<compile_context>
chip_gen: v6e
topology: v6e:2x2x1
jax: 0.10.0
libtpu: 0.0.40
codegen_flags: <defaults>
</compile_context>

<pallas_src>
import jax
import jax.numpy as jnp
from jax.experimental import pallas as pl
from jax.experimental.pallas import tpu as pltpu

C_IN = 512          # input channels (features_with_locality)
C_MID = 16          # 1x1 conv output channels
H = W = 7
HW = H * W          # 49 spatial positions
K = C_IN * HW       # 25088  effective contraction length after conv/linear fusion
HID = 512           # Linear output width
TK = 49 * 128       # 6272   K-tile (divides K exactly, lane-aligned) -> 4 K-steps


# ----------------------------------------------------------------------------
# Fused kernel: one (TB, TK) x (TK, 512) MXU matmul per grid step,
# f32 accumulator across the K axis, bias + ReLU on the last K step.
# ----------------------------------------------------------------------------
def _lpe_kernel(x_ref, w_ref, b_ref, o_ref, acc_ref):
    # x_ref  : (TB, TK)   bf16   batch tile of flattened NCHW input
    # w_ref  : (TK, 512)  bf16   K-slice of the fused conv+linear weight
    # b_ref  : (1, 512)   f32    fused bias
    # o_ref  : (TB, 512)  f32
    # acc_ref: (TB, 512)  f32    scratch accumulator (resident across K steps)
    k = pl.program_id(1)

    @pl.when(k == 0)
    def _():
        acc_ref[...] = jnp.zeros_like(acc_ref)

    acc_ref[...] += jnp.dot(x_ref[...], w_ref[...],
                            preferred_element_type=jnp.float32)

    @pl.when(k == pl.num_programs(1) - 1)
    def _():
        o_ref[...] = jnp.maximum(acc_ref[...] + b_ref[...], 0.0)   # bias + ReLU


# ----------------------------------------------------------------------------
# Forward wrapper
# ----------------------------------------------------------------------------
def locality_preserved_encoder(features, prep, *, tb=128):
    """features: (B, 512, 7, 7) float32 NCHW  ->  (B, 512) float32."""
    B = features.shape[0]
    # NCHW flatten is contiguous: x_flat[b, i*49 + p] = features[b, i, h, w].
    x = features.reshape(B, K).astype(jnp.bfloat16)

    # Batch tile: up to `tb` samples per grid step, shrunk (multiple of 8) for tiny B.
    TB = min(tb, max(8, ((B + 7) // 8) * 8))
    B_pad = ((B + TB - 1) // TB) * TB
    if B_pad != B:
        x = jnp.pad(x, ((0, B_pad - B), (0, 0)))

    grid = (B_pad // TB, K // TK)
    out = pl.pallas_call(
        _lpe_kernel,
        out_shape=jax.ShapeDtypeStruct((B_pad, HID), jnp.float32),
        grid=grid,
        in_specs=[
            pl.BlockSpec((TB, TK), lambda i, k: (i, k)),      # batch tile of x
            pl.BlockSpec((TK, HID), lambda i, k: (k, 0)),     # K-slice of Weff
            pl.BlockSpec((1, HID), lambda i, k: (0, 0)),      # bias, VMEM-resident
        ],
        out_specs=pl.BlockSpec((TB, HID), lambda i, k: (i, 0)),
        scratch_shapes=[pltpu.VMEM((TB, HID), jnp.float32)],
        compiler_params=pltpu.CompilerParams(
            dimension_semantics=("parallel", "arbitrary"),
            vmem_limit_bytes=40 * 1024 * 1024),
        cost_estimate=pl.CostEstimate(
            flops=2 * B_pad * K * HID,
            transcendentals=0,
            bytes_accessed=B_pad * K * 2 + K * HID * 2 + B_pad * HID * 4),
    )(x, prep["weff"], prep["beff"])
    return out[:B]


# ----------------------------------------------------------------------------
# Parameters (PyTorch-style uniform(-1/sqrt(fan_in), +) init) and one-time prep
# ----------------------------------------------------------------------------
def init_params(key):
    ks = jax.random.split(key, 4)

    def unif(k, shape, fan_in):
        bound = 1.0 / float(fan_in) ** 0.5
        return jax.random.uniform(k, shape, jnp.float32, -bound, bound)

    return {
        "conv_w": unif(ks[0], (C_MID, C_IN, 1, 1), C_IN),      # Conv2d(512,16,1)
        "conv_b": unif(ks[1], (C_MID,), C_IN),
        "lin_w": unif(ks[2], (HID, C_MID * HW), C_MID * HW),   # Linear(784, 512)
        "lin_b": unif(ks[3], (HID,), C_MID * HW),
    }


def prepare_params(params):
    """One-time, host-side fusion of the 1x1 conv into the Linear (hoisted out of
    the hot path).  Computed in f32, cast once to bf16."""
    wc = params["conv_w"].reshape(C_MID, C_IN)                  # (16, 512)  [c, i]
    lw3 = params["lin_w"].reshape(HID, C_MID, HW)               # (512, 16, 49) [j, c, p]
    # Weff[i*49 + p, j] = sum_c wc[c, i] * lin_w[j, c*49 + p]
    weff = (jnp.einsum("ci,jcp->ipj", wc, lw3)
            .reshape(K, HID).astype(jnp.bfloat16))              # (25088, 512)
    # beff[j] = lin_b[j] + sum_{c,p} conv_b[c] * lin_w[j, c*49 + p]   (stays f32)
    beff = (params["lin_b"]
            + jnp.einsum("c,jcp->j", params["conv_b"], lw3)).reshape(1, HID)
    return {"weff": weff, "beff": beff.astype(jnp.float32)}


# ----------------------------------------------------------------------------
# Pure-JAX reference (float32, exact PyTorch semantics) for validation
# ----------------------------------------------------------------------------
def _reference(features, params):
    B = features.shape[0]
    x = features.reshape(B, C_IN, HW)
    wc = params["conv_w"].reshape(C_MID, C_IN)
    y = jnp.einsum("oi,bis->bos", wc, x) + params["conv_b"][None, :, None]
    z = y.reshape(B, C_MID * HW)            # channel-major == torch nn.Flatten
    out = z @ params["lin_w"].T + params["lin_b"][None, :]
    return jnp.maximum(out, 0.0)


if __name__ == "__main__":
    key = jax.random.PRNGKey(0)
    k_x, k_p = jax.random.split(key)

    B = 2
    # Input to the module: locality-preserving feature maps (B, 512, 7, 7).
    features = jax.random.normal(k_x, (B, C_IN, H, W), jnp.float32)
    params = init_params(k_p)
    prep = prepare_params(params)           # once, outside the jitted forward

    fwd = jax.jit(locality_preserved_encoder)
    out = fwd(features, prep)
    jax.block_until_ready(out)

    assert out.shape == (B, HID)
    ref = _reference(features, params)
    max_err = float(jnp.max(jnp.abs(out - ref)))
    assert jnp.allclose(out, ref, atol=5e-2, rtol=5e-2), max_err
    print("KERNEL_OK")
</pallas_src>

<mosaic_0001>
module attributes {stable_mosaic.version = 11 : i64} {
  func.func @_lpe_kernel(%arg0: i32, %arg1: i32, %arg2: memref<8x6272xbf16, #tpu.memory_space<vmem>>, %arg3: memref<6272x512xbf16, #tpu.memory_space<vmem>>, %arg4: memref<1x512xf32, #tpu.memory_space<vmem>>, %arg5: memref<8x512xf32, #tpu.memory_space<vmem>>, %arg6: memref<8x512xf32, #tpu.memory_space<vmem>>) attributes {dimension_semantics = [#tpu.dimension_semantics<parallel>, #tpu.dimension_semantics<arbitrary>], iteration_bounds = array<i64: 1, 4>, scalar_prefetch = 0 : i64, scratch_operands = 1 : i64, tpu.core_type = #tpu.core_type<tc>, window_params = [{transform_indices = @transform_0, window_bounds = array<i64: 8, 6272>}, {transform_indices = @transform_1, window_bounds = array<i64: 6272, 512>}, {pipeline_mode = #tpu.pipeline_mode<synchronous>, transform_indices = @transform_2, window_bounds = array<i64: 1, 512>}, {transform_indices = @transform_3, window_bounds = array<i64: 8, 512>}]} {
    %c0_i32 = arith.constant 0 : i32
    %0 = arith.cmpi eq, %arg1, %c0_i32 : i32
    %1 = arith.extui %0 : i1 to i32
    %c0_i32_0 = arith.constant 0 : i32
    %2 = arith.cmpi ne, %1, %c0_i32_0 : i32
    scf.if %2 {
      %cst_9 = arith.constant 0.000000e+00 : f32
      %12 = vector.broadcast %cst_9 : f32 to vector<8x512xf32>
      %c0_10 = arith.constant 0 : index
      %c0_11 = arith.constant 0 : index
      %13 = vector.load %arg6[%c0_10, %c0_11] : memref<8x512xf32, #tpu.memory_space<vmem>>, vector<8x512xf32>
      tpu.vector_store %arg6[%c0_10, %c0_11], %12 {strides = array<i32>} : memref<8x512xf32, #tpu.memory_space<vmem>>, vector<8x512xf32>,
    } else {
    }
    %c0 = arith.constant 0 : index
    %c0_1 = arith.constant 0 : index
    %3 = vector.load %arg6[%c0, %c0_1] : memref<8x512xf32, #tpu.memory_space<vmem>>, vector<8x512xf32>
    %c0_2 = arith.constant 0 : index
    %c0_3 = arith.constant 0 : index
    %4 = vector.load %arg2[%c0_2, %c0_3] : memref<8x6272xbf16, #tpu.memory_space<vmem>>, vector<8x6272xbf16>
    %c0_4 = arith.constant 0 : index
    %c0_5 = arith.constant 0 : index
    %5 = vector.load %arg3[%c0_4, %c0_5] : memref<6272x512xbf16, #tpu.memory_space<vmem>>, vector<6272x512xbf16>
    %cst = arith.constant dense<0.000000e+00> : vector<8x512xf32>
    %6 = tpu.matmul %4, %5, %cst {dimension_numbers = #tpu.dot_dimension_numbers<[1], [0], [0], [1], [0, 0, 1, 1], [], []>} : vector<8x6272xbf16>, vector<6272x512xbf16>, vector<8x512xf32> -> vector<8x512xf32>
    %7 = arith.addf %3, %6 : vector<8x512xf32>
    %c0_6 = arith.constant 0 : index
    %c0_7 = arith.constant 0 : index
    %8 = vector.load %arg6[%c0_6, %c0_7] : memref<8x512xf32, #tpu.memory_space<vmem>>, vector<8x512xf32>
    tpu.vector_store %arg6[%c0_6, %c0_7], %7 {strides = array<i32>} : memref<8x512xf32, #tpu.memory_space<vmem>>, vector<8x512xf32>,
    %c3_i32 = arith.constant 3 : i32
    %9 = arith.cmpi eq, %arg1, %c3_i32 : i32
    %10 = arith.extui %9 : i1 to i32
    %c0_i32_8 = arith.constant 0 : i32
    %11 = arith.cmpi ne, %10, %c0_i32_8 : i32
    scf.if %11 {
      %c0_9 = arith.constant 0 : index
      %c0_10 = arith.constant 0 : index
      %12 = vector.load %arg6[%c0_9, %c0_10] : memref<8x512xf32, #tpu.memory_space<vmem>>, vector<8x512xf32>
      %c0_11 = arith.constant 0 : index
      %c0_12 = arith.constant 0 : index
      %13 = vector.load %arg4[%c0_11, %c0_12] : memref<1x512xf32, #tpu.memory_space<vmem>>, vector<1x512xf32>
      %14 = vector.broadcast %13 : vector<1x512xf32> to vector<8x512xf32>
      %15 = arith.addf %12, %14 : vector<8x512xf32>
      %cst_13 = arith.constant 0.000000e+00 : f32
      %16 = vector.broadcast %cst_13 : f32 to vector<8x512xf32>
      %17 = arith.maximumf %15, %16 : vector<8x512xf32>
      %c0_14 = arith.constant 0 : index
      %c0_15 = arith.constant 0 : index
      %18 = vector.load %arg5[%c0_14, %c0_15] : memref<8x512xf32, #tpu.memory_space<vmem>>, vector<8x512xf32>
      tpu.vector_store %arg5[%c0_14, %c0_15], %17 {strides = array<i32>} : memref<8x512xf32, #tpu.memory_space<vmem>>, vector<8x512xf32>,
    } else {
    }
    return
  }
  func.func @transform_0(%arg0: i32, %arg1: i32) -> (i32, i32) {
    %c0_i32 = arith.constant 0 : i32
    return %arg0, %arg1 : i32, i32
  }
  func.func @transform_1(%arg0: i32, %arg1: i32) -> (i32, i32) {
    %c0_i32 = arith.constant 0 : i32
    %c0_i32_0 = arith.constant 0 : i32
    return %arg1, %c0_i32 : i32, i32
  }
  func.func @transform_2(%arg0: i32, %arg1: i32) -> (i32, i32) {
    %c0_i32 = arith.constant 0 : i32
    %c0_i32_0 = arith.constant 0 : i32
    %c0_i32_1 = arith.constant 0 : i32
    return %c0_i32, %c0_i32_0 : i32, i32
  }
  func.func @transform_3(%arg0: i32, %arg1: i32) -> (i32, i32) {
    %c0_i32 = arith.constant 0 : i32
    %c0_i32_0 = arith.constant 0 : i32
    return %arg0, %c0_i32 : i32, i32
  }
}

</mosaic_0001>

<llo_original>
// kernel: locality_preserved_encoder.1
$region0: #{locality_preserved_encoder.1}
  #allocation0 [shape = 'u32[]', space=smem, size = 0x4, offset = 0x4, fixed_abs, tag = 'smem constant byte address 0x4 - core index']
  #allocation1 [shape = 'u32[144,128]{1,0:T(1,128)}', space=vmem, size = 0x12000, scoped, tag = 'internal scratch']
  #allocation2 [shape = 'f32[8,512]{1,0:T(8,128)}', space=vmem, size = 0x4000, scoped, tag = 'scratch operand']
  %s0 = inlined_call_operand.vmem [shape: bf16[8,25088], index: 0, kind: input, shape index: {}]
  %s1 = inlined_call_operand.hbm [shape: bf16[25088,512], index: 1, kind: input, shape index: {}]
  %s2 = inlined_call_operand.hbm [shape: f32[1,512], index: 2, kind: input, shape index: {}]
  %s3 = inlined_call_operand.vmem [shape: f32[8,512], index: 3, kind: output, shape index: {}]
  %s4 = sld [smem:[#allocation0]]
  $region61: #{locality_preserved_encoder.1} parent=0
    _
  %s6 = ssub.s32 1, %s4
  %s7 = scalar_select 0, %s6, %s4
  $region1: #{locality_preserved_encoder.1} parent=0
    #allocation3 [shape = 'u8[12845056]{0}', space=vmem, size = 0xc40000, scoped, tag = 'input window, operand 1']
    #allocation4 [shape = 's32[2]{0}', space=sflag, size = 0x8, scoped, tag = 'scoped memory for locality_preserved_encoder.1']
    #allocation5 [shape = 'u8[2048]{0}', space=vmem, size = 0x800, scoped, tag = 'input window, operand 2, single buffered']
    #allocation6 [shape = 's32[1]{0}', space=sflag, size = 0x4, scoped, tag = 'scoped memory for locality_preserved_encoder.1']
    %8 = vsyncpa [#allocation4], 0
    %s9 = scalar_lea.sflag [#allocation4], 1
    %10 = vsyncpa %s9, 0
    %11 = vsyncpa [#allocation6], 0
    loop: start=0, step=1, limit=6
    $region2: #{locality_preserved_encoder.1} parent=1 // loop_pre_header
      _
    $region3: #{locality_preserved_encoder.1} parent=1 // loop_header
      %s13 = sphi 0, %s17
      %p14 = scmp.ge.s32.totalorder %s13, 6
      %s20 = sphi 0, %s32
      %s21 = sphi 0, %s28
      %s22 = sphi 0, %s20
      %s23 = sphi 0, %s21
      %s24 = sphi 0, %s22
      %s25 = sphi 0, %s23
      %s37 = sphi 0, %s39
      %s40 = sphi 0, %s37
      %s41 = sphi 0, %s40
      %s57 = sphi 0, %s41
      %s63 = sphi 0, %s65
      %s66 = sphi 0, %s63
      %s67 = sphi 0, %s66
      %s83 = sphi 0, %s67
      %s87 = sphi 0, %s87
      %s89 = sphi 0, %s87
      %s90 = sphi 0, %s89
      %s104 = sphi 0, %s90
      %s110 = sphi 0, %s112
      %s113 = sphi 0, %s110
      %s114 = sphi 0, %s113
      %s130 = sphi 0, %s114
    $region4: #{locality_preserved_encoder.1} parent=1 // loop_header_branch
      %16 = sbr.rel (%p14) target = $region8
    $region5: #{locality_preserved_encoder.1} parent=1 // loop_body
      %s18 = ssub.s32 %s13, 1
      %s19 = ssub.s32 %s13, 2
      %s26 = sadd.s32 1, %s21
      %p27 = scmp.ge.s32.totalorder %s26, 4
      %s28 = scalar_select %p27, 0, %s26
      %s29 = sadd.s32 1, %s20
      %s30 = scalar_select %p27, %s29, %s20
      %p31 = scmp.ge.s32.totalorder %s30, 1
      %s32 = scalar_select %p31, 0, %s30
      %s33 = ssub.s32 %s20, %s32
      %s34 = ssub.s32 %s21, %s28
      %s35 = sor.u32 %s33, %s34
      %p36 = scmp.eq.s32.totalorder %s35, 0
      %s38 = sadd.s32 %s37, 1
      %s39 = scalar_select %p36, %s37, %s38
      %p42 = pneg %p36
      %p43 = scmp.eq.s32.totalorder %s13, 3
      %p44 = por %p42, %p43
      %p45 = scmp.ne.s32.totalorder %s37, %s40
      %p46 = scmp.eq.s32.totalorder %s13, 0
      %p47 = por %p45, %p46
      %p48 = scmp.ne.s32.totalorder %s37, %s40
      %p49 = scmp.eq.s32.totalorder %s18, 3
      %p50 = por %p48, %p49
      %p51 = scmp.ne.s32.totalorder %s40, %s41
      %p52 = scmp.eq.s32.totalorder %s18, 0
      %p53 = por %p51, %p52
      %p54 = scmp.ne.s32.totalorder %s40, %s41
      %p55 = scmp.eq.s32.totalorder %s19, 3
      %p56 = por %p54, %p55
      %p58 = scmp.ne.s32.totalorder %s41, %s57
      %p59 = scmp.eq.s32.totalorder %s19, 0
      %p60 = por %p58, %p59
      %s61 = ssub.s32 %s21, %s28
      %p62 = scmp.eq.s32.totalorder %s61, 0
      %s64 = sadd.s32 %s63, 1
      %s65 = scalar_select %p62, %s63, %s64
      %p68 = pneg %p62
      %p69 = scmp.eq.s32.totalorder %s13, 3
      %p70 = por %p68, %p69
      %p71 = scmp.ne.s32.totalorder %s63, %s66
      %p72 = scmp.eq.s32.totalorder %s13, 0
      %p73 = por %p71, %p72
      %p74 = scmp.ne.s32.totalorder %s63, %s66
      %p75 = scmp.eq.s32.totalorder %s18, 3
      %p76 = por %p74, %p75
      %p77 = scmp.ne.s32.totalorder %s66, %s67
      %p78 = scmp.eq.s32.totalorder %s18, 0
      %p79 = por %p77, %p78
      %p80 = scmp.ne.s32.totalorder %s66, %s67
      %p81 = scmp.eq.s32.totalorder %s19, 3
      %p82 = por %p80, %p81
      %p84 = scmp.ne.s32.totalorder %s67, %s83
      %p85 = scmp.eq.s32.totalorder %s19, 0
      %p86 = por %p84, %p85
      %s88 = sadd.s32 %s87, 1
      %p91 = scmp.eq.s32.totalorder %s13, 3
      %p92 = scmp.ne.s32.totalorder %s87, %s89
      %p93 = scmp.eq.s32.totalorder %s13, 0
      %p94 = por %p92, %p93
      %p95 = scmp.ne.s32.totalorder %s87, %s89
      %p96 = scmp.eq.s32.totalorder %s18, 3
      %p97 = por %p95, %p96
      %p98 = scmp.ne.s32.totalorder %s89, %s90
      %p99 = scmp.eq.s32.totalorder %s18, 0
      %p100 = por %p98, %p99
      %p101 = scmp.ne.s32.totalorder %s89, %s90
      %p102 = scmp.eq.s32.totalorder %s19, 3
      %p103 = por %p101, %p102
      %p105 = scmp.ne.s32.totalorder %s90, %s104
      %p106 = scmp.eq.s32.totalorder %s19, 0
      %p107 = por %p105, %p106
      %s108 = ssub.s32 %s20, %s32
      %p109 = scmp.eq.s32.totalorder %s108, 0
      %s111 = sadd.s32 %s110, 1
      %s112 = scalar_select %p109, %s110, %s111
      %p115 = pneg %p109
      %p116 = scmp.eq.s32.totalorder %s13, 3
      %p117 = por %p115, %p116
      %p118 = scmp.ne.s32.totalorder %s110, %s113
      %p119 = scmp.eq.s32.totalorder %s13, 0
      %p120 = por %p118, %p119
      %p121 = scmp.ne.s32.totalorder %s110, %s113
      %p122 = scmp.eq.s32.totalorder %s18, 3
      %p123 = por %p121, %p122
      %p124 = scmp.ne.s32.totalorder %s113, %s114
      %p125 = scmp.eq.s32.totalorder %s18, 0
      %p126 = por %p124, %p125
      %p127 = scmp.ne.s32.totalorder %s113, %s114
      %p128 = scmp.eq.s32.totalorder %s19, 3
      %p129 = por %p127, %p128
      %p131 = scmp.ne.s32.totalorder %s114, %s130
      %p132 = scmp.eq.s32.totalorder %s19, 0
      %p133 = por %p131, %p132
      %p134 = scmp.le.s32.totalorder 1, %s13
      %p135 = scmp.lt.s32.totalorder %s13, 5
      %p136 = pnand %p134, %p135
      %p137 = pneg %p136
      // Predicated region
      $region9: #{locality_preserved_encoder.1} parent=5 // pred_check
        _
      $region10: #{locality_preserved_encoder.1} parent=5 // pred_check_branch
        %139 = sbr.rel (%p136) target = $region12
      $region11: #{locality_preserved_encoder.1} parent=5 // pred_region
        %s140 = ssub.s32 %s13, 1
        // Predicated region
        $region13: #{locality_preserved_encoder.1} parent=11 // pred_check
          %p141 = pneg %p100
        $region14: #{locality_preserved_encoder.1} parent=11 // pred_check_branch
          %143 = sbr.rel (%p141) target = $region16
        $region15: #{locality_preserved_encoder.1} parent=11 // pred_region
          %s145 = ssub.s32 64, 64
          %146 = vsyncadd [#allocation6], %s145
          %s148 = sshll.u32 [#allocation5], 4
          %s149 = int_to_ptr.vmem [resolvable:$true] %s148
          %151 = dma.hbm_to_vmem [thread:$0]  %s2, 64, %s149, [#allocation6]
        $region16: #{locality_preserved_encoder.1} parent=11 // pred_fallthru
          _
      $region12: #{locality_preserved_encoder.1} parent=5 // pred_fallthru
        _
      %p152 = scmp.lt.s32.totalorder %s13, 4
      // Predicated region
      $region17: #{locality_preserved_encoder.1} parent=5 // pred_check
        %p153 = pneg %p152
      $region18: #{locality_preserved_encoder.1} parent=5 // pred_check_branch
        %155 = sbr.rel (%p153) target = $region20
      $region19: #{locality_preserved_encoder.1} parent=5 // pred_region
        // Predicated region
        $region21: #{locality_preserved_encoder.1} parent=19 // pred_check
          %p156 = pneg %p47
        $region22: #{locality_preserved_encoder.1} parent=19 // pred_check_branch
          %158 = sbr.rel (%p156) target = $region24
        $region23: #{locality_preserved_encoder.1} parent=19 // pred_region
          %s159 = smul.u32 49, %s21
          %p160 = scmp.lt.s32.totalorder %s20, 0
          %s161 = scalar_select %p160, %s20, 0
          %p162 = scmp.lt.s32.totalorder %s159, 195
          %s163 = scalar_select %p162, %s159, 195
          %s164 = smul.addr %s161, 196
          %s165 = sadd.s32 %s163, %s164
          %s166 = smul.addr %s165, 4
          %s167 = scalar_lea.vmem %s0, %s166
          %s168 = smul.u32 49, %s21
        $region24: #{locality_preserved_encoder.1} parent=19 // pred_fallthru
          _
        // Predicated region
        $region25: #{locality_preserved_encoder.1} parent=19 // pred_check
          %p169 = pneg %p73
        $region26: #{locality_preserved_encoder.1} parent=19 // pred_check_branch
          %171 = sbr.rel (%p169) target = $region28
        $region27: #{locality_preserved_encoder.1} parent=19 // pred_region
          %s172 = sand.u32 %s63, 1
          %s173 = scalar_lea.sflag [#allocation4], %s172
          %s174 = sand.u32 %s63, 1
          %s175 = smul.addr %s174, 12544
          %s176 = scalar_lea.vmem [#allocation3], %s175
          %s177 = smul.u32 784, %s21
          %s179 = ssub.s32 200704, 200704
          %180 = vsyncadd %s173, %s179
          %s181 = smul.addr %s177, 4
          %s182 = smul.addr %s181, 64
          %s183 = scalar_lea.hbm %s1, %s182
          %s184 = sshll.u32 %s176, 4
          %s185 = int_to_ptr.vmem [resolvable:$true] %s184
          %190 = dma.hbm_to_vmem [thread:$0]  %s183, 200704, %s185, %s173, 256, 256, 16
        $region28: #{locality_preserved_encoder.1} parent=19 // pred_fallthru
          _
      $region20: #{locality_preserved_encoder.1} parent=5 // pred_fallthru
        _
      %p191 = scmp.le.s32.totalorder 1, %s13
      %p192 = scmp.lt.s32.totalorder %s13, 5
      %p193 = pnand %p191, %p192
      %p194 = pneg %p193
      // Predicated region
      $region29: #{locality_preserved_encoder.1} parent=5 // pred_check
        _
      $region30: #{locality_preserved_encoder.1} parent=5 // pred_check_branch
        %196 = sbr.rel (%p193) target = $region32
      $region31: #{locality_preserved_encoder.1} parent=5 // pred_region
        %s197 = ssub.s32 %s13, 1
        %s198 = sand.u32 %s66, 1
        %s199 = scalar_lea.sflag [#allocation4], %s198
        %s200 = sand.u32 %s66, 1
        %s201 = smul.addr %s200, 12544
        %s202 = scalar_lea.vmem [#allocation3], %s201
        // Predicated region
        $region33: #{locality_preserved_encoder.1} parent=31 // pred_check
          %p203 = pneg %p79
        $region34: #{locality_preserved_encoder.1} parent=31 // pred_check_branch
          %205 = sbr.rel (%p203) target = $region36
        $region35: #{locality_preserved_encoder.1} parent=31 // pred_region
          %206 = dma.done %s199, 200704
        $region36: #{locality_preserved_encoder.1} parent=31 // pred_fallthru
          _
        // Predicated region
        $region37: #{locality_preserved_encoder.1} parent=31 // pred_check
          %p207 = pneg %p100
        $region38: #{locality_preserved_encoder.1} parent=31 // pred_check_branch
          %209 = sbr.rel (%p207) target = $region40
        $region39: #{locality_preserved_encoder.1} parent=31 // pred_region
          %210 = dma.done [#allocation6], 64
        $region40: #{locality_preserved_encoder.1} parent=31 // pred_fallthru
          _
        %s211 = smul.u32 49, %s23
        %p212 = scmp.lt.s32.totalorder %s22, 0
        %s213 = scalar_select %p212, %s22, 0
        %p214 = scmp.lt.s32.totalorder %s211, 195
        %s215 = scalar_select %p214, %s211, 195
        %s216 = smul.addr %s213, 196
        %s217 = sadd.s32 %s215, %s216
        %s218 = smul.addr %s217, 4
        %s219 = scalar_lea.vmem %s0, %s218
        %p220 = pneg %p53
        %p221 = pneg %p50
        %s222 = sand.u32 %s66, 1
        %s223 = scalar_lea.sflag [#allocation4], %s222
        %s224 = sand.u32 %s66, 1
        %s225 = smul.addr %s224, 12544
        %s226 = scalar_lea.vmem [#allocation3], %s225
        %p227 = pneg %p79
        %p228 = pneg %p76
        %p229 = pneg %p100
        %p230 = pneg %p97
        %p231 = pneg %p126
        %p232 = pneg %p123
        %p233 = scmp.lt.s32.totalorder %s22, 0
        %s234 = scalar_select %p233, %s22, 0
        %s235 = smul.addr %s234, 4
        %s236 = smul.addr %s235, 8
        %s237 = scalar_lea.vmem %s3, %s236
        %s238 = smul.u32 49, %s23
        %p239 = scmp.lt.s32.totalorder %s22, 0
        %s240 = scalar_select %p239, %s22, 0
        %p241 = scmp.lt.s32.totalorder %s238, 195
        %s242 = scalar_select %p241, %s238, 195
        %s243 = smul.addr %s240, 196
        %s244 = sadd.s32 %s242, %s243
        %s245 = smul.addr %s244, 4
        %s246 = scalar_lea.vmem %s0, %s245
        %s247 = smul.u32 49, %s23
        %s248 = smul.u32 784, %s23
        %p249 = scmp.lt.s32.totalorder %s22, 0
        %s250 = scalar_select %p249, %s22, 0
        %s251 = smul.addr %s250, 4
        %s252 = smul.addr %s251, 8
        %s253 = scalar_lea.vmem %s3, %s252
        %p255 = scmp.eq.s32.totalorder %s23, 0
        // Predicated region
        $region41: #{locality_preserved_encoder.1} parent=31 // pred_check
          %p256 = pneg %p255
        $region42: #{locality_preserved_encoder.1} parent=31 // pred_check_branch
          %258 = sbr.rel (%p256) target = $region44
        $region43: #{locality_preserved_encoder.1} parent=31 // pred_region
          %259 = vst [vmem:[#allocation2] sm:$0xff] 0.0
          %260 = vst [vmem:[#allocation2 + $0x8] sm:$0xff] 0.0
          %261 = vst [vmem:[#allocation2 + $0x10] sm:$0xff] 0.0
          %262 = vst [vmem:[#allocation2 + $0x18] sm:$0xff] 0.0
        $region44: #{locality_preserved_encoder.1} parent=31 // pred_fallthru
          _
        %v263 = vld [vmem:[#allocation2] sm:$0xff]
        %v264 = vld [vmem:[#allocation2 + $0x8] sm:$0xff]
        %v265 = vld [vmem:[#allocation2 + $0x10] sm:$0xff]
        %v266 = vld [vmem:[#allocation2 + $0x18] sm:$0xff]
        %v267 = vld [vmem:[%s246] sm:$0xff]
        %v268 = vld [vmem:[%s246 + $0x8] sm:$0xff]
        %v269 = vld [vmem:[%s246 + $0x10] sm:$0xff]
        %v270 = vld [vmem:[%s246 + $0x18] sm:$0xff]
        %v271 = vld [vmem:[%s246 + $0x20] sm:$0xff]
        %v272 = vld [vmem:[%s246 + $0x28] sm:$0xff]
        %v273 = vld [vmem:[%s246 + $0x30] sm:$0xff]
        %v274 = vld [vmem:[%s246 + $0x38] sm:$0xff]
        %v275 = vld [vmem:[%s246 + $0x40] sm:$0xff]
        %v276 = vld [vmem:[%s246 + $0x48] sm:$0xff]
        %v277 = vld [vmem:[%s246 + $0x50] sm:$0xff]
        %v278 = vld [vmem:[%s246 + $0x58] sm:$0xff]
        %v279 = vld [vmem:[%s246 + $0x60] sm:$0xff]
        %v280 = vld [vmem:[%s246 + $0x68] sm:$0xff]
        %v281 = vld [vmem:[%s246 + $0x70] sm:$0xff]
        %v282 = vld [vmem:[%s246 + $0x78] sm:$0xff]
        %v283 = vld [vmem:[%s246 + $0x80] sm:$0xff]
        %v284 = vld [vmem:[%s246 + $0x88] sm:$0xff]
        %v285 = vld [vmem:[%s246 + $0x90] sm:$0xff]
        %v286 = vld [vmem:[%s246 + $0x98] sm:$0xff]
        %v287 = vld [vmem:[%s246 + $0xa0] sm:$0xff]
        %v288 = vld [vmem:[%s246 + $0xa8] sm:$0xff]
        %v289 = vld [vmem:[%s246 + $0xb0] sm:$0xff]
        %v290 = vld [vmem:[%s246 + $0xb8] sm:$0xff]
        %v291 = vld [vmem:[%s246 + $0xc0] sm:$0xf]
        %v292 = vld [vmem:[%s202] sm:$0xff]
        %v293 = vld [vmem:[%s202 + $0x8] sm:$0xff]
        %v294 = vld [vmem:[%s202 + $0x10] sm:$0xff]
        %v295 = vld [vmem:[%s202 + $0x18] sm:$0xff]
        %v296 = vld [vmem:[%s202 + $0x20] sm:$0xff]
        %v297 = vld [vmem:[%s202 + $0x28] sm:$0xff]
        %v298 = vld [vmem:[%s202 + $0x30] sm:$0xff]
        %v299 = vld [vmem:[%s202 + $0x38] sm:$0xff]
        %v300 = vld [vmem:[%s202 + $0x40] sm:$0xff]
        %v301 = vld [vmem:[%s202 + $0x48] sm:$0xff]
        %v302 = vld [vmem:[%s202 + $0x50] sm:$0xff]
        %v303 = vld [vmem:[%s202 + $0x58] sm:$0xff]
        %v304 = vld [vmem:[%s202 + $0x60] sm:$0xff]
        %v305 = vld [vmem:[%s202 + $0x68] sm:$0xff]
        %v306 = vld [vmem:[%s202 + $0x70] sm:$0xff]
        %v307 = vld [vmem:[%s202 + $0x78] sm:$0xff]
        %v308 = vld [vmem:[%s202 + $0x80] sm:$0xff]
        %v309 = vld [vmem:[%s202 + $0x88] sm:$0xff]
        %v310 = vld [vmem:[%s202 + $0x90] sm:$0xff]
        %v311 = vld [vmem:[%s202 + $0x98] sm:$0xff]
        %v312 = vld [vmem:[%s202 + $0xa0] sm:$0xff]
        %v313 = vld [vmem:[%s202 + $0xa8] sm:$0xff]
        %v314 = vld [vmem:[%s202 + $0xb0] sm:$0xff]
        %v315 = vld [vmem:[%s202 + $0xb8] sm:$0xff]
        %v316 = vld [vmem:[%s202 + $0xc0] sm:$0xff]
        %v317 = vld [vmem:[%s202 + $0xc8] sm:$0xff]
        %v318 = vld [vmem:[%s202 + $0xd0] sm:$0xff]
        %v319 = vld [vmem:[%s202 + $0xd8] sm:$0xff]
        %v320 = vld [vmem:[%s202 + $0xe0] sm:$0xff]
        %v321 = vld [vmem:[%s202 + $0xe8] sm:$0xff]
        %v322 = vld [vmem:[%s202 + $0xf0] sm:$0xff]
        %v323 = vld [vmem:[%s202 + $0xf8] sm:$0xff]
        %v324 = vld [vmem:[%s202 + $0x100] sm:$0xff]
        %v325 = vld [vmem:[%s202 + $0x108] sm:$0xff]
        %v326 = vld [vmem:[%s202 + $0x110] sm:$0xff]
        %v327 = vld [vmem:[%s202 + $0x118] sm:$0xff]
        %v328 = vld [vmem:[%s202 + $0x120] sm:$0xff]
        %v329 = vld [vmem:[%s202 + $0x128] sm:$0xff]
        %v330 = vld [vmem:[%s202 + $0x130] sm:$0xff]
        %v331 = vld [vmem:[%s202 + $0x138] sm:$0xff]
        %v332 = vld [vmem:[%s202 + $0x140] sm:$0xff]
        %v333 = vld [vmem:[%s202 + $0x148] sm:$0xff]
        %v334 = vld [vmem:[%s202 + $0x150] sm:$0xff]
        %v335 = vld [vmem:[%s202 + $0x158] sm:$0xff]
        %v336 = vld [vmem:[%s202 + $0x160] sm:$0xff]
        %v337 = vld [vmem:[%s202 + $0x168] sm:$0xff]
        %v338 = vld [vmem:[%s202 + $0x170] sm:$0xff]
        %v339 = vld [vmem:[%s202 + $0x178] sm:$0xff]
        %v340 = vld [vmem:[%s202 + $0x180] sm:$0xff]
        %v341 = vld [vmem:[%s202 + $0x188] sm:$0xff]
        %v342 = vld [vmem:[%s202 + $0x190] sm:$0xff]
        %v343 = vld [vmem:[%s202 + $0x198] sm:$0xff]
        %v344 = vld [vmem:[%s202 + $0x1a0] sm:$0xff]
        %v345 = vld [vmem:[%s202 + $0x1a8] sm:$0xff]
        %v346 = vld [vmem:[%s202 + $0x1b0] sm:$0xff]
        %v347 = vld [vmem:[%s202 + $0x1b8] sm:$0xff]
        %v348 = vld [vmem:[%s202 + $0x1c0] sm:$0xff]
        %v349 = vld [vmem:[%s202 + $0x1c8] sm:$0xff]
        %v350 = vld [vmem:[%s202 + $0x1d0] sm:$0xff]
        %v351 = vld [vmem:[%s202 + $0x1d8] sm:$0xff]
        %v352 = vld [vmem:[%s202 + $0x1e0] sm:$0xff]
        %v353 = vld [vmem:[%s202 + $0x1e8] sm:$0xff]
        %v354 = vld [vmem:[%s202 + $0x1f0] sm:$0xff]
        %v355 = vld [vmem:[%s202 + $0x1f8] sm:$0xff]
        %v356 = vld [vmem:[%s202 + $0x200] sm:$0xff]
        %v357 = vld [vmem:[%s202 + $0x208] sm:$0xff]
        %v358 = vld [vmem:[%s202 + $0x210] sm:$0xff]
        %v359 = vld [vmem:[%s202 + $0x218] sm:$0xff]
        %v360 = vld [vmem:[%s202 + $0x220] sm:$0xff]
        %v361 = vld [vmem:[%s202 + $0x228] sm:$0xff]
        %v362 = vld [vmem:[%s202 + $0x230] sm:$0xff]
        %v363 = vld [vmem:[%s202 + $0x238] sm:$0xff]
        %v364 = vld [vmem:[%s202 + $0x240] sm:$0xff]
        %v365 = vld [vmem:[%s202 + $0x248] sm:$0xff]
        %v366 = vld [vmem:[%s202 + $0x250] sm:$0xff]
        %v367 = vld [vmem:[%s202 + $0x258] sm:$0xff]
        %v368 = vld [vmem:[%s202 + $0x260] sm:$0xff]
        %v369 = vld [vmem:[%s202 + $0x268] sm:$0xff]
        %v370 = vld [vmem:[%s202 + $0x270] sm:$0xff]
        %v371 = vld [vmem:[%s202 + $0x278] sm:$0xff]
        %v372 = vld [vmem:[%s202 + $0x280] sm:$0xff]
        %v373 = vld [vmem:[%s202 + $0x288] sm:$0xff]
        %v374 = vld [vmem:[%s202 + $0x290] sm:$0xff]
        %v375 = vld [vmem:[%s202 + $0x298] sm:$0xff]
        %v376 = vld [vmem:[%s202 + $0x2a0] sm:$0xff]
        %v377 = vld [vmem:[%s202 + $0x2a8] sm:$0xff]
        %v378 = vld [vmem:[%s202 + $0x2b0] sm:$0xff]
        %v379 = vld [vmem:[%s202 + $0x2b8] sm:$0xff]
        %v380 = vld [vmem:[%s202 + $0x2c0] sm:$0xff]
        %v381 = vld [vmem:[%s202 + $0x2c8] sm:$0xff]
        %v382 = vld [vmem:[%s202 + $0x2d0] sm:$0xff]
        %v383 = vld [vmem:[%s202 + $0x2d8] sm:$0xff]
        %v384 = vld [vmem:[%s202 + $0x2e0] sm:$0xff]
        %v385 = vld [vmem:[%s202 + $0x2e8] sm:$0xff]
        %v386 = vld [vmem:[%s202 + $0x2f0] sm:$0xff]
        %v387 = vld [vmem:[%s202 + $0x2f8] sm:$0xff]
        %v388 = vld [vmem:[%s202 + $0x300] sm:$0xff]
        %v389 = vld [vmem:[%s202 + $0x308] sm:$0xff]
        %v390 = vld [vmem:[%s202 + $0x310] sm:$0xff]
        %v391 = vld [vmem:[%s202 + $0x318] sm:$0xff]
        %v392 = vld [vmem:[%s202 + $0x320] sm:$0xff]
        %v393 = vld [vmem:[%s202 + $0x328] sm:$0xff]
        %v394 = vld [vmem:[%s202 + $0x330] sm:$0xff]
        %v395 = vld [vmem:[%s202 + $0x338] sm:$0xff]
        %v396 = vld [vmem:[%s202 + $0x340] sm:$0xff]
        %v397 = vld [vmem:[%s202 + $0x348] sm:$0xff]
        %v398 = vld [vmem:[%s202 + $0x350] sm:$0xff]
        %v399 = vld [vmem:[%s202 + $0x358] sm:$0xff]
        %v400 = vld [vmem:[%s202 + $0x360] sm:$0xff]
        %v401 = vld [vmem:[%s202 + $0x368] sm:$0xff]
        %v402 = vld [vmem:[%s202 + $0x370] sm:$0xff]
        %v403 = vld [vmem:[%s202 + $0x378] sm:$0xff]
        %v404 = vld [vmem:[%s202 + $0x380] sm:$0xff]
        %v405 = vld [vmem:[%s202 + $0x388] sm:$0xff]
        %v406 = vld [vmem:[%s202 + $0x390] sm:$0xff]
        %v407 = vld [vmem:[%s202 + $0x398] sm:$0xff]
        %v408 = vld [vmem:[%s202 + $0x3a0] sm:$0xff]
        %v409 = vld [vmem:[%s202 + $0x3a8] sm:$0xff]
        %v410 = vld [vmem:[%s202 + $0x3b0] sm:$0xff]
        %v411 = vld [vmem:[%s202 + $0x3b8] sm:$0xff]
        %v412 = vld [vmem:[%s202 + $0x3c0] sm:$0xff]
        %v413 = vld [vmem:[%s202 + $0x3c8] sm:$0xff]
        %v414 = vld [vmem:[%s202 + $0x3d0] sm:$0xff]
        %v415 = vld [vmem:[%s202 + $0x3d8] sm:$0xff]
        %v416 = vld [vmem:[%s202 + $0x3e0] sm:$0xff]
        %v417 = vld [vmem:[%s202 + $0x3e8] sm:$0xff]
        %v418 = vld [vmem:[%s202 + $0x3f0] sm:$0xff]
        %v419 = vld [vmem:[%s202 + $0x3f8] sm:$0xff]
        %v420 = vld [vmem:[%s202 + $0x400] sm:$0xff]
        %v421 = vld [vmem:[%s202 + $0x408] sm:$0xff]
        %v422 = vld [vmem:[%s202 + $0x410] sm:$0xff]
        %v423 = vld [vmem:[%s202 + $0x418] sm:$0xff]
        %v424 = vld [vmem:[%s202 + $0x420] sm:$0xff]
        %v425 = vld [vmem:[%s202 + $0x428] sm:$0xff]
        %v426 = vld [vmem:[%s202 + $0x430] sm:$0xff]
        %v427 = vld [vmem:[%s202 + $0x438] sm:$0xff]
        %v428 = vld [vmem:[%s202 + $0x440] sm:$0xff]
        %v429 = vld [vmem:[%s202 + $0x448] sm:$0xff]
        %v430 = vld [vmem:[%s202 + $0x450] sm:$0xff]
        %v431 = vld [vmem:[%s202 + $0x458] sm:$0xff]
        %v432 = vld [vmem:[%s202 + $0x460] sm:$0xff]
        %v433 = vld [vmem:[%s202 + $0x468] sm:$0xff]
        %v434 = vld [vmem:[%s202 + $0x470] sm:$0xff]
        %v435 = vld [vmem:[%s202 + $0x478] sm:$0xff]
        %v436 = vld [vmem:[%s202 + $0x480] sm:$0xff]
        %v437 = vld [vmem:[%s202 + $0x488] sm:$0xff]
        %v438 = vld [vmem:[%s202 + $0x490] sm:$0xff]
        %v439 = vld [vmem:[%s202 + $0x498] sm:$0xff]
        %v440 = vld [vmem:[%s202 + $0x4a0] sm:$0xff]
        %v441 = vld [vmem:[%s202 + $0x4a8] sm:$0xff]
        %v442 = vld [vmem:[%s202 + $0x4b0] sm:$0xff]
        %v443 = vld [vmem:[%s202 + $0x4b8] sm:$0xff]
        %v444 = vld [vmem:[%s202 + $0x4c0] sm:$0xff]
        %v445 = vld [vmem:[%s202 + $0x4c8] sm:$0xff]
        %v446 = vld [vmem:[%s202 + $0x4d0] sm:$0xff]
        %v447 = vld [vmem:[%s202 + $0x4d8] sm:$0xff]
        %v448 = vld [vmem:[%s202 + $0x4e0] sm:$0xff]
        %v449 = vld [vmem:[%s202 + $0x4e8] sm:$0xff]
        %v450 = vld [vmem:[%s202 + $0x4f0] sm:$0xff]
        %v451 = vld [vmem:[%s202 + $0x4f8] sm:$0xff]
        %v452 = vld [vmem:[%s202 + $0x500] sm:$0xff]
        %v453 = vld [vmem:[%s202 + $0x508] sm:$0xff]
        %v454 = vld [vmem:[%s202 + $0x510] sm:$0xff]
        %v455 = vld [vmem:[%s202 + $0x518] sm:$0xff]
        %v456 = vld [vmem:[%s202 + $0x520] sm:$0xff]
        %v457 = vld [vmem:[%s202 + $0x528] sm:$0xff]
        %v458 = vld [vmem:[%s202 + $0x530] sm:$0xff]
        %v459 = vld [vmem:[%s202 + $0x538] sm:$0xff]
        %v460 = vld [vmem:[%s202 + $0x540] sm:$0xff]
        %v461 = vld [vmem:[%s202 + $0x548] sm:$0xff]
        %v462 = vld [vmem:[%s202 + $0x550] sm:$0xff]
        %v463 = vld [vmem:[%s202 + $0x558] sm:$0xff]
        %v464 = vld [vmem:[%s202 + $0x560] sm:$0xff]
        %v465 = vld [vmem:[%s202 + $0x568] sm:$0xff]
        %v466 = vld [vmem:[%s202 + $0x570] sm:$0xff]
        %v467 = vld [vmem:[%s202 + $0x578] sm:$0xff]
        %v468 = vld [vmem:[%s202 + $0x580] sm:$0xff]
        %v469 = vld [vmem:[%s202 + $0x588] sm:$0xff]
        %v470 = vld [vmem:[%s202 + $0x590] sm:$0xff]
        %v471 = vld [vmem:[%s202 + $0x598] sm:$0xff]
        %v472 = vld [vmem:[%s202 + $0x5a0] sm:$0xff]
        %v473 = vld [vmem:[%s202 + $0x5a8] sm:$0xff]
        %v474 = vld [vmem:[%s202 + $0x5b0] sm:$0xff]
        %v475 = vld [vmem:[%s202 + $0x5b8] sm:$0xff]
        %v476 = vld [vmem:[%s202 + $0x5c0] sm:$0xff]
        %v477 = vld [vmem:[%s202 + $0x5c8] sm:$0xff]
        %v478 = vld [vmem:[%s202 + $0x5d0] sm:$0xff]
        %v479 = vld [vmem:[%s202 + $0x5d8] sm:$0xff]
        %v480 = vld [vmem:[%s202 + $0x5e0] sm:$0xff]
        %v481 = vld [vmem:[%s202 + $0x5e8] sm:$0xff]
        %v482 = vld [vmem:[%s202 + $0x5f0] sm:$0xff]
        %v483 = vld [vmem:[%s202 + $0x5f8] sm:$0xff]
        %v484 = vld [vmem:[%s202 + $0x600] sm:$0xff]
        %v485 = vld [vmem:[%s202 + $0x608] sm:$0xff]
        %v486 = vld [vmem:[%s202 + $0x610] sm:$0xff]
        %v487 = vld [vmem:[%s202 + $0x618] sm:$0xff]
        %v488 = vld [vmem:[%s202 + $0x620] sm:$0xff]
        %v489 = vld [vmem:[%s202 + $0x628] sm:$0xff]
        %v490 = vld [vmem:[%s202 + $0x630] sm:$0xff]
        %v491 = vld [vmem:[%s202 + $0x638] sm:$0xff]
        %v492 = vld [vmem:[%s202 + $0x640] sm:$0xff]
        %v493 = vld [vmem:[%s202 + $0x648] sm:$0xff]
        %v494 = vld [vmem:[%s202 + $0x650] sm:$0xff]
        %v495 = vld [vmem:[%s202 + $0x658] sm:$0xff]
        %v496 = vld [vmem:[%s202 + $0x660] sm:$0xff]
        %v497 = vld [vmem:[%s202 + $0x668] sm:$0xff]
        %v498 = vld [vmem:[%s202 + $0x670] sm:$0xff]
        %v499 = vld [vmem:[%s202 + $0x678] sm:$0xff]
        %v500 = vld [vmem:[%s202 + $0x680] sm:$0xff]
        %v501 = vld [vmem:[%s202 + $0x688] sm:$0xff]
        %v502 = vld [vmem:[%s202 + $0x690] sm:$0xff]
        %v503 = vld [vmem:[%s202 + $0x698] sm:$0xff]
        %v504 = vld [vmem:[%s202 + $0x6a0] sm:$0xff]
        %v505 = vld [vmem:[%s202 + $0x6a8] sm:$0xff]
        %v506 = vld [vmem:[%s202 + $0x6b0] sm:$0xff]
        %v507 = vld [vmem:[%s202 + $0x6b8] sm:$0xff]
        %v508 = vld [vmem:[%s202 + $0x6c0] sm:$0xff]
        %v509 = vld [vmem:[%s202 + $0x6c8] sm:$0xff]
        %v510 = vld [vmem:[%s202 + $0x6d0] sm:$0xff]
        %v511 = vld [vmem:[%s202 + $0x6d8] sm:$0xff]
        %v512 = vld [vmem:[%s202 + $0x6e0] sm:$0xff]
        %v513 = vld [vmem:[%s202 + $0x6e8] sm:$0xff]
        %v514 = vld [vmem:[%s202 + $0x6f0] sm:$0xff]
        %v515 = vld [vmem:[%s202 + $0x6f8] sm:$0xff]
        %v516 = vld [vmem:[%s202 + $0x700] sm:$0xff]
        %v517 = vld [vmem:[%s202 + $0x708] sm:$0xff]
        %v518 = vld [vmem:[%s202 + $0x710] sm:$0xff]
        %v519 = vld [vmem:[%s202 + $0x718] sm:$0xff]
        %v520 = vld [vmem:[%s202 + $0x720] sm:$0xff]
        %v521 = vld [vmem:[%s202 + $0x728] sm:$0xff]
        %v522 = vld [vmem:[%s202 + $0x730] sm:$0xff]
        %v523 = vld [vmem:[%s202 + $0x738] sm:$0xff]
        %v524 = vld [vmem:[%s202 + $0x740] sm:$0xff]
        %v525 = vld [vmem:[%s202 + $0x748] sm:$0xff]
        %v526 = vld [vmem:[%s202 + $0x750] sm:$0xff]
        %v527 = vld [vmem:[%s202 + $0x758] sm:$0xff]
        %v528 = vld [vmem:[%s202 + $0x760] sm:$0xff]
        %v529 = vld [vmem:[%s202 + $0x768] sm:$0xff]
        %v530 = vld [vmem:[%s202 + $0x770] sm:$0xff]
        %v531 = vld [vmem:[%s202 + $0x778] sm:$0xff]
        %v532 = vld [vmem:[%s202 + $0x780] sm:$0xff]
        %v533 = vld [vmem:[%s202 + $0x788] sm:$0xff]
        %v534 = vld [vmem:[%s202 + $0x790] sm:$0xff]
        %v535 = vld [vmem:[%s202 + $0x798] sm:$0xff]
        %v536 = vld [vmem:[%s202 + $0x7a0] sm:$0xff]
        %v537 = vld [vmem:[%s202 + $0x7a8] sm:$0xff]
        %v538 = vld [vmem:[%s202 + $0x7b0] sm:$0xff]
        %v539 = vld [vmem:[%s202 + $0x7b8] sm:$0xff]
        %v540 = vld [vmem:[%s202 + $0x7c0] sm:$0xff]
        %v541 = vld [vmem:[%s202 + $0x7c8] sm:$0xff]
        %v542 = vld [vmem:[%s202 + $0x7d0] sm:$0xff]
        %v543 = vld [vmem:[%s202 + $0x7d8] sm:$0xff]
        %v544 = vld [vmem:[%s202 + $0x7e0] sm:$0xff]
        %v545 = vld [vmem:[%s202 + $0x7e8] sm:$0xff]
        %v546 = vld [vmem:[%s202 + $0x7f0] sm:$0xff]
        %v547 = vld [vmem:[%s202 + $0x7f8] sm:$0xff]
        %v548 = vld [vmem:[%s202 + $0x800] sm:$0xff]
        %v549 = vld [vmem:[%s202 + $0x808] sm:$0xff]
        %v550 = vld [vmem:[%s202 + $0x810] sm:$0xff]
        %v551 = vld [vmem:[%s202 + $0x818] sm:$0xff]
        %v552 = vld [vmem:[%s202 + $0x820] sm:$0xff]
        %v553 = vld [vmem:[%s202 + $0x828] sm:$0xff]
        %v554 = vld [vmem:[%s202 + $0x830] sm:$0xff]
        %v555 = vld [vmem:[%s202 + $0x838] sm:$0xff]
        %v556 = vld [vmem:[%s202 + $0x840] sm:$0xff]
        %v557 = vld [vmem:[%s202 + $0x848] sm:$0xff]
        %v558 = vld [vmem:[%s202 + $0x850] sm:$0xff]
        %v559 = vld [vmem:[%s202 + $0x858] sm:$0xff]
        %v560 = vld [vmem:[%s202 + $0x860] sm:$0xff]
        %v561 = vld [vmem:[%s202 + $0x868] sm:$0xff]
        %v562 = vld [vmem:[%s202 + $0x870] sm:$0xff]
        %v563 = vld [vmem:[%s202 + $0x878] sm:$0xff]
        %v564 = vld [vmem:[%s202 + $0x880] sm:$0xff]
        %v565 = vld [vmem:[%s202 + $0x888] sm:$0xff]
        %v566 = vld [vmem:[%s202 + $0x890] sm:$0xff]
        %v567 = vld [vmem:[%s202 + $0x898] sm:$0xff]
        %v568 = vld [vmem:[%s202 + $0x8a0] sm:$0xff]
        %v569 = vld [vmem:[%s202 + $0x8a8] sm:$0xff]
        %v570 = vld [vmem:[%s202 + $0x8b0] sm:$0xff]
        %v571 = vld [vmem:[%s202 + $0x8b8] sm:$0xff]
        %v572 = vld [vmem:[%s202 + $0x8c0] sm:$0xff]
        %v573 = vld [vmem:[%s202 + $0x8c8] sm:$0xff]
        %v574 = vld [vmem:[%s202 + $0x8d0] sm:$0xff]
        %v575 = vld [vmem:[%s202 + $0x8d8] sm:$0xff]
        %v576 = vld [vmem:[%s202 + $0x8e0] sm:$0xff]
        %v577 = vld [vmem:[%s202 + $0x8e8] sm:$0xff]
        %v578 = vld [vmem:[%s202 + $0x8f0] sm:$0xff]
        %v579 = vld [vmem:[%s202 + $0x8f8] sm:$0xff]
        %v580 = vld [vmem:[%s202 + $0x900] sm:$0xff]
        %v581 = vld [vmem:[%s202 + $0x908] sm:$0xff]
        %v582 = vld [vmem:[%s202 + $0x910] sm:$0xff]
        %v583 = vld [vmem:[%s202 + $0x918] sm:$0xff]
        %v584 = vld [vmem:[%s202 + $0x920] sm:$0xff]
        %v585 = vld [vmem:[%s202 + $0x928] sm:$0xff]
        %v586 = vld [vmem:[%s202 + $0x930] sm:$0xff]
        %v587 = vld [vmem:[%s202 + $0x938] sm:$0xff]
        %v588 = vld [vmem:[%s202 + $0x940] sm:$0xff]
        %v589 = vld [vmem:[%s202 + $0x948] sm:$0xff]
        %v590 = vld [vmem:[%s202 + $0x950] sm:$0xff]
        %v591 = vld [vmem:[%s202 + $0x958] sm:$0xff]
        %v592 = vld [vmem:[%s202 + $0x960] sm:$0xff]
        %v593 = vld [vmem:[%s202 + $0x968] sm:$0xff]
        %v594 = vld [vmem:[%s202 + $0x970] sm:$0xff]
        %v595 = vld [vmem:[%s202 + $0x978] sm:$0xff]
        %v596 = vld [vmem:[%s202 + $0x980] sm:$0xff]
        %v597 = vld [vmem:[%s202 + $0x988] sm:$0xff]
        %v598 = vld [vmem:[%s202 + $0x990] sm:$0xff]
        %v599 = vld [vmem:[%s202 + $0x998] sm:$0xff]
        %v600 = vld [vmem:[%s202 + $0x9a0] sm:$0xff]
        %v601 = vld [vmem:[%s202 + $0x9a8] sm:$0xff]
        %v602 = vld [vmem:[%s202 + $0x9b0] sm:$0xff]
        %v603 = vld [vmem:[%s202 + $0x9b8] sm:$0xff]
        %v604 = vld [vmem:[%s202 + $0x9c0] sm:$0xff]
        %v605 = vld [vmem:[%s202 + $0x9c8] sm:$0xff]
        %v606 = vld [vmem:[%s202 + $0x9d0] sm:$0xff]
        %v607 = vld [vmem:[%s202 + $0x9d8] sm:$0xff]
        %v608 = vld [vmem:[%s202 + $0x9e0] sm:$0xff]
        %v609 = vld [vmem:[%s202 + $0x9e8] sm:$0xff]
        %v610 = vld [vmem:[%s202 + $0x9f0] sm:$0xff]
        %v611 = vld [vmem:[%s202 + $0x9f8] sm:$0xff]
        %v612 = vld [vmem:[%s202 + $0xa00] sm:$0xff]
        %v613 = vld [vmem:[%s202 + $0xa08] sm:$0xff]
        %v614 = vld [vmem:[%s202 + $0xa10] sm:$0xff]
        %v615 = vld [vmem:[%s202 + $0xa18] sm:$0xff]
        %v616 = vld [vmem:[%s202 + $0xa20] sm:$0xff]
        %v617 = vld [vmem:[%s202 + $0xa28] sm:$0xff]
        %v618 = vld [vmem:[%s202 + $0xa30] sm:$0xff]
        %v619 = vld [vmem:[%s202 + $0xa38] sm:$0xff]
        %v620 = vld [vmem:[%s202 + $0xa40] sm:$0xff]
        %v621 = vld [vmem:[%s202 + $0xa48] sm:$0xff]
        %v622 = vld [vmem:[%s202 + $0xa50] sm:$0xff]
        %v623 = vld [vmem:[%s202 + $0xa58] sm:$0xff]
        %v624 = vld [vmem:[%s202 + $0xa60] sm:$0xff]
        %v625 = vld [vmem:[%s202 + $0xa68] sm:$0xff]
        %v626 = vld [vmem:[%s202 + $0xa70] sm:$0xff]
        %v627 = vld [vmem:[%s202 + $0xa78] sm:$0xff]
        %v628 = vld [vmem:[%s202 + $0xa80] sm:$0xff]
        %v629 = vld [vmem:[%s202 + $0xa88] sm:$0xff]
        %v630 = vld [vmem:[%s202 + $0xa90] sm:$0xff]
        %v631 = vld [vmem:[%s202 + $0xa98] sm:$0xff]
        %v632 = vld [vmem:[%s202 + $0xaa0] sm:$0xff]
        %v633 = vld [vmem:[%s202 + $0xaa8] sm:$0xff]
        %v634 = vld [vmem:[%s202 + $0xab0] sm:$0xff]
        %v635 = vld [vmem:[%s202 + $0xab8] sm:$0xff]
        %v636 = vld [vmem:[%s202 + $0xac0] sm:$0xff]
        %v637 = vld [vmem:[%s202 + $0xac8] sm:$0xff]
        %v638 = vld [vmem:[%s202 + $0xad0] sm:$0xff]
        %v639 = vld [vmem:[%s202 + $0xad8] sm:$0xff]
        %v640 = vld [vmem:[%s202 + $0xae0] sm:$0xff]
        %v641 = vld [vmem:[%s202 + $0xae8] sm:$0xff]
        %v642 = vld [vmem:[%s202 + $0xaf0] sm:$0xff]
        %v643 = vld [vmem:[%s202 + $0xaf8] sm:$0xff]
        %v644 = vld [vmem:[%s202 + $0xb00] sm:$0xff]
        %v645 = vld [vmem:[%s202 + $0xb08] sm:$0xff]
        %v646 = vld [vmem:[%s202 + $0xb10] sm:$0xff]
        %v647 = vld [vmem:[%s202 + $0xb18] sm:$0xff]
        %v648 = vld [vmem:[%s202 + $0xb20] sm:$0xff]
        %v649 = vld [vmem:[%s202 + $0xb28] sm:$0xff]
        %v650 = vld [vmem:[%s202 + $0xb30] sm:$0xff]
        %v651 = vld [vmem:[%s202 + $0xb38] sm:$0xff]
        %v652 = vld [vmem:[%s202 + $0xb40] sm:$0xff]
        %v653 = vld [vmem:[%s202 + $0xb48] sm:$0xff]
        %v654 = vld [vmem:[%s202 + $0xb50] sm:$0xff]
        %v655 = vld [vmem:[%s202 + $0xb58] sm:$0xff]
        %v656 = vld [vmem:[%s202 + $0xb60] sm:$0xff]
        %v657 = vld [vmem:[%s202 + $0xb68] sm:$0xff]
        %v658 = vld [vmem:[%s202 + $0xb70] sm:$0xff]
        %v659 = vld [vmem:[%s202 + $0xb78] sm:$0xff]
        %v660 = vld [vmem:[%s202 + $0xb80] sm:$0xff]
        %v661 = vld [vmem:[%s202 + $0xb88] sm:$0xff]
        %v662 = vld [vmem:[%s202 + $0xb90] sm:$0xff]
        %v663 = vld [vmem:[%s202 + $0xb98] sm:$0xff]
        %v664 = vld [vmem:[%s202 + $0xba0] sm:$0xff]
        %v665 = vld [vmem:[%s202 + $0xba8] sm:$0xff]
        %v666 = vld [vmem:[%s202 + $0xbb0] sm:$0xff]
        %v667 = vld [vmem:[%s202 + $0xbb8] sm:$0xff]
        %v668 = vld [vmem:[%s202 + $0xbc0] sm:$0xff]
        %v669 = vld [vmem:[%s202 + $0xbc8] sm:$0xff]
        %v670 = vld [vmem:[%s202 + $0xbd0] sm:$0xff]
        %v671 = vld [vmem:[%s202 + $0xbd8] sm:$0xff]
        %v672 = vld [vmem:[%s202 + $0xbe0] sm:$0xff]
        %v673 = vld [vmem:[%s202 + $0xbe8] sm:$0xff]
        %v674 = vld [vmem:[%s202 + $0xbf0] sm:$0xff]
        %v675 = vld [vmem:[%s202 + $0xbf8] sm:$0xff]
        %v676 = vld [vmem:[%s202 + $0xc00] sm:$0xff]
        %v677 = vld [vmem:[%s202 + $0xc08] sm:$0xff]
        %v678 = vld [vmem:[%s202 + $0xc10] sm:$0xff]
        %v679 = vld [vmem:[%s202 + $0xc18] sm:$0xff]
        %v680 = vld [vmem:[%s202 + $0xc20] sm:$0xff]
        %v681 = vld [vmem:[%s202 + $0xc28] sm:$0xff]
        %v682 = vld [vmem:[%s202 + $0xc30] sm:$0xff]
        %v683 = vld [vmem:[%s202 + $0xc38] sm:$0xff]
        %v684 = vld [vmem:[%s202 + $0xc40] sm:$0xff]
        %v685 = vld [vmem:[%s202 + $0xc48] sm:$0xff]
        %v686 = vld [vmem:[%s202 + $0xc50] sm:$0xff]
        %v687 = vld [vmem:[%s202 + $0xc58] sm:$0xff]
        %v688 = vld [vmem:[%s202 + $0xc60] sm:$0xff]
        %v689 = vld [vmem:[%s202 + $0xc68] sm:$0xff]
        %v690 = vld [vmem:[%s202 + $0xc70] sm:$0xff]
        %v691 = vld [vmem:[%s202 + $0xc78] sm:$0xff]
        %v692 = vld [vmem:[%s202 + $0xc80] sm:$0xff]
        %v693 = vld [vmem:[%s202 + $0xc88] sm:$0xff]
        %v694 = vld [vmem:[%s202 + $0xc90] sm:$0xff]
        %v695 = vld [vmem:[%s202 + $0xc98] sm:$0xff]
        %v696 = vld [vmem:[%s202 + $0xca0] sm:$0xff]
        %v697 = vld [vmem:[%s202 + $0xca8] sm:$0xff]
        %v698 = vld [vmem:[%s202 + $0xcb0] sm:$0xff]
        %v699 = vld [vmem:[%s202 + $0xcb8] sm:$0xff]
        %v700 = vld [vmem:[%s202 + $0xcc0] sm:$0xff]
        %v701 = vld [vmem:[%s202 + $0xcc8] sm:$0xff]
        %v702 = vld [vmem:[%s202 + $0xcd0] sm:$0xff]
        %v703 = vld [vmem:[%s202 + $0xcd8] sm:$0xff]
        %v704 = vld [vmem:[%s202 + $0xce0] sm:$0xff]
        %v705 = vld [vmem:[%s202 + $0xce8] sm:$0xff]
        %v706 = vld [vmem:[%s202 + $0xcf0] sm:$0xff]
        %v707 = vld [vmem:[%s202 + $0xcf8] sm:$0xff]
        %v708 = vld [vmem:[%s202 + $0xd00] sm:$0xff]
        %v709 = vld [vmem:[%s202 + $0xd08] sm:$0xff]
        %v710 = vld [vmem:[%s202 + $0xd10] sm:$0xff]
        %v711 = vld [vmem:[%s202 + $0xd18] sm:$0xff]
        %v712 = vld [vmem:[%s202 + $0xd20] sm:$0xff]
        %v713 = vld [vmem:[%s202 + $0xd28] sm:$0xff]
        %v714 = vld [vmem:[%s202 + $0xd30] sm:$0xff]
        %v715 = vld [vmem:[%s202 + $0xd38] sm:$0xff]
        %v716 = vld [vmem:[%s202 + $0xd40] sm:$0xff]
        %v717 = vld [vmem:[%s202 + $0xd48] sm:$0xff]
        %v718 = vld [vmem:[%s202 + $0xd50] sm:$0xff]
        %v719 = vld [vmem:[%s202 + $0xd58] sm:$0xff]
        %v720 = vld [vmem:[%s202 + $0xd60] sm:$0xff]
        %v721 = vld [vmem:[%s202 + $0xd68] sm:$0xff]
        %v722 = vld [vmem:[%s202 + $0xd70] sm:$0xff]
        %v723 = vld [vmem:[%s202 + $0xd78] sm:$0xff]
        %v724 = vld [vmem:[%s202 + $0xd80] sm:$0xff]
        %v725 = vld [vmem:[%s202 + $0xd88] sm:$0xff]
        %v726 = vld [vmem:[%s202 + $0xd90] sm:$0xff]
        %v727 = vld [vmem:[%s202 + $0xd98] sm:$0xff]
        %v728 = vld [vmem:[%s202 + $0xda0] sm:$0xff]
        %v729 = vld [vmem:[%s202 + $0xda8] sm:$0xff]
        %v730 = vld [vmem:[%s202 + $0xdb0] sm:$0xff]
        %v731 = vld [vmem:[%s202 + $0xdb8] sm:$0xff]
        %v732 = vld [vmem:[%s202 + $0xdc0] sm:$0xff]
        %v733 = vld [vmem:[%s202 + $0xdc8] sm:$0xff]
        %v734 = vld [vmem:[%s202 + $0xdd0] sm:$0xff]
        %v735 = vld [vmem:[%s202 + $0xdd8] sm:$0xff]
        %v736 = vld [vmem:[%s202 + $0xde0] sm:$0xff]
        %v737 = vld [vmem:[%s202 + $0xde8] sm:$0xff]
        %v738 = vld [vmem:[%s202 + $0xdf0] sm:$0xff]
        %v739 = vld [vmem:[%s202 + $0xdf8] sm:$0xff]
        %v740 = vld [vmem:[%s202 + $0xe00] sm:$0xff]
        %v741 = vld [vmem:[%s202 + $0xe08] sm:$0xff]
        %v742 = vld [vmem:[%s202 + $0xe10] sm:$0xff]
        %v743 = vld [vmem:[%s202 + $0xe18] sm:$0xff]
        %v744 = vld [vmem:[%s202 + $0xe20] sm:$0xff]
        %v745 = vld [vmem:[%s202 + $0xe28] sm:$0xff]
        %v746 = vld [vmem:[%s202 + $0xe30] sm:$0xff]
        %v747 = vld [vmem:[%s202 + $0xe38] sm:$0xff]
        %v748 = vld [vmem:[%s202 + $0xe40] sm:$0xff]
        %v749 = vld [vmem:[%s202 + $0xe48] sm:$0xff]
        %v750 = vld [vmem:[%s202 + $0xe50] sm:$0xff]
        %v751 = vld [vmem:[%s202 + $0xe58] sm:$0xff]
        %v752 = vld [vmem:[%s202 + $0xe60] sm:$0xff]
        %v753 = vld [vmem:[%s202 + $0xe68] sm:$0xff]
        %v754 = vld [vmem:[%s202 + $0xe70] sm:$0xff]
        %v755 = vld [vmem:[%s202 + $0xe78] sm:$0xff]
        %v756 = vld [vmem:[%s202 + $0xe80] sm:$0xff]
        %v757 = vld [vmem:[%s202 + $0xe88] sm:$0xff]
        %v758 = vld [vmem:[%s202 + $0xe90] sm:$0xff]
        %v759 = vld [vmem:[%s202 + $0xe98] sm:$0xff]
        %v760 = vld [vmem:[%s202 + $0xea0] sm:$0xff]
        %v761 = vld [vmem:[%s202 + $0xea8] sm:$0xff]
        %v762 = vld [vmem:[%s202 + $0xeb0] sm:$0xff]
        %v763 = vld [vmem:[%s202 + $0xeb8] sm:$0xff]
        %v764 = vld [vmem:[%s202 + $0xec0] sm:$0xff]
        %v765 = vld [vmem:[%s202 + $0xec8] sm:$0xff]
        %v766 = vld [vmem:[%s202 + $0xed0] sm:$0xff]
        %v767 = vld [vmem:[%s202 + $0xed8] sm:$0xff]
        %v768 = vld [vmem:[%s202 + $0xee0] sm:$0xff]
        %v769 = vld [vmem:[%s202 + $0xee8] sm:$0xff]
        %v770 = vld [vmem:[%s202 + $0xef0] sm:$0xff]
        %v771 = vld [vmem:[%s202 + $0xef8] sm:$0xff]
        %v772 = vld [vmem:[%s202 + $0xf00] sm:$0xff]
        %v773 = vld [vmem:[%s202 + $0xf08] sm:$0xff]
        %v774 = vld [vmem:[%s202 + $0xf10] sm:$0xff]
        %v775 = vld [vmem:[%s202 + $0xf18] sm:$0xff]
        %v776 = vld [vmem:[%s202 + $0xf20] sm:$0xff]
        %v777 = vld [vmem:[%s202 + $0xf28] sm:$0xff]
        %v778 = vld [vmem:[%s202 + $0xf30] sm:$0xff]
        %v779 = vld [vmem:[%s202 + $0xf38] sm:$0xff]
        %v780 = vld [vmem:[%s202 + $0xf40] sm:$0xff]
        %v781 = vld [vmem:[%s202 + $0xf48] sm:$0xff]
        %v782 = vld [vmem:[%s202 + $0xf50] sm:$0xff]
        %v783 = vld [vmem:[%s202 + $0xf58] sm:$0xff]
        %v784 = vld [vmem:[%s202 + $0xf60] sm:$0xff]
        %v785 = vld [vmem:[%s202 + $0xf68] sm:$0xff]
        %v786 = vld [vmem:[%s202 + $0xf70] sm:$0xff]
        %v787 = vld [vmem:[%s202 + $0xf78] sm:$0xff]
        %v788 = vld [vmem:[%s202 + $0xf80] sm:$0xff]
        %v789 = vld [vmem:[%s202 + $0xf88] sm:$0xff]
        %v790 = vld [vmem:[%s202 + $0xf90] sm:$0xff]
        %v791 = vld [vmem:[%s202 + $0xf98] sm:$0xff]
        %v792 = vld [vmem:[%s202 + $0xfa0] sm:$0xff]
        %v793 = vld [vmem:[%s202 + $0xfa8] sm:$0xff]
        %v794 = vld [vmem:[%s202 + $0xfb0] sm:$0xff]
        %v795 = vld [vmem:[%s202 + $0xfb8] sm:$0xff]
        %v796 = vld [vmem:[%s202 + $0xfc0] sm:$0xff]
        %v797 = vld [vmem:[%s202 + $0xfc8] sm:$0xff]
        %v798 = vld [vmem:[%s202 + $0xfd0] sm:$0xff]
        %v799 = vld [vmem:[%s202 + $0xfd8] sm:$0xff]
        %v800 = vld [vmem:[%s202 + $0xfe0] sm:$0xff]
        %v801 = vld [vmem:[%s202 + $0xfe8] sm:$0xff]
        %v802 = vld [vmem:[%s202 + $0xff0] sm:$0xff]
        %v803 = vld [vmem:[%s202 + $0xff8] sm:$0xff]
        %v804 = vld [vmem:[%s202 + $0x1000] sm:$0xff]
        %v805 = vld [vmem:[%s202 + $0x1008] sm:$0xff]
        %v806 = vld [vmem:[%s202 + $0x1010] sm:$0xff]
        %v807 = vld [vmem:[%s202 + $0x1018] sm:$0xff]
        %v808 = vld [vmem:[%s202 + $0x1020] sm:$0xff]
        %v809 = vld [vmem:[%s202 + $0x1028] sm:$0xff]
        %v810 = vld [vmem:[%s202 + $0x1030] sm:$0xff]
        %v811 = vld [vmem:[%s202 + $0x1038] sm:$0xff]
        %v812 = vld [vmem:[%s202 + $0x1040] sm:$0xff]
        %v813 = vld [vmem:[%s202 + $0x1048] sm:$0xff]
        %v814 = vld [vmem:[%s202 + $0x1050] sm:$0xff]
        %v815 = vld [vmem:[%s202 + $0x1058] sm:$0xff]
        %v816 = vld [vmem:[%s202 + $0x1060] sm:$0xff]
        %v817 = vld [vmem:[%s202 + $0x1068] sm:$0xff]
        %v818 = vld [vmem:[%s202 + $0x1070] sm:$0xff]
        %v819 = vld [vmem:[%s202 + $0x1078] sm:$0xff]
        %v820 = vld [vmem:[%s202 + $0x1080] sm:$0xff]
        %v821 = vld [vmem:[%s202 + $0x1088] sm:$0xff]
        %v822 = vld [vmem:[%s202 + $0x1090] sm:$0xff]
        %v823 = vld [vmem:[%s202 + $0x1098] sm:$0xff]
        %v824 = vld [vmem:[%s202 + $0x10a0] sm:$0xff]
        %v825 = vld [vmem:[%s202 + $0x10a8] sm:$0xff]
        %v826 = vld [vmem:[%s202 + $0x10b0] sm:$0xff]
        %v827 = vld [vmem:[%s202 + $0x10b8] sm:$0xff]
        %v828 = vld [vmem:[%s202 + $0x10c0] sm:$0xff]
        %v829 = vld [vmem:[%s202 + $0x10c8] sm:$0xff]
        %v830 = vld [vmem:[%s202 + $0x10d0] sm:$0xff]
        %v831 = vld [vmem:[%s202 + $0x10d8] sm:$0xff]
        %v832 = vld [vmem:[%s202 + $0x10e0] sm:$0xff]
        %v833 = vld [vmem:[%s202 + $0x10e8] sm:$0xff]
        %v834 = vld [vmem:[%s202 + $0x10f0] sm:$0xff]
        %v835 = vld [vmem:[%s202 + $0x10f8] sm:$0xff]
        %v836 = vld [vmem:[%s202 + $0x1100] sm:$0xff]
        %v837 = vld [vmem:[%s202 + $0x1108] sm:$0xff]
        %v838 = vld [vmem:[%s202 + $0x1110] sm:$0xff]
        %v839 = vld [vmem:[%s202 + $0x1118] sm:$0xff]
        %v840 = vld [vmem:[%s202 + $0x1120] sm:$0xff]
        %v841 = vld [vmem:[%s202 + $0x1128] sm:$0xff]
        %v842 = vld [vmem:[%s202 + $0x1130] sm:$0xff]
        %v843 = vld [vmem:[%s202 + $0x1138] sm:$0xff]
        %v844 = vld [vmem:[%s202 + $0x1140] sm:$0xff]
        %v845 = vld [vmem:[%s202 + $0x1148] sm:$0xff]
        %v846 = vld [vmem:[%s202 + $0x1150] sm:$0xff]
        %v847 = vld [vmem:[%s202 + $0x1158] sm:$0xff]
        %v848 = vld [vmem:[%s202 + $0x1160] sm:$0xff]
        %v849 = vld [vmem:[%s202 + $0x1168] sm:$0xff]
        %v850 = vld [vmem:[%s202 + $0x1170] sm:$0xff]
        %v851 = vld [vmem:[%s202 + $0x1178] sm:$0xff]
        %v852 = vld [vmem:[%s202 + $0x1180] sm:$0xff]
        %v853 = vld [vmem:[%s202 + $0x1188] sm:$0xff]
        %v854 = vld [vmem:[%s202 + $0x1190] sm:$0xff]
        %v855 = vld [vmem:[%s202 + $0x1198] sm:$0xff]
        %v856 = vld [vmem:[%s202 + $0x11a0] sm:$0xff]
        %v857 = vld [vmem:[%s202 + $0x11a8] sm:$0xff]
        %v858 = vld [vmem:[%s202 + $0x11b0] sm:$0xff]
        %v859 = vld [vmem:[%s202 + $0x11b8] sm:$0xff]
        %v860 = vld [vmem:[%s202 + $0x11c0] sm:$0xff]
        %v861 = vld [vmem:[%s202 + $0x11c8] sm:$0xff]
        %v862 = vld [vmem:[%s202 + $0x11d0] sm:$0xff]
        %v863 = vld [vmem:[%s202 + $0x11d8] sm:$0xff]
        %v864 = vld [vmem:[%s202 + $0x11e0] sm:$0xff]
        %v865 = vld [vmem:[%s202 + $0x11e8] sm:$0xff]
        %v866 = vld [vmem:[%s202 + $0x11f0] sm:$0xff]
        %v867 = vld [vmem:[%s202 + $0x11f8] sm:$0xff]
        %v868 = vld [vmem:[%s202 + $0x1200] sm:$0xff]
        %v869 = vld [vmem:[%s202 + $0x1208] sm:$0xff]
        %v870 = vld [vmem:[%s202 + $0x1210] sm:$0xff]
        %v871 = vld [vmem:[%s202 + $0x1218] sm:$0xff]
        %v872 = vld [vmem:[%s202 + $0x1220] sm:$0xff]
        %v873 = vld [vmem:[%s202 + $0x1228] sm:$0xff]
        %v874 = vld [vmem:[%s202 + $0x1230] sm:$0xff]
        %v875 = vld [vmem:[%s202 + $0x1238] sm:$0xff]
        %v876 = vld [vmem:[%s202 + $0x1240] sm:$0xff]
        %v877 = vld [vmem:[%s202 + $0x1248] sm:$0xff]
        %v878 = vld [vmem:[%s202 + $0x1250] sm:$0xff]
        %v879 = vld [vmem:[%s202 + $0x1258] sm:$0xff]
        %v880 = vld [vmem:[%s202 + $0x1260] sm:$0xff]
        %v881 = vld [vmem:[%s202 + $0x1268] sm:$0xff]
        %v882 = vld [vmem:[%s202 + $0x1270] sm:$0xff]
        %v883 = vld [vmem:[%s202 + $0x1278] sm:$0xff]
        %v884 = vld [vmem:[%s202 + $0x1280] sm:$0xff]
        %v885 = vld [vmem:[%s202 + $0x1288] sm:$0xff]
        %v886 = vld [vmem:[%s202 + $0x1290] sm:$0xff]
        %v887 = vld [vmem:[%s202 + $0x1298] sm:$0xff]
        %v888 = vld [vmem:[%s202 + $0x12a0] sm:$0xff]
        %v889 = vld [vmem:[%s202 + $0x12a8] sm:$0xff]
        %v890 = vld [vmem:[%s202 + $0x12b0] sm:$0xff]
        %v891 = vld [vmem:[%s202 + $0x12b8] sm:$0xff]
        %v892 = vld [vmem:[%s202 + $0x12c0] sm:$0xff]
        %v893 = vld [vmem:[%s202 + $0x12c8] sm:$0xff]
        %v894 = vld [vmem:[%s202 + $0x12d0] sm:$0xff]
        %v895 = vld [vmem:[%s202 + $0x12d8] sm:$0xff]
        %v896 = vld [vmem:[%s202 + $0x12e0] sm:$0xff]
        %v897 = vld [vmem:[%s202 + $0x12e8] sm:$0xff]
        %v898 = vld [vmem:[%s202 + $0x12f0] sm:$0xff]
        %v899 = vld [vmem:[%s202 + $0x12f8] sm:$0xff]
        %v900 = vld [vmem:[%s202 + $0x1300] sm:$0xff]
        %v901 = vld [vmem:[%s202 + $0x1308] sm:$0xff]
        %v902 = vld [vmem:[%s202 + $0x1310] sm:$0xff]
        %v903 = vld [vmem:[%s202 + $0x1318] sm:$0xff]
        %v904 = vld [vmem:[%s202 + $0x1320] sm:$0xff]
        %v905 = vld [vmem:[%s202 + $0x1328] sm:$0xff]
        %v906 = vld [vmem:[%s202 + $0x1330] sm:$0xff]
        %v907 = vld [vmem:[%s202 + $0x1338] sm:$0xff]
        %v908 = vld [vmem:[%s202 + $0x1340] sm:$0xff]
        %v909 = vld [vmem:[%s202 + $0x1348] sm:$0xff]
        %v910 = vld [vmem:[%s202 + $0x1350] sm:$0xff]
        %v911 = vld [vmem:[%s202 + $0x1358] sm:$0xff]
        %v912 = vld [vmem:[%s202 + $0x1360] sm:$0xff]
        %v913 = vld [vmem:[%s202 + $0x1368] sm:$0xff]
        %v914 = vld [vmem:[%s202 + $0x1370] sm:$0xff]
        %v915 = vld [vmem:[%s202 + $0x1378] sm:$0xff]
        %v916 = vld [vmem:[%s202 + $0x1380] sm:$0xff]
        %v917 = vld [vmem:[%s202 + $0x1388] sm:$0xff]
        %v918 = vld [vmem:[%s202 + $0x1390] sm:$0xff]
        %v919 = vld [vmem:[%s202 + $0x1398] sm:$0xff]
        %v920 = vld [vmem:[%s202 + $0x13a0] sm:$0xff]
        %v921 = vld [vmem:[%s202 + $0x13a8] sm:$0xff]
        %v922 = vld [vmem:[%s202 + $0x13b0] sm:$0xff]
        %v923 = vld [vmem:[%s202 + $0x13b8] sm:$0xff]
        %v924 = vld [vmem:[%s202 + $0x13c0] sm:$0xff]
        %v925 = vld [vmem:[%s202 + $0x13c8] sm:$0xff]
        %v926 = vld [vmem:[%s202 + $0x13d0] sm:$0xff]
        %v927 = vld [vmem:[%s202 + $0x13d8] sm:$0xff]
        %v928 = vld [vmem:[%s202 + $0x13e0] sm:$0xff]
        %v929 = vld [vmem:[%s202 + $0x13e8] sm:$0xff]
        %v930 = vld [vmem:[%s202 + $0x13f0] sm:$0xff]
        %v931 = vld [vmem:[%s202 + $0x13f8] sm:$0xff]
        %v932 = vld [vmem:[%s202 + $0x1400] sm:$0xff]
        %v933 = vld [vmem:[%s202 + $0x1408] sm:$0xff]
        %v934 = vld [vmem:[%s202 + $0x1410] sm:$0xff]
        %v935 = vld [vmem:[%s202 + $0x1418] sm:$0xff]
        %v936 = vld [vmem:[%s202 + $0x1420] sm:$0xff]
        %v937 = vld [vmem:[%s202 + $0x1428] sm:$0xff]
        %v938 = vld [vmem:[%s202 + $0x1430] sm:$0xff]
        %v939 = vld [vmem:[%s202 + $0x1438] sm:$0xff]
        %v940 = vld [vmem:[%s202 + $0x1440] sm:$0xff]
        %v941 = vld [vmem:[%s202 + $0x1448] sm:$0xff]
        %v942 = vld [vmem:[%s202 + $0x1450] sm:$0xff]
        %v943 = vld [vmem:[%s202 + $0x1458] sm:$0xff]
        %v944 = vld [vmem:[%s202 + $0x1460] sm:$0xff]
        %v945 = vld [vmem:[%s202 + $0x1468] sm:$0xff]
        %v946 = vld [vmem:[%s202 + $0x1470] sm:$0xff]
        %v947 = vld [vmem:[%s202 + $0x1478] sm:$0xff]
        %v948 = vld [vmem:[%s202 + $0x1480] sm:$0xff]
        %v949 = vld [vmem:[%s202 + $0x1488] sm:$0xff]
        %v950 = vld [vmem:[%s202 + $0x1490] sm:$0xff]
        %v951 = vld [vmem:[%s202 + $0x1498] sm:$0xff]
        %v952 = vld [vmem:[%s202 + $0x14a0] sm:$0xff]
        %v953 = vld [vmem:[%s202 + $0x14a8] sm:$0xff]
        %v954 = vld [vmem:[%s202 + $0x14b0] sm:$0xff]
        %v955 = vld [vmem:[%s202 + $0x14b8] sm:$0xff]
        %v956 = vld [vmem:[%s202 + $0x14c0] sm:$0xff]
        %v957 = vld [vmem:[%s202 + $0x14c8] sm:$0xff]
        %v958 = vld [vmem:[%s202 + $0x14d0] sm:$0xff]
        %v959 = vld [vmem:[%s202 + $0x14d8] sm:$0xff]
        %v960 = vld [vmem:[%s202 + $0x14e0] sm:$0xff]
        %v961 = vld [vmem:[%s202 + $0x14e8] sm:$0xff]
        %v962 = vld [vmem:[%s202 + $0x14f0] sm:$0xff]
        %v963 = vld [vmem:[%s202 + $0x14f8] sm:$0xff]
        %v964 = vld [vmem:[%s202 + $0x1500] sm:$0xff]
        %v965 = vld [vmem:[%s202 + $0x1508] sm:$0xff]
        %v966 = vld [vmem:[%s202 + $0x1510] sm:$0xff]
        %v967 = vld [vmem:[%s202 + $0x1518] sm:$0xff]
        %v968 = vld [vmem:[%s202 + $0x1520] sm:$0xff]
        %v969 = vld [vmem:[%s202 + $0x1528] sm:$0xff]
        %v970 = vld [vmem:[%s202 + $0x1530] sm:$0xff]
        %v971 = vld [vmem:[%s202 + $0x1538] sm:$0xff]
        %v972 = vld [vmem:[%s202 + $0x1540] sm:$0xff]
        %v973 = vld [vmem:[%s202 + $0x1548] sm:$0xff]
        %v974 = vld [vmem:[%s202 + $0x1550] sm:$0xff]
        %v975 = vld [vmem:[%s202 + $0x1558] sm:$0xff]
        %v976 = vld [vmem:[%s202 + $0x1560] sm:$0xff]
        %v977 = vld [vmem:[%s202 + $0x1568] sm:$0xff]
        %v978 = vld [vmem:[%s202 + $0x1570] sm:$0xff]
        %v979 = vld [vmem:[%s202 + $0x1578] sm:$0xff]
        %v980 = vld [vmem:[%s202 + $0x1580] sm:$0xff]
        %v981 = vld [vmem:[%s202 + $0x1588] sm:$0xff]
        %v982 = vld [vmem:[%s202 + $0x1590] sm:$0xff]
        %v983 = vld [vmem:[%s202 + $0x1598] sm:$0xff]
        %v984 = vld [vmem:[%s202 + $0x15a0] sm:$0xff]
        %v985 = vld [vmem:[%s202 + $0x15a8] sm:$0xff]
        %v986 = vld [vmem:[%s202 + $0x15b0] sm:$0xff]
        %v987 = vld [vmem:[%s202 + $0x15b8] sm:$0xff]
        %v988 = vld [vmem:[%s202 + $0x15c0] sm:$0xff]
        %v989 = vld [vmem:[%s202 + $0x15c8] sm:$0xff]
        %v990 = vld [vmem:[%s202 + $0x15d0] sm:$0xff]
        %v991 = vld [vmem:[%s202 + $0x15d8] sm:$0xff]
        %v992 = vld [vmem:[%s202 + $0x15e0] sm:$0xff]
        %v993 = vld [vmem:[%s202 + $0x15e8] sm:$0xff]
        %v994 = vld [vmem:[%s202 + $0x15f0] sm:$0xff]
        %v995 = vld [vmem:[%s202 + $0x15f8] sm:$0xff]
        %v996 = vld [vmem:[%s202 + $0x1600] sm:$0xff]
        %v997 = vld [vmem:[%s202 + $0x1608] sm:$0xff]
        %v998 = vld [vmem:[%s202 + $0x1610] sm:$0xff]
        %v999 = vld [vmem:[%s202 + $0x1618] sm:$0xff]
        %v1000 = vld [vmem:[%s202 + $0x1620] sm:$0xff]
        %v1001 = vld [vmem:[%s202 + $0x1628] sm:$0xff]
        %v1002 = vld [vmem:[%s202 + $0x1630] sm:$0xff]
        %v1003 = vld [vmem:[%s202 + $0x1638] sm:$0xff]
        %v1004 = vld [vmem:[%s202 + $0x1640] sm:$0xff]
        %v1005 = vld [vmem:[%s202 + $0x1648] sm:$0xff]
        %v1006 = vld [vmem:[%s202 + $0x1650] sm:$0xff]
        %v1007 = vld [vmem:[%s202 + $0x1658] sm:$0xff]
        %v1008 = vld [vmem:[%s202 + $0x1660] sm:$0xff]
        %v1009 = vld [vmem:[%s202 + $0x1668] sm:$0xff]
        %v1010 = vld [vmem:[%s202 + $0x1670] sm:$0xff]
        %v1011 = vld [vmem:[%s202 + $0x1678] sm:$0xff]
        %v1012 = vld [vmem:[%s202 + $0x1680] sm:$0xff]
        %v1013 = vld [vmem:[%s202 + $0x1688] sm:$0xff]
        %v1014 = vld [vmem:[%s202 + $0x1690] sm:$0xff]
        %v1015 = vld [vmem:[%s202 + $0x1698] sm:$0xff]
        %v1016 = vld [vmem:[%s202 + $0x16a0] sm:$0xff]
        %v1017 = vld [vmem:[%s202 + $0x16a8] sm:$0xff]
        %v1018 = vld [vmem:[%s202 + $0x16b0] sm:$0xff]
        %v1019 = vld [vmem:[%s202 + $0x16b8] sm:$0xff]
        %v1020 = vld [vmem:[%s202 + $0x16c0] sm:$0xff]
        %v1021 = vld [vmem:[%s202 + $0x16c8] sm:$0xff]
        %v1022 = vld [vmem:[%s202 + $0x16d0] sm:$0xff]
        %v1023 = vld [vmem:[%s202 + $0x16d8] sm:$0xff]
        %v1024 = vld [vmem:[%s202 + $0x16e0] sm:$0xff]
        %v1025 = vld [vmem:[%s202 + $0x16e8] sm:$0xff]
        %v1026 = vld [vmem:[%s202 + $0x16f0] sm:$0xff]
        %v1027 = vld [vmem:[%s202 + $0x16f8] sm:$0xff]
        %v1028 = vld [vmem:[%s202 + $0x1700] sm:$0xff]
        %v1029 = vld [vmem:[%s202 + $0x1708] sm:$0xff]
        %v1030 = vld [vmem:[%s202 + $0x1710] sm:$0xff]
        %v1031 = vld [vmem:[%s202 + $0x1718] sm:$0xff]
        %v1032 = vld [vmem:[%s202 + $0x1720] sm:$0xff]
        %v1033 = vld [vmem:[%s202 + $0x1728] sm:$0xff]
        %v1034 = vld [vmem:[%s202 + $0x1730] sm:$0xff]
        %v1035 = vld [vmem:[%s202 + $0x1738] sm:$0xff]
        %v1036 = vld [vmem:[%s202 + $0x1740] sm:$0xff]
        %v1037 = vld [vmem:[%s202 + $0x1748] sm:$0xff]
        %v1038 = vld [vmem:[%s202 + $0x1750] sm:$0xff]
        %v1039 = vld [vmem:[%s202 + $0x1758] sm:$0xff]
        %v1040 = vld [vmem:[%s202 + $0x1760] sm:$0xff]
        %v1041 = vld [vmem:[%s202 + $0x1768] sm:$0xff]
        %v1042 = vld [vmem:[%s202 + $0x1770] sm:$0xff]
        %v1043 = vld [vmem:[%s202 + $0x1778] sm:$0xff]
        %v1044 = vld [vmem:[%s202 + $0x1780] sm:$0xff]
        %v1045 = vld [vmem:[%s202 + $0x1788] sm:$0xff]
        %v1046 = vld [vmem:[%s202 + $0x1790] sm:$0xff]
        %v1047 = vld [vmem:[%s202 + $0x1798] sm:$0xff]
        %v1048 = vld [vmem:[%s202 + $0x17a0] sm:$0xff]
        %v1049 = vld [vmem:[%s202 + $0x17a8] sm:$0xff]
        %v1050 = vld [vmem:[%s202 + $0x17b0] sm:$0xff]
        %v1051 = vld [vmem:[%s202 + $0x17b8] sm:$0xff]
        %v1052 = vld [vmem:[%s202 + $0x17c0] sm:$0xff]
        %v1053 = vld [vmem:[%s202 + $0x17c8] sm:$0xff]
        %v1054 = vld [vmem:[%s202 + $0x17d0] sm:$0xff]
        %v1055 = vld [vmem:[%s202 + $0x17d8] sm:$0xff]
        %v1056 = vld [vmem:[%s202 + $0x17e0] sm:$0xff]
        %v1057 = vld [vmem:[%s202 + $0x17e8] sm:$0xff]
        %v1058 = vld [vmem:[%s202 + $0x17f0] sm:$0xff]
        %v1059 = vld [vmem:[%s202 + $0x17f8] sm:$0xff]
        %v1060 = vld [vmem:[%s202 + $0x1800] sm:$0xff]
        %v1061 = vld [vmem:[%s202 + $0x1808] sm:$0xff]
        %v1062 = vld [vmem:[%s202 + $0x1810] sm:$0xff]
        %v1063 = vld [vmem:[%s202 + $0x1818] sm:$0xff]
        %v1064 = vld [vmem:[%s202 + $0x1820] sm:$0xff]
        %v1065 = vld [vmem:[%s202 + $0x1828] sm:$0xff]
        %v1066 = vld [vmem:[%s202 + $0x1830] sm:$0xff]
        %v1067 = vld [vmem:[%s202 + $0x1838] sm:$0xff]
        %v1068 = vld [vmem:[%s202 + $0x1840] sm:$0xff]
        %v1069 = vld [vmem:[%s202 + $0x1848] sm:$0xff]
        %v1070 = vld [vmem:[%s202 + $0x1850] sm:$0xff]
        %v1071 = vld [vmem:[%s202 + $0x1858] sm:$0xff]
        %v1072 = vld [vmem:[%s202 + $0x1860] sm:$0xff]
        %v1073 = vld [vmem:[%s202 + $0x1868] sm:$0xff]
        %v1074 = vld [vmem:[%s202 + $0x1870] sm:$0xff]
        %v1075 = vld [vmem:[%s202 + $0x1878] sm:$0xff]
        %v1076 = vld [vmem:[%s202 + $0x1880] sm:$0xff]
        %v1077 = vld [vmem:[%s202 + $0x1888] sm:$0xff]
        %v1078 = vld [vmem:[%s202 + $0x1890] sm:$0xff]
        %v1079 = vld [vmem:[%s202 + $0x1898] sm:$0xff]
        %v1080 = vld [vmem:[%s202 + $0x18a0] sm:$0xff]
        %v1081 = vld [vmem:[%s202 + $0x18a8] sm:$0xff]
        %v1082 = vld [vmem:[%s202 + $0x18b0] sm:$0xff]
        %v1083 = vld [vmem:[%s202 + $0x18b8] sm:$0xff]
        %v1084 = vld [vmem:[%s202 + $0x18c0] sm:$0xff]
        %v1085 = vld [vmem:[%s202 + $0x18c8] sm:$0xff]
        %v1086 = vld [vmem:[%s202 + $0x18d0] sm:$0xff]
        %v1087 = vld [vmem:[%s202 + $0x18d8] sm:$0xff]
        %v1088 = vld [vmem:[%s202 + $0x18e0] sm:$0xff]
        %v1089 = vld [vmem:[%s202 + $0x18e8] sm:$0xff]
        %v1090 = vld [vmem:[%s202 + $0x18f0] sm:$0xff]
        %v1091 = vld [vmem:[%s202 + $0x18f8] sm:$0xff]
        %v1092 = vld [vmem:[%s202 + $0x1900] sm:$0xff]
        %v1093 = vld [vmem:[%s202 + $0x1908] sm:$0xff]
        %v1094 = vld [vmem:[%s202 + $0x1910] sm:$0xff]
        %v1095 = vld [vmem:[%s202 + $0x1918] sm:$0xff]
        %v1096 = vld [vmem:[%s202 + $0x1920] sm:$0xff]
        %v1097 = vld [vmem:[%s202 + $0x1928] sm:$0xff]
        %v1098 = vld [vmem:[%s202 + $0x1930] sm:$0xff]
        %v1099 = vld [vmem:[%s202 + $0x1938] sm:$0xff]
        %v1100 = vld [vmem:[%s202 + $0x1940] sm:$0xff]
        %v1101 = vld [vmem:[%s202 + $0x1948] sm:$0xff]
        %v1102 = vld [vmem:[%s202 + $0x1950] sm:$0xff]
        %v1103 = vld [vmem:[%s202 + $0x1958] sm:$0xff]
        %v1104 = vld [vmem:[%s202 + $0x1960] sm:$0xff]
        %v1105 = vld [vmem:[%s202 + $0x1968] sm:$0xff]
        %v1106 = vld [vmem:[%s202 + $0x1970] sm:$0xff]
        %v1107 = vld [vmem:[%s202 + $0x1978] sm:$0xff]
        %v1108 = vld [vmem:[%s202 + $0x1980] sm:$0xff]
        %v1109 = vld [vmem:[%s202 + $0x1988] sm:$0xff]
        %v1110 = vld [vmem:[%s202 + $0x1990] sm:$0xff]
        %v1111 = vld [vmem:[%s202 + $0x1998] sm:$0xff]
        %v1112 = vld [vmem:[%s202 + $0x19a0] sm:$0xff]
        %v1113 = vld [vmem:[%s202 + $0x19a8] sm:$0xff]
        %v1114 = vld [vmem:[%s202 + $0x19b0] sm:$0xff]
        %v1115 = vld [vmem:[%s202 + $0x19b8] sm:$0xff]
        %v1116 = vld [vmem:[%s202 + $0x19c0] sm:$0xff]
        %v1117 = vld [vmem:[%s202 + $0x19c8] sm:$0xff]
        %v1118 = vld [vmem:[%s202 + $0x19d0] sm:$0xff]
        %v1119 = vld [vmem:[%s202 + $0x19d8] sm:$0xff]
        %v1120 = vld [vmem:[%s202 + $0x19e0] sm:$0xff]
        %v1121 = vld [vmem:[%s202 + $0x19e8] sm:$0xff]
        %v1122 = vld [vmem:[%s202 + $0x19f0] sm:$0xff]
        %v1123 = vld [vmem:[%s202 + $0x19f8] sm:$0xff]
        %v1124 = vld [vmem:[%s202 + $0x1a00] sm:$0xff]
        %v1125 = vld [vmem:[%s202 + $0x1a08] sm:$0xff]
        %v1126 = vld [vmem:[%s202 + $0x1a10] sm:$0xff]
        %v1127 = vld [vmem:[%s202 + $0x1a18] sm:$0xff]
        %v1128 = vld [vmem:[%s202 + $0x1a20] sm:$0xff]
        %v1129 = vld [vmem:[%s202 + $0x1a28] sm:$0xff]
        %v1130 = vld [vmem:[%s202 + $0x1a30] sm:$0xff]
        %v1131 = vld [vmem:[%s202 + $0x1a38] sm:$0xff]
        %v1132 = vld [vmem:[%s202 + $0x1a40] sm:$0xff]
        %v1133 = vld [vmem:[%s202 + $0x1a48] sm:$0xff]
        %v1134 = vld [vmem:[%s202 + $0x1a50] sm:$0xff]
        %v1135 = vld [vmem:[%s202 + $0x1a58] sm:$0xff]
        %v1136 = vld [vmem:[%s202 + $0x1a60] sm:$0xff]
        %v1137 = vld [vmem:[%s202 + $0x1a68] sm:$0xff]
        %v1138 = vld [vmem:[%s202 + $0x1a70] sm:$0xff]
        %v1139 = vld [vmem:[%s202 + $0x1a78] sm:$0xff]
        %v1140 = vld [vmem:[%s202 + $0x1a80] sm:$0xff]
        %v1141 = vld [vmem:[%s202 + $0x1a88] sm:$0xff]
        %v1142 = vld [vmem:[%s202 + $0x1a90] sm:$0xff]
        %v1143 = vld [vmem:[%s202 + $0x1a98] sm:$0xff]
        %v1144 = vld [vmem:[%s202 + $0x1aa0] sm:$0xff]
        %v1145 = vld [vmem:[%s202 + $0x1aa8] sm:$0xff]
        %v1146 = vld [vmem:[%s202 + $0x1ab0] sm:$0xff]
        %v1147 = vld [vmem:[%s202 + $0x1ab8] sm:$0xff]
        %v1148 = vld [vmem:[%s202 + $0x1ac0] sm:$0xff]
        %v1149 = vld [vmem:[%s202 + $0x1ac8] sm:$0xff]
        %v1150 = vld [vmem:[%s202 + $0x1ad0] sm:$0xff]
        %v1151 = vld [vmem:[%s202 + $0x1ad8] sm:$0xff]
        %v1152 = vld [vmem:[%s202 + $0x1ae0] sm:$0xff]
        %v1153 = vld [vmem:[%s202 + $0x1ae8] sm:$0xff]
        %v1154 = vld [vmem:[%s202 + $0x1af0] sm:$0xff]
        %v1155 = vld [vmem:[%s202 + $0x1af8] sm:$0xff]
        %v1156 = vld [vmem:[%s202 + $0x1b00] sm:$0xff]
        %v1157 = vld [vmem:[%s202 + $0x1b08] sm:$0xff]
        %v1158 = vld [vmem:[%s202 + $0x1b10] sm:$0xff]
        %v1159 = vld [vmem:[%s202 + $0x1b18] sm:$0xff]
        %v1160 = vld [vmem:[%s202 + $0x1b20] sm:$0xff]
        %v1161 = vld [vmem:[%s202 + $0x1b28] sm:$0xff]
        %v1162 = vld [vmem:[%s202 + $0x1b30] sm:$0xff]
        %v1163 = vld [vmem:[%s202 + $0x1b38] sm:$0xff]
        %v1164 = vld [vmem:[%s202 + $0x1b40] sm:$0xff]
        %v1165 = vld [vmem:[%s202 + $0x1b48] sm:$0xff]
        %v1166 = vld [vmem:[%s202 + $0x1b50] sm:$0xff]
        %v1167 = vld [vmem:[%s202 + $0x1b58] sm:$0xff]
        %v1168 = vld [vmem:[%s202 + $0x1b60] sm:$0xff]
        %v1169 = vld [vmem:[%s202 + $0x1b68] sm:$0xff]
        %v1170 = vld [vmem:[%s202 + $0x1b70] sm:$0xff]
        %v1171 = vld [vmem:[%s202 + $0x1b78] sm:$0xff]
        %v1172 = vld [vmem:[%s202 + $0x1b80] sm:$0xff]
        %v1173 = vld [vmem:[%s202 + $0x1b88] sm:$0xff]
        %v1174 = vld [vmem:[%s202 + $0x1b90] sm:$0xff]
        %v1175 = vld [vmem:[%s202 + $0x1b98] sm:$0xff]
        %v1176 = vld [vmem:[%s202 + $0x1ba0] sm:$0xff]
        %v1177 = vld [vmem:[%s202 + $0x1ba8] sm:$0xff]
        %v1178 = vld [vmem:[%s202 + $0x1bb0] sm:$0xff]
        %v1179 = vld [vmem:[%s202 + $0x1bb8] sm:$0xff]
        %v1180 = vld [vmem:[%s202 + $0x1bc0] sm:$0xff]
        %v1181 = vld [vmem:[%s202 + $0x1bc8] sm:$0xff]
        %v1182 = vld [vmem:[%s202 + $0x1bd0] sm:$0xff]
        %v1183 = vld [vmem:[%s202 + $0x1bd8] sm:$0xff]
        %v1184 = vld [vmem:[%s202 + $0x1be0] sm:$0xff]
        %v1185 = vld [vmem:[%s202 + $0x1be8] sm:$0xff]
        %v1186 = vld [vmem:[%s202 + $0x1bf0] sm:$0xff]
        %v1187 = vld [vmem:[%s202 + $0x1bf8] sm:$0xff]
        %v1188 = vld [vmem:[%s202 + $0x1c00] sm:$0xff]
        %v1189 = vld [vmem:[%s202 + $0x1c08] sm:$0xff]
        %v1190 = vld [vmem:[%s202 + $0x1c10] sm:$0xff]
        %v1191 = vld [vmem:[%s202 + $0x1c18] sm:$0xff]
        %v1192 = vld [vmem:[%s202 + $0x1c20] sm:$0xff]
        %v1193 = vld [vmem:[%s202 + $0x1c28] sm:$0xff]
        %v1194 = vld [vmem:[%s202 + $0x1c30] sm:$0xff]
        %v1195 = vld [vmem:[%s202 + $0x1c38] sm:$0xff]
        %v1196 = vld [vmem:[%s202 + $0x1c40] sm:$0xff]
        %v1197 = vld [vmem:[%s202 + $0x1c48] sm:$0xff]
        %v1198 = vld [vmem:[%s202 + $0x1c50] sm:$0xff]
        %v1199 = vld [vmem:[%s202 + $0x1c58] sm:$0xff]
        %v1200 = vld [vmem:[%s202 + $0x1c60] sm:$0xff]
        %v1201 = vld [vmem:[%s202 + $0x1c68] sm:$0xff]
        %v1202 = vld [vmem:[%s202 + $0x1c70] sm:$0xff]
        %v1203 = vld [vmem:[%s202 + $0x1c78] sm:$0xff]
        %v1204 = vld [vmem:[%s202 + $0x1c80] sm:$0xff]
        %v1205 = vld [vmem:[%s202 + $0x1c88] sm:$0xff]
        %v1206 = vld [vmem:[%s202 + $0x1c90] sm:$0xff]
        %v1207 = vld [vmem:[%s202 + $0x1c98] sm:$0xff]
        %v1208 = vld [vmem:[%s202 + $0x1ca0] sm:$0xff]
        %v1209 = vld [vmem:[%s202 + $0x1ca8] sm:$0xff]
        %v1210 = vld [vmem:[%s202 + $0x1cb0] sm:$0xff]
        %v1211 = vld [vmem:[%s202 + $0x1cb8] sm:$0xff]
        %v1212 = vld [vmem:[%s202 + $0x1cc0] sm:$0xff]
        %v1213 = vld [vmem:[%s202 + $0x1cc8] sm:$0xff]
        %v1214 = vld [vmem:[%s202 + $0x1cd0] sm:$0xff]
        %v1215 = vld [vmem:[%s202 + $0x1cd8] sm:$0xff]
        %v1216 = vld [vmem:[%s202 + $0x1ce0] sm:$0xff]
        %v1217 = vld [vmem:[%s202 + $0x1ce8] sm:$0xff]
        %v1218 = vld [vmem:[%s202 + $0x1cf0] sm:$0xff]
        %v1219 = vld [vmem:[%s202 + $0x1cf8] sm:$0xff]
        %v1220 = vld [vmem:[%s202 + $0x1d00] sm:$0xff]
        %v1221 = vld [vmem:[%s202 + $0x1d08] sm:$0xff]
        %v1222 = vld [vmem:[%s202 + $0x1d10] sm:$0xff]
        %v1223 = vld [vmem:[%s202 + $0x1d18] sm:$0xff]
        %v1224 = vld [vmem:[%s202 + $0x1d20] sm:$0xff]
        %v1225 = vld [vmem:[%s202 + $0x1d28] sm:$0xff]
        %v1226 = vld [vmem:[%s202 + $0x1d30] sm:$0xff]
        %v1227 = vld [vmem:[%s202 + $0x1d38] sm:$0xff]
        %v1228 = vld [vmem:[%s202 + $0x1d40] sm:$0xff]
        %v1229 = vld [vmem:[%s202 + $0x1d48] sm:$0xff]
        %v1230 = vld [vmem:[%s202 + $0x1d50] sm:$0xff]
        %v1231 = vld [vmem:[%s202 + $0x1d58] sm:$0xff]
        %v1232 = vld [vmem:[%s202 + $0x1d60] sm:$0xff]
        %v1233 = vld [vmem:[%s202 + $0x1d68] sm:$0xff]
        %v1234 = vld [vmem:[%s202 + $0x1d70] sm:$0xff]
        %v1235 = vld [vmem:[%s202 + $0x1d78] sm:$0xff]
        %v1236 = vld [vmem:[%s202 + $0x1d80] sm:$0xff]
        %v1237 = vld [vmem:[%s202 + $0x1d88] sm:$0xff]
        %v1238 = vld [vmem:[%s202 + $0x1d90] sm:$0xff]
        %v1239 = vld [vmem:[%s202 + $0x1d98] sm:$0xff]
        %v1240 = vld [vmem:[%s202 + $0x1da0] sm:$0xff]
        %v1241 = vld [vmem:[%s202 + $0x1da8] sm:$0xff]
        %v1242 = vld [vmem:[%s202 + $0x1db0] sm:$0xff]
        %v1243 = vld [vmem:[%s202 + $0x1db8] sm:$0xff]
        %v1244 = vld [vmem:[%s202 + $0x1dc0] sm:$0xff]
        %v1245 = vld [vmem:[%s202 + $0x1dc8] sm:$0xff]
        %v1246 = vld [vmem:[%s202 + $0x1dd0] sm:$0xff]
        %v1247 = vld [vmem:[%s202 + $0x1dd8] sm:$0xff]
        %v1248 = vld [vmem:[%s202 + $0x1de0] sm:$0xff]
        %v1249 = vld [vmem:[%s202 + $0x1de8] sm:$0xff]
        %v1250 = vld [vmem:[%s202 + $0x1df0] sm:$0xff]
        %v1251 = vld [vmem:[%s202 + $0x1df8] sm:$0xff]
        %v1252 = vld [vmem:[%s202 + $0x1e00] sm:$0xff]
        %v1253 = vld [vmem:[%s202 + $0x1e08] sm:$0xff]
        %v1254 = vld [vmem:[%s202 + $0x1e10] sm:$0xff]
        %v1255 = vld [vmem:[%s202 + $0x1e18] sm:$0xff]
        %v1256 = vld [vmem:[%s202 + $0x1e20] sm:$0xff]
        %v1257 = vld [vmem:[%s202 + $0x1e28] sm:$0xff]
        %v1258 = vld [vmem:[%s202 + $0x1e30] sm:$0xff]
        %v1259 = vld [vmem:[%s202 + $0x1e38] sm:$0xff]
        %v1260 = vld [vmem:[%s202 + $0x1e40] sm:$0xff]
        %v1261 = vld [vmem:[%s202 + $0x1e48] sm:$0xff]
        %v1262 = vld [vmem:[%s202 + $0x1e50] sm:$0xff]
        %v1263 = vld [vmem:[%s202 + $0x1e58] sm:$0xff]
        %v1264 = vld [vmem:[%s202 + $0x1e60] sm:$0xff]
        %v1265 = vld [vmem:[%s202 + $0x1e68] sm:$0xff]
        %v1266 = vld [vmem:[%s202 + $0x1e70] sm:$0xff]
        %v1267 = vld [vmem:[%s202 + $0x1e78] sm:$0xff]
        %v1268 = vld [vmem:[%s202 + $0x1e80] sm:$0xff]
        %v1269 = vld [vmem:[%s202 + $0x1e88] sm:$0xff]
        %v1270 = vld [vmem:[%s202 + $0x1e90] sm:$0xff]
        %v1271 = vld [vmem:[%s202 + $0x1e98] sm:$0xff]
        %v1272 = vld [vmem:[%s202 + $0x1ea0] sm:$0xff]
        %v1273 = vld [vmem:[%s202 + $0x1ea8] sm:$0xff]
        %v1274 = vld [vmem:[%s202 + $0x1eb0] sm:$0xff]
        %v1275 = vld [vmem:[%s202 + $0x1eb8] sm:$0xff]
        %v1276 = vld [vmem:[%s202 + $0x1ec0] sm:$0xff]
        %v1277 = vld [vmem:[%s202 + $0x1ec8] sm:$0xff]
        %v1278 = vld [vmem:[%s202 + $0x1ed0] sm:$0xff]
        %v1279 = vld [vmem:[%s202 + $0x1ed8] sm:$0xff]
        %v1280 = vld [vmem:[%s202 + $0x1ee0] sm:$0xff]
        %v1281 = vld [vmem:[%s202 + $0x1ee8] sm:$0xff]
        %v1282 = vld [vmem:[%s202 + $0x1ef0] sm:$0xff]
        %v1283 = vld [vmem:[%s202 + $0x1ef8] sm:$0xff]
        %v1284 = vld [vmem:[%s202 + $0x1f00] sm:$0xff]
        %v1285 = vld [vmem:[%s202 + $0x1f08] sm:$0xff]
        %v1286 = vld [vmem:[%s202 + $0x1f10] sm:$0xff]
        %v1287 = vld [vmem:[%s202 + $0x1f18] sm:$0xff]
        %v1288 = vld [vmem:[%s202 + $0x1f20] sm:$0xff]
        %v1289 = vld [vmem:[%s202 + $0x1f28] sm:$0xff]
        %v1290 = vld [vmem:[%s202 + $0x1f30] sm:$0xff]
        %v1291 = vld [vmem:[%s202 + $0x1f38] sm:$0xff]
        %v1292 = vld [vmem:[%s202 + $0x1f40] sm:$0xff]
        %v1293 = vld [vmem:[%s202 + $0x1f48] sm:$0xff]
        %v1294 = vld [vmem:[%s202 + $0x1f50] sm:$0xff]
        %v1295 = vld [vmem:[%s202 + $0x1f58] sm:$0xff]
        %v1296 = vld [vmem:[%s202 + $0x1f60] sm:$0xff]
        %v1297 = vld [vmem:[%s202 + $0x1f68] sm:$0xff]
        %v1298 = vld [vmem:[%s202 + $0x1f70] sm:$0xff]
        %v1299 = vld [vmem:[%s202 + $0x1f78] sm:$0xff]
        %v1300 = vld [vmem:[%s202 + $0x1f80] sm:$0xff]
        %v1301 = vld [vmem:[%s202 + $0x1f88] sm:$0xff]
        %v1302 = vld [vmem:[%s202 + $0x1f90] sm:$0xff]
        %v1303 = vld [vmem:[%s202 + $0x1f98] sm:$0xff]
        %v1304 = vld [vmem:[%s202 + $0x1fa0] sm:$0xff]
        %v1305 = vld [vmem:[%s202 + $0x1fa8] sm:$0xff]
        %v1306 = vld [vmem:[%s202 + $0x1fb0] sm:$0xff]
        %v1307 = vld [vmem:[%s202 + $0x1fb8] sm:$0xff]
        %v1308 = vld [vmem:[%s202 + $0x1fc0] sm:$0xff]
        %v1309 = vld [vmem:[%s202 + $0x1fc8] sm:$0xff]
        %v1310 = vld [vmem:[%s202 + $0x1fd0] sm:$0xff]
        %v1311 = vld [vmem:[%s202 + $0x1fd8] sm:$0xff]
        %v1312 = vld [vmem:[%s202 + $0x1fe0] sm:$0xff]
        %v1313 = vld [vmem:[%s202 + $0x1fe8] sm:$0xff]
        %v1314 = vld [vmem:[%s202 + $0x1ff0] sm:$0xff]
        %v1315 = vld [vmem:[%s202 + $0x1ff8] sm:$0xff]
        %v1316 = vld [vmem:[%s202 + $0x2000] sm:$0xff]
        %v1317 = vld [vmem:[%s202 + $0x2008] sm:$0xff]
        %v1318 = vld [vmem:[%s202 + $0x2010] sm:$0xff]
        %v1319 = vld [vmem:[%s202 + $0x2018] sm:$0xff]
        %v1320 = vld [vmem:[%s202 + $0x2020] sm:$0xff]
        %v1321 = vld [vmem:[%s202 + $0x2028] sm:$0xff]
        %v1322 = vld [vmem:[%s202 + $0x2030] sm:$0xff]
        %v1323 = vld [vmem:[%s202 + $0x2038] sm:$0xff]
        %v1324 = vld [vmem:[%s202 + $0x2040] sm:$0xff]
        %v1325 = vld [vmem:[%s202 + $0x2048] sm:$0xff]
        %v1326 = vld [vmem:[%s202 + $0x2050] sm:$0xff]
        %v1327 = vld [vmem:[%s202 + $0x2058] sm:$0xff]
        %v1328 = vld [vmem:[%s202 + $0x2060] sm:$0xff]
        %v1329 = vld [vmem:[%s202 + $0x2068] sm:$0xff]
        %v1330 = vld [vmem:[%s202 + $0x2070] sm:$0xff]
        %v1331 = vld [vmem:[%s202 + $0x2078] sm:$0xff]
        %v1332 = vld [vmem:[%s202 + $0x2080] sm:$0xff]
        %v1333 = vld [vmem:[%s202 + $0x2088] sm:$0xff]
        %v1334 = vld [vmem:[%s202 + $0x2090] sm:$0xff]
        %v1335 = vld [vmem:[%s202 + $0x2098] sm:$0xff]
        %v1336 = vld [vmem:[%s202 + $0x20a0] sm:$0xff]
        %v1337 = vld [vmem:[%s202 + $0x20a8] sm:$0xff]
        %v1338 = vld [vmem:[%s202 + $0x20b0] sm:$0xff]
        %v1339 = vld [vmem:[%s202 + $0x20b8] sm:$0xff]
        %v1340 = vld [vmem:[%s202 + $0x20c0] sm:$0xff]
        %v1341 = vld [vmem:[%s202 + $0x20c8] sm:$0xff]
        %v1342 = vld [vmem:[%s202 + $0x20d0] sm:$0xff]
        %v1343 = vld [vmem:[%s202 + $0x20d8] sm:$0xff]
        %v1344 = vld [vmem:[%s202 + $0x20e0] sm:$0xff]
        %v1345 = vld [vmem:[%s202 + $0x20e8] sm:$0xff]
        %v1346 = vld [vmem:[%s202 + $0x20f0] sm:$0xff]
        %v1347 = vld [vmem:[%s202 + $0x20f8] sm:$0xff]
        %v1348 = vld [vmem:[%s202 + $0x2100] sm:$0xff]
        %v1349 = vld [vmem:[%s202 + $0x2108] sm:$0xff]
        %v1350 = vld [vmem:[%s202 + $0x2110] sm:$0xff]
        %v1351 = vld [vmem:[%s202 + $0x2118] sm:$0xff]
        %v1352 = vld [vmem:[%s202 + $0x2120] sm:$0xff]
        %v1353 = vld [vmem:[%s202 + $0x2128] sm:$0xff]
        %v1354 = vld [vmem:[%s202 + $0x2130] sm:$0xff]
        %v1355 = vld [vmem:[%s202 + $0x2138] sm:$0xff]
        %v1356 = vld [vmem:[%s202 + $0x2140] sm:$0xff]
        %v1357 = vld [vmem:[%s202 + $0x2148] sm:$0xff]
        %v1358 = vld [vmem:[%s202 + $0x2150] sm:$0xff]
        %v1359 = vld [vmem:[%s202 + $0x2158] sm:$0xff]
        %v1360 = vld [vmem:[%s202 + $0x2160] sm:$0xff]
        %v1361 = vld [vmem:[%s202 + $0x2168] sm:$0xff]
        %v1362 = vld [vmem:[%s202 + $0x2170] sm:$0xff]
        %v1363 = vld [vmem:[%s202 + $0x2178] sm:$0xff]
        %v1364 = vld [vmem:[%s202 + $0x2180] sm:$0xff]
        %v1365 = vld [vmem:[%s202 + $0x2188] sm:$0xff]
        %v1366 = vld [vmem:[%s202 + $0x2190] sm:$0xff]
        %v1367 = vld [vmem:[%s202 + $0x2198] sm:$0xff]
        %v1368 = vld [vmem:[%s202 + $0x21a0] sm:$0xff]
        %v1369 = vld [vmem:[%s202 + $0x21a8] sm:$0xff]
        %v1370 = vld [vmem:[%s202 + $0x21b0] sm:$0xff]
        %v1371 = vld [vmem:[%s202 + $0x21b8] sm:$0xff]
        %v1372 = vld [vmem:[%s202 + $0x21c0] sm:$0xff]
        %v1373 = vld [vmem:[%s202 + $0x21c8] sm:$0xff]
        %v1374 = vld [vmem:[%s202 + $0x21d0] sm:$0xff]
        %v1375 = vld [vmem:[%s202 + $0x21d8] sm:$0xff]
        %v1376 = vld [vmem:[%s202 + $0x21e0] sm:$0xff]
        %v1377 = vld [vmem:[%s202 + $0x21e8] sm:$0xff]
        %v1378 = vld [vmem:[%s202 + $0x21f0] sm:$0xff]
        %v1379 = vld [vmem:[%s202 + $0x21f8] sm:$0xff]
        %v1380 = vld [vmem:[%s202 + $0x2200] sm:$0xff]
        %v1381 = vld [vmem:[%s202 + $0x2208] sm:$0xff]
        %v1382 = vld [vmem:[%s202 + $0x2210] sm:$0xff]
        %v1383 = vld [vmem:[%s202 + $0x2218] sm:$0xff]
        %v1384 = vld [vmem:[%s202 + $0x2220] sm:$0xff]
        %v1385 = vld [vmem:[%s202 + $0x2228] sm:$0xff]
        %v1386 = vld [vmem:[%s202 + $0x2230] sm:$0xff]
        %v1387 = vld [vmem:[%s202 + $0x2238] sm:$0xff]
        %v1388 = vld [vmem:[%s202 + $0x2240] sm:$0xff]
        %v1389 = vld [vmem:[%s202 + $0x2248] sm:$0xff]
        %v1390 = vld [vmem:[%s202 + $0x2250] sm:$0xff]
        %v1391 = vld [vmem:[%s202 + $0x2258] sm:$0xff]
        %v1392 = vld [vmem:[%s202 + $0x2260] sm:$0xff]
        %v1393 = vld [vmem:[%s202 + $0x2268] sm:$0xff]
        %v1394 = vld [vmem:[%s202 + $0x2270] sm:$0xff]
        %v1395 = vld [vmem:[%s202 + $0x2278] sm:$0xff]
        %v1396 = vld [vmem:[%s202 + $0x2280] sm:$0xff]
        %v1397 = vld [vmem:[%s202 + $0x2288] sm:$0xff]
        %v1398 = vld [vmem:[%s202 + $0x2290] sm:$0xff]
        %v1399 = vld [vmem:[%s202 + $0x2298] sm:$0xff]
        %v1400 = vld [vmem:[%s202 + $0x22a0] sm:$0xff]
        %v1401 = vld [vmem:[%s202 + $0x22a8] sm:$0xff]
        %v1402 = vld [vmem:[%s202 + $0x22b0] sm:$0xff]
        %v1403 = vld [vmem:[%s202 + $0x22b8] sm:$0xff]
        %v1404 = vld [vmem:[%s202 + $0x22c0] sm:$0xff]
        %v1405 = vld [vmem:[%s202 + $0x22c8] sm:$0xff]
        %v1406 = vld [vmem:[%s202 + $0x22d0] sm:$0xff]
        %v1407 = vld [vmem:[%s202 + $0x22d8] sm:$0xff]
        %v1408 = vld [vmem:[%s202 + $0x22e0] sm:$0xff]
        %v1409 = vld [vmem:[%s202 + $0x22e8] sm:$0xff]
        %v1410 = vld [vmem:[%s202 + $0x22f0] sm:$0xff]
        %v1411 = vld [vmem:[%s202 + $0x22f8] sm:$0xff]
        %v1412 = vld [vmem:[%s202 + $0x2300] sm:$0xff]
        %v1413 = vld [vmem:[%s202 + $0x2308] sm:$0xff]
        %v1414 = vld [vmem:[%s202 + $0x2310] sm:$0xff]
        %v1415 = vld [vmem:[%s202 + $0x2318] sm:$0xff]
        %v1416 = vld [vmem:[%s202 + $0x2320] sm:$0xff]
        %v1417 = vld [vmem:[%s202 + $0x2328] sm:$0xff]
        %v1418 = vld [vmem:[%s202 + $0x2330] sm:$0xff]
        %v1419 = vld [vmem:[%s202 + $0x2338] sm:$0xff]
        %v1420 = vld [vmem:[%s202 + $0x2340] sm:$0xff]
        %v1421 = vld [vmem:[%s202 + $0x2348] sm:$0xff]
        %v1422 = vld [vmem:[%s202 + $0x2350] sm:$0xff]
        %v1423 = vld [vmem:[%s202 + $0x2358] sm:$0xff]
        %v1424 = vld [vmem:[%s202 + $0x2360] sm:$0xff]
        %v1425 = vld [vmem:[%s202 + $0x2368] sm:$0xff]
        %v1426 = vld [vmem:[%s202 + $0x2370] sm:$0xff]
        %v1427 = vld [vmem:[%s202 + $0x2378] sm:$0xff]
        %v1428 = vld [vmem:[%s202 + $0x2380] sm:$0xff]
        %v1429 = vld [vmem:[%s202 + $0x2388] sm:$0xff]
        %v1430 = vld [vmem:[%s202 + $0x2390] sm:$0xff]
        %v1431 = vld [vmem:[%s202 + $0x2398] sm:$0xff]
        %v1432 = vld [vmem:[%s202 + $0x23a0] sm:$0xff]
        %v1433 = vld [vmem:[%s202 + $0x23a8] sm:$0xff]
        %v1434 = vld [vmem:[%s202 + $0x23b0] sm:$0xff]
        %v1435 = vld [vmem:[%s202 + $0x23b8] sm:$0xff]
        %v1436 = vld [vmem:[%s202 + $0x23c0] sm:$0xff]
        %v1437 = vld [vmem:[%s202 + $0x23c8] sm:$0xff]
        %v1438 = vld [vmem:[%s202 + $0x23d0] sm:$0xff]
        %v1439 = vld [vmem:[%s202 + $0x23d8] sm:$0xff]
        %v1440 = vld [vmem:[%s202 + $0x23e0] sm:$0xff]
        %v1441 = vld [vmem:[%s202 + $0x23e8] sm:$0xff]
        %v1442 = vld [vmem:[%s202 + $0x23f0] sm:$0xff]
        %v1443 = vld [vmem:[%s202 + $0x23f8] sm:$0xff]
        %v1444 = vld [vmem:[%s202 + $0x2400] sm:$0xff]
        %v1445 = vld [vmem:[%s202 + $0x2408] sm:$0xff]
        %v1446 = vld [vmem:[%s202 + $0x2410] sm:$0xff]
        %v1447 = vld [vmem:[%s202 + $0x2418] sm:$0xff]
        %v1448 = vld [vmem:[%s202 + $0x2420] sm:$0xff]
        %v1449 = vld [vmem:[%s202 + $0x2428] sm:$0xff]
        %v1450 = vld [vmem:[%s202 + $0x2430] sm:$0xff]
        %v1451 = vld [vmem:[%s202 + $0x2438] sm:$0xff]
        %v1452 = vld [vmem:[%s202 + $0x2440] sm:$0xff]
        %v1453 = vld [vmem:[%s202 + $0x2448] sm:$0xff]
        %v1454 = vld [vmem:[%s202 + $0x2450] sm:$0xff]
        %v1455 = vld [vmem:[%s202 + $0x2458] sm:$0xff]
        %v1456 = vld [vmem:[%s202 + $0x2460] sm:$0xff]
        %v1457 = vld [vmem:[%s202 + $0x2468] sm:$0xff]
        %v1458 = vld [vmem:[%s202 + $0x2470] sm:$0xff]
        %v1459 = vld [vmem:[%s202 + $0x2478] sm:$0xff]
        %v1460 = vld [vmem:[%s202 + $0x2480] sm:$0xff]
        %v1461 = vld [vmem:[%s202 + $0x2488] sm:$0xff]
        %v1462 = vld [vmem:[%s202 + $0x2490] sm:$0xff]
        %v1463 = vld [vmem:[%s202 + $0x2498] sm:$0xff]
        %v1464 = vld [vmem:[%s202 + $0x24a0] sm:$0xff]
        %v1465 = vld [vmem:[%s202 + $0x24a8] sm:$0xff]
        %v1466 = vld [vmem:[%s202 + $0x24b0] sm:$0xff]
        %v1467 = vld [vmem:[%s202 + $0x24b8] sm:$0xff]
        %v1468 = vld [vmem:[%s202 + $0x24c0] sm:$0xff]
        %v1469 = vld [vmem:[%s202 + $0x24c8] sm:$0xff]
        %v1470 = vld [vmem:[%s202 + $0x24d0] sm:$0xff]
        %v1471 = vld [vmem:[%s202 + $0x24d8] sm:$0xff]
        %v1472 = vld [vmem:[%s202 + $0x24e0] sm:$0xff]
        %v1473 = vld [vmem:[%s202 + $0x24e8] sm:$0xff]
        %v1474 = vld [vmem:[%s202 + $0x24f0] sm:$0xff]
        %v1475 = vld [vmem:[%s202 + $0x24f8] sm:$0xff]
        %v1476 = vld [vmem:[%s202 + $0x2500] sm:$0xff]
        %v1477 = vld [vmem:[%s202 + $0x2508] sm:$0xff]
        %v1478 = vld [vmem:[%s202 + $0x2510] sm:$0xff]
        %v1479 = vld [vmem:[%s202 + $0x2518] sm:$0xff]
        %v1480 = vld [vmem:[%s202 + $0x2520] sm:$0xff]
        %v1481 = vld [vmem:[%s202 + $0x2528] sm:$0xff]
        %v1482 = vld [vmem:[%s202 + $0x2530] sm:$0xff]
        %v1483 = vld [vmem:[%s202 + $0x2538] sm:$0xff]
        %v1484 = vld [vmem:[%s202 + $0x2540] sm:$0xff]
        %v1485 = vld [vmem:[%s202 + $0x2548] sm:$0xff]
        %v1486 = vld [vmem:[%s202 + $0x2550] sm:$0xff]
        %v1487 = vld [vmem:[%s202 + $0x2558] sm:$0xff]
        %v1488 = vld [vmem:[%s202 + $0x2560] sm:$0xff]
        %v1489 = vld [vmem:[%s202 + $0x2568] sm:$0xff]
        %v1490 = vld [vmem:[%s202 + $0x2570] sm:$0xff]
        %v1491 = vld [vmem:[%s202 + $0x2578] sm:$0xff]
        %v1492 = vld [vmem:[%s202 + $0x2580] sm:$0xff]
        %v1493 = vld [vmem:[%s202 + $0x2588] sm:$0xff]
        %v1494 = vld [vmem:[%s202 + $0x2590] sm:$0xff]
        %v1495 = vld [vmem:[%s202 + $0x2598] sm:$0xff]
        %v1496 = vld [vmem:[%s202 + $0x25a0] sm:$0xff]
        %v1497 = vld [vmem:[%s202 + $0x25a8] sm:$0xff]
        %v1498 = vld [vmem:[%s202 + $0x25b0] sm:$0xff]
        %v1499 = vld [vmem:[%s202 + $0x25b8] sm:$0xff]
        %v1500 = vld [vmem:[%s202 + $0x25c0] sm:$0xff]
        %v1501 = vld [vmem:[%s202 + $0x25c8] sm:$0xff]
        %v1502 = vld [vmem:[%s202 + $0x25d0] sm:$0xff]
        %v1503 = vld [vmem:[%s202 + $0x25d8] sm:$0xff]
        %v1504 = vld [vmem:[%s202 + $0x25e0] sm:$0xff]
        %v1505 = vld [vmem:[%s202 + $0x25e8] sm:$0xff]
        %v1506 = vld [vmem:[%s202 + $0x25f0] sm:$0xff]
        %v1507 = vld [vmem:[%s202 + $0x25f8] sm:$0xff]
        %v1508 = vld [vmem:[%s202 + $0x2600] sm:$0xff]
        %v1509 = vld [vmem:[%s202 + $0x2608] sm:$0xff]
        %v1510 = vld [vmem:[%s202 + $0x2610] sm:$0xff]
        %v1511 = vld [vmem:[%s202 + $0x2618] sm:$0xff]
        %v1512 = vld [vmem:[%s202 + $0x2620] sm:$0xff]
        %v1513 = vld [vmem:[%s202 + $0x2628] sm:$0xff]
        %v1514 = vld [vmem:[%s202 + $0x2630] sm:$0xff]
        %v1515 = vld [vmem:[%s202 + $0x2638] sm:$0xff]
        %v1516 = vld [vmem:[%s202 + $0x2640] sm:$0xff]
        %v1517 = vld [vmem:[%s202 + $0x2648] sm:$0xff]
        %v1518 = vld [vmem:[%s202 + $0x2650] sm:$0xff]
        %v1519 = vld [vmem:[%s202 + $0x2658] sm:$0xff]
        %v1520 = vld [vmem:[%s202 + $0x2660] sm:$0xff]
        %v1521 = vld [vmem:[%s202 + $0x2668] sm:$0xff]
        %v1522 = vld [vmem:[%s202 + $0x2670] sm:$0xff]
        %v1523 = vld [vmem:[%s202 + $0x2678] sm:$0xff]
        %v1524 = vld [vmem:[%s202 + $0x2680] sm:$0xff]
        %v1525 = vld [vmem:[%s202 + $0x2688] sm:$0xff]
        %v1526 = vld [vmem:[%s202 + $0x2690] sm:$0xff]
        %v1527 = vld [vmem:[%s202 + $0x2698] sm:$0xff]
        %v1528 = vld [vmem:[%s202 + $0x26a0] sm:$0xff]
        %v1529 = vld [vmem:[%s202 + $0x26a8] sm:$0xff]
        %v1530 = vld [vmem:[%s202 + $0x26b0] sm:$0xff]
        %v1531 = vld [vmem:[%s202 + $0x26b8] sm:$0xff]
        %v1532 = vld [vmem:[%s202 + $0x26c0] sm:$0xff]
        %v1533 = vld [vmem:[%s202 + $0x26c8] sm:$0xff]
        %v1534 = vld [vmem:[%s202 + $0x26d0] sm:$0xff]
        %v1535 = vld [vmem:[%s202 + $0x26d8] sm:$0xff]
        %v1536 = vld [vmem:[%s202 + $0x26e0] sm:$0xff]
        %v1537 = vld [vmem:[%s202 + $0x26e8] sm:$0xff]
        %v1538 = vld [vmem:[%s202 + $0x26f0] sm:$0xff]
        %v1539 = vld [vmem:[%s202 + $0x26f8] sm:$0xff]
        %v1540 = vld [vmem:[%s202 + $0x2700] sm:$0xff]
        %v1541 = vld [vmem:[%s202 + $0x2708] sm:$0xff]
        %v1542 = vld [vmem:[%s202 + $0x2710] sm:$0xff]
        %v1543 = vld [vmem:[%s202 + $0x2718] sm:$0xff]
        %v1544 = vld [vmem:[%s202 + $0x2720] sm:$0xff]
        %v1545 = vld [vmem:[%s202 + $0x2728] sm:$0xff]
        %v1546 = vld [vmem:[%s202 + $0x2730] sm:$0xff]
        %v1547 = vld [vmem:[%s202 + $0x2738] sm:$0xff]
        %v1548 = vld [vmem:[%s202 + $0x2740] sm:$0xff]
        %v1549 = vld [vmem:[%s202 + $0x2748] sm:$0xff]
        %v1550 = vld [vmem:[%s202 + $0x2750] sm:$0xff]
        %v1551 = vld [vmem:[%s202 + $0x2758] sm:$0xff]
        %v1552 = vld [vmem:[%s202 + $0x2760] sm:$0xff]
        %v1553 = vld [vmem:[%s202 + $0x2768] sm:$0xff]
        %v1554 = vld [vmem:[%s202 + $0x2770] sm:$0xff]
        %v1555 = vld [vmem:[%s202 + $0x2778] sm:$0xff]
        %v1556 = vld [vmem:[%s202 + $0x2780] sm:$0xff]
        %v1557 = vld [vmem:[%s202 + $0x2788] sm:$0xff]
        %v1558 = vld [vmem:[%s202 + $0x2790] sm:$0xff]
        %v1559 = vld [vmem:[%s202 + $0x2798] sm:$0xff]
        %v1560 = vld [vmem:[%s202 + $0x27a0] sm:$0xff]
        %v1561 = vld [vmem:[%s202 + $0x27a8] sm:$0xff]
        %v1562 = vld [vmem:[%s202 + $0x27b0] sm:$0xff]
        %v1563 = vld [vmem:[%s202 + $0x27b8] sm:$0xff]
        %v1564 = vld [vmem:[%s202 + $0x27c0] sm:$0xff]
        %v1565 = vld [vmem:[%s202 + $0x27c8] sm:$0xff]
        %v1566 = vld [vmem:[%s202 + $0x27d0] sm:$0xff]
        %v1567 = vld [vmem:[%s202 + $0x27d8] sm:$0xff]
        %v1568 = vld [vmem:[%s202 + $0x27e0] sm:$0xff]
        %v1569 = vld [vmem:[%s202 + $0x27e8] sm:$0xff]
        %v1570 = vld [vmem:[%s202 + $0x27f0] sm:$0xff]
        %v1571 = vld [vmem:[%s202 + $0x27f8] sm:$0xff]
        %v1572 = vld [vmem:[%s202 + $0x2800] sm:$0xff]
        %v1573 = vld [vmem:[%s202 + $0x2808] sm:$0xff]
        %v1574 = vld [vmem:[%s202 + $0x2810] sm:$0xff]
        %v1575 = vld [vmem:[%s202 + $0x2818] sm:$0xff]
        %v1576 = vld [vmem:[%s202 + $0x2820] sm:$0xff]
        %v1577 = vld [vmem:[%s202 + $0x2828] sm:$0xff]
        %v1578 = vld [vmem:[%s202 + $0x2830] sm:$0xff]
        %v1579 = vld [vmem:[%s202 + $0x2838] sm:$0xff]
        %v1580 = vld [vmem:[%s202 + $0x2840] sm:$0xff]
        %v1581 = vld [vmem:[%s202 + $0x2848] sm:$0xff]
        %v1582 = vld [vmem:[%s202 + $0x2850] sm:$0xff]
        %v1583 = vld [vmem:[%s202 + $0x2858] sm:$0xff]
        %v1584 = vld [vmem:[%s202 + $0x2860] sm:$0xff]
        %v1585 = vld [vmem:[%s202 + $0x2868] sm:$0xff]
        %v1586 = vld [vmem:[%s202 + $0x2870] sm:$0xff]
        %v1587 = vld [vmem:[%s202 + $0x2878] sm:$0xff]
        %v1588 = vld [vmem:[%s202 + $0x2880] sm:$0xff]
        %v1589 = vld [vmem:[%s202 + $0x2888] sm:$0xff]
        %v1590 = vld [vmem:[%s202 + $0x2890] sm:$0xff]
        %v1591 = vld [vmem:[%s202 + $0x2898] sm:$0xff]
        %v1592 = vld [vmem:[%s202 + $0x28a0] sm:$0xff]
        %v1593 = vld [vmem:[%s202 + $0x28a8] sm:$0xff]
        %v1594 = vld [vmem:[%s202 + $0x28b0] sm:$0xff]
        %v1595 = vld [vmem:[%s202 + $0x28b8] sm:$0xff]
        %v1596 = vld [vmem:[%s202 + $0x28c0] sm:$0xff]
        %v1597 = vld [vmem:[%s202 + $0x28c8] sm:$0xff]
        %v1598 = vld [vmem:[%s202 + $0x28d0] sm:$0xff]
        %v1599 = vld [vmem:[%s202 + $0x28d8] sm:$0xff]
        %v1600 = vld [vmem:[%s202 + $0x28e0] sm:$0xff]
        %v1601 = vld [vmem:[%s202 + $0x28e8] sm:$0xff]
        %v1602 = vld [vmem:[%s202 + $0x28f0] sm:$0xff]
        %v1603 = vld [vmem:[%s202 + $0x28f8] sm:$0xff]
        %v1604 = vld [vmem:[%s202 + $0x2900] sm:$0xff]
        %v1605 = vld [vmem:[%s202 + $0x2908] sm:$0xff]
        %v1606 = vld [vmem:[%s202 + $0x2910] sm:$0xff]
        %v1607 = vld [vmem:[%s202 + $0x2918] sm:$0xff]
        %v1608 = vld [vmem:[%s202 + $0x2920] sm:$0xff]
        %v1609 = vld [vmem:[%s202 + $0x2928] sm:$0xff]
        %v1610 = vld [vmem:[%s202 + $0x2930] sm:$0xff]
        %v1611 = vld [vmem:[%s202 + $0x2938] sm:$0xff]
        %v1612 = vld [vmem:[%s202 + $0x2940] sm:$0xff]
        %v1613 = vld [vmem:[%s202 + $0x2948] sm:$0xff]
        %v1614 = vld [vmem:[%s202 + $0x2950] sm:$0xff]
        %v1615 = vld [vmem:[%s202 + $0x2958] sm:$0xff]
        %v1616 = vld [vmem:[%s202 + $0x2960] sm:$0xff]
        %v1617 = vld [vmem:[%s202 + $0x2968] sm:$0xff]
        %v1618 = vld [vmem:[%s202 + $0x2970] sm:$0xff]
        %v1619 = vld [vmem:[%s202 + $0x2978] sm:$0xff]
        %v1620 = vld [vmem:[%s202 + $0x2980] sm:$0xff]
        %v1621 = vld [vmem:[%s202 + $0x2988] sm:$0xff]
        %v1622 = vld [vmem:[%s202 + $0x2990] sm:$0xff]
        %v1623 = vld [vmem:[%s202 + $0x2998] sm:$0xff]
        %v1624 = vld [vmem:[%s202 + $0x29a0] sm:$0xff]
        %v1625 = vld [vmem:[%s202 + $0x29a8] sm:$0xff]
        %v1626 = vld [vmem:[%s202 + $0x29b0] sm:$0xff]
        %v1627 = vld [vmem:[%s202 + $0x29b8] sm:$0xff]
        %v1628 = vld [vmem:[%s202 + $0x29c0] sm:$0xff]
        %v1629 = vld [vmem:[%s202 + $0x29c8] sm:$0xff]
        %v1630 = vld [vmem:[%s202 + $0x29d0] sm:$0xff]
        %v1631 = vld [vmem:[%s202 + $0x29d8] sm:$0xff]
        %v1632 = vld [vmem:[%s202 + $0x29e0] sm:$0xff]
        %v1633 = vld [vmem:[%s202 + $0x29e8] sm:$0xff]
        %v1634 = vld [vmem:[%s202 + $0x29f0] sm:$0xff]
        %v1635 = vld [vmem:[%s202 + $0x29f8] sm:$0xff]
        %v1636 = vld [vmem:[%s202 + $0x2a00] sm:$0xff]
        %v1637 = vld [vmem:[%s202 + $0x2a08] sm:$0xff]
        %v1638 = vld [vmem:[%s202 + $0x2a10] sm:$0xff]
        %v1639 = vld [vmem:[%s202 + $0x2a18] sm:$0xff]
        %v1640 = vld [vmem:[%s202 + $0x2a20] sm:$0xff]
        %v1641 = vld [vmem:[%s202 + $0x2a28] sm:$0xff]
        %v1642 = vld [vmem:[%s202 + $0x2a30] sm:$0xff]
        %v1643 = vld [vmem:[%s202 + $0x2a38] sm:$0xff]
        %v1644 = vld [vmem:[%s202 + $0x2a40] sm:$0xff]
        %v1645 = vld [vmem:[%s202 + $0x2a48] sm:$0xff]
        %v1646 = vld [vmem:[%s202 + $0x2a50] sm:$0xff]
        %v1647 = vld [vmem:[%s202 + $0x2a58] sm:$0xff]
        %v1648 = vld [vmem:[%s202 + $0x2a60] sm:$0xff]
        %v1649 = vld [vmem:[%s202 + $0x2a68] sm:$0xff]
        %v1650 = vld [vmem:[%s202 + $0x2a70] sm:$0xff]
        %v1651 = vld [vmem:[%s202 + $0x2a78] sm:$0xff]
        %v1652 = vld [vmem:[%s202 + $0x2a80] sm:$0xff]
        %v1653 = vld [vmem:[%s202 + $0x2a88] sm:$0xff]
        %v1654 = vld [vmem:[%s202 + $0x2a90] sm:$0xff]
        %v1655 = vld [vmem:[%s202 + $0x2a98] sm:$0xff]
        %v1656 = vld [vmem:[%s202 + $0x2aa0] sm:$0xff]
        %v1657 = vld [vmem:[%s202 + $0x2aa8] sm:$0xff]
        %v1658 = vld [vmem:[%s202 + $0x2ab0] sm:$0xff]
        %v1659 = vld [vmem:[%s202 + $0x2ab8] sm:$0xff]
        %v1660 = vld [vmem:[%s202 + $0x2ac0] sm:$0xff]
        %v1661 = vld [vmem:[%s202 + $0x2ac8] sm:$0xff]
        %v1662 = vld [vmem:[%s202 + $0x2ad0] sm:$0xff]
        %v1663 = vld [vmem:[%s202 + $0x2ad8] sm:$0xff]
        %v1664 = vld [vmem:[%s202 + $0x2ae0] sm:$0xff]
        %v1665 = vld [vmem:[%s202 + $0x2ae8] sm:$0xff]
        %v1666 = vld [vmem:[%s202 + $0x2af0] sm:$0xff]
        %v1667 = vld [vmem:[%s202 + $0x2af8] sm:$0xff]
        %v1668 = vld [vmem:[%s202 + $0x2b00] sm:$0xff]
        %v1669 = vld [vmem:[%s202 + $0x2b08] sm:$0xff]
        %v1670 = vld [vmem:[%s202 + $0x2b10] sm:$0xff]
        %v1671 = vld [vmem:[%s202 + $0x2b18] sm:$0xff]
        %v1672 = vld [vmem:[%s202 + $0x2b20] sm:$0xff]
        %v1673 = vld [vmem:[%s202 + $0x2b28] sm:$0xff]
        %v1674 = vld [vmem:[%s202 + $0x2b30] sm:$0xff]
        %v1675 = vld [vmem:[%s202 + $0x2b38] sm:$0xff]
        %v1676 = vld [vmem:[%s202 + $0x2b40] sm:$0xff]
        %v1677 = vld [vmem:[%s202 + $0x2b48] sm:$0xff]
        %v1678 = vld [vmem:[%s202 + $0x2b50] sm:$0xff]
        %v1679 = vld [vmem:[%s202 + $0x2b58] sm:$0xff]
        %v1680 = vld [vmem:[%s202 + $0x2b60] sm:$0xff]
        %v1681 = vld [vmem:[%s202 + $0x2b68] sm:$0xff]
        %v1682 = vld [vmem:[%s202 + $0x2b70] sm:$0xff]
        %v1683 = vld [vmem:[%s202 + $0x2b78] sm:$0xff]
        %v1684 = vld [vmem:[%s202 + $0x2b80] sm:$0xff]
        %v1685 = vld [vmem:[%s202 + $0x2b88] sm:$0xff]
        %v1686 = vld [vmem:[%s202 + $0x2b90] sm:$0xff]
        %v1687 = vld [vmem:[%s202 + $0x2b98] sm:$0xff]
        %v1688 = vld [vmem:[%s202 + $0x2ba0] sm:$0xff]
        %v1689 = vld [vmem:[%s202 + $0x2ba8] sm:$0xff]
        %v1690 = vld [vmem:[%s202 + $0x2bb0] sm:$0xff]
        %v1691 = vld [vmem:[%s202 + $0x2bb8] sm:$0xff]
        %v1692 = vld [vmem:[%s202 + $0x2bc0] sm:$0xff]
        %v1693 = vld [vmem:[%s202 + $0x2bc8] sm:$0xff]
        %v1694 = vld [vmem:[%s202 + $0x2bd0] sm:$0xff]
        %v1695 = vld [vmem:[%s202 + $0x2bd8] sm:$0xff]
        %v1696 = vld [vmem:[%s202 + $0x2be0] sm:$0xff]
        %v1697 = vld [vmem:[%s202 + $0x2be8] sm:$0xff]
        %v1698 = vld [vmem:[%s202 + $0x2bf0] sm:$0xff]
        %v1699 = vld [vmem:[%s202 + $0x2bf8] sm:$0xff]
        %v1700 = vld [vmem:[%s202 + $0x2c00] sm:$0xff]
        %v1701 = vld [vmem:[%s202 + $0x2c08] sm:$0xff]
        %v1702 = vld [vmem:[%s202 + $0x2c10] sm:$0xff]
        %v1703 = vld [vmem:[%s202 + $0x2c18] sm:$0xff]
        %v1704 = vld [vmem:[%s202 + $0x2c20] sm:$0xff]
        %v1705 = vld [vmem:[%s202 + $0x2c28] sm:$0xff]
        %v1706 = vld [vmem:[%s202 + $0x2c30] sm:$0xff]
        %v1707 = vld [vmem:[%s202 + $0x2c38] sm:$0xff]
        %v1708 = vld [vmem:[%s202 + $0x2c40] sm:$0xff]
        %v1709 = vld [vmem:[%s202 + $0x2c48] sm:$0xff]
        %v1710 = vld [vmem:[%s202 + $0x2c50] sm:$0xff]
        %v1711 = vld [vmem:[%s202 + $0x2c58] sm:$0xff]
        %v1712 = vld [vmem:[%s202 + $0x2c60] sm:$0xff]
        %v1713 = vld [vmem:[%s202 + $0x2c68] sm:$0xff]
        %v1714 = vld [vmem:[%s202 + $0x2c70] sm:$0xff]
        %v1715 = vld [vmem:[%s202 + $0x2c78] sm:$0xff]
        %v1716 = vld [vmem:[%s202 + $0x2c80] sm:$0xff]
        %v1717 = vld [vmem:[%s202 + $0x2c88] sm:$0xff]
        %v1718 = vld [vmem:[%s202 + $0x2c90] sm:$0xff]
        %v1719 = vld [vmem:[%s202 + $0x2c98] sm:$0xff]
        %v1720 = vld [vmem:[%s202 + $0x2ca0] sm:$0xff]
        %v1721 = vld [vmem:[%s202 + $0x2ca8] sm:$0xff]
        %v1722 = vld [vmem:[%s202 + $0x2cb0] sm:$0xff]
        %v1723 = vld [vmem:[%s202 + $0x2cb8] sm:$0xff]
        %v1724 = vld [vmem:[%s202 + $0x2cc0] sm:$0xff]
        %v1725 = vld [vmem:[%s202 + $0x2cc8] sm:$0xff]
        %v1726 = vld [vmem:[%s202 + $0x2cd0] sm:$0xff]
        %v1727 = vld [vmem:[%s202 + $0x2cd8] sm:$0xff]
        %v1728 = vld [vmem:[%s202 + $0x2ce0] sm:$0xff]
        %v1729 = vld [vmem:[%s202 + $0x2ce8] sm:$0xff]
        %v1730 = vld [vmem:[%s202 + $0x2cf0] sm:$0xff]
        %v1731 = vld [vmem:[%s202 + $0x2cf8] sm:$0xff]
        %v1732 = vld [vmem:[%s202 + $0x2d00] sm:$0xff]
        %v1733 = vld [vmem:[%s202 + $0x2d08] sm:$0xff]
        %v1734 = vld [vmem:[%s202 + $0x2d10] sm:$0xff]
        %v1735 = vld [vmem:[%s202 + $0x2d18] sm:$0xff]
        %v1736 = vld [vmem:[%s202 + $0x2d20] sm:$0xff]
        %v1737 = vld [vmem:[%s202 + $0x2d28] sm:$0xff]
        %v1738 = vld [vmem:[%s202 + $0x2d30] sm:$0xff]
        %v1739 = vld [vmem:[%s202 + $0x2d38] sm:$0xff]
        %v1740 = vld [vmem:[%s202 + $0x2d40] sm:$0xff]
        %v1741 = vld [vmem:[%s202 + $0x2d48] sm:$0xff]
        %v1742 = vld [vmem:[%s202 + $0x2d50] sm:$0xff]
        %v1743 = vld [vmem:[%s202 + $0x2d58] sm:$0xff]
        %v1744 = vld [vmem:[%s202 + $0x2d60] sm:$0xff]
        %v1745 = vld [vmem:[%s202 + $0x2d68] sm:$0xff]
        %v1746 = vld [vmem:[%s202 + $0x2d70] sm:$0xff]
        %v1747 = vld [vmem:[%s202 + $0x2d78] sm:$0xff]
        %v1748 = vld [vmem:[%s202 + $0x2d80] sm:$0xff]
        %v1749 = vld [vmem:[%s202 + $0x2d88] sm:$0xff]
        %v1750 = vld [vmem:[%s202 + $0x2d90] sm:$0xff]
        %v1751 = vld [vmem:[%s202 + $0x2d98] sm:$0xff]
        %v1752 = vld [vmem:[%s202 + $0x2da0] sm:$0xff]
        %v1753 = vld [vmem:[%s202 + $0x2da8] sm:$0xff]
        %v1754 = vld [vmem:[%s202 + $0x2db0] sm:$0xff]
        %v1755 = vld [vmem:[%s202 + $0x2db8] sm:$0xff]
        %v1756 = vld [vmem:[%s202 + $0x2dc0] sm:$0xff]
        %v1757 = vld [vmem:[%s202 + $0x2dc8] sm:$0xff]
        %v1758 = vld [vmem:[%s202 + $0x2dd0] sm:$0xff]
        %v1759 = vld [vmem:[%s202 + $0x2dd8] sm:$0xff]
        %v1760 = vld [vmem:[%s202 + $0x2de0] sm:$0xff]
        %v1761 = vld [vmem:[%s202 + $0x2de8] sm:$0xff]
        %v1762 = vld [vmem:[%s202 + $0x2df0] sm:$0xff]
        %v1763 = vld [vmem:[%s202 + $0x2df8] sm:$0xff]
        %v1764 = vld [vmem:[%s202 + $0x2e00] sm:$0xff]
        %v1765 = vld [vmem:[%s202 + $0x2e08] sm:$0xff]
        %v1766 = vld [vmem:[%s202 + $0x2e10] sm:$0xff]
        %v1767 = vld [vmem:[%s202 + $0x2e18] sm:$0xff]
        %v1768 = vld [vmem:[%s202 + $0x2e20] sm:$0xff]
        %v1769 = vld [vmem:[%s202 + $0x2e28] sm:$0xff]
        %v1770 = vld [vmem:[%s202 + $0x2e30] sm:$0xff]
        %v1771 = vld [vmem:[%s202 + $0x2e38] sm:$0xff]
        %v1772 = vld [vmem:[%s202 + $0x2e40] sm:$0xff]
        %v1773 = vld [vmem:[%s202 + $0x2e48] sm:$0xff]
        %v1774 = vld [vmem:[%s202 + $0x2e50] sm:$0xff]
        %v1775 = vld [vmem:[%s202 + $0x2e58] sm:$0xff]
        %v1776 = vld [vmem:[%s202 + $0x2e60] sm:$0xff]
        %v1777 = vld [vmem:[%s202 + $0x2e68] sm:$0xff]
        %v1778 = vld [vmem:[%s202 + $0x2e70] sm:$0xff]
        %v1779 = vld [vmem:[%s202 + $0x2e78] sm:$0xff]
        %v1780 = vld [vmem:[%s202 + $0x2e80] sm:$0xff]
        %v1781 = vld [vmem:[%s202 + $0x2e88] sm:$0xff]
        %v1782 = vld [vmem:[%s202 + $0x2e90] sm:$0xff]
        %v1783 = vld [vmem:[%s202 + $0x2e98] sm:$0xff]
        %v1784 = vld [vmem:[%s202 + $0x2ea0] sm:$0xff]
        %v1785 = vld [vmem:[%s202 + $0x2ea8] sm:$0xff]
        %v1786 = vld [vmem:[%s202 + $0x2eb0] sm:$0xff]
        %v1787 = vld [vmem:[%s202 + $0x2eb8] sm:$0xff]
        %v1788 = vld [vmem:[%s202 + $0x2ec0] sm:$0xff]
        %v1789 = vld [vmem:[%s202 + $0x2ec8] sm:$0xff]
        %v1790 = vld [vmem:[%s202 + $0x2ed0] sm:$0xff]
        %v1791 = vld [vmem:[%s202 + $0x2ed8] sm:$0xff]
        %v1792 = vld [vmem:[%s202 + $0x2ee0] sm:$0xff]
        %v1793 = vld [vmem:[%s202 + $0x2ee8] sm:$0xff]
        %v1794 = vld [vmem:[%s202 + $0x2ef0] sm:$0xff]
        %v1795 = vld [vmem:[%s202 + $0x2ef8] sm:$0xff]
        %v1796 = vld [vmem:[%s202 + $0x2f00] sm:$0xff]
        %v1797 = vld [vmem:[%s202 + $0x2f08] sm:$0xff]
        %v1798 = vld [vmem:[%s202 + $0x2f10] sm:$0xff]
        %v1799 = vld [vmem:[%s202 + $0x2f18] sm:$0xff]
        %v1800 = vld [vmem:[%s202 + $0x2f20] sm:$0xff]
        %v1801 = vld [vmem:[%s202 + $0x2f28] sm:$0xff]
        %v1802 = vld [vmem:[%s202 + $0x2f30] sm:$0xff]
        %v1803 = vld [vmem:[%s202 + $0x2f38] sm:$0xff]
        %v1804 = vld [vmem:[%s202 + $0x2f40] sm:$0xff]
        %v1805 = vld [vmem:[%s202 + $0x2f48] sm:$0xff]
        %v1806 = vld [vmem:[%s202 + $0x2f50] sm:$0xff]
        %v1807 = vld [vmem:[%s202 + $0x2f58] sm:$0xff]
        %v1808 = vld [vmem:[%s202 + $0x2f60] sm:$0xff]
        %v1809 = vld [vmem:[%s202 + $0x2f68] sm:$0xff]
        %v1810 = vld [vmem:[%s202 + $0x2f70] sm:$0xff]
        %v1811 = vld [vmem:[%s202 + $0x2f78] sm:$0xff]
        %v1812 = vld [vmem:[%s202 + $0x2f80] sm:$0xff]
        %v1813 = vld [vmem:[%s202 + $0x2f88] sm:$0xff]
        %v1814 = vld [vmem:[%s202 + $0x2f90] sm:$0xff]
        %v1815 = vld [vmem:[%s202 + $0x2f98] sm:$0xff]
        %v1816 = vld [vmem:[%s202 + $0x2fa0] sm:$0xff]
        %v1817 = vld [vmem:[%s202 + $0x2fa8] sm:$0xff]
        %v1818 = vld [vmem:[%s202 + $0x2fb0] sm:$0xff]
        %v1819 = vld [vmem:[%s202 + $0x2fb8] sm:$0xff]
        %v1820 = vld [vmem:[%s202 + $0x2fc0] sm:$0xff]
        %v1821 = vld [vmem:[%s202 + $0x2fc8] sm:$0xff]
        %v1822 = vld [vmem:[%s202 + $0x2fd0] sm:$0xff]
        %v1823 = vld [vmem:[%s202 + $0x2fd8] sm:$0xff]
        %v1824 = vld [vmem:[%s202 + $0x2fe0] sm:$0xff]
        %v1825 = vld [vmem:[%s202 + $0x2fe8] sm:$0xff]
        %v1826 = vld [vmem:[%s202 + $0x2ff0] sm:$0xff]
        %v1827 = vld [vmem:[%s202 + $0x2ff8] sm:$0xff]
        %v1828 = vld [vmem:[%s202 + $0x3000] sm:$0xff]
        %v1829 = vld [vmem:[%s202 + $0x3008] sm:$0xff]
        %v1830 = vld [vmem:[%s202 + $0x3010] sm:$0xff]
        %v1831 = vld [vmem:[%s202 + $0x3018] sm:$0xff]
        %v1832 = vld [vmem:[%s202 + $0x3020] sm:$0xff]
        %v1833 = vld [vmem:[%s202 + $0x3028] sm:$0xff]
        %v1834 = vld [vmem:[%s202 + $0x3030] sm:$0xff]
        %v1835 = vld [vmem:[%s202 + $0x3038] sm:$0xff]
        %v1836 = vld [vmem:[%s202 + $0x3040] sm:$0xff]
        %v1837 = vld [vmem:[%s202 + $0x3048] sm:$0xff]
        %v1838 = vld [vmem:[%s202 + $0x3050] sm:$0xff]
        %v1839 = vld [vmem:[%s202 + $0x3058] sm:$0xff]
        %v1840 = vld [vmem:[%s202 + $0x3060] sm:$0xff]
        %v1841 = vld [vmem:[%s202 + $0x3068] sm:$0xff]
        %v1842 = vld [vmem:[%s202 + $0x3070] sm:$0xff]
        %v1843 = vld [vmem:[%s202 + $0x3078] sm:$0xff]
        %v1844 = vld [vmem:[%s202 + $0x3080] sm:$0xff]
        %v1845 = vld [vmem:[%s202 + $0x3088] sm:$0xff]
        %v1846 = vld [vmem:[%s202 + $0x3090] sm:$0xff]
        %v1847 = vld [vmem:[%s202 + $0x3098] sm:$0xff]
        %v1848 = vld [vmem:[%s202 + $0x30a0] sm:$0xff]
        %v1849 = vld [vmem:[%s202 + $0x30a8] sm:$0xff]
        %v1850 = vld [vmem:[%s202 + $0x30b0] sm:$0xff]
        %v1851 = vld [vmem:[%s202 + $0x30b8] sm:$0xff]
        %v1852 = vld [vmem:[%s202 + $0x30c0] sm:$0xff]
        %v1853 = vld [vmem:[%s202 + $0x30c8] sm:$0xff]
        %v1854 = vld [vmem:[%s202 + $0x30d0] sm:$0xff]
        %v1855 = vld [vmem:[%s202 + $0x30d8] sm:$0xff]
        %v1856 = vld [vmem:[%s202 + $0x30e0] sm:$0xff]
        %v1857 = vld [vmem:[%s202 + $0x30e8] sm:$0xff]
        %v1858 = vld [vmem:[%s202 + $0x30f0] sm:$0xff]
        %v1859 = vld [vmem:[%s202 + $0x30f8] sm:$0xff]
        %v1885 = vunpack.c.l.b16 %v267
        %v1886 = vunpack.c.h.b16 %v267
        %v1887 = vunpack.c.l.b16 %v268
        %v1888 = vunpack.c.h.b16 %v268
        %v1889 = vunpack.c.l.b16 %v269
        %v1890 = vunpack.c.h.b16 %v269
        %v1891 = vunpack.c.l.b16 %v270
        %v1892 = vunpack.c.h.b16 %v270
        %v1893 = vunpack.c.l.b16 %v271
        %v1894 = vunpack.c.h.b16 %v271
        %v1895 = vunpack.c.l.b16 %v272
        %v1896 = vunpack.c.h.b16 %v272
        %v1897 = vunpack.c.l.b16 %v273
        %v1898 = vunpack.c.h.b16 %v273
        %v1899 = vunpack.c.l.b16 %v274
        %v1900 = vunpack.c.h.b16 %v274
        %v1901 = vunpack.c.l.b16 %v275
        %v1902 = vunpack.c.h.b16 %v275
        %v1903 = vunpack.c.l.b16 %v276
        %v1904 = vunpack.c.h.b16 %v276
        %v1905 = vunpack.c.l.b16 %v277
        %v1906 = vunpack.c.h.b16 %v277
        %v1907 = vunpack.c.l.b16 %v278
        %v1908 = vunpack.c.h.b16 %v278
        %v1909 = vunpack.c.l.b16 %v279
        %v1910 = vunpack.c.h.b16 %v279
        %v1911 = vunpack.c.l.b16 %v280
        %v1912 = vunpack.c.h.b16 %v280
        %v1913 = vunpack.c.l.b16 %v281
        %v1914 = vunpack.c.h.b16 %v281
        %v1915 = vunpack.c.l.b16 %v282
        %v1916 = vunpack.c.h.b16 %v282
        %v1917 = vunpack.c.l.b16 %v283
        %v1918 = vunpack.c.h.b16 %v283
        %v1919 = vunpack.c.l.b16 %v284
        %v1920 = vunpack.c.h.b16 %v284
        %v1921 = vunpack.c.l.b16 %v285
        %v1922 = vunpack.c.h.b16 %v285
        %v1923 = vunpack.c.l.b16 %v286
        %v1924 = vunpack.c.h.b16 %v286
        %v1925 = vunpack.c.l.b16 %v287
        %v1926 = vunpack.c.h.b16 %v287
        %v1927 = vunpack.c.l.b16 %v288
        %v1928 = vunpack.c.h.b16 %v288
        %v1929 = vunpack.c.l.b16 %v289
        %v1930 = vunpack.c.h.b16 %v289
        %v1931 = vunpack.c.l.b16 %v290
        %v1932 = vunpack.c.h.b16 %v290
        %v1933 = vunpack.c.l.b16 %v291
        %v1934 = vpack.c.b16 %v1885, %v1885
        %v1935 = vpack.c.b16 %v1886, %v1886
        %v1936 = vpack.c.b16 %v1887, %v1887
        %v1937 = vpack.c.b16 %v1888, %v1888
        %v1938 = vpack.c.b16 %v1889, %v1889
        %v1939 = vpack.c.b16 %v1890, %v1890
        %v1940 = vpack.c.b16 %v1891, %v1891
        %v1941 = vpack.c.b16 %v1892, %v1892
        %v1942 = vpack.c.b16 %v1893, %v1893
        %v1943 = vpack.c.b16 %v1894, %v1894
        %v1944 = vpack.c.b16 %v1895, %v1895
        %v1945 = vpack.c.b16 %v1896, %v1896
        %v1946 = vpack.c.b16 %v1897, %v1897
        %v1947 = vpack.c.b16 %v1898, %v1898
        %v1948 = vpack.c.b16 %v1899, %v1899
        %v1949 = vpack.c.b16 %v1900, %v1900
        %v1950 = vpack.c.b16 %v1901, %v1901
        %v1951 = vpack.c.b16 %v1902, %v1902
        %v1952 = vpack.c.b16 %v1903, %v1903
        %v1953 = vpack.c.b16 %v1904, %v1904
        %v1954 = vpack.c.b16 %v1905, %v1905
        %v1955 = vpack.c.b16 %v1906, %v1906
        %v1956 = vpack.c.b16 %v1907, %v1907
        %v1957 = vpack.c.b16 %v1908, %v1908
        %v1958 = vpack.c.b16 %v1909, %v1909
        %v1959 = vpack.c.b16 %v1910, %v1910
        %v1960 = vpack.c.b16 %v1911, %v1911
        %v1961 = vpack.c.b16 %v1912, %v1912
        %v1962 = vpack.c.b16 %v1913, %v1913
        %v1963 = vpack.c.b16 %v1914, %v1914
        %v1964 = vpack.c.b16 %v1915, %v1915
        %v1965 = vpack.c.b16 %v1916, %v1916
        %v1966 = vpack.c.b16 %v1917, %v1917
        %v1967 = vpack.c.b16 %v1918, %v1918
        %v1968 = vpack.c.b16 %v1919, %v1919
        %v1969 = vpack.c.b16 %v1920, %v1920
        %v1970 = vpack.c.b16 %v1921, %v1921
        %v1971 = vpack.c.b16 %v1922, %v1922
        %v1972 = vpack.c.b16 %v1923, %v1923
        %v1973 = vpack.c.b16 %v1924, %v1924
        %v1974 = vpack.c.b16 %v1925, %v1925
        %v1975 = vpack.c.b16 %v1926, %v1926
        %v1976 = vpack.c.b16 %v1927, %v1927
        %v1977 = vpack.c.b16 %v1928, %v1928
        %v1978 = vpack.c.b16 %v1929, %v1929
        %v1979 = vpack.c.b16 %v1930, %v1930
        %v1980 = vpack.c.b16 %v1931, %v1931
        %v1981 = vpack.c.b16 %v1932, %v1932
        %v1982 = vpack.c.b16 %v1933, %v1933
        %v3600 = vunpack.c.l.b16 %v292
        %v3601 = vunpack.c.h.b16 %v292
        %v3602 = vunpack.c.l.b16 %v293
        %v3603 = vunpack.c.h.b16 %v293
        %v3604 = vunpack.c.l.b16 %v294
        %v3605 = vunpack.c.h.b16 %v294
        %v3606 = vunpack.c.l.b16 %v295
        %v3607 = vunpack.c.h.b16 %v295
        %v3608 = vunpack.c.l.b16 %v296
        %v3609 = vunpack.c.h.b16 %v296
        %v3610 = vunpack.c.l.b16 %v297
        %v3611 = vunpack.c.h.b16 %v297
        %v3612 = vunpack.c.l.b16 %v298
        %v3613 = vunpack.c.h.b16 %v298
        %v3614 = vunpack.c.l.b16 %v299
        %v3615 = vunpack.c.h.b16 %v299
        %v3616 = vunpack.c.l.b16 %v300
        %v3617 = vunpack.c.h.b16 %v300
        %v3618 = vunpack.c.l.b16 %v301
        %v3619 = vunpack.c.h.b16 %v301
        %v3620 = vunpack.c.l.b16 %v302
        %v3621 = vunpack.c.h.b16 %v302
        %v3622 = vunpack.c.l.b16 %v303
        %v3623 = vunpack.c.h.b16 %v303
        %v3624 = vunpack.c.l.b16 %v304
        %v3625 = vunpack.c.h.b16 %v304
        %v3626 = vunpack.c.l.b16 %v305
        %v3627 = vunpack.c.h.b16 %v305
        %v3628 = vunpack.c.l.b16 %v306
        %v3629 = vunpack.c.h.b16 %v306
        %v3630 = vunpack.c.l.b16 %v307
        %v3631 = vunpack.c.h.b16 %v307
        %v3632 = vunpack.c.l.b16 %v308
        %v3633 = vunpack.c.h.b16 %v308
        %v3634 = vunpack.c.l.b16 %v309
        %v3635 = vunpack.c.h.b16 %v309
        %v3636 = vunpack.c.l.b16 %v310
        %v3637 = vunpack.c.h.b16 %v310
        %v3638 = vunpack.c.l.b16 %v311
        %v3639 = vunpack.c.h.b16 %v311
        %v3640 = vunpack.c.l.b16 %v312
        %v3641 = vunpack.c.h.b16 %v312
        %v3642 = vunpack.c.l.b16 %v313
        %v3643 = vunpack.c.h.b16 %v313
        %v3644 = vunpack.c.l.b16 %v314
        %v3645 = vunpack.c.h.b16 %v314
        %v3646 = vunpack.c.l.b16 %v315
        %v3647 = vunpack.c.h.b16 %v315
        %v3648 = vunpack.c.l.b16 %v316
        %v3649 = vunpack.c.h.b16 %v316
        %v3650 = vunpack.c.l.b16 %v317
        %v3651 = vunpack.c.h.b16 %v317
        %v3652 = vunpack.c.l.b16 %v318
        %v3653 = vunpack.c.h.b16 %v318
        %v3654 = vunpack.c.l.b16 %v319
        %v3655 = vunpack.c.h.b16 %v319
        %v3656 = vunpack.c.l.b16 %v320
        %v3657 = vunpack.c.h.b16 %v320
        %v3658 = vunpack.c.l.b16 %v321
        %v3659 = vunpack.c.h.b16 %v321
        %v3660 = vunpack.c.l.b16 %v322
        %v3661 = vunpack.c.h.b16 %v322
        %v3662 = vunpack.c.l.b16 %v323
        %v3663 = vunpack.c.h.b16 %v323
        %v3664 = vunpack.c.l.b16 %v324
        %v3665 = vunpack.c.h.b16 %v324
        %v3666 = vunpack.c.l.b16 %v325
        %v3667 = vunpack.c.h.b16 %v325
        %v3668 = vunpack.c.l.b16 %v326
        %v3669 = vunpack.c.h.b16 %v326
        %v3670 = vunpack.c.l.b16 %v327
        %v3671 = vunpack.c.h.b16 %v327
        %v3672 = vunpack.c.l.b16 %v328
        %v3673 = vunpack.c.h.b16 %v328
        %v3674 = vunpack.c.l.b16 %v329
        %v3675 = vunpack.c.h.b16 %v329
        %v3676 = vunpack.c.l.b16 %v330
        %v3677 = vunpack.c.h.b16 %v330
        %v3678 = vunpack.c.l.b16 %v331
        %v3679 = vunpack.c.h.b16 %v331
        %v3680 = vunpack.c.l.b16 %v332
        %v3681 = vunpack.c.h.b16 %v332
        %v3682 = vunpack.c.l.b16 %v333
        %v3683 = vunpack.c.h.b16 %v333
        %v3684 = vunpack.c.l.b16 %v334
        %v3685 = vunpack.c.h.b16 %v334
        %v3686 = vunpack.c.l.b16 %v335
        %v3687 = vunpack.c.h.b16 %v335
        %v3688 = vunpack.c.l.b16 %v336
        %v3689 = vunpack.c.h.b16 %v336
        %v3690 = vunpack.c.l.b16 %v337
        %v3691 = vunpack.c.h.b16 %v337
        %v3692 = vunpack.c.l.b16 %v338
        %v3693 = vunpack.c.h.b16 %v338
        %v3694 = vunpack.c.l.b16 %v339
        %v3695 = vunpack.c.h.b16 %v339
        %v3696 = vunpack.c.l.b16 %v340
        %v3697 = vunpack.c.h.b16 %v340
        %v3698 = vunpack.c.l.b16 %v341
        %v3699 = vunpack.c.h.b16 %v341
        %v3700 = vunpack.c.l.b16 %v342
        %v3701 = vunpack.c.h.b16 %v342
        %v3702 = vunpack.c.l.b16 %v343
        %v3703 = vunpack.c.h.b16 %v343
        %v3704 = vunpack.c.l.b16 %v344
        %v3705 = vunpack.c.h.b16 %v344
        %v3706 = vunpack.c.l.b16 %v345
        %v3707 = vunpack.c.h.b16 %v345
        %v3708 = vunpack.c.l.b16 %v346
        %v3709 = vunpack.c.h.b16 %v346
        %v3710 = vunpack.c.l.b16 %v347
        %v3711 = vunpack.c.h.b16 %v347
        %v3712 = vunpack.c.l.b16 %v348
        %v3713 = vunpack.c.h.b16 %v348
        %v3714 = vunpack.c.l.b16 %v349
        %v3715 = vunpack.c.h.b16 %v349
        %v3716 = vunpack.c.l.b16 %v350
        %v3717 = vunpack.c.h.b16 %v350
        %v3718 = vunpack.c.l.b16 %v351
        %v3719 = vunpack.c.h.b16 %v351
        %v3720 = vunpack.c.l.b16 %v352
        %v3721 = vunpack.c.h.b16 %v352
        %v3722 = vunpack.c.l.b16 %v353
        %v3723 = vunpack.c.h.b16 %v353
        %v3724 = vunpack.c.l.b16 %v354
        %v3725 = vunpack.c.h.b16 %v354
        %v3726 = vunpack.c.l.b16 %v355
        %v3727 = vunpack.c.h.b16 %v355
        %v3728 = vunpack.c.l.b16 %v356
        %v3729 = vunpack.c.h.b16 %v356
        %v3730 = vunpack.c.l.b16 %v357
        %v3731 = vunpack.c.h.b16 %v357
        %v3732 = vunpack.c.l.b16 %v358
        %v3733 = vunpack.c.h.b16 %v358
        %v3734 = vunpack.c.l.b16 %v359
        %v3735 = vunpack.c.h.b16 %v359
        %v3736 = vunpack.c.l.b16 %v360
        %v3737 = vunpack.c.h.b16 %v360
        %v3738 = vunpack.c.l.b16 %v361
        %v3739 = vunpack.c.h.b16 %v361
        %v3740 = vunpack.c.l.b16 %v362
        %v3741 = vunpack.c.h.b16 %v362
        %v3742 = vunpack.c.l.b16 %v363
        %v3743 = vunpack.c.h.b16 %v363
        %v3744 = vunpack.c.l.b16 %v364
        %v3745 = vunpack.c.h.b16 %v364
        %v3746 = vunpack.c.l.b16 %v365
        %v3747 = vunpack.c.h.b16 %v365
        %v3748 = vunpack.c.l.b16 %v366
        %v3749 = vunpack.c.h.b16 %v366
        %v3750 = vunpack.c.l.b16 %v367
        %v3751 = vunpack.c.h.b16 %v367
        %v3752 = vunpack.c.l.b16 %v368
        %v3753 = vunpack.c.h.b16 %v368
        %v3754 = vunpack.c.l.b16 %v369
        %v3755 = vunpack.c.h.b16 %v369
        %v3756 = vunpack.c.l.b16 %v370
        %v3757 = vunpack.c.h.b16 %v370
        %v3758 = vunpack.c.l.b16 %v371
        %v3759 = vunpack.c.h.b16 %v371
        %v3760 = vunpack.c.l.b16 %v372
        %v3761 = vunpack.c.h.b16 %v372
        %v3762 = vunpack.c.l.b16 %v373
        %v3763 = vunpack.c.h.b16 %v373
        %v3764 = vunpack.c.l.b16 %v374
        %v3765 = vunpack.c.h.b16 %v374
        %v3766 = vunpack.c.l.b16 %v375
        %v3767 = vunpack.c.h.b16 %v375
        %v3768 = vunpack.c.l.b16 %v376
        %v3769 = vunpack.c.h.b16 %v376
        %v3770 = vunpack.c.l.b16 %v377
        %v3771 = vunpack.c.h.b16 %v377
        %v3772 = vunpack.c.l.b16 %v378
        %v3773 = vunpack.c.h.b16 %v378
        %v3774 = vunpack.c.l.b16 %v379
        %v3775 = vunpack.c.h.b16 %v379
        %v3776 = vunpack.c.l.b16 %v380
        %v3777 = vunpack.c.h.b16 %v380
        %v3778 = vunpack.c.l.b16 %v381
        %v3779 = vunpack.c.h.b16 %v381
        %v3780 = vunpack.c.l.b16 %v382
        %v3781 = vunpack.c.h.b16 %v382
        %v3782 = vunpack.c.l.b16 %v383
        %v3783 = vunpack.c.h.b16 %v383
        %v3784 = vunpack.c.l.b16 %v384
        %v3785 = vunpack.c.h.b16 %v384
        %v3786 = vunpack.c.l.b16 %v385
        %v3787 = vunpack.c.h.b16 %v385
        %v3788 = vunpack.c.l.b16 %v386
        %v3789 = vunpack.c.h.b16 %v386
        %v3790 = vunpack.c.l.b16 %v387
        %v3791 = vunpack.c.h.b16 %v387
        %v3792 = vunpack.c.l.b16 %v388
        %v3793 = vunpack.c.h.b16 %v388
        %v3794 = vunpack.c.l.b16 %v389
        %v3795 = vunpack.c.h.b16 %v389
        %v3796 = vunpack.c.l.b16 %v390
        %v3797 = vunpack.c.h.b16 %v390
        %v3798 = vunpack.c.l.b16 %v391
        %v3799 = vunpack.c.h.b16 %v391
        %v3800 = vunpack.c.l.b16 %v392
        %v3801 = vunpack.c.h.b16 %v392
        %v3802 = vunpack.c.l.b16 %v393
        %v3803 = vunpack.c.h.b16 %v393
        %v3804 = vunpack.c.l.b16 %v394
        %v3805 = vunpack.c.h.b16 %v394
        %v3806 = vunpack.c.l.b16 %v395
        %v3807 = vunpack.c.h.b16 %v395
        %v3808 = vunpack.c.l.b16 %v396
        %v3809 = vunpack.c.h.b16 %v396
        %v3810 = vunpack.c.l.b16 %v397
        %v3811 = vunpack.c.h.b16 %v397
        %v3812 = vunpack.c.l.b16 %v398
        %v3813 = vunpack.c.h.b16 %v398
        %v3814 = vunpack.c.l.b16 %v399
        %v3815 = vunpack.c.h.b16 %v399
        %v3816 = vunpack.c.l.b16 %v400
        %v3817 = vunpack.c.h.b16 %v400
        %v3818 = vunpack.c.l.b16 %v401
        %v3819 = vunpack.c.h.b16 %v401
        %v3820 = vunpack.c.l.b16 %v402
        %v3821 = vunpack.c.h.b16 %v402
        %v3822 = vunpack.c.l.b16 %v403
        %v3823 = vunpack.c.h.b16 %v403
        %v3824 = vunpack.c.l.b16 %v404
        %v3825 = vunpack.c.h.b16 %v404
        %v3826 = vunpack.c.l.b16 %v405
        %v3827 = vunpack.c.h.b16 %v405
        %v3828 = vunpack.c.l.b16 %v406
        %v3829 = vunpack.c.h.b16 %v406
        %v3830 = vunpack.c.l.b16 %v407
        %v3831 = vunpack.c.h.b16 %v407
        %v3832 = vunpack.c.l.b16 %v408
        %v3833 = vunpack.c.h.b16 %v408
        %v3834 = vunpack.c.l.b16 %v409
        %v3835 = vunpack.c.h.b16 %v409
        %v3836 = vunpack.c.l.b16 %v410
        %v3837 = vunpack.c.h.b16 %v410
        %v3838 = vunpack.c.l.b16 %v411
        %v3839 = vunpack.c.h.b16 %v411
        %v3840 = vunpack.c.l.b16 %v412
        %v3841 = vunpack.c.h.b16 %v412
        %v3842 = vunpack.c.l.b16 %v413
        %v3843 = vunpack.c.h.b16 %v413
        %v3844 = vunpack.c.l.b16 %v414
        %v3845 = vunpack.c.h.b16 %v414
        %v3846 = vunpack.c.l.b16 %v415
        %v3847 = vunpack.c.h.b16 %v415
        %v3848 = vunpack.c.l.b16 %v416
        %v3849 = vunpack.c.h.b16 %v416
        %v3850 = vunpack.c.l.b16 %v417
        %v3851 = vunpack.c.h.b16 %v417
        %v3852 = vunpack.c.l.b16 %v418
        %v3853 = vunpack.c.h.b16 %v418
        %v3854 = vunpack.c.l.b16 %v419
        %v3855 = vunpack.c.h.b16 %v419
        %v3856 = vunpack.c.l.b16 %v420
        %v3857 = vunpack.c.h.b16 %v420
        %v3858 = vunpack.c.l.b16 %v421
        %v3859 = vunpack.c.h.b16 %v421
        %v3860 = vunpack.c.l.b16 %v422
        %v3861 = vunpack.c.h.b16 %v422
        %v3862 = vunpack.c.l.b16 %v423
        %v3863 = vunpack.c.h.b16 %v423
        %v3864 = vunpack.c.l.b16 %v424
        %v3865 = vunpack.c.h.b16 %v424
        %v3866 = vunpack.c.l.b16 %v425
        %v3867 = vunpack.c.h.b16 %v425
        %v3868 = vunpack.c.l.b16 %v426
        %v3869 = vunpack.c.h.b16 %v426
        %v3870 = vunpack.c.l.b16 %v427
        %v3871 = vunpack.c.h.b16 %v427
        %v3872 = vunpack.c.l.b16 %v428
        %v3873 = vunpack.c.h.b16 %v428
        %v3874 = vunpack.c.l.b16 %v429
        %v3875 = vunpack.c.h.b16 %v429
        %v3876 = vunpack.c.l.b16 %v430
        %v3877 = vunpack.c.h.b16 %v430
        %v3878 = vunpack.c.l.b16 %v431
        %v3879 = vunpack.c.h.b16 %v431
        %v3880 = vunpack.c.l.b16 %v432
        %v3881 = vunpack.c.h.b16 %v432
        %v3882 = vunpack.c.l.b16 %v433
        %v3883 = vunpack.c.h.b16 %v433
        %v3884 = vunpack.c.l.b16 %v434
        %v3885 = vunpack.c.h.b16 %v434
        %v3886 = vunpack.c.l.b16 %v435
        %v3887 = vunpack.c.h.b16 %v435
        %v3888 = vunpack.c.l.b16 %v436
        %v3889 = vunpack.c.h.b16 %v436
        %v3890 = vunpack.c.l.b16 %v437
        %v3891 = vunpack.c.h.b16 %v437
        %v3892 = vunpack.c.l.b16 %v438
        %v3893 = vunpack.c.h.b16 %v438
        %v3894 = vunpack.c.l.b16 %v439
        %v3895 = vunpack.c.h.b16 %v439
        %v3896 = vunpack.c.l.b16 %v440
        %v3897 = vunpack.c.h.b16 %v440
        %v3898 = vunpack.c.l.b16 %v441
        %v3899 = vunpack.c.h.b16 %v441
        %v3900 = vunpack.c.l.b16 %v442
        %v3901 = vunpack.c.h.b16 %v442
        %v3902 = vunpack.c.l.b16 %v443
        %v3903 = vunpack.c.h.b16 %v443
        %v3904 = vunpack.c.l.b16 %v444
        %v3905 = vunpack.c.h.b16 %v444
        %v3906 = vunpack.c.l.b16 %v445
        %v3907 = vunpack.c.h.b16 %v445
        %v3908 = vunpack.c.l.b16 %v446
        %v3909 = vunpack.c.h.b16 %v446
        %v3910 = vunpack.c.l.b16 %v447
        %v3911 = vunpack.c.h.b16 %v447
        %v3912 = vunpack.c.l.b16 %v448
        %v3913 = vunpack.c.h.b16 %v448
        %v3914 = vunpack.c.l.b16 %v449
        %v3915 = vunpack.c.h.b16 %v449
        %v3916 = vunpack.c.l.b16 %v450
        %v3917 = vunpack.c.h.b16 %v450
        %v3918 = vunpack.c.l.b16 %v451
        %v3919 = vunpack.c.h.b16 %v451
        %v3920 = vunpack.c.l.b16 %v452
        %v3921 = vunpack.c.h.b16 %v452
        %v3922 = vunpack.c.l.b16 %v453
        %v3923 = vunpack.c.h.b16 %v453
        %v3924 = vunpack.c.l.b16 %v454
        %v3925 = vunpack.c.h.b16 %v454
        %v3926 = vunpack.c.l.b16 %v455
        %v3927 = vunpack.c.h.b16 %v455
        %v3928 = vunpack.c.l.b16 %v456
        %v3929 = vunpack.c.h.b16 %v456
        %v3930 = vunpack.c.l.b16 %v457
        %v3931 = vunpack.c.h.b16 %v457
        %v3932 = vunpack.c.l.b16 %v458
        %v3933 = vunpack.c.h.b16 %v458
        %v3934 = vunpack.c.l.b16 %v459
        %v3935 = vunpack.c.h.b16 %v459
        %v3936 = vunpack.c.l.b16 %v460
        %v3937 = vunpack.c.h.b16 %v460
        %v3938 = vunpack.c.l.b16 %v461
        %v3939 = vunpack.c.h.b16 %v461
        %v3940 = vunpack.c.l.b16 %v462
        %v3941 = vunpack.c.h.b16 %v462
        %v3942 = vunpack.c.l.b16 %v463
        %v3943 = vunpack.c.h.b16 %v463
        %v3944 = vunpack.c.l.b16 %v464
        %v3945 = vunpack.c.h.b16 %v464
        %v3946 = vunpack.c.l.b16 %v465
        %v3947 = vunpack.c.h.b16 %v465
        %v3948 = vunpack.c.l.b16 %v466
        %v3949 = vunpack.c.h.b16 %v466
        %v3950 = vunpack.c.l.b16 %v467
        %v3951 = vunpack.c.h.b16 %v467
        %v3952 = vunpack.c.l.b16 %v468
        %v3953 = vunpack.c.h.b16 %v468
        %v3954 = vunpack.c.l.b16 %v469
        %v3955 = vunpack.c.h.b16 %v469
        %v3956 = vunpack.c.l.b16 %v470
        %v3957 = vunpack.c.h.b16 %v470
        %v3958 = vunpack.c.l.b16 %v471
        %v3959 = vunpack.c.h.b16 %v471
        %v3960 = vunpack.c.l.b16 %v472
        %v3961 = vunpack.c.h.b16 %v472
        %v3962 = vunpack.c.l.b16 %v473
        %v3963 = vunpack.c.h.b16 %v473
        %v3964 = vunpack.c.l.b16 %v474
        %v3965 = vunpack.c.h.b16 %v474
        %v3966 = vunpack.c.l.b16 %v475
        %v3967 = vunpack.c.h.b16 %v475
        %v3968 = vunpack.c.l.b16 %v476
        %v3969 = vunpack.c.h.b16 %v476
        %v3970 = vunpack.c.l.b16 %v477
        %v3971 = vunpack.c.h.b16 %v477
        %v3972 = vunpack.c.l.b16 %v478
        %v3973 = vunpack.c.h.b16 %v478
        %v3974 = vunpack.c.l.b16 %v479
        %v3975 = vunpack.c.h.b16 %v479
        %v3976 = vunpack.c.l.b16 %v480
        %v3977 = vunpack.c.h.b16 %v480
        %v3978 = vunpack.c.l.b16 %v481
        %v3979 = vunpack.c.h.b16 %v481
        %v3980 = vunpack.c.l.b16 %v482
        %v3981 = vunpack.c.h.b16 %v482
        %v3982 = vunpack.c.l.b16 %v483
        %v3983 = vunpack.c.h.b16 %v483
        %v3984 = vunpack.c.l.b16 %v484
        %v3985 = vunpack.c.h.b16 %v484
        %v3986 = vunpack.c.l.b16 %v485
        %v3987 = vunpack.c.h.b16 %v485
        %v3988 = vunpack.c.l.b16 %v486
        %v3989 = vunpack.c.h.b16 %v486
        %v3990 = vunpack.c.l.b16 %v487
        %v3991 = vunpack.c.h.b16 %v487
        %v3992 = vunpack.c.l.b16 %v488
        %v3993 = vunpack.c.h.b16 %v488
        %v3994 = vunpack.c.l.b16 %v489
        %v3995 = vunpack.c.h.b16 %v489
        %v3996 = vunpack.c.l.b16 %v490
        %v3997 = vunpack.c.h.b16 %v490
        %v3998 = vunpack.c.l.b16 %v491
        %v3999 = vunpack.c.h.b16 %v491
        %v4000 = vunpack.c.l.b16 %v492
        %v4001 = vunpack.c.h.b16 %v492
        %v4002 = vunpack.c.l.b16 %v493
        %v4003 = vunpack.c.h.b16 %v493
        %v4004 = vunpack.c.l.b16 %v494
        %v4005 = vunpack.c.h.b16 %v494
        %v4006 = vunpack.c.l.b16 %v495
        %v4007 = vunpack.c.h.b16 %v495
        %v4008 = vunpack.c.l.b16 %v496
        %v4009 = vunpack.c.h.b16 %v496
        %v4010 = vunpack.c.l.b16 %v497
        %v4011 = vunpack.c.h.b16 %v497
        %v4012 = vunpack.c.l.b16 %v498
        %v4013 = vunpack.c.h.b16 %v498
        %v4014 = vunpack.c.l.b16 %v499
        %v4015 = vunpack.c.h.b16 %v499
        %v4016 = vunpack.c.l.b16 %v500
        %v4017 = vunpack.c.h.b16 %v500
        %v4018 = vunpack.c.l.b16 %v501
        %v4019 = vunpack.c.h.b16 %v501
        %v4020 = vunpack.c.l.b16 %v502
        %v4021 = vunpack.c.h.b16 %v502
        %v4022 = vunpack.c.l.b16 %v503
        %v4023 = vunpack.c.h.b16 %v503
        %v4024 = vunpack.c.l.b16 %v504
        %v4025 = vunpack.c.h.b16 %v504
        %v4026 = vunpack.c.l.b16 %v505
        %v4027 = vunpack.c.h.b16 %v505
        %v4028 = vunpack.c.l.b16 %v506
        %v4029 = vunpack.c.h.b16 %v506
        %v4030 = vunpack.c.l.b16 %v507
        %v4031 = vunpack.c.h.b16 %v507
        %v4032 = vunpack.c.l.b16 %v508
        %v4033 = vunpack.c.h.b16 %v508
        %v4034 = vunpack.c.l.b16 %v509
        %v4035 = vunpack.c.h.b16 %v509
        %v4036 = vunpack.c.l.b16 %v510
        %v4037 = vunpack.c.h.b16 %v510
        %v4038 = vunpack.c.l.b16 %v511
        %v4039 = vunpack.c.h.b16 %v511
        %v4040 = vunpack.c.l.b16 %v512
        %v4041 = vunpack.c.h.b16 %v512
        %v4042 = vunpack.c.l.b16 %v513
        %v4043 = vunpack.c.h.b16 %v513
        %v4044 = vunpack.c.l.b16 %v514
        %v4045 = vunpack.c.h.b16 %v514
        %v4046 = vunpack.c.l.b16 %v515
        %v4047 = vunpack.c.h.b16 %v515
        %v4048 = vunpack.c.l.b16 %v516
        %v4049 = vunpack.c.h.b16 %v516
        %v4050 = vunpack.c.l.b16 %v517
        %v4051 = vunpack.c.h.b16 %v517
        %v4052 = vunpack.c.l.b16 %v518
        %v4053 = vunpack.c.h.b16 %v518
        %v4054 = vunpack.c.l.b16 %v519
        %v4055 = vunpack.c.h.b16 %v519
        %v4056 = vunpack.c.l.b16 %v520
        %v4057 = vunpack.c.h.b16 %v520
        %v4058 = vunpack.c.l.b16 %v521
        %v4059 = vunpack.c.h.b16 %v521
        %v4060 = vunpack.c.l.b16 %v522
        %v4061 = vunpack.c.h.b16 %v522
        %v4062 = vunpack.c.l.b16 %v523
        %v4063 = vunpack.c.h.b16 %v523
        %v4064 = vunpack.c.l.b16 %v524
        %v4065 = vunpack.c.h.b16 %v524
        %v4066 = vunpack.c.l.b16 %v525
        %v4067 = vunpack.c.h.b16 %v525
        %v4068 = vunpack.c.l.b16 %v526
        %v4069 = vunpack.c.h.b16 %v526
        %v4070 = vunpack.c.l.b16 %v527
        %v4071 = vunpack.c.h.b16 %v527
        %v4072 = vunpack.c.l.b16 %v528
        %v4073 = vunpack.c.h.b16 %v528
        %v4074 = vunpack.c.l.b16 %v529
        %v4075 = vunpack.c.h.b16 %v529
        %v4076 = vunpack.c.l.b16 %v530
        %v4077 = vunpack.c.h.b16 %v530
        %v4078 = vunpack.c.l.b16 %v531
        %v4079 = vunpack.c.h.b16 %v531
        %v4080 = vunpack.c.l.b16 %v532
        %v4081 = vunpack.c.h.b16 %v532
        %v4082 = vunpack.c.l.b16 %v533
        %v4083 = vunpack.c.h.b16 %v533
        %v4084 = vunpack.c.l.b16 %v534
        %v4085 = vunpack.c.h.b16 %v534
        %v4086 = vunpack.c.l.b16 %v535
        %v4087 = vunpack.c.h.b16 %v535
        %v4088 = vunpack.c.l.b16 %v536
        %v4089 = vunpack.c.h.b16 %v536
        %v4090 = vunpack.c.l.b16 %v537
        %v4091 = vunpack.c.h.b16 %v537
        %v4092 = vunpack.c.l.b16 %v538
        %v4093 = vunpack.c.h.b16 %v538
        %v4094 = vunpack.c.l.b16 %v539
        %v4095 = vunpack.c.h.b16 %v539
        %v4096 = vunpack.c.l.b16 %v540
        %v4097 = vunpack.c.h.b16 %v540
        %v4098 = vunpack.c.l.b16 %v541
        %v4099 = vunpack.c.h.b16 %v541
        %v4100 = vunpack.c.l.b16 %v542
        %v4101 = vunpack.c.h.b16 %v542
        %v4102 = vunpack.c.l.b16 %v543
        %v4103 = vunpack.c.h.b16 %v543
        %v4104 = vunpack.c.l.b16 %v544
        %v4105 = vunpack.c.h.b16 %v544
        %v4106 = vunpack.c.l.b16 %v545
        %v4107 = vunpack.c.h.b16 %v545
        %v4108 = vunpack.c.l.b16 %v546
        %v4109 = vunpack.c.h.b16 %v546
        %v4110 = vunpack.c.l.b16 %v547
        %v4111 = vunpack.c.h.b16 %v547
        %v4112 = vunpack.c.l.b16 %v548
        %v4113 = vunpack.c.h.b16 %v548
        %v4114 = vunpack.c.l.b16 %v549
        %v4115 = vunpack.c.h.b16 %v549
        %v4116 = vunpack.c.l.b16 %v550
        %v4117 = vunpack.c.h.b16 %v550
        %v4118 = vunpack.c.l.b16 %v551
        %v4119 = vunpack.c.h.b16 %v551
        %v4120 = vunpack.c.l.b16 %v552
        %v4121 = vunpack.c.h.b16 %v552
        %v4122 = vunpack.c.l.b16 %v553
        %v4123 = vunpack.c.h.b16 %v553
        %v4124 = vunpack.c.l.b16 %v554
        %v4125 = vunpack.c.h.b16 %v554
        %v4126 = vunpack.c.l.b16 %v555
        %v4127 = vunpack.c.h.b16 %v555
        %v4128 = vunpack.c.l.b16 %v556
        %v4129 = vunpack.c.h.b16 %v556
        %v4130 = vunpack.c.l.b16 %v557
        %v4131 = vunpack.c.h.b16 %v557
        %v4132 = vunpack.c.l.b16 %v558
        %v4133 = vunpack.c.h.b16 %v558
        %v4134 = vunpack.c.l.b16 %v559
        %v4135 = vunpack.c.h.b16 %v559
        %v4136 = vunpack.c.l.b16 %v560
        %v4137 = vunpack.c.h.b16 %v560
        %v4138 = vunpack.c.l.b16 %v561
        %v4139 = vunpack.c.h.b16 %v561
        %v4140 = vunpack.c.l.b16 %v562
        %v4141 = vunpack.c.h.b16 %v562
        %v4142 = vunpack.c.l.b16 %v563
        %v4143 = vunpack.c.h.b16 %v563
        %v4144 = vunpack.c.l.b16 %v564
        %v4145 = vunpack.c.h.b16 %v564
        %v4146 = vunpack.c.l.b16 %v565
        %v4147 = vunpack.c.h.b16 %v565
        %v4148 = vunpack.c.l.b16 %v566
        %v4149 = vunpack.c.h.b16 %v566
        %v4150 = vunpack.c.l.b16 %v567
        %v4151 = vunpack.c.h.b16 %v567
        %v4152 = vunpack.c.l.b16 %v568
        %v4153 = vunpack.c.h.b16 %v568
        %v4154 = vunpack.c.l.b16 %v569
        %v4155 = vunpack.c.h.b16 %v569
        %v4156 = vunpack.c.l.b16 %v570
        %v4157 = vunpack.c.h.b16 %v570
        %v4158 = vunpack.c.l.b16 %v571
        %v4159 = vunpack.c.h.b16 %v571
        %v4160 = vunpack.c.l.b16 %v572
        %v4161 = vunpack.c.h.b16 %v572
        %v4162 = vunpack.c.l.b16 %v573
        %v4163 = vunpack.c.h.b16 %v573
        %v4164 = vunpack.c.l.b16 %v574
        %v4165 = vunpack.c.h.b16 %v574
        %v4166 = vunpack.c.l.b16 %v575
        %v4167 = vunpack.c.h.b16 %v575
        %v4168 = vunpack.c.l.b16 %v576
        %v4169 = vunpack.c.h.b16 %v576
        %v4170 = vunpack.c.l.b16 %v577
        %v4171 = vunpack.c.h.b16 %v577
        %v4172 = vunpack.c.l.b16 %v578
        %v4173 = vunpack.c.h.b16 %v578
        %v4174 = vunpack.c.l.b16 %v579
        %v4175 = vunpack.c.h.b16 %v579
        %v4176 = vunpack.c.l.b16 %v580
        %v4177 = vunpack.c.h.b16 %v580
        %v4178 = vunpack.c.l.b16 %v581
        %v4179 = vunpack.c.h.b16 %v581
        %v4180 = vunpack.c.l.b16 %v582
        %v4181 = vunpack.c.h.b16 %v582
        %v4182 = vunpack.c.l.b16 %v583
        %v4183 = vunpack.c.h.b16 %v583
        %v4184 = vunpack.c.l.b16 %v584
        %v4185 = vunpack.c.h.b16 %v584
        %v4186 = vunpack.c.l.b16 %v585
        %v4187 = vunpack.c.h.b16 %v585
        %v4188 = vunpack.c.l.b16 %v586
        %v4189 = vunpack.c.h.b16 %v586
        %v4190 = vunpack.c.l.b16 %v587
        %v4191 = vunpack.c.h.b16 %v587
        %v4192 = vunpack.c.l.b16 %v588
        %v4193 = vunpack.c.h.b16 %v588
        %v4194 = vunpack.c.l.b16 %v589
        %v4195 = vunpack.c.h.b16 %v589
        %v4196 = vunpack.c.l.b16 %v590
        %v4197 = vunpack.c.h.b16 %v590
        %v4198 = vunpack.c.l.b16 %v591
        %v4199 = vunpack.c.h.b16 %v591
        %v4200 = vunpack.c.l.b16 %v592
        %v4201 = vunpack.c.h.b16 %v592
        %v4202 = vunpack.c.l.b16 %v593
        %v4203 = vunpack.c.h.b16 %v593
        %v4204 = vunpack.c.l.b16 %v594
        %v4205 = vunpack.c.h.b16 %v594
        %v4206 = vunpack.c.l.b16 %v595
        %v4207 = vunpack.c.h.b16 %v595
        %v4208 = vunpack.c.l.b16 %v596
        %v4209 = vunpack.c.h.b16 %v596
        %v4210 = vunpack.c.l.b16 %v597
        %v4211 = vunpack.c.h.b16 %v597
        %v4212 = vunpack.c.l.b16 %v598
        %v4213 = vunpack.c.h.b16 %v598
        %v4214 = vunpack.c.l.b16 %v599
        %v4215 = vunpack.c.h.b16 %v599
        %v4216 = vunpack.c.l.b16 %v600
        %v4217 = vunpack.c.h.b16 %v600
        %v4218 = vunpack.c.l.b16 %v601
        %v4219 = vunpack.c.h.b16 %v601
        %v4220 = vunpack.c.l.b16 %v602
        %v4221 = vunpack.c.h.b16 %v602
        %v4222 = vunpack.c.l.b16 %v603
        %v4223 = vunpack.c.h.b16 %v603
        %v4224 = vunpack.c.l.b16 %v604
        %v4225 = vunpack.c.h.b16 %v604
        %v4226 = vunpack.c.l.b16 %v605
        %v4227 = vunpack.c.h.b16 %v605
        %v4228 = vunpack.c.l.b16 %v606
        %v4229 = vunpack.c.h.b16 %v606
        %v4230 = vunpack.c.l.b16 %v607
        %v4231 = vunpack.c.h.b16 %v607
        %v4232 = vunpack.c.l.b16 %v608
        %v4233 = vunpack.c.h.b16 %v608
        %v4234 = vunpack.c.l.b16 %v609
        %v4235 = vunpack.c.h.b16 %v609
        %v4236 = vunpack.c.l.b16 %v610
        %v4237 = vunpack.c.h.b16 %v610
        %v4238 = vunpack.c.l.b16 %v611
        %v4239 = vunpack.c.h.b16 %v611
        %v4240 = vunpack.c.l.b16 %v612
        %v4241 = vunpack.c.h.b16 %v612
        %v4242 = vunpack.c.l.b16 %v613
        %v4243 = vunpack.c.h.b16 %v613
        %v4244 = vunpack.c.l.b16 %v614
        %v4245 = vunpack.c.h.b16 %v614
        %v4246 = vunpack.c.l.b16 %v615
        %v4247 = vunpack.c.h.b16 %v615
        %v4248 = vunpack.c.l.b16 %v616
        %v4249 = vunpack.c.h.b16 %v616
        %v4250 = vunpack.c.l.b16 %v617
        %v4251 = vunpack.c.h.b16 %v617
        %v4252 = vunpack.c.l.b16 %v618
        %v4253 = vunpack.c.h.b16 %v618
        %v4254 = vunpack.c.l.b16 %v619
        %v4255 = vunpack.c.h.b16 %v619
        %v4256 = vunpack.c.l.b16 %v620
        %v4257 = vunpack.c.h.b16 %v620
        %v4258 = vunpack.c.l.b16 %v621
        %v4259 = vunpack.c.h.b16 %v621
        %v4260 = vunpack.c.l.b16 %v622
        %v4261 = vunpack.c.h.b16 %v622
        %v4262 = vunpack.c.l.b16 %v623
        %v4263 = vunpack.c.h.b16 %v623
        %v4264 = vunpack.c.l.b16 %v624
        %v4265 = vunpack.c.h.b16 %v624
        %v4266 = vunpack.c.l.b16 %v625
        %v4267 = vunpack.c.h.b16 %v625
        %v4268 = vunpack.c.l.b16 %v626
        %v4269 = vunpack.c.h.b16 %v626
        %v4270 = vunpack.c.l.b16 %v627
        %v4271 = vunpack.c.h.b16 %v627
        %v4272 = vunpack.c.l.b16 %v628
        %v4273 = vunpack.c.h.b16 %v628
        %v4274 = vunpack.c.l.b16 %v629
        %v4275 = vunpack.c.h.b16 %v629
        %v4276 = vunpack.c.l.b16 %v630
        %v4277 = vunpack.c.h.b16 %v630
        %v4278 = vunpack.c.l.b16 %v631
        %v4279 = vunpack.c.h.b16 %v631
        %v4280 = vunpack.c.l.b16 %v632
        %v4281 = vunpack.c.h.b16 %v632
        %v4282 = vunpack.c.l.b16 %v633
        %v4283 = vunpack.c.h.b16 %v633
        %v4284 = vunpack.c.l.b16 %v634
        %v4285 = vunpack.c.h.b16 %v634
        %v4286 = vunpack.c.l.b16 %v635
        %v4287 = vunpack.c.h.b16 %v635
        %v4288 = vunpack.c.l.b16 %v636
        %v4289 = vunpack.c.h.b16 %v636
        %v4290 = vunpack.c.l.b16 %v637
        %v4291 = vunpack.c.h.b16 %v637
        %v4292 = vunpack.c.l.b16 %v638
        %v4293 = vunpack.c.h.b16 %v638
        %v4294 = vunpack.c.l.b16 %v639
        %v4295 = vunpack.c.h.b16 %v639
        %v4296 = vunpack.c.l.b16 %v640
        %v4297 = vunpack.c.h.b16 %v640
        %v4298 = vunpack.c.l.b16 %v641
        %v4299 = vunpack.c.h.b16 %v641
        %v4300 = vunpack.c.l.b16 %v642
        %v4301 = vunpack.c.h.b16 %v642
        %v4302 = vunpack.c.l.b16 %v643
        %v4303 = vunpack.c.h.b16 %v643
        %v4304 = vunpack.c.l.b16 %v644
        %v4305 = vunpack.c.h.b16 %v644
        %v4306 = vunpack.c.l.b16 %v645
        %v4307 = vunpack.c.h.b16 %v645
        %v4308 = vunpack.c.l.b16 %v646
        %v4309 = vunpack.c.h.b16 %v646
        %v4310 = vunpack.c.l.b16 %v647
        %v4311 = vunpack.c.h.b16 %v647
        %v4312 = vunpack.c.l.b16 %v648
        %v4313 = vunpack.c.h.b16 %v648
        %v4314 = vunpack.c.l.b16 %v649
        %v4315 = vunpack.c.h.b16 %v649
        %v4316 = vunpack.c.l.b16 %v650
        %v4317 = vunpack.c.h.b16 %v650
        %v4318 = vunpack.c.l.b16 %v651
        %v4319 = vunpack.c.h.b16 %v651
        %v4320 = vunpack.c.l.b16 %v652
        %v4321 = vunpack.c.h.b16 %v652
        %v4322 = vunpack.c.l.b16 %v653
        %v4323 = vunpack.c.h.b16 %v653
        %v4324 = vunpack.c.l.b16 %v654
        %v4325 = vunpack.c.h.b16 %v654
        %v4326 = vunpack.c.l.b16 %v655
        %v4327 = vunpack.c.h.b16 %v655
        %v4328 = vunpack.c.l.b16 %v656
        %v4329 = vunpack.c.h.b16 %v656
        %v4330 = vunpack.c.l.b16 %v657
        %v4331 = vunpack.c.h.b16 %v657
        %v4332 = vunpack.c.l.b16 %v658
        %v4333 = vunpack.c.h.b16 %v658
        %v4334 = vunpack.c.l.b16 %v659
        %v4335 = vunpack.c.h.b16 %v659
        %v4336 = vunpack.c.l.b16 %v660
        %v4337 = vunpack.c.h.b16 %v660
        %v4338 = vunpack.c.l.b16 %v661
        %v4339 = vunpack.c.h.b16 %v661
        %v4340 = vunpack.c.l.b16 %v662
        %v4341 = vunpack.c.h.b16 %v662
        %v4342 = vunpack.c.l.b16 %v663
        %v4343 = vunpack.c.h.b16 %v663
        %v4344 = vunpack.c.l.b16 %v664
        %v4345 = vunpack.c.h.b16 %v664
        %v4346 = vunpack.c.l.b16 %v665
        %v4347 = vunpack.c.h.b16 %v665
        %v4348 = vunpack.c.l.b16 %v666
        %v4349 = vunpack.c.h.b16 %v666
        %v4350 = vunpack.c.l.b16 %v667
        %v4351 = vunpack.c.h.b16 %v667
        %v4352 = vunpack.c.l.b16 %v668
        %v4353 = vunpack.c.h.b16 %v668
        %v4354 = vunpack.c.l.b16 %v669
        %v4355 = vunpack.c.h.b16 %v669
        %v4356 = vunpack.c.l.b16 %v670
        %v4357 = vunpack.c.h.b16 %v670
        %v4358 = vunpack.c.l.b16 %v671
        %v4359 = vunpack.c.h.b16 %v671
        %v4360 = vunpack.c.l.b16 %v672
        %v4361 = vunpack.c.h.b16 %v672
        %v4362 = vunpack.c.l.b16 %v673
        %v4363 = vunpack.c.h.b16 %v673
        %v4364 = vunpack.c.l.b16 %v674
        %v4365 = vunpack.c.h.b16 %v674
        %v4366 = vunpack.c.l.b16 %v675
        %v4367 = vunpack.c.h.b16 %v675
        %v4368 = vunpack.c.l.b16 %v676
        %v4369 = vunpack.c.h.b16 %v676
        %v4370 = vunpack.c.l.b16 %v677
        %v4371 = vunpack.c.h.b16 %v677
        %v4372 = vunpack.c.l.b16 %v678
        %v4373 = vunpack.c.h.b16 %v678
        %v4374 = vunpack.c.l.b16 %v679
        %v4375 = vunpack.c.h.b16 %v679
        %v4376 = vunpack.c.l.b16 %v680
        %v4377 = vunpack.c.h.b16 %v680
        %v4378 = vunpack.c.l.b16 %v681
        %v4379 = vunpack.c.h.b16 %v681
        %v4380 = vunpack.c.l.b16 %v682
        %v4381 = vunpack.c.h.b16 %v682
        %v4382 = vunpack.c.l.b16 %v683
        %v4383 = vunpack.c.h.b16 %v683
        %v4384 = vunpack.c.l.b16 %v684
        %v4385 = vunpack.c.h.b16 %v684
        %v4386 = vunpack.c.l.b16 %v685
        %v4387 = vunpack.c.h.b16 %v685
        %v4388 = vunpack.c.l.b16 %v686
        %v4389 = vunpack.c.h.b16 %v686
        %v4390 = vunpack.c.l.b16 %v687
        %v4391 = vunpack.c.h.b16 %v687
        %v4392 = vunpack.c.l.b16 %v688
        %v4393 = vunpack.c.h.b16 %v688
        %v4394 = vunpack.c.l.b16 %v689
        %v4395 = vunpack.c.h.b16 %v689
        %v4396 = vunpack.c.l.b16 %v690
        %v4397 = vunpack.c.h.b16 %v690
        %v4398 = vunpack.c.l.b16 %v691
        %v4399 = vunpack.c.h.b16 %v691
        %v4400 = vunpack.c.l.b16 %v692
        %v4401 = vunpack.c.h.b16 %v692
        %v4402 = vunpack.c.l.b16 %v693
        %v4403 = vunpack.c.h.b16 %v693
        %v4404 = vunpack.c.l.b16 %v694
        %v4405 = vunpack.c.h.b16 %v694
        %v4406 = vunpack.c.l.b16 %v695
        %v4407 = vunpack.c.h.b16 %v695
        %v4408 = vunpack.c.l.b16 %v696
        %v4409 = vunpack.c.h.b16 %v696
        %v4410 = vunpack.c.l.b16 %v697
        %v4411 = vunpack.c.h.b16 %v697
        %v4412 = vunpack.c.l.b16 %v698
        %v4413 = vunpack.c.h.b16 %v698
        %v4414 = vunpack.c.l.b16 %v699
        %v4415 = vunpack.c.h.b16 %v699
        %v4416 = vunpack.c.l.b16 %v700
        %v4417 = vunpack.c.h.b16 %v700
        %v4418 = vunpack.c.l.b16 %v701
        %v4419 = vunpack.c.h.b16 %v701
        %v4420 = vunpack.c.l.b16 %v702
        %v4421 = vunpack.c.h.b16 %v702
        %v4422 = vunpack.c.l.b16 %v703
        %v4423 = vunpack.c.h.b16 %v703
        %v4424 = vunpack.c.l.b16 %v704
        %v4425 = vunpack.c.h.b16 %v704
        %v4426 = vunpack.c.l.b16 %v705
        %v4427 = vunpack.c.h.b16 %v705
        %v4428 = vunpack.c.l.b16 %v706
        %v4429 = vunpack.c.h.b16 %v706
        %v4430 = vunpack.c.l.b16 %v707
        %v4431 = vunpack.c.h.b16 %v707
        %v4432 = vunpack.c.l.b16 %v708
        %v4433 = vunpack.c.h.b16 %v708
        %v4434 = vunpack.c.l.b16 %v709
        %v4435 = vunpack.c.h.b16 %v709
        %v4436 = vunpack.c.l.b16 %v710
        %v4437 = vunpack.c.h.b16 %v710
        %v4438 = vunpack.c.l.b16 %v711
        %v4439 = vunpack.c.h.b16 %v711
        %v4440 = vunpack.c.l.b16 %v712
        %v4441 = vunpack.c.h.b16 %v712
        %v4442 = vunpack.c.l.b16 %v713
        %v4443 = vunpack.c.h.b16 %v713
        %v4444 = vunpack.c.l.b16 %v714
        %v4445 = vunpack.c.h.b16 %v714
        %v4446 = vunpack.c.l.b16 %v715
        %v4447 = vunpack.c.h.b16 %v715
        %v4448 = vunpack.c.l.b16 %v716
        %v4449 = vunpack.c.h.b16 %v716
        %v4450 = vunpack.c.l.b16 %v717
        %v4451 = vunpack.c.h.b16 %v717
        %v4452 = vunpack.c.l.b16 %v718
        %v4453 = vunpack.c.h.b16 %v718
        %v4454 = vunpack.c.l.b16 %v719
        %v4455 = vunpack.c.h.b16 %v719
        %v4456 = vunpack.c.l.b16 %v720
        %v4457 = vunpack.c.h.b16 %v720
        %v4458 = vunpack.c.l.b16 %v721
        %v4459 = vunpack.c.h.b16 %v721
        %v4460 = vunpack.c.l.b16 %v722
        %v4461 = vunpack.c.h.b16 %v722
        %v4462 = vunpack.c.l.b16 %v723
        %v4463 = vunpack.c.h.b16 %v723
        %v4464 = vunpack.c.l.b16 %v724
        %v4465 = vunpack.c.h.b16 %v724
        %v4466 = vunpack.c.l.b16 %v725
        %v4467 = vunpack.c.h.b16 %v725
        %v4468 = vunpack.c.l.b16 %v726
        %v4469 = vunpack.c.h.b16 %v726
        %v4470 = vunpack.c.l.b16 %v727
        %v4471 = vunpack.c.h.b16 %v727
        %v4472 = vunpack.c.l.b16 %v728
        %v4473 = vunpack.c.h.b16 %v728
        %v4474 = vunpack.c.l.b16 %v729
        %v4475 = vunpack.c.h.b16 %v729
        %v4476 = vunpack.c.l.b16 %v730
        %v4477 = vunpack.c.h.b16 %v730
        %v4478 = vunpack.c.l.b16 %v731
        %v4479 = vunpack.c.h.b16 %v731
        %v4480 = vunpack.c.l.b16 %v732
        %v4481 = vunpack.c.h.b16 %v732
        %v4482 = vunpack.c.l.b16 %v733
        %v4483 = vunpack.c.h.b16 %v733
        %v4484 = vunpack.c.l.b16 %v734
        %v4485 = vunpack.c.h.b16 %v734
        %v4486 = vunpack.c.l.b16 %v735
        %v4487 = vunpack.c.h.b16 %v735
        %v4488 = vunpack.c.l.b16 %v736
        %v4489 = vunpack.c.h.b16 %v736
        %v4490 = vunpack.c.l.b16 %v737
        %v4491 = vunpack.c.h.b16 %v737
        %v4492 = vunpack.c.l.b16 %v738
        %v4493 = vunpack.c.h.b16 %v738
        %v4494 = vunpack.c.l.b16 %v739
        %v4495 = vunpack.c.h.b16 %v739
        %v4496 = vunpack.c.l.b16 %v740
        %v4497 = vunpack.c.h.b16 %v740
        %v4498 = vunpack.c.l.b16 %v741
        %v4499 = vunpack.c.h.b16 %v741
        %v4500 = vunpack.c.l.b16 %v742
        %v4501 = vunpack.c.h.b16 %v742
        %v4502 = vunpack.c.l.b16 %v743
        %v4503 = vunpack.c.h.b16 %v743
        %v4504 = vunpack.c.l.b16 %v744
        %v4505 = vunpack.c.h.b16 %v744
        %v4506 = vunpack.c.l.b16 %v745
        %v4507 = vunpack.c.h.b16 %v745
        %v4508 = vunpack.c.l.b16 %v746
        %v4509 = vunpack.c.h.b16 %v746
        %v4510 = vunpack.c.l.b16 %v747
        %v4511 = vunpack.c.h.b16 %v747
        %v4512 = vunpack.c.l.b16 %v748
        %v4513 = vunpack.c.h.b16 %v748
        %v4514 = vunpack.c.l.b16 %v749
        %v4515 = vunpack.c.h.b16 %v749
        %v4516 = vunpack.c.l.b16 %v750
        %v4517 = vunpack.c.h.b16 %v750
        %v4518 = vunpack.c.l.b16 %v751
        %v4519 = vunpack.c.h.b16 %v751
        %v4520 = vunpack.c.l.b16 %v752
        %v4521 = vunpack.c.h.b16 %v752
        %v4522 = vunpack.c.l.b16 %v753
        %v4523 = vunpack.c.h.b16 %v753
        %v4524 = vunpack.c.l.b16 %v754
        %v4525 = vunpack.c.h.b16 %v754
        %v4526 = vunpack.c.l.b16 %v755
        %v4527 = vunpack.c.h.b16 %v755
        %v4528 = vunpack.c.l.b16 %v756
        %v4529 = vunpack.c.h.b16 %v756
        %v4530 = vunpack.c.l.b16 %v757
        %v4531 = vunpack.c.h.b16 %v757
        %v4532 = vunpack.c.l.b16 %v758
        %v4533 = vunpack.c.h.b16 %v758
        %v4534 = vunpack.c.l.b16 %v759
        %v4535 = vunpack.c.h.b16 %v759
        %v4536 = vunpack.c.l.b16 %v760
        %v4537 = vunpack.c.h.b16 %v760
        %v4538 = vunpack.c.l.b16 %v761
        %v4539 = vunpack.c.h.b16 %v761
        %v4540 = vunpack.c.l.b16 %v762
        %v4541 = vunpack.c.h.b16 %v762
        %v4542 = vunpack.c.l.b16 %v763
        %v4543 = vunpack.c.h.b16 %v763
        %v4544 = vunpack.c.l.b16 %v764
        %v4545 = vunpack.c.h.b16 %v764
        %v4546 = vunpack.c.l.b16 %v765
        %v4547 = vunpack.c.h.b16 %v765
        %v4548 = vunpack.c.l.b16 %v766
        %v4549 = vunpack.c.h.b16 %v766
        %v4550 = vunpack.c.l.b16 %v767
        %v4551 = vunpack.c.h.b16 %v767
        %v4552 = vunpack.c.l.b16 %v768
        %v4553 = vunpack.c.h.b16 %v768
        %v4554 = vunpack.c.l.b16 %v769
        %v4555 = vunpack.c.h.b16 %v769
        %v4556 = vunpack.c.l.b16 %v770
        %v4557 = vunpack.c.h.b16 %v770
        %v4558 = vunpack.c.l.b16 %v771
        %v4559 = vunpack.c.h.b16 %v771
        %v4560 = vunpack.c.l.b16 %v772
        %v4561 = vunpack.c.h.b16 %v772
        %v4562 = vunpack.c.l.b16 %v773
        %v4563 = vunpack.c.h.b16 %v773
        %v4564 = vunpack.c.l.b16 %v774
        %v4565 = vunpack.c.h.b16 %v774
        %v4566 = vunpack.c.l.b16 %v775
        %v4567 = vunpack.c.h.b16 %v775
        %v4568 = vunpack.c.l.b16 %v776
        %v4569 = vunpack.c.h.b16 %v776
        %v4570 = vunpack.c.l.b16 %v777
        %v4571 = vunpack.c.h.b16 %v777
        %v4572 = vunpack.c.l.b16 %v778
        %v4573 = vunpack.c.h.b16 %v778
        %v4574 = vunpack.c.l.b16 %v779
        %v4575 = vunpack.c.h.b16 %v779
        %v4576 = vunpack.c.l.b16 %v780
        %v4577 = vunpack.c.h.b16 %v780
        %v4578 = vunpack.c.l.b16 %v781
        %v4579 = vunpack.c.h.b16 %v781
        %v4580 = vunpack.c.l.b16 %v782
        %v4581 = vunpack.c.h.b16 %v782
        %v4582 = vunpack.c.l.b16 %v783
        %v4583 = vunpack.c.h.b16 %v783
        %v4584 = vunpack.c.l.b16 %v784
        %v4585 = vunpack.c.h.b16 %v784
        %v4586 = vunpack.c.l.b16 %v785
        %v4587 = vunpack.c.h.b16 %v785
        %v4588 = vunpack.c.l.b16 %v786
        %v4589 = vunpack.c.h.b16 %v786
        %v4590 = vunpack.c.l.b16 %v787
        %v4591 = vunpack.c.h.b16 %v787
        %v4592 = vunpack.c.l.b16 %v788
        %v4593 = vunpack.c.h.b16 %v788
        %v4594 = vunpack.c.l.b16 %v789
        %v4595 = vunpack.c.h.b16 %v789
        %v4596 = vunpack.c.l.b16 %v790
        %v4597 = vunpack.c.h.b16 %v790
        %v4598 = vunpack.c.l.b16 %v791
        %v4599 = vunpack.c.h.b16 %v791
        %v4600 = vunpack.c.l.b16 %v792
        %v4601 = vunpack.c.h.b16 %v792
        %v4602 = vunpack.c.l.b16 %v793
        %v4603 = vunpack.c.h.b16 %v793
        %v4604 = vunpack.c.l.b16 %v794
        %v4605 = vunpack.c.h.b16 %v794
        %v4606 = vunpack.c.l.b16 %v795
        %v4607 = vunpack.c.h.b16 %v795
        %v4608 = vunpack.c.l.b16 %v796
        %v4609 = vunpack.c.h.b16 %v796
        %v4610 = vunpack.c.l.b16 %v797
        %v4611 = vunpack.c.h.b16 %v797
        %v4612 = vunpack.c.l.b16 %v798
        %v4613 = vunpack.c.h.b16 %v798
        %v4614 = vunpack.c.l.b16 %v799
        %v4615 = vunpack.c.h.b16 %v799
        %v4616 = vunpack.c.l.b16 %v800
        %v4617 = vunpack.c.h.b16 %v800
        %v4618 = vunpack.c.l.b16 %v801
        %v4619 = vunpack.c.h.b16 %v801
        %v4620 = vunpack.c.l.b16 %v802
        %v4621 = vunpack.c.h.b16 %v802
        %v4622 = vunpack.c.l.b16 %v803
        %v4623 = vunpack.c.h.b16 %v803
        %v4624 = vunpack.c.l.b16 %v804
        %v4625 = vunpack.c.h.b16 %v804
        %v4626 = vunpack.c.l.b16 %v805
        %v4627 = vunpack.c.h.b16 %v805
        %v4628 = vunpack.c.l.b16 %v806
        %v4629 = vunpack.c.h.b16 %v806
        %v4630 = vunpack.c.l.b16 %v807
        %v4631 = vunpack.c.h.b16 %v807
        %v4632 = vunpack.c.l.b16 %v808
        %v4633 = vunpack.c.h.b16 %v808
        %v4634 = vunpack.c.l.b16 %v809
        %v4635 = vunpack.c.h.b16 %v809
        %v4636 = vunpack.c.l.b16 %v810
        %v4637 = vunpack.c.h.b16 %v810
        %v4638 = vunpack.c.l.b16 %v811
        %v4639 = vunpack.c.h.b16 %v811
        %v4640 = vunpack.c.l.b16 %v812
        %v4641 = vunpack.c.h.b16 %v812
        %v4642 = vunpack.c.l.b16 %v813
        %v4643 = vunpack.c.h.b16 %v813
        %v4644 = vunpack.c.l.b16 %v814
        %v4645 = vunpack.c.h.b16 %v814
        %v4646 = vunpack.c.l.b16 %v815
        %v4647 = vunpack.c.h.b16 %v815
        %v4648 = vunpack.c.l.b16 %v816
        %v4649 = vunpack.c.h.b16 %v816
        %v4650 = vunpack.c.l.b16 %v817
        %v4651 = vunpack.c.h.b16 %v817
        %v4652 = vunpack.c.l.b16 %v818
        %v4653 = vunpack.c.h.b16 %v818
        %v4654 = vunpack.c.l.b16 %v819
        %v4655 = vunpack.c.h.b16 %v819
        %v4656 = vunpack.c.l.b16 %v820
        %v4657 = vunpack.c.h.b16 %v820
        %v4658 = vunpack.c.l.b16 %v821
        %v4659 = vunpack.c.h.b16 %v821
        %v4660 = vunpack.c.l.b16 %v822
        %v4661 = vunpack.c.h.b16 %v822
        %v4662 = vunpack.c.l.b16 %v823
        %v4663 = vunpack.c.h.b16 %v823
        %v4664 = vunpack.c.l.b16 %v824
        %v4665 = vunpack.c.h.b16 %v824
        %v4666 = vunpack.c.l.b16 %v825
        %v4667 = vunpack.c.h.b16 %v825
        %v4668 = vunpack.c.l.b16 %v826
        %v4669 = vunpack.c.h.b16 %v826
        %v4670 = vunpack.c.l.b16 %v827
        %v4671 = vunpack.c.h.b16 %v827
        %v4672 = vunpack.c.l.b16 %v828
        %v4673 = vunpack.c.h.b16 %v828
        %v4674 = vunpack.c.l.b16 %v829
        %v4675 = vunpack.c.h.b16 %v829
        %v4676 = vunpack.c.l.b16 %v830
        %v4677 = vunpack.c.h.b16 %v830
        %v4678 = vunpack.c.l.b16 %v831
        %v4679 = vunpack.c.h.b16 %v831
        %v4680 = vunpack.c.l.b16 %v832
        %v4681 = vunpack.c.h.b16 %v832
        %v4682 = vunpack.c.l.b16 %v833
        %v4683 = vunpack.c.h.b16 %v833
        %v4684 = vunpack.c.l.b16 %v834
        %v4685 = vunpack.c.h.b16 %v834
        %v4686 = vunpack.c.l.b16 %v835
        %v4687 = vunpack.c.h.b16 %v835
        %v4688 = vunpack.c.l.b16 %v836
        %v4689 = vunpack.c.h.b16 %v836
        %v4690 = vunpack.c.l.b16 %v837
        %v4691 = vunpack.c.h.b16 %v837
        %v4692 = vunpack.c.l.b16 %v838
        %v4693 = vunpack.c.h.b16 %v838
        %v4694 = vunpack.c.l.b16 %v839
        %v4695 = vunpack.c.h.b16 %v839
        %v4696 = vunpack.c.l.b16 %v840
        %v4697 = vunpack.c.h.b16 %v840
        %v4698 = vunpack.c.l.b16 %v841
        %v4699 = vunpack.c.h.b16 %v841
        %v4700 = vunpack.c.l.b16 %v842
        %v4701 = vunpack.c.h.b16 %v842
        %v4702 = vunpack.c.l.b16 %v843
        %v4703 = vunpack.c.h.b16 %v843
        %v4704 = vunpack.c.l.b16 %v844
        %v4705 = vunpack.c.h.b16 %v844
        %v4706 = vunpack.c.l.b16 %v845
        %v4707 = vunpack.c.h.b16 %v845
        %v4708 = vunpack.c.l.b16 %v846
        %v4709 = vunpack.c.h.b16 %v846
        %v4710 = vunpack.c.l.b16 %v847
        %v4711 = vunpack.c.h.b16 %v847
        %v4712 = vunpack.c.l.b16 %v848
        %v4713 = vunpack.c.h.b16 %v848
        %v4714 = vunpack.c.l.b16 %v849
        %v4715 = vunpack.c.h.b16 %v849
        %v4716 = vunpack.c.l.b16 %v850
        %v4717 = vunpack.c.h.b16 %v850
        %v4718 = vunpack.c.l.b16 %v851
        %v4719 = vunpack.c.h.b16 %v851
        %v4720 = vunpack.c.l.b16 %v852
        %v4721 = vunpack.c.h.b16 %v852
        %v4722 = vunpack.c.l.b16 %v853
        %v4723 = vunpack.c.h.b16 %v853
        %v4724 = vunpack.c.l.b16 %v854
        %v4725 = vunpack.c.h.b16 %v854
        %v4726 = vunpack.c.l.b16 %v855
        %v4727 = vunpack.c.h.b16 %v855
        %v4728 = vunpack.c.l.b16 %v856
        %v4729 = vunpack.c.h.b16 %v856
        %v4730 = vunpack.c.l.b16 %v857
        %v4731 = vunpack.c.h.b16 %v857
        %v4732 = vunpack.c.l.b16 %v858
        %v4733 = vunpack.c.h.b16 %v858
        %v4734 = vunpack.c.l.b16 %v859
        %v4735 = vunpack.c.h.b16 %v859
        %v4736 = vunpack.c.l.b16 %v860
        %v4737 = vunpack.c.h.b16 %v860
        %v4738 = vunpack.c.l.b16 %v861
        %v4739 = vunpack.c.h.b16 %v861
        %v4740 = vunpack.c.l.b16 %v862
        %v4741 = vunpack.c.h.b16 %v862
        %v4742 = vunpack.c.l.b16 %v863
        %v4743 = vunpack.c.h.b16 %v863
        %v4744 = vunpack.c.l.b16 %v864
        %v4745 = vunpack.c.h.b16 %v864
        %v4746 = vunpack.c.l.b16 %v865
        %v4747 = vunpack.c.h.b16 %v865
        %v4748 = vunpack.c.l.b16 %v866
        %v4749 = vunpack.c.h.b16 %v866
        %v4750 = vunpack.c.l.b16 %v867
        %v4751 = vunpack.c.h.b16 %v867
        %v4752 = vunpack.c.l.b16 %v868
        %v4753 = vunpack.c.h.b16 %v868
        %v4754 = vunpack.c.l.b16 %v869
        %v4755 = vunpack.c.h.b16 %v869
        %v4756 = vunpack.c.l.b16 %v870
        %v4757 = vunpack.c.h.b16 %v870
        %v4758 = vunpack.c.l.b16 %v871
        %v4759 = vunpack.c.h.b16 %v871
        %v4760 = vunpack.c.l.b16 %v872
        %v4761 = vunpack.c.h.b16 %v872
        %v4762 = vunpack.c.l.b16 %v873
        %v4763 = vunpack.c.h.b16 %v873
        %v4764 = vunpack.c.l.b16 %v874
        %v4765 = vunpack.c.h.b16 %v874
        %v4766 = vunpack.c.l.b16 %v875
        %v4767 = vunpack.c.h.b16 %v875
        %v4768 = vunpack.c.l.b16 %v876
        %v4769 = vunpack.c.h.b16 %v876
        %v4770 = vunpack.c.l.b16 %v877
        %v4771 = vunpack.c.h.b16 %v877
        %v4772 = vunpack.c.l.b16 %v878
        %v4773 = vunpack.c.h.b16 %v878
        %v4774 = vunpack.c.l.b16 %v879
        %v4775 = vunpack.c.h.b16 %v879
        %v4776 = vunpack.c.l.b16 %v880
        %v4777 = vunpack.c.h.b16 %v880
        %v4778 = vunpack.c.l.b16 %v881
        %v4779 = vunpack.c.h.b16 %v881
        %v4780 = vunpack.c.l.b16 %v882
        %v4781 = vunpack.c.h.b16 %v882
        %v4782 = vunpack.c.l.b16 %v883
        %v4783 = vunpack.c.h.b16 %v883
        %v4784 = vunpack.c.l.b16 %v884
        %v4785 = vunpack.c.h.b16 %v884
        %v4786 = vunpack.c.l.b16 %v885
        %v4787 = vunpack.c.h.b16 %v885
        %v4788 = vunpack.c.l.b16 %v886
        %v4789 = vunpack.c.h.b16 %v886
        %v4790 = vunpack.c.l.b16 %v887
        %v4791 = vunpack.c.h.b16 %v887
        %v4792 = vunpack.c.l.b16 %v888
        %v4793 = vunpack.c.h.b16 %v888
        %v4794 = vunpack.c.l.b16 %v889
        %v4795 = vunpack.c.h.b16 %v889
        %v4796 = vunpack.c.l.b16 %v890
        %v4797 = vunpack.c.h.b16 %v890
        %v4798 = vunpack.c.l.b16 %v891
        %v4799 = vunpack.c.h.b16 %v891
        %v4800 = vunpack.c.l.b16 %v892
        %v4801 = vunpack.c.h.b16 %v892
        %v4802 = vunpack.c.l.b16 %v893
        %v4803 = vunpack.c.h.b16 %v893
        %v4804 = vunpack.c.l.b16 %v894
        %v4805 = vunpack.c.h.b16 %v894
        %v4806 = vunpack.c.l.b16 %v895
        %v4807 = vunpack.c.h.b16 %v895
        %v4808 = vunpack.c.l.b16 %v896
        %v4809 = vunpack.c.h.b16 %v896
        %v4810 = vunpack.c.l.b16 %v897
        %v4811 = vunpack.c.h.b16 %v897
        %v4812 = vunpack.c.l.b16 %v898
        %v4813 = vunpack.c.h.b16 %v898
        %v4814 = vunpack.c.l.b16 %v899
        %v4815 = vunpack.c.h.b16 %v899
        %v4816 = vunpack.c.l.b16 %v900
        %v4817 = vunpack.c.h.b16 %v900
        %v4818 = vunpack.c.l.b16 %v901
        %v4819 = vunpack.c.h.b16 %v901
        %v4820 = vunpack.c.l.b16 %v902
        %v4821 = vunpack.c.h.b16 %v902
        %v4822 = vunpack.c.l.b16 %v903
        %v4823 = vunpack.c.h.b16 %v903
        %v4824 = vunpack.c.l.b16 %v904
        %v4825 = vunpack.c.h.b16 %v904
        %v4826 = vunpack.c.l.b16 %v905
        %v4827 = vunpack.c.h.b16 %v905
        %v4828 = vunpack.c.l.b16 %v906
        %v4829 = vunpack.c.h.b16 %v906
        %v4830 = vunpack.c.l.b16 %v907
        %v4831 = vunpack.c.h.b16 %v907
        %v4832 = vunpack.c.l.b16 %v908
        %v4833 = vunpack.c.h.b16 %v908
        %v4834 = vunpack.c.l.b16 %v909
        %v4835 = vunpack.c.h.b16 %v909
        %v4836 = vunpack.c.l.b16 %v910
        %v4837 = vunpack.c.h.b16 %v910
        %v4838 = vunpack.c.l.b16 %v911
        %v4839 = vunpack.c.h.b16 %v911
        %v4840 = vunpack.c.l.b16 %v912
        %v4841 = vunpack.c.h.b16 %v912
        %v4842 = vunpack.c.l.b16 %v913
        %v4843 = vunpack.c.h.b16 %v913
        %v4844 = vunpack.c.l.b16 %v914
        %v4845 = vunpack.c.h.b16 %v914
        %v4846 = vunpack.c.l.b16 %v915
        %v4847 = vunpack.c.h.b16 %v915
        %v4848 = vunpack.c.l.b16 %v916
        %v4849 = vunpack.c.h.b16 %v916
        %v4850 = vunpack.c.l.b16 %v917
        %v4851 = vunpack.c.h.b16 %v917
        %v4852 = vunpack.c.l.b16 %v918
        %v4853 = vunpack.c.h.b16 %v918
        %v4854 = vunpack.c.l.b16 %v919
        %v4855 = vunpack.c.h.b16 %v919
        %v4856 = vunpack.c.l.b16 %v920
        %v4857 = vunpack.c.h.b16 %v920
        %v4858 = vunpack.c.l.b16 %v921
        %v4859 = vunpack.c.h.b16 %v921
        %v4860 = vunpack.c.l.b16 %v922
        %v4861 = vunpack.c.h.b16 %v922
        %v4862 = vunpack.c.l.b16 %v923
        %v4863 = vunpack.c.h.b16 %v923
        %v4864 = vunpack.c.l.b16 %v924
        %v4865 = vunpack.c.h.b16 %v924
        %v4866 = vunpack.c.l.b16 %v925
        %v4867 = vunpack.c.h.b16 %v925
        %v4868 = vunpack.c.l.b16 %v926
        %v4869 = vunpack.c.h.b16 %v926
        %v4870 = vunpack.c.l.b16 %v927
        %v4871 = vunpack.c.h.b16 %v927
        %v4872 = vunpack.c.l.b16 %v928
        %v4873 = vunpack.c.h.b16 %v928
        %v4874 = vunpack.c.l.b16 %v929
        %v4875 = vunpack.c.h.b16 %v929
        %v4876 = vunpack.c.l.b16 %v930
        %v4877 = vunpack.c.h.b16 %v930
        %v4878 = vunpack.c.l.b16 %v931
        %v4879 = vunpack.c.h.b16 %v931
        %v4880 = vunpack.c.l.b16 %v932
        %v4881 = vunpack.c.h.b16 %v932
        %v4882 = vunpack.c.l.b16 %v933
        %v4883 = vunpack.c.h.b16 %v933
        %v4884 = vunpack.c.l.b16 %v934
        %v4885 = vunpack.c.h.b16 %v934
        %v4886 = vunpack.c.l.b16 %v935
        %v4887 = vunpack.c.h.b16 %v935
        %v4888 = vunpack.c.l.b16 %v936
        %v4889 = vunpack.c.h.b16 %v936
        %v4890 = vunpack.c.l.b16 %v937
        %v4891 = vunpack.c.h.b16 %v937
        %v4892 = vunpack.c.l.b16 %v938
        %v4893 = vunpack.c.h.b16 %v938
        %v4894 = vunpack.c.l.b16 %v939
        %v4895 = vunpack.c.h.b16 %v939
        %v4896 = vunpack.c.l.b16 %v940
        %v4897 = vunpack.c.h.b16 %v940
        %v4898 = vunpack.c.l.b16 %v941
        %v4899 = vunpack.c.h.b16 %v941
        %v4900 = vunpack.c.l.b16 %v942
        %v4901 = vunpack.c.h.b16 %v942
        %v4902 = vunpack.c.l.b16 %v943
        %v4903 = vunpack.c.h.b16 %v943
        %v4904 = vunpack.c.l.b16 %v944
        %v4905 = vunpack.c.h.b16 %v944
        %v4906 = vunpack.c.l.b16 %v945
        %v4907 = vunpack.c.h.b16 %v945
        %v4908 = vunpack.c.l.b16 %v946
        %v4909 = vunpack.c.h.b16 %v946
        %v4910 = vunpack.c.l.b16 %v947
        %v4911 = vunpack.c.h.b16 %v947
        %v4912 = vunpack.c.l.b16 %v948
        %v4913 = vunpack.c.h.b16 %v948
        %v4914 = vunpack.c.l.b16 %v949
        %v4915 = vunpack.c.h.b16 %v949
        %v4916 = vunpack.c.l.b16 %v950
        %v4917 = vunpack.c.h.b16 %v950
        %v4918 = vunpack.c.l.b16 %v951
        %v4919 = vunpack.c.h.b16 %v951
        %v4920 = vunpack.c.l.b16 %v952
        %v4921 = vunpack.c.h.b16 %v952
        %v4922 = vunpack.c.l.b16 %v953
        %v4923 = vunpack.c.h.b16 %v953
        %v4924 = vunpack.c.l.b16 %v954
        %v4925 = vunpack.c.h.b16 %v954
        %v4926 = vunpack.c.l.b16 %v955
        %v4927 = vunpack.c.h.b16 %v955
        %v4928 = vunpack.c.l.b16 %v956
        %v4929 = vunpack.c.h.b16 %v956
        %v4930 = vunpack.c.l.b16 %v957
        %v4931 = vunpack.c.h.b16 %v957
        %v4932 = vunpack.c.l.b16 %v958
        %v4933 = vunpack.c.h.b16 %v958
        %v4934 = vunpack.c.l.b16 %v959
        %v4935 = vunpack.c.h.b16 %v959
        %v4936 = vunpack.c.l.b16 %v960
        %v4937 = vunpack.c.h.b16 %v960
        %v4938 = vunpack.c.l.b16 %v961
        %v4939 = vunpack.c.h.b16 %v961
        %v4940 = vunpack.c.l.b16 %v962
        %v4941 = vunpack.c.h.b16 %v962
        %v4942 = vunpack.c.l.b16 %v963
        %v4943 = vunpack.c.h.b16 %v963
        %v4944 = vunpack.c.l.b16 %v964
        %v4945 = vunpack.c.h.b16 %v964
        %v4946 = vunpack.c.l.b16 %v965
        %v4947 = vunpack.c.h.b16 %v965
        %v4948 = vunpack.c.l.b16 %v966
        %v4949 = vunpack.c.h.b16 %v966
        %v4950 = vunpack.c.l.b16 %v967
        %v4951 = vunpack.c.h.b16 %v967
        %v4952 = vunpack.c.l.b16 %v968
        %v4953 = vunpack.c.h.b16 %v968
        %v4954 = vunpack.c.l.b16 %v969
        %v4955 = vunpack.c.h.b16 %v969
        %v4956 = vunpack.c.l.b16 %v970
        %v4957 = vunpack.c.h.b16 %v970
        %v4958 = vunpack.c.l.b16 %v971
        %v4959 = vunpack.c.h.b16 %v971
        %v4960 = vunpack.c.l.b16 %v972
        %v4961 = vunpack.c.h.b16 %v972
        %v4962 = vunpack.c.l.b16 %v973
        %v4963 = vunpack.c.h.b16 %v973
        %v4964 = vunpack.c.l.b16 %v974
        %v4965 = vunpack.c.h.b16 %v974
        %v4966 = vunpack.c.l.b16 %v975
        %v4967 = vunpack.c.h.b16 %v975
        %v4968 = vunpack.c.l.b16 %v976
        %v4969 = vunpack.c.h.b16 %v976
        %v4970 = vunpack.c.l.b16 %v977
        %v4971 = vunpack.c.h.b16 %v977
        %v4972 = vunpack.c.l.b16 %v978
        %v4973 = vunpack.c.h.b16 %v978
        %v4974 = vunpack.c.l.b16 %v979
        %v4975 = vunpack.c.h.b16 %v979
        %v4976 = vunpack.c.l.b16 %v980
        %v4977 = vunpack.c.h.b16 %v980
        %v4978 = vunpack.c.l.b16 %v981
        %v4979 = vunpack.c.h.b16 %v981
        %v4980 = vunpack.c.l.b16 %v982
        %v4981 = vunpack.c.h.b16 %v982
        %v4982 = vunpack.c.l.b16 %v983
        %v4983 = vunpack.c.h.b16 %v983
        %v4984 = vunpack.c.l.b16 %v984
        %v4985 = vunpack.c.h.b16 %v984
        %v4986 = vunpack.c.l.b16 %v985
        %v4987 = vunpack.c.h.b16 %v985
        %v4988 = vunpack.c.l.b16 %v986
        %v4989 = vunpack.c.h.b16 %v986
        %v4990 = vunpack.c.l.b16 %v987
        %v4991 = vunpack.c.h.b16 %v987
        %v4992 = vunpack.c.l.b16 %v988
        %v4993 = vunpack.c.h.b16 %v988
        %v4994 = vunpack.c.l.b16 %v989
        %v4995 = vunpack.c.h.b16 %v989
        %v4996 = vunpack.c.l.b16 %v990
        %v4997 = vunpack.c.h.b16 %v990
        %v4998 = vunpack.c.l.b16 %v991
        %v4999 = vunpack.c.h.b16 %v991
        %v5000 = vunpack.c.l.b16 %v992
        %v5001 = vunpack.c.h.b16 %v992
        %v5002 = vunpack.c.l.b16 %v993
        %v5003 = vunpack.c.h.b16 %v993
        %v5004 = vunpack.c.l.b16 %v994
        %v5005 = vunpack.c.h.b16 %v994
        %v5006 = vunpack.c.l.b16 %v995
        %v5007 = vunpack.c.h.b16 %v995
        %v5008 = vunpack.c.l.b16 %v996
        %v5009 = vunpack.c.h.b16 %v996
        %v5010 = vunpack.c.l.b16 %v997
        %v5011 = vunpack.c.h.b16 %v997
        %v5012 = vunpack.c.l.b16 %v998
        %v5013 = vunpack.c.h.b16 %v998
        %v5014 = vunpack.c.l.b16 %v999
        %v5015 = vunpack.c.h.b16 %v999
        %v5016 = vunpack.c.l.b16 %v1000
        %v5017 = vunpack.c.h.b16 %v1000
        %v5018 = vunpack.c.l.b16 %v1001
        %v5019 = vunpack.c.h.b16 %v1001
        %v5020 = vunpack.c.l.b16 %v1002
        %v5021 = vunpack.c.h.b16 %v1002
        %v5022 = vunpack.c.l.b16 %v1003
        %v5023 = vunpack.c.h.b16 %v1003
        %v5024 = vunpack.c.l.b16 %v1004
        %v5025 = vunpack.c.h.b16 %v1004
        %v5026 = vunpack.c.l.b16 %v1005
        %v5027 = vunpack.c.h.b16 %v1005
        %v5028 = vunpack.c.l.b16 %v1006
        %v5029 = vunpack.c.h.b16 %v1006
        %v5030 = vunpack.c.l.b16 %v1007
        %v5031 = vunpack.c.h.b16 %v1007
        %v5032 = vunpack.c.l.b16 %v1008
        %v5033 = vunpack.c.h.b16 %v1008
        %v5034 = vunpack.c.l.b16 %v1009
        %v5035 = vunpack.c.h.b16 %v1009
        %v5036 = vunpack.c.l.b16 %v1010
        %v5037 = vunpack.c.h.b16 %v1010
        %v5038 = vunpack.c.l.b16 %v1011
        %v5039 = vunpack.c.h.b16 %v1011
        %v5040 = vunpack.c.l.b16 %v1012
        %v5041 = vunpack.c.h.b16 %v1012
        %v5042 = vunpack.c.l.b16 %v1013
        %v5043 = vunpack.c.h.b16 %v1013
        %v5044 = vunpack.c.l.b16 %v1014
        %v5045 = vunpack.c.h.b16 %v1014
        %v5046 = vunpack.c.l.b16 %v1015
        %v5047 = vunpack.c.h.b16 %v1015
        %v5048 = vunpack.c.l.b16 %v1016
        %v5049 = vunpack.c.h.b16 %v1016
        %v5050 = vunpack.c.l.b16 %v1017
        %v5051 = vunpack.c.h.b16 %v1017
        %v5052 = vunpack.c.l.b16 %v1018
        %v5053 = vunpack.c.h.b16 %v1018
        %v5054 = vunpack.c.l.b16 %v1019
        %v5055 = vunpack.c.h.b16 %v1019
        %v5056 = vunpack.c.l.b16 %v1020
        %v5057 = vunpack.c.h.b16 %v1020
        %v5058 = vunpack.c.l.b16 %v1021
        %v5059 = vunpack.c.h.b16 %v1021
        %v5060 = vunpack.c.l.b16 %v1022
        %v5061 = vunpack.c.h.b16 %v1022
        %v5062 = vunpack.c.l.b16 %v1023
        %v5063 = vunpack.c.h.b16 %v1023
        %v5064 = vunpack.c.l.b16 %v1024
        %v5065 = vunpack.c.h.b16 %v1024
        %v5066 = vunpack.c.l.b16 %v1025
        %v5067 = vunpack.c.h.b16 %v1025
        %v5068 = vunpack.c.l.b16 %v1026
        %v5069 = vunpack.c.h.b16 %v1026
        %v5070 = vunpack.c.l.b16 %v1027
        %v5071 = vunpack.c.h.b16 %v1027
        %v5072 = vunpack.c.l.b16 %v1028
        %v5073 = vunpack.c.h.b16 %v1028
        %v5074 = vunpack.c.l.b16 %v1029
        %v5075 = vunpack.c.h.b16 %v1029
        %v5076 = vunpack.c.l.b16 %v1030
        %v5077 = vunpack.c.h.b16 %v1030
        %v5078 = vunpack.c.l.b16 %v1031
        %v5079 = vunpack.c.h.b16 %v1031
        %v5080 = vunpack.c.l.b16 %v1032
        %v5081 = vunpack.c.h.b16 %v1032
        %v5082 = vunpack.c.l.b16 %v1033
        %v5083 = vunpack.c.h.b16 %v1033
        %v5084 = vunpack.c.l.b16 %v1034
        %v5085 = vunpack.c.h.b16 %v1034
        %v5086 = vunpack.c.l.b16 %v1035
        %v5087 = vunpack.c.h.b16 %v1035
        %v5088 = vunpack.c.l.b16 %v1036
        %v5089 = vunpack.c.h.b16 %v1036
        %v5090 = vunpack.c.l.b16 %v1037
        %v5091 = vunpack.c.h.b16 %v1037
        %v5092 = vunpack.c.l.b16 %v1038
        %v5093 = vunpack.c.h.b16 %v1038
        %v5094 = vunpack.c.l.b16 %v1039
        %v5095 = vunpack.c.h.b16 %v1039
        %v5096 = vunpack.c.l.b16 %v1040
        %v5097 = vunpack.c.h.b16 %v1040
        %v5098 = vunpack.c.l.b16 %v1041
        %v5099 = vunpack.c.h.b16 %v1041
        %v5100 = vunpack.c.l.b16 %v1042
        %v5101 = vunpack.c.h.b16 %v1042
        %v5102 = vunpack.c.l.b16 %v1043
        %v5103 = vunpack.c.h.b16 %v1043
        %v5104 = vunpack.c.l.b16 %v1044
        %v5105 = vunpack.c.h.b16 %v1044
        %v5106 = vunpack.c.l.b16 %v1045
        %v5107 = vunpack.c.h.b16 %v1045
        %v5108 = vunpack.c.l.b16 %v1046
        %v5109 = vunpack.c.h.b16 %v1046
        %v5110 = vunpack.c.l.b16 %v1047
        %v5111 = vunpack.c.h.b16 %v1047
        %v5112 = vunpack.c.l.b16 %v1048
        %v5113 = vunpack.c.h.b16 %v1048
        %v5114 = vunpack.c.l.b16 %v1049
        %v5115 = vunpack.c.h.b16 %v1049
        %v5116 = vunpack.c.l.b16 %v1050
        %v5117 = vunpack.c.h.b16 %v1050
        %v5118 = vunpack.c.l.b16 %v1051
        %v5119 = vunpack.c.h.b16 %v1051
        %v5120 = vunpack.c.l.b16 %v1052
        %v5121 = vunpack.c.h.b16 %v1052
        %v5122 = vunpack.c.l.b16 %v1053
        %v5123 = vunpack.c.h.b16 %v1053
        %v5124 = vunpack.c.l.b16 %v1054
        %v5125 = vunpack.c.h.b16 %v1054
        %v5126 = vunpack.c.l.b16 %v1055
        %v5127 = vunpack.c.h.b16 %v1055
        %v5128 = vunpack.c.l.b16 %v1056
        %v5129 = vunpack.c.h.b16 %v1056
        %v5130 = vunpack.c.l.b16 %v1057
        %v5131 = vunpack.c.h.b16 %v1057
        %v5132 = vunpack.c.l.b16 %v1058
        %v5133 = vunpack.c.h.b16 %v1058
        %v5134 = vunpack.c.l.b16 %v1059
        %v5135 = vunpack.c.h.b16 %v1059
        %v5136 = vunpack.c.l.b16 %v1060
        %v5137 = vunpack.c.h.b16 %v1060
        %v5138 = vunpack.c.l.b16 %v1061
        %v5139 = vunpack.c.h.b16 %v1061
        %v5140 = vunpack.c.l.b16 %v1062
        %v5141 = vunpack.c.h.b16 %v1062
        %v5142 = vunpack.c.l.b16 %v1063
        %v5143 = vunpack.c.h.b16 %v1063
        %v5144 = vunpack.c.l.b16 %v1064
        %v5145 = vunpack.c.h.b16 %v1064
        %v5146 = vunpack.c.l.b16 %v1065
        %v5147 = vunpack.c.h.b16 %v1065
        %v5148 = vunpack.c.l.b16 %v1066
        %v5149 = vunpack.c.h.b16 %v1066
        %v5150 = vunpack.c.l.b16 %v1067
        %v5151 = vunpack.c.h.b16 %v1067
        %v5152 = vunpack.c.l.b16 %v1068
        %v5153 = vunpack.c.h.b16 %v1068
        %v5154 = vunpack.c.l.b16 %v1069
        %v5155 = vunpack.c.h.b16 %v1069
        %v5156 = vunpack.c.l.b16 %v1070
        %v5157 = vunpack.c.h.b16 %v1070
        %v5158 = vunpack.c.l.b16 %v1071
        %v5159 = vunpack.c.h.b16 %v1071
        %v5160 = vunpack.c.l.b16 %v1072
        %v5161 = vunpack.c.h.b16 %v1072
        %v5162 = vunpack.c.l.b16 %v1073
        %v5163 = vunpack.c.h.b16 %v1073
        %v5164 = vunpack.c.l.b16 %v1074
        %v5165 = vunpack.c.h.b16 %v1074
        %v5166 = vunpack.c.l.b16 %v1075
        %v5167 = vunpack.c.h.b16 %v1075
        %v5168 = vunpack.c.l.b16 %v1076
        %v5169 = vunpack.c.h.b16 %v1076
        %v5170 = vunpack.c.l.b16 %v1077
        %v5171 = vunpack.c.h.b16 %v1077
        %v5172 = vunpack.c.l.b16 %v1078
        %v5173 = vunpack.c.h.b16 %v1078
        %v5174 = vunpack.c.l.b16 %v1079
        %v5175 = vunpack.c.h.b16 %v1079
        %v5176 = vunpack.c.l.b16 %v1080
        %v5177 = vunpack.c.h.b16 %v1080
        %v5178 = vunpack.c.l.b16 %v1081
        %v5179 = vunpack.c.h.b16 %v1081
        %v5180 = vunpack.c.l.b16 %v1082
        %v5181 = vunpack.c.h.b16 %v1082
        %v5182 = vunpack.c.l.b16 %v1083
        %v5183 = vunpack.c.h.b16 %v1083
        %v5184 = vunpack.c.l.b16 %v1084
        %v5185 = vunpack.c.h.b16 %v1084
        %v5186 = vunpack.c.l.b16 %v1085
        %v5187 = vunpack.c.h.b16 %v1085
        %v5188 = vunpack.c.l.b16 %v1086
        %v5189 = vunpack.c.h.b16 %v1086
        %v5190 = vunpack.c.l.b16 %v1087
        %v5191 = vunpack.c.h.b16 %v1087
        %v5192 = vunpack.c.l.b16 %v1088
        %v5193 = vunpack.c.h.b16 %v1088
        %v5194 = vunpack.c.l.b16 %v1089
        %v5195 = vunpack.c.h.b16 %v1089
        %v5196 = vunpack.c.l.b16 %v1090
        %v5197 = vunpack.c.h.b16 %v1090
        %v5198 = vunpack.c.l.b16 %v1091
        %v5199 = vunpack.c.h.b16 %v1091
        %v5200 = vunpack.c.l.b16 %v1092
        %v5201 = vunpack.c.h.b16 %v1092
        %v5202 = vunpack.c.l.b16 %v1093
        %v5203 = vunpack.c.h.b16 %v1093
        %v5204 = vunpack.c.l.b16 %v1094
        %v5205 = vunpack.c.h.b16 %v1094
        %v5206 = vunpack.c.l.b16 %v1095
        %v5207 = vunpack.c.h.b16 %v1095
        %v5208 = vunpack.c.l.b16 %v1096
        %v5209 = vunpack.c.h.b16 %v1096
        %v5210 = vunpack.c.l.b16 %v1097
        %v5211 = vunpack.c.h.b16 %v1097
        %v5212 = vunpack.c.l.b16 %v1098
        %v5213 = vunpack.c.h.b16 %v1098
        %v5214 = vunpack.c.l.b16 %v1099
        %v5215 = vunpack.c.h.b16 %v1099
        %v5216 = vunpack.c.l.b16 %v1100
        %v5217 = vunpack.c.h.b16 %v1100
        %v5218 = vunpack.c.l.b16 %v1101
        %v5219 = vunpack.c.h.b16 %v1101
        %v5220 = vunpack.c.l.b16 %v1102
        %v5221 = vunpack.c.h.b16 %v1102
        %v5222 = vunpack.c.l.b16 %v1103
        %v5223 = vunpack.c.h.b16 %v1103
        %v5224 = vunpack.c.l.b16 %v1104
        %v5225 = vunpack.c.h.b16 %v1104
        %v5226 = vunpack.c.l.b16 %v1105
        %v5227 = vunpack.c.h.b16 %v1105
        %v5228 = vunpack.c.l.b16 %v1106
        %v5229 = vunpack.c.h.b16 %v1106
        %v5230 = vunpack.c.l.b16 %v1107
        %v5231 = vunpack.c.h.b16 %v1107
        %v5232 = vunpack.c.l.b16 %v1108
        %v5233 = vunpack.c.h.b16 %v1108
        %v5234 = vunpack.c.l.b16 %v1109
        %v5235 = vunpack.c.h.b16 %v1109
        %v5236 = vunpack.c.l.b16 %v1110
        %v5237 = vunpack.c.h.b16 %v1110
        %v5238 = vunpack.c.l.b16 %v1111
        %v5239 = vunpack.c.h.b16 %v1111
        %v5240 = vunpack.c.l.b16 %v1112
        %v5241 = vunpack.c.h.b16 %v1112
        %v5242 = vunpack.c.l.b16 %v1113
        %v5243 = vunpack.c.h.b16 %v1113
        %v5244 = vunpack.c.l.b16 %v1114
        %v5245 = vunpack.c.h.b16 %v1114
        %v5246 = vunpack.c.l.b16 %v1115
        %v5247 = vunpack.c.h.b16 %v1115
        %v5248 = vunpack.c.l.b16 %v1116
        %v5249 = vunpack.c.h.b16 %v1116
        %v5250 = vunpack.c.l.b16 %v1117
        %v5251 = vunpack.c.h.b16 %v1117
        %v5252 = vunpack.c.l.b16 %v1118
        %v5253 = vunpack.c.h.b16 %v1118
        %v5254 = vunpack.c.l.b16 %v1119
        %v5255 = vunpack.c.h.b16 %v1119
        %v5256 = vunpack.c.l.b16 %v1120
        %v5257 = vunpack.c.h.b16 %v1120
        %v5258 = vunpack.c.l.b16 %v1121
        %v5259 = vunpack.c.h.b16 %v1121
        %v5260 = vunpack.c.l.b16 %v1122
        %v5261 = vunpack.c.h.b16 %v1122
        %v5262 = vunpack.c.l.b16 %v1123
        %v5263 = vunpack.c.h.b16 %v1123
        %v5264 = vunpack.c.l.b16 %v1124
        %v5265 = vunpack.c.h.b16 %v1124
        %v5266 = vunpack.c.l.b16 %v1125
        %v5267 = vunpack.c.h.b16 %v1125
        %v5268 = vunpack.c.l.b16 %v1126
        %v5269 = vunpack.c.h.b16 %v1126
        %v5270 = vunpack.c.l.b16 %v1127
        %v5271 = vunpack.c.h.b16 %v1127
        %v5272 = vunpack.c.l.b16 %v1128
        %v5273 = vunpack.c.h.b16 %v1128
        %v5274 = vunpack.c.l.b16 %v1129
        %v5275 = vunpack.c.h.b16 %v1129
        %v5276 = vunpack.c.l.b16 %v1130
        %v5277 = vunpack.c.h.b16 %v1130
        %v5278 = vunpack.c.l.b16 %v1131
        %v5279 = vunpack.c.h.b16 %v1131
        %v5280 = vunpack.c.l.b16 %v1132
        %v5281 = vunpack.c.h.b16 %v1132
        %v5282 = vunpack.c.l.b16 %v1133
        %v5283 = vunpack.c.h.b16 %v1133
        %v5284 = vunpack.c.l.b16 %v1134
        %v5285 = vunpack.c.h.b16 %v1134
        %v5286 = vunpack.c.l.b16 %v1135
        %v5287 = vunpack.c.h.b16 %v1135
        %v5288 = vunpack.c.l.b16 %v1136
        %v5289 = vunpack.c.h.b16 %v1136
        %v5290 = vunpack.c.l.b16 %v1137
        %v5291 = vunpack.c.h.b16 %v1137
        %v5292 = vunpack.c.l.b16 %v1138
        %v5293 = vunpack.c.h.b16 %v1138
        %v5294 = vunpack.c.l.b16 %v1139
        %v5295 = vunpack.c.h.b16 %v1139
        %v5296 = vunpack.c.l.b16 %v1140
        %v5297 = vunpack.c.h.b16 %v1140
        %v5298 = vunpack.c.l.b16 %v1141
        %v5299 = vunpack.c.h.b16 %v1141
        %v5300 = vunpack.c.l.b16 %v1142
        %v5301 = vunpack.c.h.b16 %v1142
        %v5302 = vunpack.c.l.b16 %v1143
        %v5303 = vunpack.c.h.b16 %v1143
        %v5304 = vunpack.c.l.b16 %v1144
        %v5305 = vunpack.c.h.b16 %v1144
        %v5306 = vunpack.c.l.b16 %v1145
        %v5307 = vunpack.c.h.b16 %v1145
        %v5308 = vunpack.c.l.b16 %v1146
        %v5309 = vunpack.c.h.b16 %v1146
        %v5310 = vunpack.c.l.b16 %v1147
        %v5311 = vunpack.c.h.b16 %v1147
        %v5312 = vunpack.c.l.b16 %v1148
        %v5313 = vunpack.c.h.b16 %v1148
        %v5314 = vunpack.c.l.b16 %v1149
        %v5315 = vunpack.c.h.b16 %v1149
        %v5316 = vunpack.c.l.b16 %v1150
        %v5317 = vunpack.c.h.b16 %v1150
        %v5318 = vunpack.c.l.b16 %v1151
        %v5319 = vunpack.c.h.b16 %v1151
        %v5320 = vunpack.c.l.b16 %v1152
        %v5321 = vunpack.c.h.b16 %v1152
        %v5322 = vunpack.c.l.b16 %v1153
        %v5323 = vunpack.c.h.b16 %v1153
        %v5324 = vunpack.c.l.b16 %v1154
        %v5325 = vunpack.c.h.b16 %v1154
        %v5326 = vunpack.c.l.b16 %v1155
        %v5327 = vunpack.c.h.b16 %v1155
        %v5328 = vunpack.c.l.b16 %v1156
        %v5329 = vunpack.c.h.b16 %v1156
        %v5330 = vunpack.c.l.b16 %v1157
        %v5331 = vunpack.c.h.b16 %v1157
        %v5332 = vunpack.c.l.b16 %v1158
        %v5333 = vunpack.c.h.b16 %v1158
        %v5334 = vunpack.c.l.b16 %v1159
        %v5335 = vunpack.c.h.b16 %v1159
        %v5336 = vunpack.c.l.b16 %v1160
        %v5337 = vunpack.c.h.b16 %v1160
        %v5338 = vunpack.c.l.b16 %v1161
        %v5339 = vunpack.c.h.b16 %v1161
        %v5340 = vunpack.c.l.b16 %v1162
        %v5341 = vunpack.c.h.b16 %v1162
        %v5342 = vunpack.c.l.b16 %v1163
        %v5343 = vunpack.c.h.b16 %v1163
        %v5344 = vunpack.c.l.b16 %v1164
        %v5345 = vunpack.c.h.b16 %v1164
        %v5346 = vunpack.c.l.b16 %v1165
        %v5347 = vunpack.c.h.b16 %v1165
        %v5348 = vunpack.c.l.b16 %v1166
        %v5349 = vunpack.c.h.b16 %v1166
        %v5350 = vunpack.c.l.b16 %v1167
        %v5351 = vunpack.c.h.b16 %v1167
        %v5352 = vunpack.c.l.b16 %v1168
        %v5353 = vunpack.c.h.b16 %v1168
        %v5354 = vunpack.c.l.b16 %v1169
        %v5355 = vunpack.c.h.b16 %v1169
        %v5356 = vunpack.c.l.b16 %v1170
        %v5357 = vunpack.c.h.b16 %v1170
        %v5358 = vunpack.c.l.b16 %v1171
        %v5359 = vunpack.c.h.b16 %v1171
        %v5360 = vunpack.c.l.b16 %v1172
        %v5361 = vunpack.c.h.b16 %v1172
        %v5362 = vunpack.c.l.b16 %v1173
        %v5363 = vunpack.c.h.b16 %v1173
        %v5364 = vunpack.c.l.b16 %v1174
        %v5365 = vunpack.c.h.b16 %v1174
        %v5366 = vunpack.c.l.b16 %v1175
        %v5367 = vunpack.c.h.b16 %v1175
        %v5368 = vunpack.c.l.b16 %v1176
        %v5369 = vunpack.c.h.b16 %v1176
        %v5370 = vunpack.c.l.b16 %v1177
        %v5371 = vunpack.c.h.b16 %v1177
        %v5372 = vunpack.c.l.b16 %v1178
        %v5373 = vunpack.c.h.b16 %v1178
        %v5374 = vunpack.c.l.b16 %v1179
        %v5375 = vunpack.c.h.b16 %v1179
        %v5376 = vunpack.c.l.b16 %v1180
        %v5377 = vunpack.c.h.b16 %v1180
        %v5378 = vunpack.c.l.b16 %v1181
        %v5379 = vunpack.c.h.b16 %v1181
        %v5380 = vunpack.c.l.b16 %v1182
        %v5381 = vunpack.c.h.b16 %v1182
        %v5382 = vunpack.c.l.b16 %v1183
        %v5383 = vunpack.c.h.b16 %v1183
        %v5384 = vunpack.c.l.b16 %v1184
        %v5385 = vunpack.c.h.b16 %v1184
        %v5386 = vunpack.c.l.b16 %v1185
        %v5387 = vunpack.c.h.b16 %v1185
        %v5388 = vunpack.c.l.b16 %v1186
        %v5389 = vunpack.c.h.b16 %v1186
        %v5390 = vunpack.c.l.b16 %v1187
        %v5391 = vunpack.c.h.b16 %v1187
        %v5392 = vunpack.c.l.b16 %v1188
        %v5393 = vunpack.c.h.b16 %v1188
        %v5394 = vunpack.c.l.b16 %v1189
        %v5395 = vunpack.c.h.b16 %v1189
        %v5396 = vunpack.c.l.b16 %v1190
        %v5397 = vunpack.c.h.b16 %v1190
        %v5398 = vunpack.c.l.b16 %v1191
        %v5399 = vunpack.c.h.b16 %v1191
        %v5400 = vunpack.c.l.b16 %v1192
        %v5401 = vunpack.c.h.b16 %v1192
        %v5402 = vunpack.c.l.b16 %v1193
        %v5403 = vunpack.c.h.b16 %v1193
        %v5404 = vunpack.c.l.b16 %v1194
        %v5405 = vunpack.c.h.b16 %v1194
        %v5406 = vunpack.c.l.b16 %v1195
        %v5407 = vunpack.c.h.b16 %v1195
        %v5408 = vunpack.c.l.b16 %v1196
        %v5409 = vunpack.c.h.b16 %v1196
        %v5410 = vunpack.c.l.b16 %v1197
        %v5411 = vunpack.c.h.b16 %v1197
        %v5412 = vunpack.c.l.b16 %v1198
        %v5413 = vunpack.c.h.b16 %v1198
        %v5414 = vunpack.c.l.b16 %v1199
        %v5415 = vunpack.c.h.b16 %v1199
        %v5416 = vunpack.c.l.b16 %v1200
        %v5417 = vunpack.c.h.b16 %v1200
        %v5418 = vunpack.c.l.b16 %v1201
        %v5419 = vunpack.c.h.b16 %v1201
        %v5420 = vunpack.c.l.b16 %v1202
        %v5421 = vunpack.c.h.b16 %v1202
        %v5422 = vunpack.c.l.b16 %v1203
        %v5423 = vunpack.c.h.b16 %v1203
        %v5424 = vunpack.c.l.b16 %v1204
        %v5425 = vunpack.c.h.b16 %v1204
        %v5426 = vunpack.c.l.b16 %v1205
        %v5427 = vunpack.c.h.b16 %v1205
        %v5428 = vunpack.c.l.b16 %v1206
        %v5429 = vunpack.c.h.b16 %v1206
        %v5430 = vunpack.c.l.b16 %v1207
        %v5431 = vunpack.c.h.b16 %v1207
        %v5432 = vunpack.c.l.b16 %v1208
        %v5433 = vunpack.c.h.b16 %v1208
        %v5434 = vunpack.c.l.b16 %v1209
        %v5435 = vunpack.c.h.b16 %v1209
        %v5436 = vunpack.c.l.b16 %v1210
        %v5437 = vunpack.c.h.b16 %v1210
        %v5438 = vunpack.c.l.b16 %v1211
        %v5439 = vunpack.c.h.b16 %v1211
        %v5440 = vunpack.c.l.b16 %v1212
        %v5441 = vunpack.c.h.b16 %v1212
        %v5442 = vunpack.c.l.b16 %v1213
        %v5443 = vunpack.c.h.b16 %v1213
        %v5444 = vunpack.c.l.b16 %v1214
        %v5445 = vunpack.c.h.b16 %v1214
        %v5446 = vunpack.c.l.b16 %v1215
        %v5447 = vunpack.c.h.b16 %v1215
        %v5448 = vunpack.c.l.b16 %v1216
        %v5449 = vunpack.c.h.b16 %v1216
        %v5450 = vunpack.c.l.b16 %v1217
        %v5451 = vunpack.c.h.b16 %v1217
        %v5452 = vunpack.c.l.b16 %v1218
        %v5453 = vunpack.c.h.b16 %v1218
        %v5454 = vunpack.c.l.b16 %v1219
        %v5455 = vunpack.c.h.b16 %v1219
        %v5456 = vunpack.c.l.b16 %v1220
        %v5457 = vunpack.c.h.b16 %v1220
        %v5458 = vunpack.c.l.b16 %v1221
        %v5459 = vunpack.c.h.b16 %v1221
        %v5460 = vunpack.c.l.b16 %v1222
        %v5461 = vunpack.c.h.b16 %v1222
        %v5462 = vunpack.c.l.b16 %v1223
        %v5463 = vunpack.c.h.b16 %v1223
        %v5464 = vunpack.c.l.b16 %v1224
        %v5465 = vunpack.c.h.b16 %v1224
        %v5466 = vunpack.c.l.b16 %v1225
        %v5467 = vunpack.c.h.b16 %v1225
        %v5468 = vunpack.c.l.b16 %v1226
        %v5469 = vunpack.c.h.b16 %v1226
        %v5470 = vunpack.c.l.b16 %v1227
        %v5471 = vunpack.c.h.b16 %v1227
        %v5472 = vunpack.c.l.b16 %v1228
        %v5473 = vunpack.c.h.b16 %v1228
        %v5474 = vunpack.c.l.b16 %v1229
        %v5475 = vunpack.c.h.b16 %v1229
        %v5476 = vunpack.c.l.b16 %v1230
        %v5477 = vunpack.c.h.b16 %v1230
        %v5478 = vunpack.c.l.b16 %v1231
        %v5479 = vunpack.c.h.b16 %v1231
        %v5480 = vunpack.c.l.b16 %v1232
        %v5481 = vunpack.c.h.b16 %v1232
        %v5482 = vunpack.c.l.b16 %v1233
        %v5483 = vunpack.c.h.b16 %v1233
        %v5484 = vunpack.c.l.b16 %v1234
        %v5485 = vunpack.c.h.b16 %v1234
        %v5486 = vunpack.c.l.b16 %v1235
        %v5487 = vunpack.c.h.b16 %v1235
        %v5488 = vunpack.c.l.b16 %v1236
        %v5489 = vunpack.c.h.b16 %v1236
        %v5490 = vunpack.c.l.b16 %v1237
        %v5491 = vunpack.c.h.b16 %v1237
        %v5492 = vunpack.c.l.b16 %v1238
        %v5493 = vunpack.c.h.b16 %v1238
        %v5494 = vunpack.c.l.b16 %v1239
        %v5495 = vunpack.c.h.b16 %v1239
        %v5496 = vunpack.c.l.b16 %v1240
        %v5497 = vunpack.c.h.b16 %v1240
        %v5498 = vunpack.c.l.b16 %v1241
        %v5499 = vunpack.c.h.b16 %v1241
        %v5500 = vunpack.c.l.b16 %v1242
        %v5501 = vunpack.c.h.b16 %v1242
        %v5502 = vunpack.c.l.b16 %v1243
        %v5503 = vunpack.c.h.b16 %v1243
        %v5504 = vunpack.c.l.b16 %v1244
        %v5505 = vunpack.c.h.b16 %v1244
        %v5506 = vunpack.c.l.b16 %v1245
        %v5507 = vunpack.c.h.b16 %v1245
        %v5508 = vunpack.c.l.b16 %v1246
        %v5509 = vunpack.c.h.b16 %v1246
        %v5510 = vunpack.c.l.b16 %v1247
        %v5511 = vunpack.c.h.b16 %v1247
        %v5512 = vunpack.c.l.b16 %v1248
        %v5513 = vunpack.c.h.b16 %v1248
        %v5514 = vunpack.c.l.b16 %v1249
        %v5515 = vunpack.c.h.b16 %v1249
        %v5516 = vunpack.c.l.b16 %v1250
        %v5517 = vunpack.c.h.b16 %v1250
        %v5518 = vunpack.c.l.b16 %v1251
        %v5519 = vunpack.c.h.b16 %v1251
        %v5520 = vunpack.c.l.b16 %v1252
        %v5521 = vunpack.c.h.b16 %v1252
        %v5522 = vunpack.c.l.b16 %v1253
        %v5523 = vunpack.c.h.b16 %v1253
        %v5524 = vunpack.c.l.b16 %v1254
        %v5525 = vunpack.c.h.b16 %v1254
        %v5526 = vunpack.c.l.b16 %v1255
        %v5527 = vunpack.c.h.b16 %v1255
        %v5528 = vunpack.c.l.b16 %v1256
        %v5529 = vunpack.c.h.b16 %v1256
        %v5530 = vunpack.c.l.b16 %v1257
        %v5531 = vunpack.c.h.b16 %v1257
        %v5532 = vunpack.c.l.b16 %v1258
        %v5533 = vunpack.c.h.b16 %v1258
        %v5534 = vunpack.c.l.b16 %v1259
        %v5535 = vunpack.c.h.b16 %v1259
        %v5536 = vunpack.c.l.b16 %v1260
        %v5537 = vunpack.c.h.b16 %v1260
        %v5538 = vunpack.c.l.b16 %v1261
        %v5539 = vunpack.c.h.b16 %v1261
        %v5540 = vunpack.c.l.b16 %v1262
        %v5541 = vunpack.c.h.b16 %v1262
        %v5542 = vunpack.c.l.b16 %v1263
        %v5543 = vunpack.c.h.b16 %v1263
        %v5544 = vunpack.c.l.b16 %v1264
        %v5545 = vunpack.c.h.b16 %v1264
        %v5546 = vunpack.c.l.b16 %v1265
        %v5547 = vunpack.c.h.b16 %v1265
        %v5548 = vunpack.c.l.b16 %v1266
        %v5549 = vunpack.c.h.b16 %v1266
        %v5550 = vunpack.c.l.b16 %v1267
        %v5551 = vunpack.c.h.b16 %v1267
        %v5552 = vunpack.c.l.b16 %v1268
        %v5553 = vunpack.c.h.b16 %v1268
        %v5554 = vunpack.c.l.b16 %v1269
        %v5555 = vunpack.c.h.b16 %v1269
        %v5556 = vunpack.c.l.b16 %v1270
        %v5557 = vunpack.c.h.b16 %v1270
        %v5558 = vunpack.c.l.b16 %v1271
        %v5559 = vunpack.c.h.b16 %v1271
        %v5560 = vunpack.c.l.b16 %v1272
        %v5561 = vunpack.c.h.b16 %v1272
        %v5562 = vunpack.c.l.b16 %v1273
        %v5563 = vunpack.c.h.b16 %v1273
        %v5564 = vunpack.c.l.b16 %v1274
        %v5565 = vunpack.c.h.b16 %v1274
        %v5566 = vunpack.c.l.b16 %v1275
        %v5567 = vunpack.c.h.b16 %v1275
        %v5568 = vunpack.c.l.b16 %v1276
        %v5569 = vunpack.c.h.b16 %v1276
        %v5570 = vunpack.c.l.b16 %v1277
        %v5571 = vunpack.c.h.b16 %v1277
        %v5572 = vunpack.c.l.b16 %v1278
        %v5573 = vunpack.c.h.b16 %v1278
        %v5574 = vunpack.c.l.b16 %v1279
        %v5575 = vunpack.c.h.b16 %v1279
        %v5576 = vunpack.c.l.b16 %v1280
        %v5577 = vunpack.c.h.b16 %v1280
        %v5578 = vunpack.c.l.b16 %v1281
        %v5579 = vunpack.c.h.b16 %v1281
        %v5580 = vunpack.c.l.b16 %v1282
        %v5581 = vunpack.c.h.b16 %v1282
        %v5582 = vunpack.c.l.b16 %v1283
        %v5583 = vunpack.c.h.b16 %v1283
        %v5584 = vunpack.c.l.b16 %v1284
        %v5585 = vunpack.c.h.b16 %v1284
        %v5586 = vunpack.c.l.b16 %v1285
        %v5587 = vunpack.c.h.b16 %v1285
        %v5588 = vunpack.c.l.b16 %v1286
        %v5589 = vunpack.c.h.b16 %v1286
        %v5590 = vunpack.c.l.b16 %v1287
        %v5591 = vunpack.c.h.b16 %v1287
        %v5592 = vunpack.c.l.b16 %v1288
        %v5593 = vunpack.c.h.b16 %v1288
        %v5594 = vunpack.c.l.b16 %v1289
        %v5595 = vunpack.c.h.b16 %v1289
        %v5596 = vunpack.c.l.b16 %v1290
        %v5597 = vunpack.c.h.b16 %v1290
        %v5598 = vunpack.c.l.b16 %v1291
        %v5599 = vunpack.c.h.b16 %v1291
        %v5600 = vunpack.c.l.b16 %v1292
        %v5601 = vunpack.c.h.b16 %v1292
        %v5602 = vunpack.c.l.b16 %v1293
        %v5603 = vunpack.c.h.b16 %v1293
        %v5604 = vunpack.c.l.b16 %v1294
        %v5605 = vunpack.c.h.b16 %v1294
        %v5606 = vunpack.c.l.b16 %v1295
        %v5607 = vunpack.c.h.b16 %v1295
        %v5608 = vunpack.c.l.b16 %v1296
        %v5609 = vunpack.c.h.b16 %v1296
        %v5610 = vunpack.c.l.b16 %v1297
        %v5611 = vunpack.c.h.b16 %v1297
        %v5612 = vunpack.c.l.b16 %v1298
        %v5613 = vunpack.c.h.b16 %v1298
        %v5614 = vunpack.c.l.b16 %v1299
        %v5615 = vunpack.c.h.b16 %v1299
        %v5616 = vunpack.c.l.b16 %v1300
        %v5617 = vunpack.c.h.b16 %v1300
        %v5618 = vunpack.c.l.b16 %v1301
        %v5619 = vunpack.c.h.b16 %v1301
        %v5620 = vunpack.c.l.b16 %v1302
        %v5621 = vunpack.c.h.b16 %v1302
        %v5622 = vunpack.c.l.b16 %v1303
        %v5623 = vunpack.c.h.b16 %v1303
        %v5624 = vunpack.c.l.b16 %v1304
        %v5625 = vunpack.c.h.b16 %v1304
        %v5626 = vunpack.c.l.b16 %v1305
        %v5627 = vunpack.c.h.b16 %v1305
        %v5628 = vunpack.c.l.b16 %v1306
        %v5629 = vunpack.c.h.b16 %v1306
        %v5630 = vunpack.c.l.b16 %v1307
        %v5631 = vunpack.c.h.b16 %v1307
        %v5632 = vunpack.c.l.b16 %v1308
        %v5633 = vunpack.c.h.b16 %v1308
        %v5634 = vunpack.c.l.b16 %v1309
        %v5635 = vunpack.c.h.b16 %v1309
        %v5636 = vunpack.c.l.b16 %v1310
        %v5637 = vunpack.c.h.b16 %v1310
        %v5638 = vunpack.c.l.b16 %v1311
        %v5639 = vunpack.c.h.b16 %v1311
        %v5640 = vunpack.c.l.b16 %v1312
        %v5641 = vunpack.c.h.b16 %v1312
        %v5642 = vunpack.c.l.b16 %v1313
        %v5643 = vunpack.c.h.b16 %v1313
        %v5644 = vunpack.c.l.b16 %v1314
        %v5645 = vunpack.c.h.b16 %v1314
        %v5646 = vunpack.c.l.b16 %v1315
        %v5647 = vunpack.c.h.b16 %v1315
        %v5648 = vunpack.c.l.b16 %v1316
        %v5649 = vunpack.c.h.b16 %v1316
        %v5650 = vunpack.c.l.b16 %v1317
        %v5651 = vunpack.c.h.b16 %v1317
        %v5652 = vunpack.c.l.b16 %v1318
        %v5653 = vunpack.c.h.b16 %v1318
        %v5654 = vunpack.c.l.b16 %v1319
        %v5655 = vunpack.c.h.b16 %v1319
        %v5656 = vunpack.c.l.b16 %v1320
        %v5657 = vunpack.c.h.b16 %v1320
        %v5658 = vunpack.c.l.b16 %v1321
        %v5659 = vunpack.c.h.b16 %v1321
        %v5660 = vunpack.c.l.b16 %v1322
        %v5661 = vunpack.c.h.b16 %v1322
        %v5662 = vunpack.c.l.b16 %v1323
        %v5663 = vunpack.c.h.b16 %v1323
        %v5664 = vunpack.c.l.b16 %v1324
        %v5665 = vunpack.c.h.b16 %v1324
        %v5666 = vunpack.c.l.b16 %v1325
        %v5667 = vunpack.c.h.b16 %v1325
        %v5668 = vunpack.c.l.b16 %v1326
        %v5669 = vunpack.c.h.b16 %v1326
        %v5670 = vunpack.c.l.b16 %v1327
        %v5671 = vunpack.c.h.b16 %v1327
        %v5672 = vunpack.c.l.b16 %v1328
        %v5673 = vunpack.c.h.b16 %v1328
        %v5674 = vunpack.c.l.b16 %v1329
        %v5675 = vunpack.c.h.b16 %v1329
        %v5676 = vunpack.c.l.b16 %v1330
        %v5677 = vunpack.c.h.b16 %v1330
        %v5678 = vunpack.c.l.b16 %v1331
        %v5679 = vunpack.c.h.b16 %v1331
        %v5680 = vunpack.c.l.b16 %v1332
        %v5681 = vunpack.c.h.b16 %v1332
        %v5682 = vunpack.c.l.b16 %v1333
        %v5683 = vunpack.c.h.b16 %v1333
        %v5684 = vunpack.c.l.b16 %v1334
        %v5685 = vunpack.c.h.b16 %v1334
        %v5686 = vunpack.c.l.b16 %v1335
        %v5687 = vunpack.c.h.b16 %v1335
        %v5688 = vunpack.c.l.b16 %v1336
        %v5689 = vunpack.c.h.b16 %v1336
        %v5690 = vunpack.c.l.b16 %v1337
        %v5691 = vunpack.c.h.b16 %v1337
        %v5692 = vunpack.c.l.b16 %v1338
        %v5693 = vunpack.c.h.b16 %v1338
        %v5694 = vunpack.c.l.b16 %v1339
        %v5695 = vunpack.c.h.b16 %v1339
        %v5696 = vunpack.c.l.b16 %v1340
        %v5697 = vunpack.c.h.b16 %v1340
        %v5698 = vunpack.c.l.b16 %v1341
        %v5699 = vunpack.c.h.b16 %v1341
        %v5700 = vunpack.c.l.b16 %v1342
        %v5701 = vunpack.c.h.b16 %v1342
        %v5702 = vunpack.c.l.b16 %v1343
        %v5703 = vunpack.c.h.b16 %v1343
        %v5704 = vunpack.c.l.b16 %v1344
        %v5705 = vunpack.c.h.b16 %v1344
        %v5706 = vunpack.c.l.b16 %v1345
        %v5707 = vunpack.c.h.b16 %v1345
        %v5708 = vunpack.c.l.b16 %v1346
        %v5709 = vunpack.c.h.b16 %v1346
        %v5710 = vunpack.c.l.b16 %v1347
        %v5711 = vunpack.c.h.b16 %v1347
        %v5712 = vunpack.c.l.b16 %v1348
        %v5713 = vunpack.c.h.b16 %v1348
        %v5714 = vunpack.c.l.b16 %v1349
        %v5715 = vunpack.c.h.b16 %v1349
        %v5716 = vunpack.c.l.b16 %v1350
        %v5717 = vunpack.c.h.b16 %v1350
        %v5718 = vunpack.c.l.b16 %v1351
        %v5719 = vunpack.c.h.b16 %v1351
        %v5720 = vunpack.c.l.b16 %v1352
        %v5721 = vunpack.c.h.b16 %v1352
        %v5722 = vunpack.c.l.b16 %v1353
        %v5723 = vunpack.c.h.b16 %v1353
        %v5724 = vunpack.c.l.b16 %v1354
        %v5725 = vunpack.c.h.b16 %v1354
        %v5726 = vunpack.c.l.b16 %v1355
        %v5727 = vunpack.c.h.b16 %v1355
        %v5728 = vunpack.c.l.b16 %v1356
        %v5729 = vunpack.c.h.b16 %v1356
        %v5730 = vunpack.c.l.b16 %v1357
        %v5731 = vunpack.c.h.b16 %v1357
        %v5732 = vunpack.c.l.b16 %v1358
        %v5733 = vunpack.c.h.b16 %v1358
        %v5734 = vunpack.c.l.b16 %v1359
        %v5735 = vunpack.c.h.b16 %v1359
        %v5736 = vunpack.c.l.b16 %v1360
        %v5737 = vunpack.c.h.b16 %v1360
        %v5738 = vunpack.c.l.b16 %v1361
        %v5739 = vunpack.c.h.b16 %v1361
        %v5740 = vunpack.c.l.b16 %v1362
        %v5741 = vunpack.c.h.b16 %v1362
        %v5742 = vunpack.c.l.b16 %v1363
        %v5743 = vunpack.c.h.b16 %v1363
        %v5744 = vunpack.c.l.b16 %v1364
        %v5745 = vunpack.c.h.b16 %v1364
        %v5746 = vunpack.c.l.b16 %v1365
        %v5747 = vunpack.c.h.b16 %v1365
        %v5748 = vunpack.c.l.b16 %v1366
        %v5749 = vunpack.c.h.b16 %v1366
        %v5750 = vunpack.c.l.b16 %v1367
        %v5751 = vunpack.c.h.b16 %v1367
        %v5752 = vunpack.c.l.b16 %v1368
        %v5753 = vunpack.c.h.b16 %v1368
        %v5754 = vunpack.c.l.b16 %v1369
        %v5755 = vunpack.c.h.b16 %v1369
        %v5756 = vunpack.c.l.b16 %v1370
        %v5757 = vunpack.c.h.b16 %v1370
        %v5758 = vunpack.c.l.b16 %v1371
        %v5759 = vunpack.c.h.b16 %v1371
        %v5760 = vunpack.c.l.b16 %v1372
        %v5761 = vunpack.c.h.b16 %v1372
        %v5762 = vunpack.c.l.b16 %v1373
        %v5763 = vunpack.c.h.b16 %v1373
        %v5764 = vunpack.c.l.b16 %v1374
        %v5765 = vunpack.c.h.b16 %v1374
        %v5766 = vunpack.c.l.b16 %v1375
        %v5767 = vunpack.c.h.b16 %v1375
        %v5768 = vunpack.c.l.b16 %v1376
        %v5769 = vunpack.c.h.b16 %v1376
        %v5770 = vunpack.c.l.b16 %v1377
        %v5771 = vunpack.c.h.b16 %v1377
        %v5772 = vunpack.c.l.b16 %v1378
        %v5773 = vunpack.c.h.b16 %v1378
        %v5774 = vunpack.c.l.b16 %v1379
        %v5775 = vunpack.c.h.b16 %v1379
        %v5776 = vunpack.c.l.b16 %v1380
        %v5777 = vunpack.c.h.b16 %v1380
        %v5778 = vunpack.c.l.b16 %v1381
        %v5779 = vunpack.c.h.b16 %v1381
        %v5780 = vunpack.c.l.b16 %v1382
        %v5781 = vunpack.c.h.b16 %v1382
        %v5782 = vunpack.c.l.b16 %v1383
        %v5783 = vunpack.c.h.b16 %v1383
        %v5784 = vunpack.c.l.b16 %v1384
        %v5785 = vunpack.c.h.b16 %v1384
        %v5786 = vunpack.c.l.b16 %v1385
        %v5787 = vunpack.c.h.b16 %v1385
        %v5788 = vunpack.c.l.b16 %v1386
        %v5789 = vunpack.c.h.b16 %v1386
        %v5790 = vunpack.c.l.b16 %v1387
        %v5791 = vunpack.c.h.b16 %v1387
        %v5792 = vunpack.c.l.b16 %v1388
        %v5793 = vunpack.c.h.b16 %v1388
        %v5794 = vunpack.c.l.b16 %v1389
        %v5795 = vunpack.c.h.b16 %v1389
        %v5796 = vunpack.c.l.b16 %v1390
        %v5797 = vunpack.c.h.b16 %v1390
        %v5798 = vunpack.c.l.b16 %v1391
        %v5799 = vunpack.c.h.b16 %v1391
        %v5800 = vunpack.c.l.b16 %v1392
        %v5801 = vunpack.c.h.b16 %v1392
        %v5802 = vunpack.c.l.b16 %v1393
        %v5803 = vunpack.c.h.b16 %v1393
        %v5804 = vunpack.c.l.b16 %v1394
        %v5805 = vunpack.c.h.b16 %v1394
        %v5806 = vunpack.c.l.b16 %v1395
        %v5807 = vunpack.c.h.b16 %v1395
        %v5808 = vunpack.c.l.b16 %v1396
        %v5809 = vunpack.c.h.b16 %v1396
        %v5810 = vunpack.c.l.b16 %v1397
        %v5811 = vunpack.c.h.b16 %v1397
        %v5812 = vunpack.c.l.b16 %v1398
        %v5813 = vunpack.c.h.b16 %v1398
        %v5814 = vunpack.c.l.b16 %v1399
        %v5815 = vunpack.c.h.b16 %v1399
        %v5816 = vunpack.c.l.b16 %v1400
        %v5817 = vunpack.c.h.b16 %v1400
        %v5818 = vunpack.c.l.b16 %v1401
        %v5819 = vunpack.c.h.b16 %v1401
        %v5820 = vunpack.c.l.b16 %v1402
        %v5821 = vunpack.c.h.b16 %v1402
        %v5822 = vunpack.c.l.b16 %v1403
        %v5823 = vunpack.c.h.b16 %v1403
        %v5824 = vunpack.c.l.b16 %v1404
        %v5825 = vunpack.c.h.b16 %v1404
        %v5826 = vunpack.c.l.b16 %v1405
        %v5827 = vunpack.c.h.b16 %v1405
        %v5828 = vunpack.c.l.b16 %v1406
        %v5829 = vunpack.c.h.b16 %v1406
        %v5830 = vunpack.c.l.b16 %v1407
        %v5831 = vunpack.c.h.b16 %v1407
        %v5832 = vunpack.c.l.b16 %v1408
        %v5833 = vunpack.c.h.b16 %v1408
        %v5834 = vunpack.c.l.b16 %v1409
        %v5835 = vunpack.c.h.b16 %v1409
        %v5836 = vunpack.c.l.b16 %v1410
        %v5837 = vunpack.c.h.b16 %v1410
        %v5838 = vunpack.c.l.b16 %v1411
        %v5839 = vunpack.c.h.b16 %v1411
        %v5840 = vunpack.c.l.b16 %v1412
        %v5841 = vunpack.c.h.b16 %v1412
        %v5842 = vunpack.c.l.b16 %v1413
        %v5843 = vunpack.c.h.b16 %v1413
        %v5844 = vunpack.c.l.b16 %v1414
        %v5845 = vunpack.c.h.b16 %v1414
        %v5846 = vunpack.c.l.b16 %v1415
        %v5847 = vunpack.c.h.b16 %v1415
        %v5848 = vunpack.c.l.b16 %v1416
        %v5849 = vunpack.c.h.b16 %v1416
        %v5850 = vunpack.c.l.b16 %v1417
        %v5851 = vunpack.c.h.b16 %v1417
        %v5852 = vunpack.c.l.b16 %v1418
        %v5853 = vunpack.c.h.b16 %v1418
        %v5854 = vunpack.c.l.b16 %v1419
        %v5855 = vunpack.c.h.b16 %v1419
        %v5856 = vunpack.c.l.b16 %v1420
        %v5857 = vunpack.c.h.b16 %v1420
        %v5858 = vunpack.c.l.b16 %v1421
        %v5859 = vunpack.c.h.b16 %v1421
        %v5860 = vunpack.c.l.b16 %v1422
        %v5861 = vunpack.c.h.b16 %v1422
        %v5862 = vunpack.c.l.b16 %v1423
        %v5863 = vunpack.c.h.b16 %v1423
        %v5864 = vunpack.c.l.b16 %v1424
        %v5865 = vunpack.c.h.b16 %v1424
        %v5866 = vunpack.c.l.b16 %v1425
        %v5867 = vunpack.c.h.b16 %v1425
        %v5868 = vunpack.c.l.b16 %v1426
        %v5869 = vunpack.c.h.b16 %v1426
        %v5870 = vunpack.c.l.b16 %v1427
        %v5871 = vunpack.c.h.b16 %v1427
        %v5872 = vunpack.c.l.b16 %v1428
        %v5873 = vunpack.c.h.b16 %v1428
        %v5874 = vunpack.c.l.b16 %v1429
        %v5875 = vunpack.c.h.b16 %v1429
        %v5876 = vunpack.c.l.b16 %v1430
        %v5877 = vunpack.c.h.b16 %v1430
        %v5878 = vunpack.c.l.b16 %v1431
        %v5879 = vunpack.c.h.b16 %v1431
        %v5880 = vunpack.c.l.b16 %v1432
        %v5881 = vunpack.c.h.b16 %v1432
        %v5882 = vunpack.c.l.b16 %v1433
        %v5883 = vunpack.c.h.b16 %v1433
        %v5884 = vunpack.c.l.b16 %v1434
        %v5885 = vunpack.c.h.b16 %v1434
        %v5886 = vunpack.c.l.b16 %v1435
        %v5887 = vunpack.c.h.b16 %v1435
        %v5888 = vunpack.c.l.b16 %v1436
        %v5889 = vunpack.c.h.b16 %v1436
        %v5890 = vunpack.c.l.b16 %v1437
        %v5891 = vunpack.c.h.b16 %v1437
        %v5892 = vunpack.c.l.b16 %v1438
        %v5893 = vunpack.c.h.b16 %v1438
        %v5894 = vunpack.c.l.b16 %v1439
        %v5895 = vunpack.c.h.b16 %v1439
        %v5896 = vunpack.c.l.b16 %v1440
        %v5897 = vunpack.c.h.b16 %v1440
        %v5898 = vunpack.c.l.b16 %v1441
        %v5899 = vunpack.c.h.b16 %v1441
        %v5900 = vunpack.c.l.b16 %v1442
        %v5901 = vunpack.c.h.b16 %v1442
        %v5902 = vunpack.c.l.b16 %v1443
        %v5903 = vunpack.c.h.b16 %v1443
        %v5904 = vunpack.c.l.b16 %v1444
        %v5905 = vunpack.c.h.b16 %v1444
        %v5906 = vunpack.c.l.b16 %v1445
        %v5907 = vunpack.c.h.b16 %v1445
        %v5908 = vunpack.c.l.b16 %v1446
        %v5909 = vunpack.c.h.b16 %v1446
        %v5910 = vunpack.c.l.b16 %v1447
        %v5911 = vunpack.c.h.b16 %v1447
        %v5912 = vunpack.c.l.b16 %v1448
        %v5913 = vunpack.c.h.b16 %v1448
        %v5914 = vunpack.c.l.b16 %v1449
        %v5915 = vunpack.c.h.b16 %v1449
        %v5916 = vunpack.c.l.b16 %v1450
        %v5917 = vunpack.c.h.b16 %v1450
        %v5918 = vunpack.c.l.b16 %v1451
        %v5919 = vunpack.c.h.b16 %v1451
        %v5920 = vunpack.c.l.b16 %v1452
        %v5921 = vunpack.c.h.b16 %v1452
        %v5922 = vunpack.c.l.b16 %v1453
        %v5923 = vunpack.c.h.b16 %v1453
        %v5924 = vunpack.c.l.b16 %v1454
        %v5925 = vunpack.c.h.b16 %v1454
        %v5926 = vunpack.c.l.b16 %v1455
        %v5927 = vunpack.c.h.b16 %v1455
        %v5928 = vunpack.c.l.b16 %v1456
        %v5929 = vunpack.c.h.b16 %v1456
        %v5930 = vunpack.c.l.b16 %v1457
        %v5931 = vunpack.c.h.b16 %v1457
        %v5932 = vunpack.c.l.b16 %v1458
        %v5933 = vunpack.c.h.b16 %v1458
        %v5934 = vunpack.c.l.b16 %v1459
        %v5935 = vunpack.c.h.b16 %v1459
        %v5936 = vunpack.c.l.b16 %v1460
        %v5937 = vunpack.c.h.b16 %v1460
        %v5938 = vunpack.c.l.b16 %v1461
        %v5939 = vunpack.c.h.b16 %v1461
        %v5940 = vunpack.c.l.b16 %v1462
        %v5941 = vunpack.c.h.b16 %v1462
        %v5942 = vunpack.c.l.b16 %v1463
        %v5943 = vunpack.c.h.b16 %v1463
        %v5944 = vunpack.c.l.b16 %v1464
        %v5945 = vunpack.c.h.b16 %v1464
        %v5946 = vunpack.c.l.b16 %v1465
        %v5947 = vunpack.c.h.b16 %v1465
        %v5948 = vunpack.c.l.b16 %v1466
        %v5949 = vunpack.c.h.b16 %v1466
        %v5950 = vunpack.c.l.b16 %v1467
        %v5951 = vunpack.c.h.b16 %v1467
        %v5952 = vunpack.c.l.b16 %v1468
        %v5953 = vunpack.c.h.b16 %v1468
        %v5954 = vunpack.c.l.b16 %v1469
        %v5955 = vunpack.c.h.b16 %v1469
        %v5956 = vunpack.c.l.b16 %v1470
        %v5957 = vunpack.c.h.b16 %v1470
        %v5958 = vunpack.c.l.b16 %v1471
        %v5959 = vunpack.c.h.b16 %v1471
        %v5960 = vunpack.c.l.b16 %v1472
        %v5961 = vunpack.c.h.b16 %v1472
        %v5962 = vunpack.c.l.b16 %v1473
        %v5963 = vunpack.c.h.b16 %v1473
        %v5964 = vunpack.c.l.b16 %v1474
        %v5965 = vunpack.c.h.b16 %v1474
        %v5966 = vunpack.c.l.b16 %v1475
        %v5967 = vunpack.c.h.b16 %v1475
        %v5968 = vunpack.c.l.b16 %v1476
        %v5969 = vunpack.c.h.b16 %v1476
        %v5970 = vunpack.c.l.b16 %v1477
        %v5971 = vunpack.c.h.b16 %v1477
        %v5972 = vunpack.c.l.b16 %v1478
        %v5973 = vunpack.c.h.b16 %v1478
        %v5974 = vunpack.c.l.b16 %v1479
        %v5975 = vunpack.c.h.b16 %v1479
        %v5976 = vunpack.c.l.b16 %v1480
        %v5977 = vunpack.c.h.b16 %v1480
        %v5978 = vunpack.c.l.b16 %v1481
        %v5979 = vunpack.c.h.b16 %v1481
        %v5980 = vunpack.c.l.b16 %v1482
        %v5981 = vunpack.c.h.b16 %v1482
        %v5982 = vunpack.c.l.b16 %v1483
        %v5983 = vunpack.c.h.b16 %v1483
        %v5984 = vunpack.c.l.b16 %v1484
        %v5985 = vunpack.c.h.b16 %v1484
        %v5986 = vunpack.c.l.b16 %v1485
        %v5987 = vunpack.c.h.b16 %v1485
        %v5988 = vunpack.c.l.b16 %v1486
        %v5989 = vunpack.c.h.b16 %v1486
        %v5990 = vunpack.c.l.b16 %v1487
        %v5991 = vunpack.c.h.b16 %v1487
        %v5992 = vunpack.c.l.b16 %v1488
        %v5993 = vunpack.c.h.b16 %v1488
        %v5994 = vunpack.c.l.b16 %v1489
        %v5995 = vunpack.c.h.b16 %v1489
        %v5996 = vunpack.c.l.b16 %v1490
        %v5997 = vunpack.c.h.b16 %v1490
        %v5998 = vunpack.c.l.b16 %v1491
        %v5999 = vunpack.c.h.b16 %v1491
        %v6000 = vunpack.c.l.b16 %v1492
        %v6001 = vunpack.c.h.b16 %v1492
        %v6002 = vunpack.c.l.b16 %v1493
        %v6003 = vunpack.c.h.b16 %v1493
        %v6004 = vunpack.c.l.b16 %v1494
        %v6005 = vunpack.c.h.b16 %v1494
        %v6006 = vunpack.c.l.b16 %v1495
        %v6007 = vunpack.c.h.b16 %v1495
        %v6008 = vunpack.c.l.b16 %v1496
        %v6009 = vunpack.c.h.b16 %v1496
        %v6010 = vunpack.c.l.b16 %v1497
        %v6011 = vunpack.c.h.b16 %v1497
        %v6012 = vunpack.c.l.b16 %v1498
        %v6013 = vunpack.c.h.b16 %v1498
        %v6014 = vunpack.c.l.b16 %v1499
        %v6015 = vunpack.c.h.b16 %v1499
        %v6016 = vunpack.c.l.b16 %v1500
        %v6017 = vunpack.c.h.b16 %v1500
        %v6018 = vunpack.c.l.b16 %v1501
        %v6019 = vunpack.c.h.b16 %v1501
        %v6020 = vunpack.c.l.b16 %v1502
        %v6021 = vunpack.c.h.b16 %v1502
        %v6022 = vunpack.c.l.b16 %v1503
        %v6023 = vunpack.c.h.b16 %v1503
        %v6024 = vunpack.c.l.b16 %v1504
        %v6025 = vunpack.c.h.b16 %v1504
        %v6026 = vunpack.c.l.b16 %v1505
        %v6027 = vunpack.c.h.b16 %v1505
        %v6028 = vunpack.c.l.b16 %v1506
        %v6029 = vunpack.c.h.b16 %v1506
        %v6030 = vunpack.c.l.b16 %v1507
        %v6031 = vunpack.c.h.b16 %v1507
        %v6032 = vunpack.c.l.b16 %v1508
        %v6033 = vunpack.c.h.b16 %v1508
        %v6034 = vunpack.c.l.b16 %v1509
        %v6035 = vunpack.c.h.b16 %v1509
        %v6036 = vunpack.c.l.b16 %v1510
        %v6037 = vunpack.c.h.b16 %v1510
        %v6038 = vunpack.c.l.b16 %v1511
        %v6039 = vunpack.c.h.b16 %v1511
        %v6040 = vunpack.c.l.b16 %v1512
        %v6041 = vunpack.c.h.b16 %v1512
        %v6042 = vunpack.c.l.b16 %v1513
        %v6043 = vunpack.c.h.b16 %v1513
        %v6044 = vunpack.c.l.b16 %v1514
        %v6045 = vunpack.c.h.b16 %v1514
        %v6046 = vunpack.c.l.b16 %v1515
        %v6047 = vunpack.c.h.b16 %v1515
        %v6048 = vunpack.c.l.b16 %v1516
        %v6049 = vunpack.c.h.b16 %v1516
        %v6050 = vunpack.c.l.b16 %v1517
        %v6051 = vunpack.c.h.b16 %v1517
        %v6052 = vunpack.c.l.b16 %v1518
        %v6053 = vunpack.c.h.b16 %v1518
        %v6054 = vunpack.c.l.b16 %v1519
        %v6055 = vunpack.c.h.b16 %v1519
        %v6056 = vunpack.c.l.b16 %v1520
        %v6057 = vunpack.c.h.b16 %v1520
        %v6058 = vunpack.c.l.b16 %v1521
        %v6059 = vunpack.c.h.b16 %v1521
        %v6060 = vunpack.c.l.b16 %v1522
        %v6061 = vunpack.c.h.b16 %v1522
        %v6062 = vunpack.c.l.b16 %v1523
        %v6063 = vunpack.c.h.b16 %v1523
        %v6064 = vunpack.c.l.b16 %v1524
        %v6065 = vunpack.c.h.b16 %v1524
        %v6066 = vunpack.c.l.b16 %v1525
        %v6067 = vunpack.c.h.b16 %v1525
        %v6068 = vunpack.c.l.b16 %v1526
        %v6069 = vunpack.c.h.b16 %v1526
        %v6070 = vunpack.c.l.b16 %v1527
        %v6071 = vunpack.c.h.b16 %v1527
        %v6072 = vunpack.c.l.b16 %v1528
        %v6073 = vunpack.c.h.b16 %v1528
        %v6074 = vunpack.c.l.b16 %v1529
        %v6075 = vunpack.c.h.b16 %v1529
        %v6076 = vunpack.c.l.b16 %v1530
        %v6077 = vunpack.c.h.b16 %v1530
        %v6078 = vunpack.c.l.b16 %v1531
        %v6079 = vunpack.c.h.b16 %v1531
        %v6080 = vunpack.c.l.b16 %v1532
        %v6081 = vunpack.c.h.b16 %v1532
        %v6082 = vunpack.c.l.b16 %v1533
        %v6083 = vunpack.c.h.b16 %v1533
        %v6084 = vunpack.c.l.b16 %v1534
        %v6085 = vunpack.c.h.b16 %v1534
        %v6086 = vunpack.c.l.b16 %v1535
        %v6087 = vunpack.c.h.b16 %v1535
        %v6088 = vunpack.c.l.b16 %v1536
        %v6089 = vunpack.c.h.b16 %v1536
        %v6090 = vunpack.c.l.b16 %v1537
        %v6091 = vunpack.c.h.b16 %v1537
        %v6092 = vunpack.c.l.b16 %v1538
        %v6093 = vunpack.c.h.b16 %v1538
        %v6094 = vunpack.c.l.b16 %v1539
        %v6095 = vunpack.c.h.b16 %v1539
        %v6096 = vunpack.c.l.b16 %v1540
        %v6097 = vunpack.c.h.b16 %v1540
        %v6098 = vunpack.c.l.b16 %v1541
        %v6099 = vunpack.c.h.b16 %v1541
        %v6100 = vunpack.c.l.b16 %v1542
        %v6101 = vunpack.c.h.b16 %v1542
        %v6102 = vunpack.c.l.b16 %v1543
        %v6103 = vunpack.c.h.b16 %v1543
        %v6104 = vunpack.c.l.b16 %v1544
        %v6105 = vunpack.c.h.b16 %v1544
        %v6106 = vunpack.c.l.b16 %v1545
        %v6107 = vunpack.c.h.b16 %v1545
        %v6108 = vunpack.c.l.b16 %v1546
        %v6109 = vunpack.c.h.b16 %v1546
        %v6110 = vunpack.c.l.b16 %v1547
        %v6111 = vunpack.c.h.b16 %v1547
        %v6112 = vunpack.c.l.b16 %v1548
        %v6113 = vunpack.c.h.b16 %v1548
        %v6114 = vunpack.c.l.b16 %v1549
        %v6115 = vunpack.c.h.b16 %v1549
        %v6116 = vunpack.c.l.b16 %v1550
        %v6117 = vunpack.c.h.b16 %v1550
        %v6118 = vunpack.c.l.b16 %v1551
        %v6119 = vunpack.c.h.b16 %v1551
        %v6120 = vunpack.c.l.b16 %v1552
        %v6121 = vunpack.c.h.b16 %v1552
        %v6122 = vunpack.c.l.b16 %v1553
        %v6123 = vunpack.c.h.b16 %v1553
        %v6124 = vunpack.c.l.b16 %v1554
        %v6125 = vunpack.c.h.b16 %v1554
        %v6126 = vunpack.c.l.b16 %v1555
        %v6127 = vunpack.c.h.b16 %v1555
        %v6128 = vunpack.c.l.b16 %v1556
        %v6129 = vunpack.c.h.b16 %v1556
        %v6130 = vunpack.c.l.b16 %v1557
        %v6131 = vunpack.c.h.b16 %v1557
        %v6132 = vunpack.c.l.b16 %v1558
        %v6133 = vunpack.c.h.b16 %v1558
        %v6134 = vunpack.c.l.b16 %v1559
        %v6135 = vunpack.c.h.b16 %v1559
        %v6136 = vunpack.c.l.b16 %v1560
        %v6137 = vunpack.c.h.b16 %v1560
        %v6138 = vunpack.c.l.b16 %v1561
        %v6139 = vunpack.c.h.b16 %v1561
        %v6140 = vunpack.c.l.b16 %v1562
        %v6141 = vunpack.c.h.b16 %v1562
        %v6142 = vunpack.c.l.b16 %v1563
        %v6143 = vunpack.c.h.b16 %v1563
        %v6144 = vunpack.c.l.b16 %v1564
        %v6145 = vunpack.c.h.b16 %v1564
        %v6146 = vunpack.c.l.b16 %v1565
        %v6147 = vunpack.c.h.b16 %v1565
        %v6148 = vunpack.c.l.b16 %v1566
        %v6149 = vunpack.c.h.b16 %v1566
        %v6150 = vunpack.c.l.b16 %v1567
        %v6151 = vunpack.c.h.b16 %v1567
        %v6152 = vunpack.c.l.b16 %v1568
        %v6153 = vunpack.c.h.b16 %v1568
        %v6154 = vunpack.c.l.b16 %v1569
        %v6155 = vunpack.c.h.b16 %v1569
        %v6156 = vunpack.c.l.b16 %v1570
        %v6157 = vunpack.c.h.b16 %v1570
        %v6158 = vunpack.c.l.b16 %v1571
        %v6159 = vunpack.c.h.b16 %v1571
        %v6160 = vunpack.c.l.b16 %v1572
        %v6161 = vunpack.c.h.b16 %v1572
        %v6162 = vunpack.c.l.b16 %v1573
        %v6163 = vunpack.c.h.b16 %v1573
        %v6164 = vunpack.c.l.b16 %v1574
        %v6165 = vunpack.c.h.b16 %v1574
        %v6166 = vunpack.c.l.b16 %v1575
        %v6167 = vunpack.c.h.b16 %v1575
        %v6168 = vunpack.c.l.b16 %v1576
        %v6169 = vunpack.c.h.b16 %v1576
        %v6170 = vunpack.c.l.b16 %v1577
        %v6171 = vunpack.c.h.b16 %v1577
        %v6172 = vunpack.c.l.b16 %v1578
        %v6173 = vunpack.c.h.b16 %v1578
        %v6174 = vunpack.c.l.b16 %v1579
        %v6175 = vunpack.c.h.b16 %v1579
        %v6176 = vunpack.c.l.b16 %v1580
        %v6177 = vunpack.c.h.b16 %v1580
        %v6178 = vunpack.c.l.b16 %v1581
        %v6179 = vunpack.c.h.b16 %v1581
        %v6180 = vunpack.c.l.b16 %v1582
        %v6181 = vunpack.c.h.b16 %v1582
        %v6182 = vunpack.c.l.b16 %v1583
        %v6183 = vunpack.c.h.b16 %v1583
        %v6184 = vunpack.c.l.b16 %v1584
        %v6185 = vunpack.c.h.b16 %v1584
        %v6186 = vunpack.c.l.b16 %v1585
        %v6187 = vunpack.c.h.b16 %v1585
        %v6188 = vunpack.c.l.b16 %v1586
        %v6189 = vunpack.c.h.b16 %v1586
        %v6190 = vunpack.c.l.b16 %v1587
        %v6191 = vunpack.c.h.b16 %v1587
        %v6192 = vunpack.c.l.b16 %v1588
        %v6193 = vunpack.c.h.b16 %v1588
        %v6194 = vunpack.c.l.b16 %v1589
        %v6195 = vunpack.c.h.b16 %v1589
        %v6196 = vunpack.c.l.b16 %v1590
        %v6197 = vunpack.c.h.b16 %v1590
        %v6198 = vunpack.c.l.b16 %v1591
        %v6199 = vunpack.c.h.b16 %v1591
        %v6200 = vunpack.c.l.b16 %v1592
        %v6201 = vunpack.c.h.b16 %v1592
        %v6202 = vunpack.c.l.b16 %v1593
        %v6203 = vunpack.c.h.b16 %v1593
        %v6204 = vunpack.c.l.b16 %v1594
        %v6205 = vunpack.c.h.b16 %v1594
        %v6206 = vunpack.c.l.b16 %v1595
        %v6207 = vunpack.c.h.b16 %v1595
        %v6208 = vunpack.c.l.b16 %v1596
        %v6209 = vunpack.c.h.b16 %v1596
        %v6210 = vunpack.c.l.b16 %v1597
        %v6211 = vunpack.c.h.b16 %v1597
        %v6212 = vunpack.c.l.b16 %v1598
        %v6213 = vunpack.c.h.b16 %v1598
        %v6214 = vunpack.c.l.b16 %v1599
        %v6215 = vunpack.c.h.b16 %v1599
        %v6216 = vunpack.c.l.b16 %v1600
        %v6217 = vunpack.c.h.b16 %v1600
        %v6218 = vunpack.c.l.b16 %v1601
        %v6219 = vunpack.c.h.b16 %v1601
        %v6220 = vunpack.c.l.b16 %v1602
        %v6221 = vunpack.c.h.b16 %v1602
        %v6222 = vunpack.c.l.b16 %v1603
        %v6223 = vunpack.c.h.b16 %v1603
        %v6224 = vunpack.c.l.b16 %v1604
        %v6225 = vunpack.c.h.b16 %v1604
        %v6226 = vunpack.c.l.b16 %v1605
        %v6227 = vunpack.c.h.b16 %v1605
        %v6228 = vunpack.c.l.b16 %v1606
        %v6229 = vunpack.c.h.b16 %v1606
        %v6230 = vunpack.c.l.b16 %v1607
        %v6231 = vunpack.c.h.b16 %v1607
        %v6232 = vunpack.c.l.b16 %v1608
        %v6233 = vunpack.c.h.b16 %v1608
        %v6234 = vunpack.c.l.b16 %v1609
        %v6235 = vunpack.c.h.b16 %v1609
        %v6236 = vunpack.c.l.b16 %v1610
        %v6237 = vunpack.c.h.b16 %v1610
        %v6238 = vunpack.c.l.b16 %v1611
        %v6239 = vunpack.c.h.b16 %v1611
        %v6240 = vunpack.c.l.b16 %v1612
        %v6241 = vunpack.c.h.b16 %v1612
        %v6242 = vunpack.c.l.b16 %v1613
        %v6243 = vunpack.c.h.b16 %v1613
        %v6244 = vunpack.c.l.b16 %v1614
        %v6245 = vunpack.c.h.b16 %v1614
        %v6246 = vunpack.c.l.b16 %v1615
        %v6247 = vunpack.c.h.b16 %v1615
        %v6248 = vunpack.c.l.b16 %v1616
        %v6249 = vunpack.c.h.b16 %v1616
        %v6250 = vunpack.c.l.b16 %v1617
        %v6251 = vunpack.c.h.b16 %v1617
        %v6252 = vunpack.c.l.b16 %v1618
        %v6253 = vunpack.c.h.b16 %v1618
        %v6254 = vunpack.c.l.b16 %v1619
        %v6255 = vunpack.c.h.b16 %v1619
        %v6256 = vunpack.c.l.b16 %v1620
        %v6257 = vunpack.c.h.b16 %v1620
        %v6258 = vunpack.c.l.b16 %v1621
        %v6259 = vunpack.c.h.b16 %v1621
        %v6260 = vunpack.c.l.b16 %v1622
        %v6261 = vunpack.c.h.b16 %v1622
        %v6262 = vunpack.c.l.b16 %v1623
        %v6263 = vunpack.c.h.b16 %v1623
        %v6264 = vunpack.c.l.b16 %v1624
        %v6265 = vunpack.c.h.b16 %v1624
        %v6266 = vunpack.c.l.b16 %v1625
        %v6267 = vunpack.c.h.b16 %v1625
        %v6268 = vunpack.c.l.b16 %v1626
        %v6269 = vunpack.c.h.b16 %v1626
        %v6270 = vunpack.c.l.b16 %v1627
        %v6271 = vunpack.c.h.b16 %v1627
        %v6272 = vunpack.c.l.b16 %v1628
        %v6273 = vunpack.c.h.b16 %v1628
        %v6274 = vunpack.c.l.b16 %v1629
        %v6275 = vunpack.c.h.b16 %v1629
        %v6276 = vunpack.c.l.b16 %v1630
        %v6277 = vunpack.c.h.b16 %v1630
        %v6278 = vunpack.c.l.b16 %v1631
        %v6279 = vunpack.c.h.b16 %v1631
        %v6280 = vunpack.c.l.b16 %v1632
        %v6281 = vunpack.c.h.b16 %v1632
        %v6282 = vunpack.c.l.b16 %v1633
        %v6283 = vunpack.c.h.b16 %v1633
        %v6284 = vunpack.c.l.b16 %v1634
        %v6285 = vunpack.c.h.b16 %v1634
        %v6286 = vunpack.c.l.b16 %v1635
        %v6287 = vunpack.c.h.b16 %v1635
        %v6288 = vunpack.c.l.b16 %v1636
        %v6289 = vunpack.c.h.b16 %v1636
        %v6290 = vunpack.c.l.b16 %v1637
        %v6291 = vunpack.c.h.b16 %v1637
        %v6292 = vunpack.c.l.b16 %v1638
        %v6293 = vunpack.c.h.b16 %v1638
        %v6294 = vunpack.c.l.b16 %v1639
        %v6295 = vunpack.c.h.b16 %v1639
        %v6296 = vunpack.c.l.b16 %v1640
        %v6297 = vunpack.c.h.b16 %v1640
        %v6298 = vunpack.c.l.b16 %v1641
        %v6299 = vunpack.c.h.b16 %v1641
        %v6300 = vunpack.c.l.b16 %v1642
        %v6301 = vunpack.c.h.b16 %v1642
        %v6302 = vunpack.c.l.b16 %v1643
        %v6303 = vunpack.c.h.b16 %v1643
        %v6304 = vunpack.c.l.b16 %v1644
        %v6305 = vunpack.c.h.b16 %v1644
        %v6306 = vunpack.c.l.b16 %v1645
        %v6307 = vunpack.c.h.b16 %v1645
        %v6308 = vunpack.c.l.b16 %v1646
        %v6309 = vunpack.c.h.b16 %v1646
        %v6310 = vunpack.c.l.b16 %v1647
        %v6311 = vunpack.c.h.b16 %v1647
        %v6312 = vunpack.c.l.b16 %v1648
        %v6313 = vunpack.c.h.b16 %v1648
        %v6314 = vunpack.c.l.b16 %v1649
        %v6315 = vunpack.c.h.b16 %v1649
        %v6316 = vunpack.c.l.b16 %v1650
        %v6317 = vunpack.c.h.b16 %v1650
        %v6318 = vunpack.c.l.b16 %v1651
        %v6319 = vunpack.c.h.b16 %v1651
        %v6320 = vunpack.c.l.b16 %v1652
        %v6321 = vunpack.c.h.b16 %v1652
        %v6322 = vunpack.c.l.b16 %v1653
        %v6323 = vunpack.c.h.b16 %v1653
        %v6324 = vunpack.c.l.b16 %v1654
        %v6325 = vunpack.c.h.b16 %v1654
        %v6326 = vunpack.c.l.b16 %v1655
        %v6327 = vunpack.c.h.b16 %v1655
        %v6328 = vunpack.c.l.b16 %v1656
        %v6329 = vunpack.c.h.b16 %v1656
        %v6330 = vunpack.c.l.b16 %v1657
        %v6331 = vunpack.c.h.b16 %v1657
        %v6332 = vunpack.c.l.b16 %v1658
        %v6333 = vunpack.c.h.b16 %v1658
        %v6334 = vunpack.c.l.b16 %v1659
        %v6335 = vunpack.c.h.b16 %v1659
        %v6336 = vunpack.c.l.b16 %v1660
        %v6337 = vunpack.c.h.b16 %v1660
        %v6338 = vunpack.c.l.b16 %v1661
        %v6339 = vunpack.c.h.b16 %v1661
        %v6340 = vunpack.c.l.b16 %v1662
        %v6341 = vunpack.c.h.b16 %v1662
        %v6342 = vunpack.c.l.b16 %v1663
        %v6343 = vunpack.c.h.b16 %v1663
        %v6344 = vunpack.c.l.b16 %v1664
        %v6345 = vunpack.c.h.b16 %v1664
        %v6346 = vunpack.c.l.b16 %v1665
        %v6347 = vunpack.c.h.b16 %v1665
        %v6348 = vunpack.c.l.b16 %v1666
        %v6349 = vunpack.c.h.b16 %v1666
        %v6350 = vunpack.c.l.b16 %v1667
        %v6351 = vunpack.c.h.b16 %v1667
        %v6352 = vunpack.c.l.b16 %v1668
        %v6353 = vunpack.c.h.b16 %v1668
        %v6354 = vunpack.c.l.b16 %v1669
        %v6355 = vunpack.c.h.b16 %v1669
        %v6356 = vunpack.c.l.b16 %v1670
        %v6357 = vunpack.c.h.b16 %v1670
        %v6358 = vunpack.c.l.b16 %v1671
        %v6359 = vunpack.c.h.b16 %v1671
        %v6360 = vunpack.c.l.b16 %v1672
        %v6361 = vunpack.c.h.b16 %v1672
        %v6362 = vunpack.c.l.b16 %v1673
        %v6363 = vunpack.c.h.b16 %v1673
        %v6364 = vunpack.c.l.b16 %v1674
        %v6365 = vunpack.c.h.b16 %v1674
        %v6366 = vunpack.c.l.b16 %v1675
        %v6367 = vunpack.c.h.b16 %v1675
        %v6368 = vunpack.c.l.b16 %v1676
        %v6369 = vunpack.c.h.b16 %v1676
        %v6370 = vunpack.c.l.b16 %v1677
        %v6371 = vunpack.c.h.b16 %v1677
        %v6372 = vunpack.c.l.b16 %v1678
        %v6373 = vunpack.c.h.b16 %v1678
        %v6374 = vunpack.c.l.b16 %v1679
        %v6375 = vunpack.c.h.b16 %v1679
        %v6376 = vunpack.c.l.b16 %v1680
        %v6377 = vunpack.c.h.b16 %v1680
        %v6378 = vunpack.c.l.b16 %v1681
        %v6379 = vunpack.c.h.b16 %v1681
        %v6380 = vunpack.c.l.b16 %v1682
        %v6381 = vunpack.c.h.b16 %v1682
        %v6382 = vunpack.c.l.b16 %v1683
        %v6383 = vunpack.c.h.b16 %v1683
        %v6384 = vunpack.c.l.b16 %v1684
        %v6385 = vunpack.c.h.b16 %v1684
        %v6386 = vunpack.c.l.b16 %v1685
        %v6387 = vunpack.c.h.b16 %v1685
        %v6388 = vunpack.c.l.b16 %v1686
        %v6389 = vunpack.c.h.b16 %v1686
        %v6390 = vunpack.c.l.b16 %v1687
        %v6391 = vunpack.c.h.b16 %v1687
        %v6392 = vunpack.c.l.b16 %v1688
        %v6393 = vunpack.c.h.b16 %v1688
        %v6394 = vunpack.c.l.b16 %v1689
        %v6395 = vunpack.c.h.b16 %v1689
        %v6396 = vunpack.c.l.b16 %v1690
        %v6397 = vunpack.c.h.b16 %v1690
        %v6398 = vunpack.c.l.b16 %v1691
        %v6399 = vunpack.c.h.b16 %v1691
        %v6400 = vunpack.c.l.b16 %v1692
        %v6401 = vunpack.c.h.b16 %v1692
        %v6402 = vunpack.c.l.b16 %v1693
        %v6403 = vunpack.c.h.b16 %v1693
        %v6404 = vunpack.c.l.b16 %v1694
        %v6405 = vunpack.c.h.b16 %v1694
        %v6406 = vunpack.c.l.b16 %v1695
        %v6407 = vunpack.c.h.b16 %v1695
        %v6408 = vunpack.c.l.b16 %v1696
        %v6409 = vunpack.c.h.b16 %v1696
        %v6410 = vunpack.c.l.b16 %v1697
        %v6411 = vunpack.c.h.b16 %v1697
        %v6412 = vunpack.c.l.b16 %v1698
        %v6413 = vunpack.c.h.b16 %v1698
        %v6414 = vunpack.c.l.b16 %v1699
        %v6415 = vunpack.c.h.b16 %v1699
        %v6416 = vunpack.c.l.b16 %v1700
        %v6417 = vunpack.c.h.b16 %v1700
        %v6418 = vunpack.c.l.b16 %v1701
        %v6419 = vunpack.c.h.b16 %v1701
        %v6420 = vunpack.c.l.b16 %v1702
        %v6421 = vunpack.c.h.b16 %v1702
        %v6422 = vunpack.c.l.b16 %v1703
        %v6423 = vunpack.c.h.b16 %v1703
        %v6424 = vunpack.c.l.b16 %v1704
        %v6425 = vunpack.c.h.b16 %v1704
        %v6426 = vunpack.c.l.b16 %v1705
        %v6427 = vunpack.c.h.b16 %v1705
        %v6428 = vunpack.c.l.b16 %v1706
        %v6429 = vunpack.c.h.b16 %v1706
        %v6430 = vunpack.c.l.b16 %v1707
        %v6431 = vunpack.c.h.b16 %v1707
        %v6432 = vunpack.c.l.b16 %v1708
        %v6433 = vunpack.c.h.b16 %v1708
        %v6434 = vunpack.c.l.b16 %v1709
        %v6435 = vunpack.c.h.b16 %v1709
        %v6436 = vunpack.c.l.b16 %v1710
        %v6437 = vunpack.c.h.b16 %v1710
        %v6438 = vunpack.c.l.b16 %v1711
        %v6439 = vunpack.c.h.b16 %v1711
        %v6440 = vunpack.c.l.b16 %v1712
        %v6441 = vunpack.c.h.b16 %v1712
        %v6442 = vunpack.c.l.b16 %v1713
        %v6443 = vunpack.c.h.b16 %v1713
        %v6444 = vunpack.c.l.b16 %v1714
        %v6445 = vunpack.c.h.b16 %v1714
        %v6446 = vunpack.c.l.b16 %v1715
        %v6447 = vunpack.c.h.b16 %v1715
        %v6448 = vunpack.c.l.b16 %v1716
        %v6449 = vunpack.c.h.b16 %v1716
        %v6450 = vunpack.c.l.b16 %v1717
        %v6451 = vunpack.c.h.b16 %v1717
        %v6452 = vunpack.c.l.b16 %v1718
        %v6453 = vunpack.c.h.b16 %v1718
        %v6454 = vunpack.c.l.b16 %v1719
        %v6455 = vunpack.c.h.b16 %v1719
        %v6456 = vunpack.c.l.b16 %v1720
        %v6457 = vunpack.c.h.b16 %v1720
        %v6458 = vunpack.c.l.b16 %v1721
        %v6459 = vunpack.c.h.b16 %v1721
        %v6460 = vunpack.c.l.b16 %v1722
        %v6461 = vunpack.c.h.b16 %v1722
        %v6462 = vunpack.c.l.b16 %v1723
        %v6463 = vunpack.c.h.b16 %v1723
        %v6464 = vunpack.c.l.b16 %v1724
        %v6465 = vunpack.c.h.b16 %v1724
        %v6466 = vunpack.c.l.b16 %v1725
        %v6467 = vunpack.c.h.b16 %v1725
        %v6468 = vunpack.c.l.b16 %v1726
        %v6469 = vunpack.c.h.b16 %v1726
        %v6470 = vunpack.c.l.b16 %v1727
        %v6471 = vunpack.c.h.b16 %v1727
        %v6472 = vunpack.c.l.b16 %v1728
        %v6473 = vunpack.c.h.b16 %v1728
        %v6474 = vunpack.c.l.b16 %v1729
        %v6475 = vunpack.c.h.b16 %v1729
        %v6476 = vunpack.c.l.b16 %v1730
        %v6477 = vunpack.c.h.b16 %v1730
        %v6478 = vunpack.c.l.b16 %v1731
        %v6479 = vunpack.c.h.b16 %v1731
        %v6480 = vunpack.c.l.b16 %v1732
        %v6481 = vunpack.c.h.b16 %v1732
        %v6482 = vunpack.c.l.b16 %v1733
        %v6483 = vunpack.c.h.b16 %v1733
        %v6484 = vunpack.c.l.b16 %v1734
        %v6485 = vunpack.c.h.b16 %v1734
        %v6486 = vunpack.c.l.b16 %v1735
        %v6487 = vunpack.c.h.b16 %v1735
        %v6488 = vunpack.c.l.b16 %v1736
        %v6489 = vunpack.c.h.b16 %v1736
        %v6490 = vunpack.c.l.b16 %v1737
        %v6491 = vunpack.c.h.b16 %v1737
        %v6492 = vunpack.c.l.b16 %v1738
        %v6493 = vunpack.c.h.b16 %v1738
        %v6494 = vunpack.c.l.b16 %v1739
        %v6495 = vunpack.c.h.b16 %v1739
        %v6496 = vunpack.c.l.b16 %v1740
        %v6497 = vunpack.c.h.b16 %v1740
        %v6498 = vunpack.c.l.b16 %v1741
        %v6499 = vunpack.c.h.b16 %v1741
        %v6500 = vunpack.c.l.b16 %v1742
        %v6501 = vunpack.c.h.b16 %v1742
        %v6502 = vunpack.c.l.b16 %v1743
        %v6503 = vunpack.c.h.b16 %v1743
        %v6504 = vunpack.c.l.b16 %v1744
        %v6505 = vunpack.c.h.b16 %v1744
        %v6506 = vunpack.c.l.b16 %v1745
        %v6507 = vunpack.c.h.b16 %v1745
        %v6508 = vunpack.c.l.b16 %v1746
        %v6509 = vunpack.c.h.b16 %v1746
        %v6510 = vunpack.c.l.b16 %v1747
        %v6511 = vunpack.c.h.b16 %v1747
        %v6512 = vunpack.c.l.b16 %v1748
        %v6513 = vunpack.c.h.b16 %v1748
        %v6514 = vunpack.c.l.b16 %v1749
        %v6515 = vunpack.c.h.b16 %v1749
        %v6516 = vunpack.c.l.b16 %v1750
        %v6517 = vunpack.c.h.b16 %v1750
        %v6518 = vunpack.c.l.b16 %v1751
        %v6519 = vunpack.c.h.b16 %v1751
        %v6520 = vunpack.c.l.b16 %v1752
        %v6521 = vunpack.c.h.b16 %v1752
        %v6522 = vunpack.c.l.b16 %v1753
        %v6523 = vunpack.c.h.b16 %v1753
        %v6524 = vunpack.c.l.b16 %v1754
        %v6525 = vunpack.c.h.b16 %v1754
        %v6526 = vunpack.c.l.b16 %v1755
        %v6527 = vunpack.c.h.b16 %v1755
        %v6528 = vunpack.c.l.b16 %v1756
        %v6529 = vunpack.c.h.b16 %v1756
        %v6530 = vunpack.c.l.b16 %v1757
        %v6531 = vunpack.c.h.b16 %v1757
        %v6532 = vunpack.c.l.b16 %v1758
        %v6533 = vunpack.c.h.b16 %v1758
        %v6534 = vunpack.c.l.b16 %v1759
        %v6535 = vunpack.c.h.b16 %v1759
        %v6536 = vunpack.c.l.b16 %v1760
        %v6537 = vunpack.c.h.b16 %v1760
        %v6538 = vunpack.c.l.b16 %v1761
        %v6539 = vunpack.c.h.b16 %v1761
        %v6540 = vunpack.c.l.b16 %v1762
        %v6541 = vunpack.c.h.b16 %v1762
        %v6542 = vunpack.c.l.b16 %v1763
        %v6543 = vunpack.c.h.b16 %v1763
        %v6544 = vunpack.c.l.b16 %v1764
        %v6545 = vunpack.c.h.b16 %v1764
        %v6546 = vunpack.c.l.b16 %v1765
        %v6547 = vunpack.c.h.b16 %v1765
        %v6548 = vunpack.c.l.b16 %v1766
        %v6549 = vunpack.c.h.b16 %v1766
        %v6550 = vunpack.c.l.b16 %v1767
        %v6551 = vunpack.c.h.b16 %v1767
        %v6552 = vunpack.c.l.b16 %v1768
        %v6553 = vunpack.c.h.b16 %v1768
        %v6554 = vunpack.c.l.b16 %v1769
        %v6555 = vunpack.c.h.b16 %v1769
        %v6556 = vunpack.c.l.b16 %v1770
        %v6557 = vunpack.c.h.b16 %v1770
        %v6558 = vunpack.c.l.b16 %v1771
        %v6559 = vunpack.c.h.b16 %v1771
        %v6560 = vunpack.c.l.b16 %v1772
        %v6561 = vunpack.c.h.b16 %v1772
        %v6562 = vunpack.c.l.b16 %v1773
        %v6563 = vunpack.c.h.b16 %v1773
        %v6564 = vunpack.c.l.b16 %v1774
        %v6565 = vunpack.c.h.b16 %v1774
        %v6566 = vunpack.c.l.b16 %v1775
        %v6567 = vunpack.c.h.b16 %v1775
        %v6568 = vunpack.c.l.b16 %v1776
        %v6569 = vunpack.c.h.b16 %v1776
        %v6570 = vunpack.c.l.b16 %v1777
        %v6571 = vunpack.c.h.b16 %v1777
        %v6572 = vunpack.c.l.b16 %v1778
        %v6573 = vunpack.c.h.b16 %v1778
        %v6574 = vunpack.c.l.b16 %v1779
        %v6575 = vunpack.c.h.b16 %v1779
        %v6576 = vunpack.c.l.b16 %v1780
        %v6577 = vunpack.c.h.b16 %v1780
        %v6578 = vunpack.c.l.b16 %v1781
        %v6579 = vunpack.c.h.b16 %v1781
        %v6580 = vunpack.c.l.b16 %v1782
        %v6581 = vunpack.c.h.b16 %v1782
        %v6582 = vunpack.c.l.b16 %v1783
        %v6583 = vunpack.c.h.b16 %v1783
        %v6584 = vunpack.c.l.b16 %v1784
        %v6585 = vunpack.c.h.b16 %v1784
        %v6586 = vunpack.c.l.b16 %v1785
        %v6587 = vunpack.c.h.b16 %v1785
        %v6588 = vunpack.c.l.b16 %v1786
        %v6589 = vunpack.c.h.b16 %v1786
        %v6590 = vunpack.c.l.b16 %v1787
        %v6591 = vunpack.c.h.b16 %v1787
        %v6592 = vunpack.c.l.b16 %v1788
        %v6593 = vunpack.c.h.b16 %v1788
        %v6594 = vunpack.c.l.b16 %v1789
        %v6595 = vunpack.c.h.b16 %v1789
        %v6596 = vunpack.c.l.b16 %v1790
        %v6597 = vunpack.c.h.b16 %v1790
        %v6598 = vunpack.c.l.b16 %v1791
        %v6599 = vunpack.c.h.b16 %v1791
        %v6600 = vunpack.c.l.b16 %v1792
        %v6601 = vunpack.c.h.b16 %v1792
        %v6602 = vunpack.c.l.b16 %v1793
        %v6603 = vunpack.c.h.b16 %v1793
        %v6604 = vunpack.c.l.b16 %v1794
        %v6605 = vunpack.c.h.b16 %v1794
        %v6606 = vunpack.c.l.b16 %v1795
        %v6607 = vunpack.c.h.b16 %v1795
        %v6608 = vunpack.c.l.b16 %v1796
        %v6609 = vunpack.c.h.b16 %v1796
        %v6610 = vunpack.c.l.b16 %v1797
        %v6611 = vunpack.c.h.b16 %v1797
        %v6612 = vunpack.c.l.b16 %v1798
        %v6613 = vunpack.c.h.b16 %v1798
        %v6614 = vunpack.c.l.b16 %v1799
        %v6615 = vunpack.c.h.b16 %v1799
        %v6616 = vunpack.c.l.b16 %v1800
        %v6617 = vunpack.c.h.b16 %v1800
        %v6618 = vunpack.c.l.b16 %v1801
        %v6619 = vunpack.c.h.b16 %v1801
        %v6620 = vunpack.c.l.b16 %v1802
        %v6621 = vunpack.c.h.b16 %v1802
        %v6622 = vunpack.c.l.b16 %v1803
        %v6623 = vunpack.c.h.b16 %v1803
        %v6624 = vunpack.c.l.b16 %v1804
        %v6625 = vunpack.c.h.b16 %v1804
        %v6626 = vunpack.c.l.b16 %v1805
        %v6627 = vunpack.c.h.b16 %v1805
        %v6628 = vunpack.c.l.b16 %v1806
        %v6629 = vunpack.c.h.b16 %v1806
        %v6630 = vunpack.c.l.b16 %v1807
        %v6631 = vunpack.c.h.b16 %v1807
        %v6632 = vunpack.c.l.b16 %v1808
        %v6633 = vunpack.c.h.b16 %v1808
        %v6634 = vunpack.c.l.b16 %v1809
        %v6635 = vunpack.c.h.b16 %v1809
        %v6636 = vunpack.c.l.b16 %v1810
        %v6637 = vunpack.c.h.b16 %v1810
        %v6638 = vunpack.c.l.b16 %v1811
        %v6639 = vunpack.c.h.b16 %v1811
        %v6640 = vunpack.c.l.b16 %v1812
        %v6641 = vunpack.c.h.b16 %v1812
        %v6642 = vunpack.c.l.b16 %v1813
        %v6643 = vunpack.c.h.b16 %v1813
        %v6644 = vunpack.c.l.b16 %v1814
        %v6645 = vunpack.c.h.b16 %v1814
        %v6646 = vunpack.c.l.b16 %v1815
        %v6647 = vunpack.c.h.b16 %v1815
        %v6648 = vunpack.c.l.b16 %v1816
        %v6649 = vunpack.c.h.b16 %v1816
        %v6650 = vunpack.c.l.b16 %v1817
        %v6651 = vunpack.c.h.b16 %v1817
        %v6652 = vunpack.c.l.b16 %v1818
        %v6653 = vunpack.c.h.b16 %v1818
        %v6654 = vunpack.c.l.b16 %v1819
        %v6655 = vunpack.c.h.b16 %v1819
        %v6656 = vunpack.c.l.b16 %v1820
        %v6657 = vunpack.c.h.b16 %v1820
        %v6658 = vunpack.c.l.b16 %v1821
        %v6659 = vunpack.c.h.b16 %v1821
        %v6660 = vunpack.c.l.b16 %v1822
        %v6661 = vunpack.c.h.b16 %v1822
        %v6662 = vunpack.c.l.b16 %v1823
        %v6663 = vunpack.c.h.b16 %v1823
        %v6664 = vunpack.c.l.b16 %v1824
        %v6665 = vunpack.c.h.b16 %v1824
        %v6666 = vunpack.c.l.b16 %v1825
        %v6667 = vunpack.c.h.b16 %v1825
        %v6668 = vunpack.c.l.b16 %v1826
        %v6669 = vunpack.c.h.b16 %v1826
        %v6670 = vunpack.c.l.b16 %v1827
        %v6671 = vunpack.c.h.b16 %v1827
        %v6672 = vunpack.c.l.b16 %v1828
        %v6673 = vunpack.c.h.b16 %v1828
        %v6674 = vunpack.c.l.b16 %v1829
        %v6675 = vunpack.c.h.b16 %v1829
        %v6676 = vunpack.c.l.b16 %v1830
        %v6677 = vunpack.c.h.b16 %v1830
        %v6678 = vunpack.c.l.b16 %v1831
        %v6679 = vunpack.c.h.b16 %v1831
        %v6680 = vunpack.c.l.b16 %v1832
        %v6681 = vunpack.c.h.b16 %v1832
        %v6682 = vunpack.c.l.b16 %v1833
        %v6683 = vunpack.c.h.b16 %v1833
        %v6684 = vunpack.c.l.b16 %v1834
        %v6685 = vunpack.c.h.b16 %v1834
        %v6686 = vunpack.c.l.b16 %v1835
        %v6687 = vunpack.c.h.b16 %v1835
        %v6688 = vunpack.c.l.b16 %v1836
        %v6689 = vunpack.c.h.b16 %v1836
        %v6690 = vunpack.c.l.b16 %v1837
        %v6691 = vunpack.c.h.b16 %v1837
        %v6692 = vunpack.c.l.b16 %v1838
        %v6693 = vunpack.c.h.b16 %v1838
        %v6694 = vunpack.c.l.b16 %v1839
        %v6695 = vunpack.c.h.b16 %v1839
        %v6696 = vunpack.c.l.b16 %v1840
        %v6697 = vunpack.c.h.b16 %v1840
        %v6698 = vunpack.c.l.b16 %v1841
        %v6699 = vunpack.c.h.b16 %v1841
        %v6700 = vunpack.c.l.b16 %v1842
        %v6701 = vunpack.c.h.b16 %v1842
        %v6702 = vunpack.c.l.b16 %v1843
        %v6703 = vunpack.c.h.b16 %v1843
        %v6704 = vunpack.c.l.b16 %v1844
        %v6705 = vunpack.c.h.b16 %v1844
        %v6706 = vunpack.c.l.b16 %v1845
        %v6707 = vunpack.c.h.b16 %v1845
        %v6708 = vunpack.c.l.b16 %v1846
        %v6709 = vunpack.c.h.b16 %v1846
        %v6710 = vunpack.c.l.b16 %v1847
        %v6711 = vunpack.c.h.b16 %v1847
        %v6712 = vunpack.c.l.b16 %v1848
        %v6713 = vunpack.c.h.b16 %v1848
        %v6714 = vunpack.c.l.b16 %v1849
        %v6715 = vunpack.c.h.b16 %v1849
        %v6716 = vunpack.c.l.b16 %v1850
        %v6717 = vunpack.c.h.b16 %v1850
        %v6718 = vunpack.c.l.b16 %v1851
        %v6719 = vunpack.c.h.b16 %v1851
        %v6720 = vunpack.c.l.b16 %v1852
        %v6721 = vunpack.c.h.b16 %v1852
        %v6722 = vunpack.c.l.b16 %v1853
        %v6723 = vunpack.c.h.b16 %v1853
        %v6724 = vunpack.c.l.b16 %v1854
        %v6725 = vunpack.c.h.b16 %v1854
        %v6726 = vunpack.c.l.b16 %v1855
        %v6727 = vunpack.c.h.b16 %v1855
        %v6728 = vunpack.c.l.b16 %v1856
        %v6729 = vunpack.c.h.b16 %v1856
        %v6730 = vunpack.c.l.b16 %v1857
        %v6731 = vunpack.c.h.b16 %v1857
        %v6732 = vunpack.c.l.b16 %v1858
        %v6733 = vunpack.c.h.b16 %v1858
        %v6734 = vunpack.c.l.b16 %v1859
        %v6735 = vunpack.c.h.b16 %v1859
        %v6736 = vpack.c.b16 %v3604, %v3600
        %v6737 = vpack.c.b16 %v3605, %v3601
        %v6738 = vpack.c.b16 %v3606, %v3602
        %v6739 = vpack.c.b16 %v3607, %v3603
        %v6740 = vpack.c.b16 %v3612, %v3608
        %v6741 = vpack.c.b16 %v3613, %v3609
        %v6742 = vpack.c.b16 %v3614, %v3610
        %v6743 = vpack.c.b16 %v3615, %v3611
        %v6744 = vpack.c.b16 %v3620, %v3616
        %v6745 = vpack.c.b16 %v3621, %v3617
        %v6746 = vpack.c.b16 %v3622, %v3618
        %v6747 = vpack.c.b16 %v3623, %v3619
        %v6748 = vpack.c.b16 %v3628, %v3624
        %v6749 = vpack.c.b16 %v3629, %v3625
        %v6750 = vpack.c.b16 %v3630, %v3626
        %v6751 = vpack.c.b16 %v3631, %v3627
        %v6752 = vpack.c.b16 %v3636, %v3632
        %v6753 = vpack.c.b16 %v3637, %v3633
        %v6754 = vpack.c.b16 %v3638, %v3634
        %v6755 = vpack.c.b16 %v3639, %v3635
        %v6756 = vpack.c.b16 %v3644, %v3640
        %v6757 = vpack.c.b16 %v3645, %v3641
        %v6758 = vpack.c.b16 %v3646, %v3642
        %v6759 = vpack.c.b16 %v3647, %v3643
        %v6760 = vpack.c.b16 %v3652, %v3648
        %v6761 = vpack.c.b16 %v3653, %v3649
        %v6762 = vpack.c.b16 %v3654, %v3650
        %v6763 = vpack.c.b16 %v3655, %v3651
        %v6764 = vpack.c.b16 %v3660, %v3656
        %v6765 = vpack.c.b16 %v3661, %v3657
        %v6766 = vpack.c.b16 %v3662, %v3658
        %v6767 = vpack.c.b16 %v3663, %v3659
        %v6768 = vpack.c.b16 %v3668, %v3664
        %v6769 = vpack.c.b16 %v3669, %v3665
        %v6770 = vpack.c.b16 %v3670, %v3666
        %v6771 = vpack.c.b16 %v3671, %v3667
        %v6772 = vpack.c.b16 %v3676, %v3672
        %v6773 = vpack.c.b16 %v3677, %v3673
        %v6774 = vpack.c.b16 %v3678, %v3674
        %v6775 = vpack.c.b16 %v3679, %v3675
        %v6776 = vpack.c.b16 %v3684, %v3680
        %v6777 = vpack.c.b16 %v3685, %v3681
        %v6778 = vpack.c.b16 %v3686, %v3682
        %v6779 = vpack.c.b16 %v3687, %v3683
        %v6780 = vpack.c.b16 %v3692, %v3688
        %v6781 = vpack.c.b16 %v3693, %v3689
        %v6782 = vpack.c.b16 %v3694, %v3690
        %v6783 = vpack.c.b16 %v3695, %v3691
        %v6784 = vpack.c.b16 %v3700, %v3696
        %v6785 = vpack.c.b16 %v3701, %v3697
        %v6786 = vpack.c.b16 %v3702, %v3698
        %v6787 = vpack.c.b16 %v3703, %v3699
        %v6788 = vpack.c.b16 %v3708, %v3704
        %v6789 = vpack.c.b16 %v3709, %v3705
        %v6790 = vpack.c.b16 %v3710, %v3706
        %v6791 = vpack.c.b16 %v3711, %v3707
        %v6792 = vpack.c.b16 %v3716, %v3712
        %v6793 = vpack.c.b16 %v3717, %v3713
        %v6794 = vpack.c.b16 %v3718, %v3714
        %v6795 = vpack.c.b16 %v3719, %v3715
        %v6796 = vpack.c.b16 %v3724, %v3720
        %v6797 = vpack.c.b16 %v3725, %v3721
        %v6798 = vpack.c.b16 %v3726, %v3722
        %v6799 = vpack.c.b16 %v3727, %v3723
        %v6800 = vpack.c.b16 %v3732, %v3728
        %v6801 = vpack.c.b16 %v3733, %v3729
        %v6802 = vpack.c.b16 %v3734, %v3730
        %v6803 = vpack.c.b16 %v3735, %v3731
        %v6804 = vpack.c.b16 %v3740, %v3736
        %v6805 = vpack.c.b16 %v3741, %v3737
        %v6806 = vpack.c.b16 %v3742, %v3738
        %v6807 = vpack.c.b16 %v3743, %v3739
        %v6808 = vpack.c.b16 %v3748, %v3744
        %v6809 = vpack.c.b16 %v3749, %v3745
        %v6810 = vpack.c.b16 %v3750, %v3746
        %v6811 = vpack.c.b16 %v3751, %v3747
        %v6812 = vpack.c.b16 %v3756, %v3752
        %v6813 = vpack.c.b16 %v3757, %v3753
        %v6814 = vpack.c.b16 %v3758, %v3754
        %v6815 = vpack.c.b16 %v3759, %v3755
        %v6816 = vpack.c.b16 %v3764, %v3760
        %v6817 = vpack.c.b16 %v3765, %v3761
        %v6818 = vpack.c.b16 %v3766, %v3762
        %v6819 = vpack.c.b16 %v3767, %v3763
        %v6820 = vpack.c.b16 %v3772, %v3768
        %v6821 = vpack.c.b16 %v3773, %v3769
        %v6822 = vpack.c.b16 %v3774, %v3770
        %v6823 = vpack.c.b16 %v3775, %v3771
        %v6824 = vpack.c.b16 %v3780, %v3776
        %v6825 = vpack.c.b16 %v3781, %v3777
        %v6826 = vpack.c.b16 %v3782, %v3778
        %v6827 = vpack.c.b16 %v3783, %v3779
        %v6828 = vpack.c.b16 %v3788, %v3784
        %v6829 = vpack.c.b16 %v3789, %v3785
        %v6830 = vpack.c.b16 %v3790, %v3786
        %v6831 = vpack.c.b16 %v3791, %v3787
        %v6832 = vpack.c.b16 %v3796, %v3792
        %v6833 = vpack.c.b16 %v3797, %v3793
        %v6834 = vpack.c.b16 %v3798, %v3794
        %v6835 = vpack.c.b16 %v3799, %v3795
        %v6836 = vpack.c.b16 %v3804, %v3800
        %v6837 = vpack.c.b16 %v3805, %v3801
        %v6838 = vpack.c.b16 %v3806, %v3802
        %v6839 = vpack.c.b16 %v3807, %v3803
        %v6840 = vpack.c.b16 %v3812, %v3808
        %v6841 = vpack.c.b16 %v3813, %v3809
        %v6842 = vpack.c.b16 %v3814, %v3810
        %v6843 = vpack.c.b16 %v3815, %v3811
        %v6844 = vpack.c.b16 %v3820, %v3816
        %v6845 = vpack.c.b16 %v3821, %v3817
        %v6846 = vpack.c.b16 %v3822, %v3818
        %v6847 = vpack.c.b16 %v3823, %v3819
        %v6848 = vpack.c.b16 %v3828, %v3824
        %v6849 = vpack.c.b16 %v3829, %v3825
        %v6850 = vpack.c.b16 %v3830, %v3826
        %v6851 = vpack.c.b16 %v3831, %v3827
        %v6852 = vpack.c.b16 %v3836, %v3832
        %v6853 = vpack.c.b16 %v3837, %v3833
        %v6854 = vpack.c.b16 %v3838, %v3834
        %v6855 = vpack.c.b16 %v3839, %v3835
        %v6856 = vpack.c.b16 %v3844, %v3840
        %v6857 = vpack.c.b16 %v3845, %v3841
        %v6858 = vpack.c.b16 %v3846, %v3842
        %v6859 = vpack.c.b16 %v3847, %v3843
        %v6860 = vpack.c.b16 %v3852, %v3848
        %v6861 = vpack.c.b16 %v3853, %v3849
        %v6862 = vpack.c.b16 %v3854, %v3850
        %v6863 = vpack.c.b16 %v3855, %v3851
        %v6864 = vpack.c.b16 %v3860, %v3856
        %v6865 = vpack.c.b16 %v3861, %v3857
        %v6866 = vpack.c.b16 %v3862, %v3858
        %v6867 = vpack.c.b16 %v3863, %v3859
        %v6868 = vpack.c.b16 %v3868, %v3864
        %v6869 = vpack.c.b16 %v3869, %v3865
        %v6870 = vpack.c.b16 %v3870, %v3866
        %v6871 = vpack.c.b16 %v3871, %v3867
        %v6872 = vpack.c.b16 %v3876, %v3872
        %v6873 = vpack.c.b16 %v3877, %v3873
        %v6874 = vpack.c.b16 %v3878, %v3874
        %v6875 = vpack.c.b16 %v3879, %v3875
        %v6876 = vpack.c.b16 %v3884, %v3880
        %v6877 = vpack.c.b16 %v3885, %v3881
        %v6878 = vpack.c.b16 %v3886, %v3882
        %v6879 = vpack.c.b16 %v3887, %v3883
        %v6880 = vpack.c.b16 %v3892, %v3888
        %v6881 = vpack.c.b16 %v3893, %v3889
        %v6882 = vpack.c.b16 %v3894, %v3890
        %v6883 = vpack.c.b16 %v3895, %v3891
        %v6884 = vpack.c.b16 %v3900, %v3896
        %v6885 = vpack.c.b16 %v3901, %v3897
        %v6886 = vpack.c.b16 %v3902, %v3898
        %v6887 = vpack.c.b16 %v3903, %v3899
        %v6888 = vpack.c.b16 %v3908, %v3904
        %v6889 = vpack.c.b16 %v3909, %v3905
        %v6890 = vpack.c.b16 %v3910, %v3906
        %v6891 = vpack.c.b16 %v3911, %v3907
        %v6892 = vpack.c.b16 %v3916, %v3912
        %v6893 = vpack.c.b16 %v3917, %v3913
        %v6894 = vpack.c.b16 %v3918, %v3914
        %v6895 = vpack.c.b16 %v3919, %v3915
        %v6896 = vpack.c.b16 %v3924, %v3920
        %v6897 = vpack.c.b16 %v3925, %v3921
        %v6898 = vpack.c.b16 %v3926, %v3922
        %v6899 = vpack.c.b16 %v3927, %v3923
        %v6900 = vpack.c.b16 %v3932, %v3928
        %v6901 = vpack.c.b16 %v3933, %v3929
        %v6902 = vpack.c.b16 %v3934, %v3930
        %v6903 = vpack.c.b16 %v3935, %v3931
        %v6904 = vpack.c.b16 %v3940, %v3936
        %v6905 = vpack.c.b16 %v3941, %v3937
        %v6906 = vpack.c.b16 %v3942, %v3938
        %v6907 = vpack.c.b16 %v3943, %v3939
        %v6908 = vpack.c.b16 %v3948, %v3944
        %v6909 = vpack.c.b16 %v3949, %v3945
        %v6910 = vpack.c.b16 %v3950, %v3946
        %v6911 = vpack.c.b16 %v3951, %v3947
        %v6912 = vpack.c.b16 %v3956, %v3952
        %v6913 = vpack.c.b16 %v3957, %v3953
        %v6914 = vpack.c.b16 %v3958, %v3954
        %v6915 = vpack.c.b16 %v3959, %v3955
        %v6916 = vpack.c.b16 %v3964, %v3960
        %v6917 = vpack.c.b16 %v3965, %v3961
        %v6918 = vpack.c.b16 %v3966, %v3962
        %v6919 = vpack.c.b16 %v3967, %v3963
        %v6920 = vpack.c.b16 %v3972, %v3968
        %v6921 = vpack.c.b16 %v3973, %v3969
        %v6922 = vpack.c.b16 %v3974, %v3970
        %v6923 = vpack.c.b16 %v3975, %v3971
        %v6924 = vpack.c.b16 %v3980, %v3976
        %v6925 = vpack.c.b16 %v3981, %v3977
        %v6926 = vpack.c.b16 %v3982, %v3978
        %v6927 = vpack.c.b16 %v3983, %v3979
        %v6928 = vpack.c.b16 %v3988, %v3984
        %v6929 = vpack.c.b16 %v3989, %v3985
        %v6930 = vpack.c.b16 %v3990, %v3986
        %v6931 = vpack.c.b16 %v3991, %v3987
        %v6932 = vpack.c.b16 %v3996, %v3992
        %v6933 = vpack.c.b16 %v3997, %v3993
        %v6934 = vpack.c.b16 %v3998, %v3994
        %v6935 = vpack.c.b16 %v3999, %v3995
        %v6936 = vpack.c.b16 %v4004, %v4000
        %v6937 = vpack.c.b16 %v4005, %v4001
        %v6938 = vpack.c.b16 %v4006, %v4002
        %v6939 = vpack.c.b16 %v4007, %v4003
        %v6940 = vpack.c.b16 %v4012, %v4008
        %v6941 = vpack.c.b16 %v4013, %v4009
        %v6942 = vpack.c.b16 %v4014, %v4010
        %v6943 = vpack.c.b16 %v4015, %v4011
        %v6944 = vpack.c.b16 %v4020, %v4016
        %v6945 = vpack.c.b16 %v4021, %v4017
        %v6946 = vpack.c.b16 %v4022, %v4018
        %v6947 = vpack.c.b16 %v4023, %v4019
        %v6948 = vpack.c.b16 %v4028, %v4024
        %v6949 = vpack.c.b16 %v4029, %v4025
        %v6950 = vpack.c.b16 %v4030, %v4026
        %v6951 = vpack.c.b16 %v4031, %v4027
        %v6952 = vpack.c.b16 %v4036, %v4032
        %v6953 = vpack.c.b16 %v4037, %v4033
        %v6954 = vpack.c.b16 %v4038, %v4034
        %v6955 = vpack.c.b16 %v4039, %v4035
        %v6956 = vpack.c.b16 %v4044, %v4040
        %v6957 = vpack.c.b16 %v4045, %v4041
        %v6958 = vpack.c.b16 %v4046, %v4042
        %v6959 = vpack.c.b16 %v4047, %v4043
        %v6960 = vpack.c.b16 %v4052, %v4048
        %v6961 = vpack.c.b16 %v4053, %v4049
        %v6962 = vpack.c.b16 %v4054, %v4050
        %v6963 = vpack.c.b16 %v4055, %v4051
        %v6964 = vpack.c.b16 %v4060, %v4056
        %v6965 = vpack.c.b16 %v4061, %v4057
        %v6966 = vpack.c.b16 %v4062, %v4058
        %v6967 = vpack.c.b16 %v4063, %v4059
        %v6968 = vpack.c.b16 %v4068, %v4064
        %v6969 = vpack.c.b16 %v4069, %v4065
        %v6970 = vpack.c.b16 %v4070, %v4066
        %v6971 = vpack.c.b16 %v4071, %v4067
        %v6972 = vpack.c.b16 %v4076, %v4072
        %v6973 = vpack.c.b16 %v4077, %v4073
        %v6974 = vpack.c.b16 %v4078, %v4074
        %v6975 = vpack.c.b16 %v4079, %v4075
        %v6976 = vpack.c.b16 %v4084, %v4080
        %v6977 = vpack.c.b16 %v4085, %v4081
        %v6978 = vpack.c.b16 %v4086, %v4082
        %v6979 = vpack.c.b16 %v4087, %v4083
        %v6980 = vpack.c.b16 %v4092, %v4088
        %v6981 = vpack.c.b16 %v4093, %v4089
        %v6982 = vpack.c.b16 %v4094, %v4090
        %v6983 = vpack.c.b16 %v4095, %v4091
        %v6984 = vpack.c.b16 %v4100, %v4096
        %v6985 = vpack.c.b16 %v4101, %v4097
        %v6986 = vpack.c.b16 %v4102, %v4098
        %v6987 = vpack.c.b16 %v4103, %v4099
        %v6988 = vpack.c.b16 %v4108, %v4104
        %v6989 = vpack.c.b16 %v4109, %v4105
        %v6990 = vpack.c.b16 %v4110, %v4106
        %v6991 = vpack.c.b16 %v4111, %v4107
        %v6992 = vpack.c.b16 %v4116, %v4112
        %v6993 = vpack.c.b16 %v4117, %v4113
        %v6994 = vpack.c.b16 %v4118, %v4114
        %v6995 = vpack.c.b16 %v4119, %v4115
        %v6996 = vpack.c.b16 %v4124, %v4120
        %v6997 = vpack.c.b16 %v4125, %v4121
        %v6998 = vpack.c.b16 %v4126, %v4122
        %v6999 = vpack.c.b16 %v4127, %v4123
        %v7000 = vpack.c.b16 %v4132, %v4128
        %v7001 = vpack.c.b16 %v4133, %v4129
        %v7002 = vpack.c.b16 %v4134, %v4130
        %v7003 = vpack.c.b16 %v4135, %v4131
        %v7004 = vpack.c.b16 %v4140, %v4136
        %v7005 = vpack.c.b16 %v4141, %v4137
        %v7006 = vpack.c.b16 %v4142, %v4138
        %v7007 = vpack.c.b16 %v4143, %v4139
        %v7008 = vpack.c.b16 %v4148, %v4144
        %v7009 = vpack.c.b16 %v4149, %v4145
        %v7010 = vpack.c.b16 %v4150, %v4146
        %v7011 = vpack.c.b16 %v4151, %v4147
        %v7012 = vpack.c.b16 %v4156, %v4152
        %v7013 = vpack.c.b16 %v4157, %v4153
        %v7014 = vpack.c.b16 %v4158, %v4154
        %v7015 = vpack.c.b16 %v4159, %v4155
        %v7016 = vpack.c.b16 %v4164, %v4160
        %v7017 = vpack.c.b16 %v4165, %v4161
        %v7018 = vpack.c.b16 %v4166, %v4162
        %v7019 = vpack.c.b16 %v4167, %v4163
        %v7020 = vpack.c.b16 %v4172, %v4168
        %v7021 = vpack.c.b16 %v4173, %v4169
        %v7022 = vpack.c.b16 %v4174, %v4170
        %v7023 = vpack.c.b16 %v4175, %v4171
        %v7024 = vpack.c.b16 %v4180, %v4176
        %v7025 = vpack.c.b16 %v4181, %v4177
        %v7026 = vpack.c.b16 %v4182, %v4178
        %v7027 = vpack.c.b16 %v4183, %v4179
        %v7028 = vpack.c.b16 %v4188, %v4184
        %v7029 = vpack.c.b16 %v4189, %v4185
        %v7030 = vpack.c.b16 %v4190, %v4186
        %v7031 = vpack.c.b16 %v4191, %v4187
        %v7032 = vpack.c.b16 %v4196, %v4192
        %v7033 = vpack.c.b16 %v4197, %v4193
        %v7034 = vpack.c.b16 %v4198, %v4194
        %v7035 = vpack.c.b16 %v4199, %v4195
        %v7036 = vpack.c.b16 %v4204, %v4200
        %v7037 = vpack.c.b16 %v4205, %v4201
        %v7038 = vpack.c.b16 %v4206, %v4202
        %v7039 = vpack.c.b16 %v4207, %v4203
        %v7040 = vpack.c.b16 %v4212, %v4208
        %v7041 = vpack.c.b16 %v4213, %v4209
        %v7042 = vpack.c.b16 %v4214, %v4210
        %v7043 = vpack.c.b16 %v4215, %v4211
        %v7044 = vpack.c.b16 %v4220, %v4216
        %v7045 = vpack.c.b16 %v4221, %v4217
        %v7046 = vpack.c.b16 %v4222, %v4218
        %v7047 = vpack.c.b16 %v4223, %v4219
        %v7048 = vpack.c.b16 %v4228, %v4224
        %v7049 = vpack.c.b16 %v4229, %v4225
        %v7050 = vpack.c.b16 %v4230, %v4226
        %v7051 = vpack.c.b16 %v4231, %v4227
        %v7052 = vpack.c.b16 %v4236, %v4232
        %v7053 = vpack.c.b16 %v4237, %v4233
        %v7054 = vpack.c.b16 %v4238, %v4234
        %v7055 = vpack.c.b16 %v4239, %v4235
        %v7056 = vpack.c.b16 %v4244, %v4240
        %v7057 = vpack.c.b16 %v4245, %v4241
        %v7058 = vpack.c.b16 %v4246, %v4242
        %v7059 = vpack.c.b16 %v4247, %v4243
        %v7060 = vpack.c.b16 %v4252, %v4248
        %v7061 = vpack.c.b16 %v4253, %v4249
        %v7062 = vpack.c.b16 %v4254, %v4250
        %v7063 = vpack.c.b16 %v4255, %v4251
        %v7064 = vpack.c.b16 %v4260, %v4256
        %v7065 = vpack.c.b16 %v4261, %v4257
        %v7066 = vpack.c.b16 %v4262, %v4258
        %v7067 = vpack.c.b16 %v4263, %v4259
        %v7068 = vpack.c.b16 %v4268, %v4264
        %v7069 = vpack.c.b16 %v4269, %v4265
        %v7070 = vpack.c.b16 %v4270, %v4266
        %v7071 = vpack.c.b16 %v4271, %v4267
        %v7072 = vpack.c.b16 %v4276, %v4272
        %v7073 = vpack.c.b16 %v4277, %v4273
        %v7074 = vpack.c.b16 %v4278, %v4274
        %v7075 = vpack.c.b16 %v4279, %v4275
        %v7076 = vpack.c.b16 %v4284, %v4280
        %v7077 = vpack.c.b16 %v4285, %v4281
        %v7078 = vpack.c.b16 %v4286, %v4282
        %v7079 = vpack.c.b16 %v4287, %v4283
        %v7080 = vpack.c.b16 %v4292, %v4288
        %v7081 = vpack.c.b16 %v4293, %v4289
        %v7082 = vpack.c.b16 %v4294, %v4290
        %v7083 = vpack.c.b16 %v4295, %v4291
        %v7084 = vpack.c.b16 %v4300, %v4296
        %v7085 = vpack.c.b16 %v4301, %v4297
        %v7086 = vpack.c.b16 %v4302, %v4298
        %v7087 = vpack.c.b16 %v4303, %v4299
        %v7088 = vpack.c.b16 %v4308, %v4304
        %v7089 = vpack.c.b16 %v4309, %v4305
        %v7090 = vpack.c.b16 %v4310, %v4306
        %v7091 = vpack.c.b16 %v4311, %v4307
        %v7092 = vpack.c.b16 %v4316, %v4312
        %v7093 = vpack.c.b16 %v4317, %v4313
        %v7094 = vpack.c.b16 %v4318, %v4314
        %v7095 = vpack.c.b16 %v4319, %v4315
        %v7096 = vpack.c.b16 %v4324, %v4320
        %v7097 = vpack.c.b16 %v4325, %v4321
        %v7098 = vpack.c.b16 %v4326, %v4322
        %v7099 = vpack.c.b16 %v4327, %v4323
        %v7100 = vpack.c.b16 %v4332, %v4328
        %v7101 = vpack.c.b16 %v4333, %v4329
        %v7102 = vpack.c.b16 %v4334, %v4330
        %v7103 = vpack.c.b16 %v4335, %v4331
        %v7104 = vpack.c.b16 %v4340, %v4336
        %v7105 = vpack.c.b16 %v4341, %v4337
        %v7106 = vpack.c.b16 %v4342, %v4338
        %v7107 = vpack.c.b16 %v4343, %v4339
        %v7108 = vpack.c.b16 %v4348, %v4344
        %v7109 = vpack.c.b16 %v4349, %v4345
        %v7110 = vpack.c.b16 %v4350, %v4346
        %v7111 = vpack.c.b16 %v4351, %v4347
        %v7112 = vpack.c.b16 %v4356, %v4352
        %v7113 = vpack.c.b16 %v4357, %v4353
        %v7114 = vpack.c.b16 %v4358, %v4354
        %v7115 = vpack.c.b16 %v4359, %v4355
        %v7116 = vpack.c.b16 %v4364, %v4360
        %v7117 = vpack.c.b16 %v4365, %v4361
        %v7118 = vpack.c.b16 %v4366, %v4362
        %v7119 = vpack.c.b16 %v4367, %v4363
        %v7120 = vpack.c.b16 %v4372, %v4368
        %v7121 = vpack.c.b16 %v4373, %v4369
        %v7122 = vpack.c.b16 %v4374, %v4370
        %v7123 = vpack.c.b16 %v4375, %v4371
        %v7124 = vpack.c.b16 %v4380, %v4376
        %v7125 = vpack.c.b16 %v4381, %v4377
        %v7126 = vpack.c.b16 %v4382, %v4378
        %v7127 = vpack.c.b16 %v4383, %v4379
        %v7128 = vpack.c.b16 %v4388, %v4384
        %v7129 = vpack.c.b16 %v4389, %v4385
        %v7130 = vpack.c.b16 %v4390, %v4386
        %v7131 = vpack.c.b16 %v4391, %v4387
        %v7132 = vpack.c.b16 %v4396, %v4392
        %v7133 = vpack.c.b16 %v4397, %v4393
        %v7134 = vpack.c.b16 %v4398, %v4394
        %v7135 = vpack.c.b16 %v4399, %v4395
        %v7136 = vpack.c.b16 %v4404, %v4400
        %v7137 = vpack.c.b16 %v4405, %v4401
        %v7138 = vpack.c.b16 %v4406, %v4402
        %v7139 = vpack.c.b16 %v4407, %v4403
        %v7140 = vpack.c.b16 %v4412, %v4408
        %v7141 = vpack.c.b16 %v4413, %v4409
        %v7142 = vpack.c.b16 %v4414, %v4410
        %v7143 = vpack.c.b16 %v4415, %v4411
        %v7144 = vpack.c.b16 %v4420, %v4416
        %v7145 = vpack.c.b16 %v4421, %v4417
        %v7146 = vpack.c.b16 %v4422, %v4418
        %v7147 = vpack.c.b16 %v4423, %v4419
        %v7148 = vpack.c.b16 %v4428, %v4424
        %v7149 = vpack.c.b16 %v4429, %v4425
        %v7150 = vpack.c.b16 %v4430, %v4426
        %v7151 = vpack.c.b16 %v4431, %v4427
        %v7152 = vpack.c.b16 %v4436, %v4432
        %v7153 = vpack.c.b16 %v4437, %v4433
        %v7154 = vpack.c.b16 %v4438, %v4434
        %v7155 = vpack.c.b16 %v4439, %v4435
        %v7156 = vpack.c.b16 %v4444, %v4440
        %v7157 = vpack.c.b16 %v4445, %v4441
        %v7158 = vpack.c.b16 %v4446, %v4442
        %v7159 = vpack.c.b16 %v4447, %v4443
        %v7160 = vpack.c.b16 %v4452, %v4448
        %v7161 = vpack.c.b16 %v4453, %v4449
        %v7162 = vpack.c.b16 %v4454, %v4450
        %v7163 = vpack.c.b16 %v4455, %v4451
        %v7164 = vpack.c.b16 %v4460, %v4456
        %v7165 = vpack.c.b16 %v4461, %v4457
        %v7166 = vpack.c.b16 %v4462, %v4458
        %v7167 = vpack.c.b16 %v4463, %v4459
        %v7168 = vpack.c.b16 %v4468, %v4464
        %v7169 = vpack.c.b16 %v4469, %v4465
        %v7170 = vpack.c.b16 %v4470, %v4466
        %v7171 = vpack.c.b16 %v4471, %v4467
        %v7172 = vpack.c.b16 %v4476, %v4472
        %v7173 = vpack.c.b16 %v4477, %v4473
        %v7174 = vpack.c.b16 %v4478, %v4474
        %v7175 = vpack.c.b16 %v4479, %v4475
        %v7176 = vpack.c.b16 %v4484, %v4480
        %v7177 = vpack.c.b16 %v4485, %v4481
        %v7178 = vpack.c.b16 %v4486, %v4482
        %v7179 = vpack.c.b16 %v4487, %v4483
        %v7180 = vpack.c.b16 %v4492, %v4488
        %v7181 = vpack.c.b16 %v4493, %v4489
        %v7182 = vpack.c.b16 %v4494, %v4490
        %v7183 = vpack.c.b16 %v4495, %v4491
        %v7184 = vpack.c.b16 %v4500, %v4496
        %v7185 = vpack.c.b16 %v4501, %v4497
        %v7186 = vpack.c.b16 %v4502, %v4498
        %v7187 = vpack.c.b16 %v4503, %v4499
        %v7188 = vpack.c.b16 %v4508, %v4504
        %v7189 = vpack.c.b16 %v4509, %v4505
        %v7190 = vpack.c.b16 %v4510, %v4506
        %v7191 = vpack.c.b16 %v4511, %v4507
        %v7192 = vpack.c.b16 %v4516, %v4512
        %v7193 = vpack.c.b16 %v4517, %v4513
        %v7194 = vpack.c.b16 %v4518, %v4514
        %v7195 = vpack.c.b16 %v4519, %v4515
        %v7196 = vpack.c.b16 %v4524, %v4520
        %v7197 = vpack.c.b16 %v4525, %v4521
        %v7198 = vpack.c.b16 %v4526, %v4522
        %v7199 = vpack.c.b16 %v4527, %v4523
        %v7200 = vpack.c.b16 %v4532, %v4528
        %v7201 = vpack.c.b16 %v4533, %v4529
        %v7202 = vpack.c.b16 %v4534, %v4530
        %v7203 = vpack.c.b16 %v4535, %v4531
        %v7204 = vpack.c.b16 %v4540, %v4536
        %v7205 = vpack.c.b16 %v4541, %v4537
        %v7206 = vpack.c.b16 %v4542, %v4538
        %v7207 = vpack.c.b16 %v4543, %v4539
        %v7208 = vpack.c.b16 %v4548, %v4544
        %v7209 = vpack.c.b16 %v4549, %v4545
        %v7210 = vpack.c.b16 %v4550, %v4546
        %v7211 = vpack.c.b16 %v4551, %v4547
        %v7212 = vpack.c.b16 %v4556, %v4552
        %v7213 = vpack.c.b16 %v4557, %v4553
        %v7214 = vpack.c.b16 %v4558, %v4554
        %v7215 = vpack.c.b16 %v4559, %v4555
        %v7216 = vpack.c.b16 %v4564, %v4560
        %v7217 = vpack.c.b16 %v4565, %v4561
        %v7218 = vpack.c.b16 %v4566, %v4562
        %v7219 = vpack.c.b16 %v4567, %v4563
        %v7220 = vpack.c.b16 %v4572, %v4568
        %v7221 = vpack.c.b16 %v4573, %v4569
        %v7222 = vpack.c.b16 %v4574, %v4570
        %v7223 = vpack.c.b16 %v4575, %v4571
        %v7224 = vpack.c.b16 %v4580, %v4576
        %v7225 = vpack.c.b16 %v4581, %v4577
        %v7226 = vpack.c.b16 %v4582, %v4578
        %v7227 = vpack.c.b16 %v4583, %v4579
        %v7228 = vpack.c.b16 %v4588, %v4584
        %v7229 = vpack.c.b16 %v4589, %v4585
        %v7230 = vpack.c.b16 %v4590, %v4586
        %v7231 = vpack.c.b16 %v4591, %v4587
        %v7232 = vpack.c.b16 %v4596, %v4592
        %v7233 = vpack.c.b16 %v4597, %v4593
        %v7234 = vpack.c.b16 %v4598, %v4594
        %v7235 = vpack.c.b16 %v4599, %v4595
        %v7236 = vpack.c.b16 %v4604, %v4600
        %v7237 = vpack.c.b16 %v4605, %v4601
        %v7238 = vpack.c.b16 %v4606, %v4602
        %v7239 = vpack.c.b16 %v4607, %v4603
        %v7240 = vpack.c.b16 %v4612, %v4608
        %v7241 = vpack.c.b16 %v4613, %v4609
        %v7242 = vpack.c.b16 %v4614, %v4610
        %v7243 = vpack.c.b16 %v4615, %v4611
        %v7244 = vpack.c.b16 %v4620, %v4616
        %v7245 = vpack.c.b16 %v4621, %v4617
        %v7246 = vpack.c.b16 %v4622, %v4618
        %v7247 = vpack.c.b16 %v4623, %v4619
        %v7248 = vpack.c.b16 %v4628, %v4624
        %v7249 = vpack.c.b16 %v4629, %v4625
        %v7250 = vpack.c.b16 %v4630, %v4626
        %v7251 = vpack.c.b16 %v4631, %v4627
        %v7252 = vpack.c.b16 %v4636, %v4632
        %v7253 = vpack.c.b16 %v4637, %v4633
        %v7254 = vpack.c.b16 %v4638, %v4634
        %v7255 = vpack.c.b16 %v4639, %v4635
        %v7256 = vpack.c.b16 %v4644, %v4640
        %v7257 = vpack.c.b16 %v4645, %v4641
        %v7258 = vpack.c.b16 %v4646, %v4642
        %v7259 = vpack.c.b16 %v4647, %v4643
        %v7260 = vpack.c.b16 %v4652, %v4648
        %v7261 = vpack.c.b16 %v4653, %v4649
        %v7262 = vpack.c.b16 %v4654, %v4650
        %v7263 = vpack.c.b16 %v4655, %v4651
        %v7264 = vpack.c.b16 %v4660, %v4656
        %v7265 = vpack.c.b16 %v4661, %v4657
        %v7266 = vpack.c.b16 %v4662, %v4658
        %v7267 = vpack.c.b16 %v4663, %v4659
        %v7268 = vpack.c.b16 %v4668, %v4664
        %v7269 = vpack.c.b16 %v4669, %v4665
        %v7270 = vpack.c.b16 %v4670, %v4666
        %v7271 = vpack.c.b16 %v4671, %v4667
        %v7272 = vpack.c.b16 %v4676, %v4672
        %v7273 = vpack.c.b16 %v4677, %v4673
        %v7274 = vpack.c.b16 %v4678, %v4674
        %v7275 = vpack.c.b16 %v4679, %v4675
        %v7276 = vpack.c.b16 %v4684, %v4680
        %v7277 = vpack.c.b16 %v4685, %v4681
        %v7278 = vpack.c.b16 %v4686, %v4682
        %v7279 = vpack.c.b16 %v4687, %v4683
        %v7280 = vpack.c.b16 %v4692, %v4688
        %v7281 = vpack.c.b16 %v4693, %v4689
        %v7282 = vpack.c.b16 %v4694, %v4690
        %v7283 = vpack.c.b16 %v4695, %v4691
        %v7284 = vpack.c.b16 %v4700, %v4696
        %v7285 = vpack.c.b16 %v4701, %v4697
        %v7286 = vpack.c.b16 %v4702, %v4698
        %v7287 = vpack.c.b16 %v4703, %v4699
        %v7288 = vpack.c.b16 %v4708, %v4704
        %v7289 = vpack.c.b16 %v4709, %v4705
        %v7290 = vpack.c.b16 %v4710, %v4706
        %v7291 = vpack.c.b16 %v4711, %v4707
        %v7292 = vpack.c.b16 %v4716, %v4712
        %v7293 = vpack.c.b16 %v4717, %v4713
        %v7294 = vpack.c.b16 %v4718, %v4714
        %v7295 = vpack.c.b16 %v4719, %v4715
        %v7296 = vpack.c.b16 %v4724, %v4720
        %v7297 = vpack.c.b16 %v4725, %v4721
        %v7298 = vpack.c.b16 %v4726, %v4722
        %v7299 = vpack.c.b16 %v4727, %v4723
        %v7300 = vpack.c.b16 %v4732, %v4728
        %v7301 = vpack.c.b16 %v4733, %v4729
        %v7302 = vpack.c.b16 %v4734, %v4730
        %v7303 = vpack.c.b16 %v4735, %v4731
        %v7304 = vpack.c.b16 %v4740, %v4736
        %v7305 = vpack.c.b16 %v4741, %v4737
        %v7306 = vpack.c.b16 %v4742, %v4738
        %v7307 = vpack.c.b16 %v4743, %v4739
        %v7308 = vpack.c.b16 %v4748, %v4744
        %v7309 = vpack.c.b16 %v4749, %v4745
        %v7310 = vpack.c.b16 %v4750, %v4746
        %v7311 = vpack.c.b16 %v4751, %v4747
        %v7312 = vpack.c.b16 %v4756, %v4752
        %v7313 = vpack.c.b16 %v4757, %v4753
        %v7314 = vpack.c.b16 %v4758, %v4754
        %v7315 = vpack.c.b16 %v4759, %v4755
        %v7316 = vpack.c.b16 %v4764, %v4760
        %v7317 = vpack.c.b16 %v4765, %v4761
        %v7318 = vpack.c.b16 %v4766, %v4762
        %v7319 = vpack.c.b16 %v4767, %v4763
        %v7320 = vpack.c.b16 %v4772, %v4768
        %v7321 = vpack.c.b16 %v4773, %v4769
        %v7322 = vpack.c.b16 %v4774, %v4770
        %v7323 = vpack.c.b16 %v4775, %v4771
        %v7324 = vpack.c.b16 %v4780, %v4776
        %v7325 = vpack.c.b16 %v4781, %v4777
        %v7326 = vpack.c.b16 %v4782, %v4778
        %v7327 = vpack.c.b16 %v4783, %v4779
        %v7328 = vpack.c.b16 %v4788, %v4784
        %v7329 = vpack.c.b16 %v4789, %v4785
        %v7330 = vpack.c.b16 %v4790, %v4786
        %v7331 = vpack.c.b16 %v4791, %v4787
        %v7332 = vpack.c.b16 %v4796, %v4792
        %v7333 = vpack.c.b16 %v4797, %v4793
        %v7334 = vpack.c.b16 %v4798, %v4794
        %v7335 = vpack.c.b16 %v4799, %v4795
        %v7336 = vpack.c.b16 %v4804, %v4800
        %v7337 = vpack.c.b16 %v4805, %v4801
        %v7338 = vpack.c.b16 %v4806, %v4802
        %v7339 = vpack.c.b16 %v4807, %v4803
        %v7340 = vpack.c.b16 %v4812, %v4808
        %v7341 = vpack.c.b16 %v4813, %v4809
        %v7342 = vpack.c.b16 %v4814, %v4810
        %v7343 = vpack.c.b16 %v4815, %v4811
        %v7344 = vpack.c.b16 %v4820, %v4816
        %v7345 = vpack.c.b16 %v4821, %v4817
        %v7346 = vpack.c.b16 %v4822, %v4818
        %v7347 = vpack.c.b16 %v4823, %v4819
        %v7348 = vpack.c.b16 %v4828, %v4824
        %v7349 = vpack.c.b16 %v4829, %v4825
        %v7350 = vpack.c.b16 %v4830, %v4826
        %v7351 = vpack.c.b16 %v4831, %v4827
        %v7352 = vpack.c.b16 %v4836, %v4832
        %v7353 = vpack.c.b16 %v4837, %v4833
        %v7354 = vpack.c.b16 %v4838, %v4834
        %v7355 = vpack.c.b16 %v4839, %v4835
        %v7356 = vpack.c.b16 %v4844, %v4840
        %v7357 = vpack.c.b16 %v4845, %v4841
        %v7358 = vpack.c.b16 %v4846, %v4842
        %v7359 = vpack.c.b16 %v4847, %v4843
        %v7360 = vpack.c.b16 %v4852, %v4848
        %v7361 = vpack.c.b16 %v4853, %v4849
        %v7362 = vpack.c.b16 %v4854, %v4850
        %v7363 = vpack.c.b16 %v4855, %v4851
        %v7364 = vpack.c.b16 %v4860, %v4856
        %v7365 = vpack.c.b16 %v4861, %v4857
        %v7366 = vpack.c.b16 %v4862, %v4858
        %v7367 = vpack.c.b16 %v4863, %v4859
        %v7368 = vpack.c.b16 %v4868, %v4864
        %v7369 = vpack.c.b16 %v4869, %v4865
        %v7370 = vpack.c.b16 %v4870, %v4866
        %v7371 = vpack.c.b16 %v4871, %v4867
        %v7372 = vpack.c.b16 %v4876, %v4872
        %v7373 = vpack.c.b16 %v4877, %v4873
        %v7374 = vpack.c.b16 %v4878, %v4874
        %v7375 = vpack.c.b16 %v4879, %v4875
        %v7376 = vpack.c.b16 %v4884, %v4880
        %v7377 = vpack.c.b16 %v4885, %v4881
        %v7378 = vpack.c.b16 %v4886, %v4882
        %v7379 = vpack.c.b16 %v4887, %v4883
        %v7380 = vpack.c.b16 %v4892, %v4888
        %v7381 = vpack.c.b16 %v4893, %v4889
        %v7382 = vpack.c.b16 %v4894, %v4890
        %v7383 = vpack.c.b16 %v4895, %v4891
        %v7384 = vpack.c.b16 %v4900, %v4896
        %v7385 = vpack.c.b16 %v4901, %v4897
        %v7386 = vpack.c.b16 %v4902, %v4898
        %v7387 = vpack.c.b16 %v4903, %v4899
        %v7388 = vpack.c.b16 %v4908, %v4904
        %v7389 = vpack.c.b16 %v4909, %v4905
        %v7390 = vpack.c.b16 %v4910, %v4906
        %v7391 = vpack.c.b16 %v4911, %v4907
        %v7392 = vpack.c.b16 %v4916, %v4912
        %v7393 = vpack.c.b16 %v4917, %v4913
        %v7394 = vpack.c.b16 %v4918, %v4914
        %v7395 = vpack.c.b16 %v4919, %v4915
        %v7396 = vpack.c.b16 %v4924, %v4920
        %v7397 = vpack.c.b16 %v4925, %v4921
        %v7398 = vpack.c.b16 %v4926, %v4922
        %v7399 = vpack.c.b16 %v4927, %v4923
        %v7400 = vpack.c.b16 %v4932, %v4928
        %v7401 = vpack.c.b16 %v4933, %v4929
        %v7402 = vpack.c.b16 %v4934, %v4930
        %v7403 = vpack.c.b16 %v4935, %v4931
        %v7404 = vpack.c.b16 %v4940, %v4936
        %v7405 = vpack.c.b16 %v4941, %v4937
        %v7406 = vpack.c.b16 %v4942, %v4938
        %v7407 = vpack.c.b16 %v4943, %v4939
        %v7408 = vpack.c.b16 %v4948, %v4944
        %v7409 = vpack.c.b16 %v4949, %v4945
        %v7410 = vpack.c.b16 %v4950, %v4946
        %v7411 = vpack.c.b16 %v4951, %v4947
        %v7412 = vpack.c.b16 %v4956, %v4952
        %v7413 = vpack.c.b16 %v4957, %v4953
        %v7414 = vpack.c.b16 %v4958, %v4954
        %v7415 = vpack.c.b16 %v4959, %v4955
        %v7416 = vpack.c.b16 %v4964, %v4960
        %v7417 = vpack.c.b16 %v4965, %v4961
        %v7418 = vpack.c.b16 %v4966, %v4962
        %v7419 = vpack.c.b16 %v4967, %v4963
        %v7420 = vpack.c.b16 %v4972, %v4968
        %v7421 = vpack.c.b16 %v4973, %v4969
        %v7422 = vpack.c.b16 %v4974, %v4970
        %v7423 = vpack.c.b16 %v4975, %v4971
        %v7424 = vpack.c.b16 %v4980, %v4976
        %v7425 = vpack.c.b16 %v4981, %v4977
        %v7426 = vpack.c.b16 %v4982, %v4978
        %v7427 = vpack.c.b16 %v4983, %v4979
        %v7428 = vpack.c.b16 %v4988, %v4984
        %v7429 = vpack.c.b16 %v4989, %v4985
        %v7430 = vpack.c.b16 %v4990, %v4986
        %v7431 = vpack.c.b16 %v4991, %v4987
        %v7432 = vpack.c.b16 %v4996, %v4992
        %v7433 = vpack.c.b16 %v4997, %v4993
        %v7434 = vpack.c.b16 %v4998, %v4994
        %v7435 = vpack.c.b16 %v4999, %v4995
        %v7436 = vpack.c.b16 %v5004, %v5000
        %v7437 = vpack.c.b16 %v5005, %v5001
        %v7438 = vpack.c.b16 %v5006, %v5002
        %v7439 = vpack.c.b16 %v5007, %v5003
        %v7440 = vpack.c.b16 %v5012, %v5008
        %v7441 = vpack.c.b16 %v5013, %v5009
        %v7442 = vpack.c.b16 %v5014, %v5010
        %v7443 = vpack.c.b16 %v5015, %v5011
        %v7444 = vpack.c.b16 %v5020, %v5016
        %v7445 = vpack.c.b16 %v5021, %v5017
        %v7446 = vpack.c.b16 %v5022, %v5018
        %v7447 = vpack.c.b16 %v5023, %v5019
        %v7448 = vpack.c.b16 %v5028, %v5024
        %v7449 = vpack.c.b16 %v5029, %v5025
        %v7450 = vpack.c.b16 %v5030, %v5026
        %v7451 = vpack.c.b16 %v5031, %v5027
        %v7452 = vpack.c.b16 %v5036, %v5032
        %v7453 = vpack.c.b16 %v5037, %v5033
        %v7454 = vpack.c.b16 %v5038, %v5034
        %v7455 = vpack.c.b16 %v5039, %v5035
        %v7456 = vpack.c.b16 %v5044, %v5040
        %v7457 = vpack.c.b16 %v5045, %v5041
        %v7458 = vpack.c.b16 %v5046, %v5042
        %v7459 = vpack.c.b16 %v5047, %v5043
        %v7460 = vpack.c.b16 %v5052, %v5048
        %v7461 = vpack.c.b16 %v5053, %v5049
        %v7462 = vpack.c.b16 %v5054, %v5050
        %v7463 = vpack.c.b16 %v5055, %v5051
        %v7464 = vpack.c.b16 %v5060, %v5056
        %v7465 = vpack.c.b16 %v5061, %v5057
        %v7466 = vpack.c.b16 %v5062, %v5058
        %v7467 = vpack.c.b16 %v5063, %v5059
        %v7468 = vpack.c.b16 %v5068, %v5064
        %v7469 = vpack.c.b16 %v5069, %v5065
        %v7470 = vpack.c.b16 %v5070, %v5066
        %v7471 = vpack.c.b16 %v5071, %v5067
        %v7472 = vpack.c.b16 %v5076, %v5072
        %v7473 = vpack.c.b16 %v5077, %v5073
        %v7474 = vpack.c.b16 %v5078, %v5074
        %v7475 = vpack.c.b16 %v5079, %v5075
        %v7476 = vpack.c.b16 %v5084, %v5080
        %v7477 = vpack.c.b16 %v5085, %v5081
        %v7478 = vpack.c.b16 %v5086, %v5082
        %v7479 = vpack.c.b16 %v5087, %v5083
        %v7480 = vpack.c.b16 %v5092, %v5088
        %v7481 = vpack.c.b16 %v5093, %v5089
        %v7482 = vpack.c.b16 %v5094, %v5090
        %v7483 = vpack.c.b16 %v5095, %v5091
        %v7484 = vpack.c.b16 %v5100, %v5096
        %v7485 = vpack.c.b16 %v5101, %v5097
        %v7486 = vpack.c.b16 %v5102, %v5098
        %v7487 = vpack.c.b16 %v5103, %v5099
        %v7488 = vpack.c.b16 %v5108, %v5104
        %v7489 = vpack.c.b16 %v5109, %v5105
        %v7490 = vpack.c.b16 %v5110, %v5106
        %v7491 = vpack.c.b16 %v5111, %v5107
        %v7492 = vpack.c.b16 %v5116, %v5112
        %v7493 = vpack.c.b16 %v5117, %v5113
        %v7494 = vpack.c.b16 %v5118, %v5114
        %v7495 = vpack.c.b16 %v5119, %v5115
        %v7496 = vpack.c.b16 %v5124, %v5120
        %v7497 = vpack.c.b16 %v5125, %v5121
        %v7498 = vpack.c.b16 %v5126, %v5122
        %v7499 = vpack.c.b16 %v5127, %v5123
        %v7500 = vpack.c.b16 %v5132, %v5128
        %v7501 = vpack.c.b16 %v5133, %v5129
        %v7502 = vpack.c.b16 %v5134, %v5130
        %v7503 = vpack.c.b16 %v5135, %v5131
        %v7504 = vpack.c.b16 %v5140, %v5136
        %v7505 = vpack.c.b16 %v5141, %v5137
        %v7506 = vpack.c.b16 %v5142, %v5138
        %v7507 = vpack.c.b16 %v5143, %v5139
        %v7508 = vpack.c.b16 %v5148, %v5144
        %v7509 = vpack.c.b16 %v5149, %v5145
        %v7510 = vpack.c.b16 %v5150, %v5146
        %v7511 = vpack.c.b16 %v5151, %v5147
        %v7512 = vpack.c.b16 %v5156, %v5152
        %v7513 = vpack.c.b16 %v5157, %v5153
        %v7514 = vpack.c.b16 %v5158, %v5154
        %v7515 = vpack.c.b16 %v5159, %v5155
        %v7516 = vpack.c.b16 %v5164, %v5160
        %v7517 = vpack.c.b16 %v5165, %v5161
        %v7518 = vpack.c.b16 %v5166, %v5162
        %v7519 = vpack.c.b16 %v5167, %v5163
        %v7520 = vpack.c.b16 %v5172, %v5168
        %v7521 = vpack.c.b16 %v5173, %v5169
        %v7522 = vpack.c.b16 %v5174, %v5170
        %v7523 = vpack.c.b16 %v5175, %v5171
        %v7524 = vpack.c.b16 %v5180, %v5176
        %v7525 = vpack.c.b16 %v5181, %v5177
        %v7526 = vpack.c.b16 %v5182, %v5178
        %v7527 = vpack.c.b16 %v5183, %v5179
        %v7528 = vpack.c.b16 %v5188, %v5184
        %v7529 = vpack.c.b16 %v5189, %v5185
        %v7530 = vpack.c.b16 %v5190, %v5186
        %v7531 = vpack.c.b16 %v5191, %v5187
        %v7532 = vpack.c.b16 %v5196, %v5192
        %v7533 = vpack.c.b16 %v5197, %v5193
        %v7534 = vpack.c.b16 %v5198, %v5194
        %v7535 = vpack.c.b16 %v5199, %v5195
        %v7536 = vpack.c.b16 %v5204, %v5200
        %v7537 = vpack.c.b16 %v5205, %v5201
        %v7538 = vpack.c.b16 %v5206, %v5202
        %v7539 = vpack.c.b16 %v5207, %v5203
        %v7540 = vpack.c.b16 %v5212, %v5208
        %v7541 = vpack.c.b16 %v5213, %v5209
        %v7542 = vpack.c.b16 %v5214, %v5210
        %v7543 = vpack.c.b16 %v5215, %v5211
        %v7544 = vpack.c.b16 %v5220, %v5216
        %v7545 = vpack.c.b16 %v5221, %v5217
        %v7546 = vpack.c.b16 %v5222, %v5218
        %v7547 = vpack.c.b16 %v5223, %v5219
        %v7548 = vpack.c.b16 %v5228, %v5224
        %v7549 = vpack.c.b16 %v5229, %v5225
        %v7550 = vpack.c.b16 %v5230, %v5226
        %v7551 = vpack.c.b16 %v5231, %v5227
        %v7552 = vpack.c.b16 %v5236, %v5232
        %v7553 = vpack.c.b16 %v5237, %v5233
        %v7554 = vpack.c.b16 %v5238, %v5234
        %v7555 = vpack.c.b16 %v5239, %v5235
        %v7556 = vpack.c.b16 %v5244, %v5240
        %v7557 = vpack.c.b16 %v5245, %v5241
        %v7558 = vpack.c.b16 %v5246, %v5242
        %v7559 = vpack.c.b16 %v5247, %v5243
        %v7560 = vpack.c.b16 %v5252, %v5248
        %v7561 = vpack.c.b16 %v5253, %v5249
        %v7562 = vpack.c.b16 %v5254, %v5250
        %v7563 = vpack.c.b16 %v5255, %v5251
        %v7564 = vpack.c.b16 %v5260, %v5256
        %v7565 = vpack.c.b16 %v5261, %v5257
        %v7566 = vpack.c.b16 %v5262, %v5258
        %v7567 = vpack.c.b16 %v5263, %v5259
        %v7568 = vpack.c.b16 %v5268, %v5264
        %v7569 = vpack.c.b16 %v5269, %v5265
        %v7570 = vpack.c.b16 %v5270, %v5266
        %v7571 = vpack.c.b16 %v5271, %v5267
        %v7572 = vpack.c.b16 %v5276, %v5272
        %v7573 = vpack.c.b16 %v5277, %v5273
        %v7574 = vpack.c.b16 %v5278, %v5274
        %v7575 = vpack.c.b16 %v5279, %v5275
        %v7576 = vpack.c.b16 %v5284, %v5280
        %v7577 = vpack.c.b16 %v5285, %v5281
        %v7578 = vpack.c.b16 %v5286, %v5282
        %v7579 = vpack.c.b16 %v5287, %v5283
        %v7580 = vpack.c.b16 %v5292, %v5288
        %v7581 = vpack.c.b16 %v5293, %v5289
        %v7582 = vpack.c.b16 %v5294, %v5290
        %v7583 = vpack.c.b16 %v5295, %v5291
        %v7584 = vpack.c.b16 %v5300, %v5296
        %v7585 = vpack.c.b16 %v5301, %v5297
        %v7586 = vpack.c.b16 %v5302, %v5298
        %v7587 = vpack.c.b16 %v5303, %v5299
        %v7588 = vpack.c.b16 %v5308, %v5304
        %v7589 = vpack.c.b16 %v5309, %v5305
        %v7590 = vpack.c.b16 %v5310, %v5306
        %v7591 = vpack.c.b16 %v5311, %v5307
        %v7592 = vpack.c.b16 %v5316, %v5312
        %v7593 = vpack.c.b16 %v5317, %v5313
        %v7594 = vpack.c.b16 %v5318, %v5314
        %v7595 = vpack.c.b16 %v5319, %v5315
        %v7596 = vpack.c.b16 %v5324, %v5320
        %v7597 = vpack.c.b16 %v5325, %v5321
        %v7598 = vpack.c.b16 %v5326, %v5322
        %v7599 = vpack.c.b16 %v5327, %v5323
        %v7600 = vpack.c.b16 %v5332, %v5328
        %v7601 = vpack.c.b16 %v5333, %v5329
        %v7602 = vpack.c.b16 %v5334, %v5330
        %v7603 = vpack.c.b16 %v5335, %v5331
        %v7604 = vpack.c.b16 %v5340, %v5336
        %v7605 = vpack.c.b16 %v5341, %v5337
        %v7606 = vpack.c.b16 %v5342, %v5338
        %v7607 = vpack.c.b16 %v5343, %v5339
        %v7608 = vpack.c.b16 %v5348, %v5344
        %v7609 = vpack.c.b16 %v5349, %v5345
        %v7610 = vpack.c.b16 %v5350, %v5346
        %v7611 = vpack.c.b16 %v5351, %v5347
        %v7612 = vpack.c.b16 %v5356, %v5352
        %v7613 = vpack.c.b16 %v5357, %v5353
        %v7614 = vpack.c.b16 %v5358, %v5354
        %v7615 = vpack.c.b16 %v5359, %v5355
        %v7616 = vpack.c.b16 %v5364, %v5360
        %v7617 = vpack.c.b16 %v5365, %v5361
        %v7618 = vpack.c.b16 %v5366, %v5362
        %v7619 = vpack.c.b16 %v5367, %v5363
        %v7620 = vpack.c.b16 %v5372, %v5368
        %v7621 = vpack.c.b16 %v5373, %v5369
        %v7622 = vpack.c.b16 %v5374, %v5370
        %v7623 = vpack.c.b16 %v5375, %v5371
        %v7624 = vpack.c.b16 %v5380, %v5376
        %v7625 = vpack.c.b16 %v5381, %v5377
        %v7626 = vpack.c.b16 %v5382, %v5378
        %v7627 = vpack.c.b16 %v5383, %v5379
        %v7628 = vpack.c.b16 %v5388, %v5384
        %v7629 = vpack.c.b16 %v5389, %v5385
        %v7630 = vpack.c.b16 %v5390, %v5386
        %v7631 = vpack.c.b16 %v5391, %v5387
        %v7632 = vpack.c.b16 %v5396, %v5392
        %v7633 = vpack.c.b16 %v5397, %v5393
        %v7634 = vpack.c.b16 %v5398, %v5394
        %v7635 = vpack.c.b16 %v5399, %v5395
        %v7636 = vpack.c.b16 %v5404, %v5400
        %v7637 = vpack.c.b16 %v5405, %v5401
        %v7638 = vpack.c.b16 %v5406, %v5402
        %v7639 = vpack.c.b16 %v5407, %v5403
        %v7640 = vpack.c.b16 %v5412, %v5408
        %v7641 = vpack.c.b16 %v5413, %v5409
        %v7642 = vpack.c.b16 %v5414, %v5410
        %v7643 = vpack.c.b16 %v5415, %v5411
        %v7644 = vpack.c.b16 %v5420, %v5416
        %v7645 = vpack.c.b16 %v5421, %v5417
        %v7646 = vpack.c.b16 %v5422, %v5418
        %v7647 = vpack.c.b16 %v5423, %v5419
        %v7648 = vpack.c.b16 %v5428, %v5424
        %v7649 = vpack.c.b16 %v5429, %v5425
        %v7650 = vpack.c.b16 %v5430, %v5426
        %v7651 = vpack.c.b16 %v5431, %v5427
        %v7652 = vpack.c.b16 %v5436, %v5432
        %v7653 = vpack.c.b16 %v5437, %v5433
        %v7654 = vpack.c.b16 %v5438, %v5434
        %v7655 = vpack.c.b16 %v5439, %v5435
        %v7656 = vpack.c.b16 %v5444, %v5440
        %v7657 = vpack.c.b16 %v5445, %v5441
        %v7658 = vpack.c.b16 %v5446, %v5442
        %v7659 = vpack.c.b16 %v5447, %v5443
        %v7660 = vpack.c.b16 %v5452, %v5448
        %v7661 = vpack.c.b16 %v5453, %v5449
        %v7662 = vpack.c.b16 %v5454, %v5450
        %v7663 = vpack.c.b16 %v5455, %v5451
        %v7664 = vpack.c.b16 %v5460, %v5456
        %v7665 = vpack.c.b16 %v5461, %v5457
        %v7666 = vpack.c.b16 %v5462, %v5458
        %v7667 = vpack.c.b16 %v5463, %v5459
        %v7668 = vpack.c.b16 %v5468, %v5464
        %v7669 = vpack.c.b16 %v5469, %v5465
        %v7670 = vpack.c.b16 %v5470, %v5466
        %v7671 = vpack.c.b16 %v5471, %v5467
        %v7672 = vpack.c.b16 %v5476, %v5472
        %v7673 = vpack.c.b16 %v5477, %v5473
        %v7674 = vpack.c.b16 %v5478, %v5474
        %v7675 = vpack.c.b16 %v5479, %v5475
        %v7676 = vpack.c.b16 %v5484, %v5480
        %v7677 = vpack.c.b16 %v5485, %v5481
        %v7678 = vpack.c.b16 %v5486, %v5482
        %v7679 = vpack.c.b16 %v5487, %v5483
        %v7680 = vpack.c.b16 %v5492, %v5488
        %v7681 = vpack.c.b16 %v5493, %v5489
        %v7682 = vpack.c.b16 %v5494, %v5490
        %v7683 = vpack.c.b16 %v5495, %v5491
        %v7684 = vpack.c.b16 %v5500, %v5496
        %v7685 = vpack.c.b16 %v5501, %v5497
        %v7686 = vpack.c.b16 %v5502, %v5498
        %v7687 = vpack.c.b16 %v5503, %v5499
        %v7688 = vpack.c.b16 %v5508, %v5504
        %v7689 = vpack.c.b16 %v5509, %v5505
        %v7690 = vpack.c.b16 %v5510, %v5506
        %v7691 = vpack.c.b16 %v5511, %v5507
        %v7692 = vpack.c.b16 %v5516, %v5512
        %v7693 = vpack.c.b16 %v5517, %v5513
        %v7694 = vpack.c.b16 %v5518, %v5514
        %v7695 = vpack.c.b16 %v5519, %v5515
        %v7696 = vpack.c.b16 %v5524, %v5520
        %v7697 = vpack.c.b16 %v5525, %v5521
        %v7698 = vpack.c.b16 %v5526, %v5522
        %v7699 = vpack.c.b16 %v5527, %v5523
        %v7700 = vpack.c.b16 %v5532, %v5528
        %v7701 = vpack.c.b16 %v5533, %v5529
        %v7702 = vpack.c.b16 %v5534, %v5530
        %v7703 = vpack.c.b16 %v5535, %v5531
        %v7704 = vpack.c.b16 %v5540, %v5536
        %v7705 = vpack.c.b16 %v5541, %v5537
        %v7706 = vpack.c.b16 %v5542, %v5538
        %v7707 = vpack.c.b16 %v5543, %v5539
        %v7708 = vpack.c.b16 %v5548, %v5544
        %v7709 = vpack.c.b16 %v5549, %v5545
        %v7710 = vpack.c.b16 %v5550, %v5546
        %v7711 = vpack.c.b16 %v5551, %v5547
        %v7712 = vpack.c.b16 %v5556, %v5552
        %v7713 = vpack.c.b16 %v5557, %v5553
        %v7714 = vpack.c.b16 %v5558, %v5554
        %v7715 = vpack.c.b16 %v5559, %v5555
        %v7716 = vpack.c.b16 %v5564, %v5560
        %v7717 = vpack.c.b16 %v5565, %v5561
        %v7718 = vpack.c.b16 %v5566, %v5562
        %v7719 = vpack.c.b16 %v5567, %v5563
        %v7720 = vpack.c.b16 %v5572, %v5568
        %v7721 = vpack.c.b16 %v5573, %v5569
        %v7722 = vpack.c.b16 %v5574, %v5570
        %v7723 = vpack.c.b16 %v5575, %v5571
        %v7724 = vpack.c.b16 %v5580, %v5576
        %v7725 = vpack.c.b16 %v5581, %v5577
        %v7726 = vpack.c.b16 %v5582, %v5578
        %v7727 = vpack.c.b16 %v5583, %v5579
        %v7728 = vpack.c.b16 %v5588, %v5584
        %v7729 = vpack.c.b16 %v5589, %v5585
        %v7730 = vpack.c.b16 %v5590, %v5586
        %v7731 = vpack.c.b16 %v5591, %v5587
        %v7732 = vpack.c.b16 %v5596, %v5592
        %v7733 = vpack.c.b16 %v5597, %v5593
        %v7734 = vpack.c.b16 %v5598, %v5594
        %v7735 = vpack.c.b16 %v5599, %v5595
        %v7736 = vpack.c.b16 %v5604, %v5600
        %v7737 = vpack.c.b16 %v5605, %v5601
        %v7738 = vpack.c.b16 %v5606, %v5602
        %v7739 = vpack.c.b16 %v5607, %v5603
        %v7740 = vpack.c.b16 %v5612, %v5608
        %v7741 = vpack.c.b16 %v5613, %v5609
        %v7742 = vpack.c.b16 %v5614, %v5610
        %v7743 = vpack.c.b16 %v5615, %v5611
        %v7744 = vpack.c.b16 %v5620, %v5616
        %v7745 = vpack.c.b16 %v5621, %v5617
        %v7746 = vpack.c.b16 %v5622, %v5618
        %v7747 = vpack.c.b16 %v5623, %v5619
        %v7748 = vpack.c.b16 %v5628, %v5624
        %v7749 = vpack.c.b16 %v5629, %v5625
        %v7750 = vpack.c.b16 %v5630, %v5626
        %v7751 = vpack.c.b16 %v5631, %v5627
        %v7752 = vpack.c.b16 %v5636, %v5632
        %v7753 = vpack.c.b16 %v5637, %v5633
        %v7754 = vpack.c.b16 %v5638, %v5634
        %v7755 = vpack.c.b16 %v5639, %v5635
        %v7756 = vpack.c.b16 %v5644, %v5640
        %v7757 = vpack.c.b16 %v5645, %v5641
        %v7758 = vpack.c.b16 %v5646, %v5642
        %v7759 = vpack.c.b16 %v5647, %v5643
        %v7760 = vpack.c.b16 %v5652, %v5648
        %v7761 = vpack.c.b16 %v5653, %v5649
        %v7762 = vpack.c.b16 %v5654, %v5650
        %v7763 = vpack.c.b16 %v5655, %v5651
        %v7764 = vpack.c.b16 %v5660, %v5656
        %v7765 = vpack.c.b16 %v5661, %v5657
        %v7766 = vpack.c.b16 %v5662, %v5658
        %v7767 = vpack.c.b16 %v5663, %v5659
        %v7768 = vpack.c.b16 %v5668, %v5664
        %v7769 = vpack.c.b16 %v5669, %v5665
        %v7770 = vpack.c.b16 %v5670, %v5666
        %v7771 = vpack.c.b16 %v5671, %v5667
        %v7772 = vpack.c.b16 %v5676, %v5672
        %v7773 = vpack.c.b16 %v5677, %v5673
        %v7774 = vpack.c.b16 %v5678, %v5674
        %v7775 = vpack.c.b16 %v5679, %v5675
        %v7776 = vpack.c.b16 %v5684, %v5680
        %v7777 = vpack.c.b16 %v5685, %v5681
        %v7778 = vpack.c.b16 %v5686, %v5682
        %v7779 = vpack.c.b16 %v5687, %v5683
        %v7780 = vpack.c.b16 %v5692, %v5688
        %v7781 = vpack.c.b16 %v5693, %v5689
        %v7782 = vpack.c.b16 %v5694, %v5690
        %v7783 = vpack.c.b16 %v5695, %v5691
        %v7784 = vpack.c.b16 %v5700, %v5696
        %v7785 = vpack.c.b16 %v5701, %v5697
        %v7786 = vpack.c.b16 %v5702, %v5698
        %v7787 = vpack.c.b16 %v5703, %v5699
        %v7788 = vpack.c.b16 %v5708, %v5704
        %v7789 = vpack.c.b16 %v5709, %v5705
        %v7790 = vpack.c.b16 %v5710, %v5706
        %v7791 = vpack.c.b16 %v5711, %v5707
        %v7792 = vpack.c.b16 %v5716, %v5712
        %v7793 = vpack.c.b16 %v5717, %v5713
        %v7794 = vpack.c.b16 %v5718, %v5714
        %v7795 = vpack.c.b16 %v5719, %v5715
        %v7796 = vpack.c.b16 %v5724, %v5720
        %v7797 = vpack.c.b16 %v5725, %v5721
        %v7798 = vpack.c.b16 %v5726, %v5722
        %v7799 = vpack.c.b16 %v5727, %v5723
        %v7800 = vpack.c.b16 %v5732, %v5728
        %v7801 = vpack.c.b16 %v5733, %v5729
        %v7802 = vpack.c.b16 %v5734, %v5730
        %v7803 = vpack.c.b16 %v5735, %v5731
        %v7804 = vpack.c.b16 %v5740, %v5736
        %v7805 = vpack.c.b16 %v5741, %v5737
        %v7806 = vpack.c.b16 %v5742, %v5738
        %v7807 = vpack.c.b16 %v5743, %v5739
        %v7808 = vpack.c.b16 %v5748, %v5744
        %v7809 = vpack.c.b16 %v5749, %v5745
        %v7810 = vpack.c.b16 %v5750, %v5746
        %v7811 = vpack.c.b16 %v5751, %v5747
        %v7812 = vpack.c.b16 %v5756, %v5752
        %v7813 = vpack.c.b16 %v5757, %v5753
        %v7814 = vpack.c.b16 %v5758, %v5754
        %v7815 = vpack.c.b16 %v5759, %v5755
        %v7816 = vpack.c.b16 %v5764, %v5760
        %v7817 = vpack.c.b16 %v5765, %v5761
        %v7818 = vpack.c.b16 %v5766, %v5762
        %v7819 = vpack.c.b16 %v5767, %v5763
        %v7820 = vpack.c.b16 %v5772, %v5768
        %v7821 = vpack.c.b16 %v5773, %v5769
        %v7822 = vpack.c.b16 %v5774, %v5770
        %v7823 = vpack.c.b16 %v5775, %v5771
        %v7824 = vpack.c.b16 %v5780, %v5776
        %v7825 = vpack.c.b16 %v5781, %v5777
        %v7826 = vpack.c.b16 %v5782, %v5778
        %v7827 = vpack.c.b16 %v5783, %v5779
        %v7828 = vpack.c.b16 %v5788, %v5784
        %v7829 = vpack.c.b16 %v5789, %v5785
        %v7830 = vpack.c.b16 %v5790, %v5786
        %v7831 = vpack.c.b16 %v5791, %v5787
        %v7832 = vpack.c.b16 %v5796, %v5792
        %v7833 = vpack.c.b16 %v5797, %v5793
        %v7834 = vpack.c.b16 %v5798, %v5794
        %v7835 = vpack.c.b16 %v5799, %v5795
        %v7836 = vpack.c.b16 %v5804, %v5800
        %v7837 = vpack.c.b16 %v5805, %v5801
        %v7838 = vpack.c.b16 %v5806, %v5802
        %v7839 = vpack.c.b16 %v5807, %v5803
        %v7840 = vpack.c.b16 %v5812, %v5808
        %v7841 = vpack.c.b16 %v5813, %v5809
        %v7842 = vpack.c.b16 %v5814, %v5810
        %v7843 = vpack.c.b16 %v5815, %v5811
        %v7844 = vpack.c.b16 %v5820, %v5816
        %v7845 = vpack.c.b16 %v5821, %v5817
        %v7846 = vpack.c.b16 %v5822, %v5818
        %v7847 = vpack.c.b16 %v5823, %v5819
        %v7848 = vpack.c.b16 %v5828, %v5824
        %v7849 = vpack.c.b16 %v5829, %v5825
        %v7850 = vpack.c.b16 %v5830, %v5826
        %v7851 = vpack.c.b16 %v5831, %v5827
        %v7852 = vpack.c.b16 %v5836, %v5832
        %v7853 = vpack.c.b16 %v5837, %v5833
        %v7854 = vpack.c.b16 %v5838, %v5834
        %v7855 = vpack.c.b16 %v5839, %v5835
        %v7856 = vpack.c.b16 %v5844, %v5840
        %v7857 = vpack.c.b16 %v5845, %v5841
        %v7858 = vpack.c.b16 %v5846, %v5842
        %v7859 = vpack.c.b16 %v5847, %v5843
        %v7860 = vpack.c.b16 %v5852, %v5848
        %v7861 = vpack.c.b16 %v5853, %v5849
        %v7862 = vpack.c.b16 %v5854, %v5850
        %v7863 = vpack.c.b16 %v5855, %v5851
        %v7864 = vpack.c.b16 %v5860, %v5856
        %v7865 = vpack.c.b16 %v5861, %v5857
        %v7866 = vpack.c.b16 %v5862, %v5858
        %v7867 = vpack.c.b16 %v5863, %v5859
        %v7868 = vpack.c.b16 %v5868, %v5864
        %v7869 = vpack.c.b16 %v5869, %v5865
        %v7870 = vpack.c.b16 %v5870, %v5866
        %v7871 = vpack.c.b16 %v5871, %v5867
        %v7872 = vpack.c.b16 %v5876, %v5872
        %v7873 = vpack.c.b16 %v5877, %v5873
        %v7874 = vpack.c.b16 %v5878, %v5874
        %v7875 = vpack.c.b16 %v5879, %v5875
        %v7876 = vpack.c.b16 %v5884, %v5880
        %v7877 = vpack.c.b16 %v5885, %v5881
        %v7878 = vpack.c.b16 %v5886, %v5882
        %v7879 = vpack.c.b16 %v5887, %v5883
        %v7880 = vpack.c.b16 %v5892, %v5888
        %v7881 = vpack.c.b16 %v5893, %v5889
        %v7882 = vpack.c.b16 %v5894, %v5890
        %v7883 = vpack.c.b16 %v5895, %v5891
        %v7884 = vpack.c.b16 %v5900, %v5896
        %v7885 = vpack.c.b16 %v5901, %v5897
        %v7886 = vpack.c.b16 %v5902, %v5898
        %v7887 = vpack.c.b16 %v5903, %v5899
        %v7888 = vpack.c.b16 %v5908, %v5904
        %v7889 = vpack.c.b16 %v5909, %v5905
        %v7890 = vpack.c.b16 %v5910, %v5906
        %v7891 = vpack.c.b16 %v5911, %v5907
        %v7892 = vpack.c.b16 %v5916, %v5912
        %v7893 = vpack.c.b16 %v5917, %v5913
        %v7894 = vpack.c.b16 %v5918, %v5914
        %v7895 = vpack.c.b16 %v5919, %v5915
        %v7896 = vpack.c.b16 %v5924, %v5920
        %v7897 = vpack.c.b16 %v5925, %v5921
        %v7898 = vpack.c.b16 %v5926, %v5922
        %v7899 = vpack.c.b16 %v5927, %v5923
        %v7900 = vpack.c.b16 %v5932, %v5928
        %v7901 = vpack.c.b16 %v5933, %v5929
        %v7902 = vpack.c.b16 %v5934, %v5930
        %v7903 = vpack.c.b16 %v5935, %v5931
        %v7904 = vpack.c.b16 %v5940, %v5936
        %v7905 = vpack.c.b16 %v5941, %v5937
        %v7906 = vpack.c.b16 %v5942, %v5938
        %v7907 = vpack.c.b16 %v5943, %v5939
        %v7908 = vpack.c.b16 %v5948, %v5944
        %v7909 = vpack.c.b16 %v5949, %v5945
        %v7910 = vpack.c.b16 %v5950, %v5946
        %v7911 = vpack.c.b16 %v5951, %v5947
        %v7912 = vpack.c.b16 %v5956, %v5952
        %v7913 = vpack.c.b16 %v5957, %v5953
        %v7914 = vpack.c.b16 %v5958, %v5954
        %v7915 = vpack.c.b16 %v5959, %v5955
        %v7916 = vpack.c.b16 %v5964, %v5960
        %v7917 = vpack.c.b16 %v5965, %v5961
        %v7918 = vpack.c.b16 %v5966, %v5962
        %v7919 = vpack.c.b16 %v5967, %v5963
        %v7920 = vpack.c.b16 %v5972, %v5968
        %v7921 = vpack.c.b16 %v5973, %v5969
        %v7922 = vpack.c.b16 %v5974, %v5970
        %v7923 = vpack.c.b16 %v5975, %v5971
        %v7924 = vpack.c.b16 %v5980, %v5976
        %v7925 = vpack.c.b16 %v5981, %v5977
        %v7926 = vpack.c.b16 %v5982, %v5978
        %v7927 = vpack.c.b16 %v5983, %v5979
        %v7928 = vpack.c.b16 %v5988, %v5984
        %v7929 = vpack.c.b16 %v5989, %v5985
        %v7930 = vpack.c.b16 %v5990, %v5986
        %v7931 = vpack.c.b16 %v5991, %v5987
        %v7932 = vpack.c.b16 %v5996, %v5992
        %v7933 = vpack.c.b16 %v5997, %v5993
        %v7934 = vpack.c.b16 %v5998, %v5994
        %v7935 = vpack.c.b16 %v5999, %v5995
        %v7936 = vpack.c.b16 %v6004, %v6000
        %v7937 = vpack.c.b16 %v6005, %v6001
        %v7938 = vpack.c.b16 %v6006, %v6002
        %v7939 = vpack.c.b16 %v6007, %v6003
        %v7940 = vpack.c.b16 %v6012, %v6008
        %v7941 = vpack.c.b16 %v6013, %v6009
        %v7942 = vpack.c.b16 %v6014, %v6010
        %v7943 = vpack.c.b16 %v6015, %v6011
        %v7944 = vpack.c.b16 %v6020, %v6016
        %v7945 = vpack.c.b16 %v6021, %v6017
        %v7946 = vpack.c.b16 %v6022, %v6018
        %v7947 = vpack.c.b16 %v6023, %v6019
        %v7948 = vpack.c.b16 %v6028, %v6024
        %v7949 = vpack.c.b16 %v6029, %v6025
        %v7950 = vpack.c.b16 %v6030, %v6026
        %v7951 = vpack.c.b16 %v6031, %v6027
        %v7952 = vpack.c.b16 %v6036, %v6032
        %v7953 = vpack.c.b16 %v6037, %v6033
        %v7954 = vpack.c.b16 %v6038, %v6034
        %v7955 = vpack.c.b16 %v6039, %v6035
        %v7956 = vpack.c.b16 %v6044, %v6040
        %v7957 = vpack.c.b16 %v6045, %v6041
        %v7958 = vpack.c.b16 %v6046, %v6042
        %v7959 = vpack.c.b16 %v6047, %v6043
        %v7960 = vpack.c.b16 %v6052, %v6048
        %v7961 = vpack.c.b16 %v6053, %v6049
        %v7962 = vpack.c.b16 %v6054, %v6050
        %v7963 = vpack.c.b16 %v6055, %v6051
        %v7964 = vpack.c.b16 %v6060, %v6056
        %v7965 = vpack.c.b16 %v6061, %v6057
        %v7966 = vpack.c.b16 %v6062, %v6058
        %v7967 = vpack.c.b16 %v6063, %v6059
        %v7968 = vpack.c.b16 %v6068, %v6064
        %v7969 = vpack.c.b16 %v6069, %v6065
        %v7970 = vpack.c.b16 %v6070, %v6066
        %v7971 = vpack.c.b16 %v6071, %v6067
        %v7972 = vpack.c.b16 %v6076, %v6072
        %v7973 = vpack.c.b16 %v6077, %v6073
        %v7974 = vpack.c.b16 %v6078, %v6074
        %v7975 = vpack.c.b16 %v6079, %v6075
        %v7976 = vpack.c.b16 %v6084, %v6080
        %v7977 = vpack.c.b16 %v6085, %v6081
        %v7978 = vpack.c.b16 %v6086, %v6082
        %v7979 = vpack.c.b16 %v6087, %v6083
        %v7980 = vpack.c.b16 %v6092, %v6088
        %v7981 = vpack.c.b16 %v6093, %v6089
        %v7982 = vpack.c.b16 %v6094, %v6090
        %v7983 = vpack.c.b16 %v6095, %v6091
        %v7984 = vpack.c.b16 %v6100, %v6096
        %v7985 = vpack.c.b16 %v6101, %v6097
        %v7986 = vpack.c.b16 %v6102, %v6098
        %v7987 = vpack.c.b16 %v6103, %v6099
        %v7988 = vpack.c.b16 %v6108, %v6104
        %v7989 = vpack.c.b16 %v6109, %v6105
        %v7990 = vpack.c.b16 %v6110, %v6106
        %v7991 = vpack.c.b16 %v6111, %v6107
        %v7992 = vpack.c.b16 %v6116, %v6112
        %v7993 = vpack.c.b16 %v6117, %v6113
        %v7994 = vpack.c.b16 %v6118, %v6114
        %v7995 = vpack.c.b16 %v6119, %v6115
        %v7996 = vpack.c.b16 %v6124, %v6120
        %v7997 = vpack.c.b16 %v6125, %v6121
        %v7998 = vpack.c.b16 %v6126, %v6122
        %v7999 = vpack.c.b16 %v6127, %v6123
        %v8000 = vpack.c.b16 %v6132, %v6128
        %v8001 = vpack.c.b16 %v6133, %v6129
        %v8002 = vpack.c.b16 %v6134, %v6130
        %v8003 = vpack.c.b16 %v6135, %v6131
        %v8004 = vpack.c.b16 %v6140, %v6136
        %v8005 = vpack.c.b16 %v6141, %v6137
        %v8006 = vpack.c.b16 %v6142, %v6138
        %v8007 = vpack.c.b16 %v6143, %v6139
        %v8008 = vpack.c.b16 %v6148, %v6144
        %v8009 = vpack.c.b16 %v6149, %v6145
        %v8010 = vpack.c.b16 %v6150, %v6146
        %v8011 = vpack.c.b16 %v6151, %v6147
        %v8012 = vpack.c.b16 %v6156, %v6152
        %v8013 = vpack.c.b16 %v6157, %v6153
        %v8014 = vpack.c.b16 %v6158, %v6154
        %v8015 = vpack.c.b16 %v6159, %v6155
        %v8016 = vpack.c.b16 %v6164, %v6160
        %v8017 = vpack.c.b16 %v6165, %v6161
        %v8018 = vpack.c.b16 %v6166, %v6162
        %v8019 = vpack.c.b16 %v6167, %v6163
        %v8020 = vpack.c.b16 %v6172, %v6168
        %v8021 = vpack.c.b16 %v6173, %v6169
        %v8022 = vpack.c.b16 %v6174, %v6170
        %v8023 = vpack.c.b16 %v6175, %v6171
        %v8024 = vpack.c.b16 %v6180, %v6176
        %v8025 = vpack.c.b16 %v6181, %v6177
        %v8026 = vpack.c.b16 %v6182, %v6178
        %v8027 = vpack.c.b16 %v6183, %v6179
        %v8028 = vpack.c.b16 %v6188, %v6184
        %v8029 = vpack.c.b16 %v6189, %v6185
        %v8030 = vpack.c.b16 %v6190, %v6186
        %v8031 = vpack.c.b16 %v6191, %v6187
        %v8032 = vpack.c.b16 %v6196, %v6192
        %v8033 = vpack.c.b16 %v6197, %v6193
        %v8034 = vpack.c.b16 %v6198, %v6194
        %v8035 = vpack.c.b16 %v6199, %v6195
        %v8036 = vpack.c.b16 %v6204, %v6200
        %v8037 = vpack.c.b16 %v6205, %v6201
        %v8038 = vpack.c.b16 %v6206, %v6202
        %v8039 = vpack.c.b16 %v6207, %v6203
        %v8040 = vpack.c.b16 %v6212, %v6208
        %v8041 = vpack.c.b16 %v6213, %v6209
        %v8042 = vpack.c.b16 %v6214, %v6210
        %v8043 = vpack.c.b16 %v6215, %v6211
        %v8044 = vpack.c.b16 %v6220, %v6216
        %v8045 = vpack.c.b16 %v6221, %v6217
        %v8046 = vpack.c.b16 %v6222, %v6218
        %v8047 = vpack.c.b16 %v6223, %v6219
        %v8048 = vpack.c.b16 %v6228, %v6224
        %v8049 = vpack.c.b16 %v6229, %v6225
        %v8050 = vpack.c.b16 %v6230, %v6226
        %v8051 = vpack.c.b16 %v6231, %v6227
        %v8052 = vpack.c.b16 %v6236, %v6232
        %v8053 = vpack.c.b16 %v6237, %v6233
        %v8054 = vpack.c.b16 %v6238, %v6234
        %v8055 = vpack.c.b16 %v6239, %v6235
        %v8056 = vpack.c.b16 %v6244, %v6240
        %v8057 = vpack.c.b16 %v6245, %v6241
        %v8058 = vpack.c.b16 %v6246, %v6242
        %v8059 = vpack.c.b16 %v6247, %v6243
        %v8060 = vpack.c.b16 %v6252, %v6248
        %v8061 = vpack.c.b16 %v6253, %v6249
        %v8062 = vpack.c.b16 %v6254, %v6250
        %v8063 = vpack.c.b16 %v6255, %v6251
        %v8064 = vpack.c.b16 %v6260, %v6256
        %v8065 = vpack.c.b16 %v6261, %v6257
        %v8066 = vpack.c.b16 %v6262, %v6258
        %v8067 = vpack.c.b16 %v6263, %v6259
        %v8068 = vpack.c.b16 %v6268, %v6264
        %v8069 = vpack.c.b16 %v6269, %v6265
        %v8070 = vpack.c.b16 %v6270, %v6266
        %v8071 = vpack.c.b16 %v6271, %v6267
        %v8072 = vpack.c.b16 %v6276, %v6272
        %v8073 = vpack.c.b16 %v6277, %v6273
        %v8074 = vpack.c.b16 %v6278, %v6274
        %v8075 = vpack.c.b16 %v6279, %v6275
        %v8076 = vpack.c.b16 %v6284, %v6280
        %v8077 = vpack.c.b16 %v6285, %v6281
        %v8078 = vpack.c.b16 %v6286, %v6282
        %v8079 = vpack.c.b16 %v6287, %v6283
        %v8080 = vpack.c.b16 %v6292, %v6288
        %v8081 = vpack.c.b16 %v6293, %v6289
        %v8082 = vpack.c.b16 %v6294, %v6290
        %v8083 = vpack.c.b16 %v6295, %v6291
        %v8084 = vpack.c.b16 %v6300, %v6296
        %v8085 = vpack.c.b16 %v6301, %v6297
        %v8086 = vpack.c.b16 %v6302, %v6298
        %v8087 = vpack.c.b16 %v6303, %v6299
        %v8088 = vpack.c.b16 %v6308, %v6304
        %v8089 = vpack.c.b16 %v6309, %v6305
        %v8090 = vpack.c.b16 %v6310, %v6306
        %v8091 = vpack.c.b16 %v6311, %v6307
        %v8092 = vpack.c.b16 %v6316, %v6312
        %v8093 = vpack.c.b16 %v6317, %v6313
        %v8094 = vpack.c.b16 %v6318, %v6314
        %v8095 = vpack.c.b16 %v6319, %v6315
        %v8096 = vpack.c.b16 %v6324, %v6320
        %v8097 = vpack.c.b16 %v6325, %v6321
        %v8098 = vpack.c.b16 %v6326, %v6322
        %v8099 = vpack.c.b16 %v6327, %v6323
        %v8100 = vpack.c.b16 %v6332, %v6328
        %v8101 = vpack.c.b16 %v6333, %v6329
        %v8102 = vpack.c.b16 %v6334, %v6330
        %v8103 = vpack.c.b16 %v6335, %v6331
        %v8104 = vpack.c.b16 %v6340, %v6336
        %v8105 = vpack.c.b16 %v6341, %v6337
        %v8106 = vpack.c.b16 %v6342, %v6338
        %v8107 = vpack.c.b16 %v6343, %v6339
        %v8108 = vpack.c.b16 %v6348, %v6344
        %v8109 = vpack.c.b16 %v6349, %v6345
        %v8110 = vpack.c.b16 %v6350, %v6346
        %v8111 = vpack.c.b16 %v6351, %v6347
        %v8112 = vpack.c.b16 %v6356, %v6352
        %v8113 = vpack.c.b16 %v6357, %v6353
        %v8114 = vpack.c.b16 %v6358, %v6354
        %v8115 = vpack.c.b16 %v6359, %v6355
        %v8116 = vpack.c.b16 %v6364, %v6360
        %v8117 = vpack.c.b16 %v6365, %v6361
        %v8118 = vpack.c.b16 %v6366, %v6362
        %v8119 = vpack.c.b16 %v6367, %v6363
        %v8120 = vpack.c.b16 %v6372, %v6368
        %v8121 = vpack.c.b16 %v6373, %v6369
        %v8122 = vpack.c.b16 %v6374, %v6370
        %v8123 = vpack.c.b16 %v6375, %v6371
        %v8124 = vpack.c.b16 %v6380, %v6376
        %v8125 = vpack.c.b16 %v6381, %v6377
        %v8126 = vpack.c.b16 %v6382, %v6378
        %v8127 = vpack.c.b16 %v6383, %v6379
        %v8128 = vpack.c.b16 %v6388, %v6384
        %v8129 = vpack.c.b16 %v6389, %v6385
        %v8130 = vpack.c.b16 %v6390, %v6386
        %v8131 = vpack.c.b16 %v6391, %v6387
        %v8132 = vpack.c.b16 %v6396, %v6392
        %v8133 = vpack.c.b16 %v6397, %v6393
        %v8134 = vpack.c.b16 %v6398, %v6394
        %v8135 = vpack.c.b16 %v6399, %v6395
        %v8136 = vpack.c.b16 %v6404, %v6400
        %v8137 = vpack.c.b16 %v6405, %v6401
        %v8138 = vpack.c.b16 %v6406, %v6402
        %v8139 = vpack.c.b16 %v6407, %v6403
        %v8140 = vpack.c.b16 %v6412, %v6408
        %v8141 = vpack.c.b16 %v6413, %v6409
        %v8142 = vpack.c.b16 %v6414, %v6410
        %v8143 = vpack.c.b16 %v6415, %v6411
        %v8144 = vpack.c.b16 %v6420, %v6416
        %v8145 = vpack.c.b16 %v6421, %v6417
        %v8146 = vpack.c.b16 %v6422, %v6418
        %v8147 = vpack.c.b16 %v6423, %v6419
        %v8148 = vpack.c.b16 %v6428, %v6424
        %v8149 = vpack.c.b16 %v6429, %v6425
        %v8150 = vpack.c.b16 %v6430, %v6426
        %v8151 = vpack.c.b16 %v6431, %v6427
        %v8152 = vpack.c.b16 %v6436, %v6432
        %v8153 = vpack.c.b16 %v6437, %v6433
        %v8154 = vpack.c.b16 %v6438, %v6434
        %v8155 = vpack.c.b16 %v6439, %v6435
        %v8156 = vpack.c.b16 %v6444, %v6440
        %v8157 = vpack.c.b16 %v6445, %v6441
        %v8158 = vpack.c.b16 %v6446, %v6442
        %v8159 = vpack.c.b16 %v6447, %v6443
        %v8160 = vpack.c.b16 %v6452, %v6448
        %v8161 = vpack.c.b16 %v6453, %v6449
        %v8162 = vpack.c.b16 %v6454, %v6450
        %v8163 = vpack.c.b16 %v6455, %v6451
        %v8164 = vpack.c.b16 %v6460, %v6456
        %v8165 = vpack.c.b16 %v6461, %v6457
        %v8166 = vpack.c.b16 %v6462, %v6458
        %v8167 = vpack.c.b16 %v6463, %v6459
        %v8168 = vpack.c.b16 %v6468, %v6464
        %v8169 = vpack.c.b16 %v6469, %v6465
        %v8170 = vpack.c.b16 %v6470, %v6466
        %v8171 = vpack.c.b16 %v6471, %v6467
        %v8172 = vpack.c.b16 %v6476, %v6472
        %v8173 = vpack.c.b16 %v6477, %v6473
        %v8174 = vpack.c.b16 %v6478, %v6474
        %v8175 = vpack.c.b16 %v6479, %v6475
        %v8176 = vpack.c.b16 %v6484, %v6480
        %v8177 = vpack.c.b16 %v6485, %v6481
        %v8178 = vpack.c.b16 %v6486, %v6482
        %v8179 = vpack.c.b16 %v6487, %v6483
        %v8180 = vpack.c.b16 %v6492, %v6488
        %v8181 = vpack.c.b16 %v6493, %v6489
        %v8182 = vpack.c.b16 %v6494, %v6490
        %v8183 = vpack.c.b16 %v6495, %v6491
        %v8184 = vpack.c.b16 %v6500, %v6496
        %v8185 = vpack.c.b16 %v6501, %v6497
        %v8186 = vpack.c.b16 %v6502, %v6498
        %v8187 = vpack.c.b16 %v6503, %v6499
        %v8188 = vpack.c.b16 %v6508, %v6504
        %v8189 = vpack.c.b16 %v6509, %v6505
        %v8190 = vpack.c.b16 %v6510, %v6506
        %v8191 = vpack.c.b16 %v6511, %v6507
        %v8192 = vpack.c.b16 %v6516, %v6512
        %v8193 = vpack.c.b16 %v6517, %v6513
        %v8194 = vpack.c.b16 %v6518, %v6514
        %v8195 = vpack.c.b16 %v6519, %v6515
        %v8196 = vpack.c.b16 %v6524, %v6520
        %v8197 = vpack.c.b16 %v6525, %v6521
        %v8198 = vpack.c.b16 %v6526, %v6522
        %v8199 = vpack.c.b16 %v6527, %v6523
        %v8200 = vpack.c.b16 %v6532, %v6528
        %v8201 = vpack.c.b16 %v6533, %v6529
        %v8202 = vpack.c.b16 %v6534, %v6530
        %v8203 = vpack.c.b16 %v6535, %v6531
        %v8204 = vpack.c.b16 %v6540, %v6536
        %v8205 = vpack.c.b16 %v6541, %v6537
        %v8206 = vpack.c.b16 %v6542, %v6538
        %v8207 = vpack.c.b16 %v6543, %v6539
        %v8208 = vpack.c.b16 %v6548, %v6544
        %v8209 = vpack.c.b16 %v6549, %v6545
        %v8210 = vpack.c.b16 %v6550, %v6546
        %v8211 = vpack.c.b16 %v6551, %v6547
        %v8212 = vpack.c.b16 %v6556, %v6552
        %v8213 = vpack.c.b16 %v6557, %v6553
        %v8214 = vpack.c.b16 %v6558, %v6554
        %v8215 = vpack.c.b16 %v6559, %v6555
        %v8216 = vpack.c.b16 %v6564, %v6560
        %v8217 = vpack.c.b16 %v6565, %v6561
        %v8218 = vpack.c.b16 %v6566, %v6562
        %v8219 = vpack.c.b16 %v6567, %v6563
        %v8220 = vpack.c.b16 %v6572, %v6568
        %v8221 = vpack.c.b16 %v6573, %v6569
        %v8222 = vpack.c.b16 %v6574, %v6570
        %v8223 = vpack.c.b16 %v6575, %v6571
        %v8224 = vpack.c.b16 %v6580, %v6576
        %v8225 = vpack.c.b16 %v6581, %v6577
        %v8226 = vpack.c.b16 %v6582, %v6578
        %v8227 = vpack.c.b16 %v6583, %v6579
        %v8228 = vpack.c.b16 %v6588, %v6584
        %v8229 = vpack.c.b16 %v6589, %v6585
        %v8230 = vpack.c.b16 %v6590, %v6586
        %v8231 = vpack.c.b16 %v6591, %v6587
        %v8232 = vpack.c.b16 %v6596, %v6592
        %v8233 = vpack.c.b16 %v6597, %v6593
        %v8234 = vpack.c.b16 %v6598, %v6594
        %v8235 = vpack.c.b16 %v6599, %v6595
        %v8236 = vpack.c.b16 %v6604, %v6600
        %v8237 = vpack.c.b16 %v6605, %v6601
        %v8238 = vpack.c.b16 %v6606, %v6602
        %v8239 = vpack.c.b16 %v6607, %v6603
        %v8240 = vpack.c.b16 %v6612, %v6608
        %v8241 = vpack.c.b16 %v6613, %v6609
        %v8242 = vpack.c.b16 %v6614, %v6610
        %v8243 = vpack.c.b16 %v6615, %v6611
        %v8244 = vpack.c.b16 %v6620, %v6616
        %v8245 = vpack.c.b16 %v6621, %v6617
        %v8246 = vpack.c.b16 %v6622, %v6618
        %v8247 = vpack.c.b16 %v6623, %v6619
        %v8248 = vpack.c.b16 %v6628, %v6624
        %v8249 = vpack.c.b16 %v6629, %v6625
        %v8250 = vpack.c.b16 %v6630, %v6626
        %v8251 = vpack.c.b16 %v6631, %v6627
        %v8252 = vpack.c.b16 %v6636, %v6632
        %v8253 = vpack.c.b16 %v6637, %v6633
        %v8254 = vpack.c.b16 %v6638, %v6634
        %v8255 = vpack.c.b16 %v6639, %v6635
        %v8256 = vpack.c.b16 %v6644, %v6640
        %v8257 = vpack.c.b16 %v6645, %v6641
        %v8258 = vpack.c.b16 %v6646, %v6642
        %v8259 = vpack.c.b16 %v6647, %v6643
        %v8260 = vpack.c.b16 %v6652, %v6648
        %v8261 = vpack.c.b16 %v6653, %v6649
        %v8262 = vpack.c.b16 %v6654, %v6650
        %v8263 = vpack.c.b16 %v6655, %v6651
        %v8264 = vpack.c.b16 %v6660, %v6656
        %v8265 = vpack.c.b16 %v6661, %v6657
        %v8266 = vpack.c.b16 %v6662, %v6658
        %v8267 = vpack.c.b16 %v6663, %v6659
        %v8268 = vpack.c.b16 %v6668, %v6664
        %v8269 = vpack.c.b16 %v6669, %v6665
        %v8270 = vpack.c.b16 %v6670, %v6666
        %v8271 = vpack.c.b16 %v6671, %v6667
        %v8272 = vpack.c.b16 %v6676, %v6672
        %v8273 = vpack.c.b16 %v6677, %v6673
        %v8274 = vpack.c.b16 %v6678, %v6674
        %v8275 = vpack.c.b16 %v6679, %v6675
        %v8276 = vpack.c.b16 %v6684, %v6680
        %v8277 = vpack.c.b16 %v6685, %v6681
        %v8278 = vpack.c.b16 %v6686, %v6682
        %v8279 = vpack.c.b16 %v6687, %v6683
        %v8280 = vpack.c.b16 %v6692, %v6688
        %v8281 = vpack.c.b16 %v6693, %v6689
        %v8282 = vpack.c.b16 %v6694, %v6690
        %v8283 = vpack.c.b16 %v6695, %v6691
        %v8284 = vpack.c.b16 %v6700, %v6696
        %v8285 = vpack.c.b16 %v6701, %v6697
        %v8286 = vpack.c.b16 %v6702, %v6698
        %v8287 = vpack.c.b16 %v6703, %v6699
        %v8288 = vpack.c.b16 %v6708, %v6704
        %v8289 = vpack.c.b16 %v6709, %v6705
        %v8290 = vpack.c.b16 %v6710, %v6706
        %v8291 = vpack.c.b16 %v6711, %v6707
        %v8292 = vpack.c.b16 %v6716, %v6712
        %v8293 = vpack.c.b16 %v6717, %v6713
        %v8294 = vpack.c.b16 %v6718, %v6714
        %v8295 = vpack.c.b16 %v6719, %v6715
        %v8296 = vpack.c.b16 %v6724, %v6720
        %v8297 = vpack.c.b16 %v6725, %v6721
        %v8298 = vpack.c.b16 %v6726, %v6722
        %v8299 = vpack.c.b16 %v6727, %v6723
        %v8300 = vpack.c.b16 %v6732, %v6728
        %v8301 = vpack.c.b16 %v6733, %v6729
        %v8302 = vpack.c.b16 %v6734, %v6730
        %v8303 = vpack.c.b16 %v6735, %v6731
        %9872 = vmatprep.subr.bf16.mxu0 %v6765
        %9873 = vmatpush1.bf16.msra.mxu0 %v6764
        %9874 = vmatprep.subr.bf16.mxu0 %v6761
        %9875 = vmatpush1.bf16.msra.mxu0 %v6760
        %9876 = vmatprep.subr.bf16.mxu0 %v6757
        %9877 = vmatpush1.bf16.msra.mxu0 %v6756
        %9878 = vmatprep.subr.bf16.mxu0 %v6753
        %9879 = vmatpush1.bf16.msra.mxu0 %v6752
        %9880 = vmatprep.subr.bf16.mxu0 %v6749
        %9881 = vmatpush1.bf16.msra.mxu0 %v6748
        %9882 = vmatprep.subr.bf16.mxu0 %v6745
        %9883 = vmatpush1.bf16.msra.mxu0 %v6744
        %9884 = vmatprep.subr.bf16.mxu0 %v6741
        %9885 = vmatpush1.bf16.msra.mxu0 %v6740
        %9886 = vmatprep.subr.bf16.mxu0 %v6737
        %9887 = vmatpush1.bf16.msra.mxu0 %v6736
        %9888 = vmatprep.subr.bf16.mxu0 %v6797
        %9889 = vmatpush2.bf16.msra.mxu0 %v6796
        %9890 = vmatprep.subr.bf16.mxu0 %v6793
        %9891 = vmatpush2.bf16.msra.mxu0 %v6792
        %9892 = vmatprep.subr.bf16.mxu0 %v6789
        %9893 = vmatpush2.bf16.msra.mxu0 %v6788
        %9894 = vmatprep.subr.bf16.mxu0 %v6785
        %9895 = vmatpush2.bf16.msra.mxu0 %v6784
        %9896 = vmatprep.subr.bf16.mxu0 %v6781
        %9897 = vmatpush2.bf16.msra.mxu0 %v6780
        %9898 = vmatprep.subr.bf16.mxu0 %v6777
        %9899 = vmatpush2.bf16.msra.mxu0 %v6776
        %9900 = vmatprep.subr.bf16.mxu0 %v6773
        %9901 = vmatpush2.bf16.msra.mxu0 %v6772
        %9902 = vmatprep.subr.bf16.mxu0 %v6769
        %9903 = vmatpush2.bf16.msra.mxu0 %v6768
        %9904 = vmatprep.mubr.bf16.mxu0 %v1935
        %9905 = vmatmul.mubr.bf16.gmra.mxu0 %v1934
        %v9906 = vpop.f32.mrf.mxu0
        %v9907 = vadd.f32 0.0, %v9906
        %v9908 = vpop.f32.mrf.mxu0
        %v9909 = vadd.f32 0.0, %v9908
        %v9910 = vpop.f32.mrf.mxu0
        %v9911 = vpop.f32.mrf.mxu0
        %9912 = vdwg.mxu0
        %9913 = vmatprep.subr.bf16.mxu0 %v6829
        %9914 = vmatpush1.bf16.msra.mxu0 %v6828
        %9915 = vmatprep.subr.bf16.mxu0 %v6825
        %9916 = vmatpush1.bf16.msra.mxu0 %v6824
        %9917 = vmatprep.subr.bf16.mxu0 %v6821
        %9918 = vmatpush1.bf16.msra.mxu0 %v6820
        %9919 = vmatprep.subr.bf16.mxu0 %v6817
        %9920 = vmatpush1.bf16.msra.mxu0 %v6816
        %9921 = vmatprep.subr.bf16.mxu0 %v6813
        %9922 = vmatpush1.bf16.msra.mxu0 %v6812
        %9923 = vmatprep.subr.bf16.mxu0 %v6809
        %9924 = vmatpush1.bf16.msra.mxu0 %v6808
        %9925 = vmatprep.subr.bf16.mxu0 %v6805
        %9926 = vmatpush1.bf16.msra.mxu0 %v6804
        %9927 = vmatprep.subr.bf16.mxu0 %v6801
        %9928 = vmatpush1.bf16.msra.mxu0 %v6800
        %9929 = vmatprep.subr.bf16.mxu0 %v6861
        %9930 = vmatpush2.bf16.msra.mxu0 %v6860
        %9931 = vmatprep.subr.bf16.mxu0 %v6857
        %9932 = vmatpush2.bf16.msra.mxu0 %v6856
        %9933 = vmatprep.subr.bf16.mxu0 %v6853
        %9934 = vmatpush2.bf16.msra.mxu0 %v6852
        %9935 = vmatprep.subr.bf16.mxu0 %v6849
        %9936 = vmatpush2.bf16.msra.mxu0 %v6848
        %9937 = vmatprep.subr.bf16.mxu0 %v6845
        %9938 = vmatpush2.bf16.msra.mxu0 %v6844
        %9939 = vmatprep.subr.bf16.mxu0 %v6841
        %9940 = vmatpush2.bf16.msra.mxu0 %v6840
        %9941 = vmatprep.subr.bf16.mxu0 %v6837
        %9942 = vmatpush2.bf16.msra.mxu0 %v6836
        %9943 = vmatprep.subr.bf16.mxu0 %v6833
        %9944 = vmatpush2.bf16.msra.mxu0 %v6832
        %9945 = vmatprep.mubr.bf16.mxu0 %v1937
        %9946 = vmatmul.mubr.bf16.gmra.mxu0 %v1936
        %v9947 = vpop.f32.mrf.mxu0
        %v9948 = vadd.f32 %v9907, %v9947
        %v9949 = vpop.f32.mrf.mxu0
        %v9950 = vadd.f32 %v9909, %v9949
        %v9951 = vpop.f32.mrf.mxu0
        %v9952 = vpop.f32.mrf.mxu0
        %9953 = vdwg.mxu0
        %9954 = vmatprep.subr.bf16.mxu0 %v6893
        %9955 = vmatpush1.bf16.msra.mxu0 %v6892
        %9956 = vmatprep.subr.bf16.mxu0 %v6889
        %9957 = vmatpush1.bf16.msra.mxu0 %v6888
        %9958 = vmatprep.subr.bf16.mxu0 %v6885
        %9959 = vmatpush1.bf16.msra.mxu0 %v6884
        %9960 = vmatprep.subr.bf16.mxu0 %v6881
        %9961 = vmatpush1.bf16.msra.mxu0 %v6880
        %9962 = vmatprep.subr.bf16.mxu0 %v6877
        %9963 = vmatpush1.bf16.msra.mxu0 %v6876
        %9964 = vmatprep.subr.bf16.mxu0 %v6873
        %9965 = vmatpush1.bf16.msra.mxu0 %v6872
        %9966 = vmatprep.subr.bf16.mxu0 %v6869
        %9967 = vmatpush1.bf16.msra.mxu0 %v6868
        %9968 = vmatprep.subr.bf16.mxu0 %v6865
        %9969 = vmatpush1.bf16.msra.mxu0 %v6864
        %9970 = vmatprep.subr.bf16.mxu0 %v6925
        %9971 = vmatpush2.bf16.msra.mxu0 %v6924
        %9972 = vmatprep.subr.bf16.mxu0 %v6921
        %9973 = vmatpush2.bf16.msra.mxu0 %v6920
        %9974 = vmatprep.subr.bf16.mxu0 %v6917
        %9975 = vmatpush2.bf16.msra.mxu0 %v6916
        %9976 = vmatprep.subr.bf16.mxu0 %v6913
        %9977 = vmatpush2.bf16.msra.mxu0 %v6912
        %9978 = vmatprep.subr.bf16.mxu0 %v6909
        %9979 = vmatpush2.bf16.msra.mxu0 %v6908
        %9980 = vmatprep.subr.bf16.mxu0 %v6905
        %9981 = vmatpush2.bf16.msra.mxu0 %v6904
        %9982 = vmatprep.subr.bf16.mxu0 %v6901
        %9983 = vmatpush2.bf16.msra.mxu0 %v6900
        %9984 = vmatprep.subr.bf16.mxu0 %v6897
        %9985 = vmatpush2.bf16.msra.mxu0 %v6896
        %9986 = vmatprep.mubr.bf16.mxu0 %v1939
        %9987 = vmatmul.mubr.bf16.gmra.mxu0 %v1938
        %v9988 = vpop.f32.mrf.mxu0
        %v9989 = vadd.f32 %v9948, %v9988
        %v9990 = vpop.f32.mrf.mxu0
        %v9991 = vadd.f32 %v9950, %v9990
        %v9992 = vpop.f32.mrf.mxu0
        %v9993 = vpop.f32.mrf.mxu0
        %9994 = vdwg.mxu0
        %9995 = vmatprep.subr.bf16.mxu0 %v6957
        %9996 = vmatpush1.bf16.msra.mxu0 %v6956
        %9997 = vmatprep.subr.bf16.mxu0 %v6953
        %9998 = vmatpush1.bf16.msra.mxu0 %v6952
        %9999 = vmatprep.subr.bf16.mxu0 %v6949
        %10000 = vmatpush1.bf16.msra.mxu0 %v6948
        %10001 = vmatprep.subr.bf16.mxu0 %v6945
        %10002 = vmatpush1.bf16.msra.mxu0 %v6944
        %10003 = vmatprep.subr.bf16.mxu0 %v6941
        %10004 = vmatpush1.bf16.msra.mxu0 %v6940
        %10005 = vmatprep.subr.bf16.mxu0 %v6937
        %10006 = vmatpush1.bf16.msra.mxu0 %v6936
        %10007 = vmatprep.subr.bf16.mxu0 %v6933
        %10008 = vmatpush1.bf16.msra.mxu0 %v6932
        %10009 = vmatprep.subr.bf16.mxu0 %v6929
        %10010 = vmatpush1.bf16.msra.mxu0 %v6928
        %10011 = vmatprep.subr.bf16.mxu0 %v6989
        %10012 = vmatpush2.bf16.msra.mxu0 %v6988
        %10013 = vmatprep.subr.bf16.mxu0 %v6985
        %10014 = vmatpush2.bf16.msra.mxu0 %v6984
        %10015 = vmatprep.subr.bf16.mxu0 %v6981
        %10016 = vmatpush2.bf16.msra.mxu0 %v6980
        %10017 = vmatprep.subr.bf16.mxu0 %v6977
        %10018 = vmatpush2.bf16.msra.mxu0 %v6976
        %10019 = vmatprep.subr.bf16.mxu0 %v6973
        %10020 = vmatpush2.bf16.msra.mxu0 %v6972
        %10021 = vmatprep.subr.bf16.mxu0 %v6969
        %10022 = vmatpush2.bf16.msra.mxu0 %v6968
        %10023 = vmatprep.subr.bf16.mxu0 %v6965
        %10024 = vmatpush2.bf16.msra.mxu0 %v6964
        %10025 = vmatprep.subr.bf16.mxu0 %v6961
        %10026 = vmatpush2.bf16.msra.mxu0 %v6960
        %10027 = vmatprep.mubr.bf16.mxu0 %v1941
        %10028 = vmatmul.mubr.bf16.gmra.mxu0 %v1940
        %v10029 = vpop.f32.mrf.mxu0
        %v10030 = vadd.f32 %v9989, %v10029
        %v10031 = vpop.f32.mrf.mxu0
        %v10032 = vadd.f32 %v9991, %v10031
        %v10033 = vpop.f32.mrf.mxu0
        %v10034 = vpop.f32.mrf.mxu0
        %10035 = vdwg.mxu0
        %10036 = vmatprep.subr.bf16.mxu0 %v7021
        %10037 = vmatpush1.bf16.msra.mxu0 %v7020
        %10038 = vmatprep.subr.bf16.mxu0 %v7017
        %10039 = vmatpush1.bf16.msra.mxu0 %v7016
        %10040 = vmatprep.subr.bf16.mxu0 %v7013
        %10041 = vmatpush1.bf16.msra.mxu0 %v7012
        %10042 = vmatprep.subr.bf16.mxu0 %v7009
        %10043 = vmatpush1.bf16.msra.mxu0 %v7008
        %10044 = vmatprep.subr.bf16.mxu0 %v7005
        %10045 = vmatpush1.bf16.msra.mxu0 %v7004
        %10046 = vmatprep.subr.bf16.mxu0 %v7001
        %10047 = vmatpush1.bf16.msra.mxu0 %v7000
        %10048 = vmatprep.subr.bf16.mxu0 %v6997
        %10049 = vmatpush1.bf16.msra.mxu0 %v6996
        %10050 = vmatprep.subr.bf16.mxu0 %v6993
        %10051 = vmatpush1.bf16.msra.mxu0 %v6992
        %10052 = vmatprep.subr.bf16.mxu0 %v7053
        %10053 = vmatpush2.bf16.msra.mxu0 %v7052
        %10054 = vmatprep.subr.bf16.mxu0 %v7049
        %10055 = vmatpush2.bf16.msra.mxu0 %v7048
        %10056 = vmatprep.subr.bf16.mxu0 %v7045
        %10057 = vmatpush2.bf16.msra.mxu0 %v7044
        %10058 = vmatprep.subr.bf16.mxu0 %v7041
        %10059 = vmatpush2.bf16.msra.mxu0 %v7040
        %10060 = vmatprep.subr.bf16.mxu0 %v7037
        %10061 = vmatpush2.bf16.msra.mxu0 %v7036
        %10062 = vmatprep.subr.bf16.mxu0 %v7033
        %10063 = vmatpush2.bf16.msra.mxu0 %v7032
        %10064 = vmatprep.subr.bf16.mxu0 %v7029
        %10065 = vmatpush2.bf16.msra.mxu0 %v7028
        %10066 = vmatprep.subr.bf16.mxu0 %v7025
        %10067 = vmatpush2.bf16.msra.mxu0 %v7024
        %10068 = vmatprep.mubr.bf16.mxu0 %v1943
        %10069 = vmatmul.mubr.bf16.gmra.mxu0 %v1942
        %v10070 = vpop.f32.mrf.mxu0
        %v10071 = vadd.f32 %v10030, %v10070
        %v10072 = vpop.f32.mrf.mxu0
        %v10073 = vadd.f32 %v10032, %v10072
        %v10074 = vpop.f32.mrf.mxu0
        %v10075 = vpop.f32.mrf.mxu0
        %10076 = vdwg.mxu0
        %10077 = vmatprep.subr.bf16.mxu0 %v7085
        %10078 = vmatpush1.bf16.msra.mxu0 %v7084
        %10079 = vmatprep.subr.bf16.mxu0 %v7081
        %10080 = vmatpush1.bf16.msra.mxu0 %v7080
        %10081 = vmatprep.subr.bf16.mxu0 %v7077
        %10082 = vmatpush1.bf16.msra.mxu0 %v7076
        %10083 = vmatprep.subr.bf16.mxu0 %v7073
        %10084 = vmatpush1.bf16.msra.mxu0 %v7072
        %10085 = vmatprep.subr.bf16.mxu0 %v7069
        %10086 = vmatpush1.bf16.msra.mxu0 %v7068
        %10087 = vmatprep.subr.bf16.mxu0 %v7065
        %10088 = vmatpush1.bf16.msra.mxu0 %v7064
        %10089 = vmatprep.subr.bf16.mxu0 %v7061
        %10090 = vmatpush1.bf16.msra.mxu0 %v7060
        %10091 = vmatprep.subr.bf16.mxu0 %v7057
        %10092 = vmatpush1.bf16.msra.mxu0 %v7056
        %10093 = vmatprep.subr.bf16.mxu0 %v7117
        %10094 = vmatpush2.bf16.msra.mxu0 %v7116
        %10095 = vmatprep.subr.bf16.mxu0 %v7113
        %10096 = vmatpush2.bf16.msra.mxu0 %v7112
        %10097 = vmatprep.subr.bf16.mxu0 %v7109
        %10098 = vmatpush2.bf16.msra.mxu0 %v7108
        %10099 = vmatprep.subr.bf16.mxu0 %v7105
        %10100 = vmatpush2.bf16.msra.mxu0 %v7104
        %10101 = vmatprep.subr.bf16.mxu0 %v7101
        %10102 = vmatpush2.bf16.msra.mxu0 %v7100
        %10103 = vmatprep.subr.bf16.mxu0 %v7097
        %10104 = vmatpush2.bf16.msra.mxu0 %v7096
        %10105 = vmatprep.subr.bf16.mxu0 %v7093
        %10106 = vmatpush2.bf16.msra.mxu0 %v7092
        %10107 = vmatprep.subr.bf16.mxu0 %v7089
        %10108 = vmatpush2.bf16.msra.mxu0 %v7088
        %10109 = vmatprep.mubr.bf16.mxu0 %v1945
        %10110 = vmatmul.mubr.bf16.gmra.mxu0 %v1944
        %v10111 = vpop.f32.mrf.mxu0
        %v10112 = vadd.f32 %v10071, %v10111
        %v10113 = vpop.f32.mrf.mxu0
        %v10114 = vadd.f32 %v10073, %v10113
        %v10115 = vpop.f32.mrf.mxu0
        %v10116 = vpop.f32.mrf.mxu0
        %10117 = vdwg.mxu0
        %10118 = vmatprep.subr.bf16.mxu0 %v7149
        %10119 = vmatpush1.bf16.msra.mxu0 %v7148
        %10120 = vmatprep.subr.bf16.mxu0 %v7145
        %10121 = vmatpush1.bf16.msra.mxu0 %v7144
        %10122 = vmatprep.subr.bf16.mxu0 %v7141
        %10123 = vmatpush1.bf16.msra.mxu0 %v7140
        %10124 = vmatprep.subr.bf16.mxu0 %v7137
        %10125 = vmatpush1.bf16.msra.mxu0 %v7136
        %10126 = vmatprep.subr.bf16.mxu0 %v7133
        %10127 = vmatpush1.bf16.msra.mxu0 %v7132
        %10128 = vmatprep.subr.bf16.mxu0 %v7129
        %10129 = vmatpush1.bf16.msra.mxu0 %v7128
        %10130 = vmatprep.subr.bf16.mxu0 %v7125
        %10131 = vmatpush1.bf16.msra.mxu0 %v7124
        %10132 = vmatprep.subr.bf16.mxu0 %v7121
        %10133 = vmatpush1.bf16.msra.mxu0 %v7120
        %10134 = vmatprep.subr.bf16.mxu0 %v7181
        %10135 = vmatpush2.bf16.msra.mxu0 %v7180
        %10136 = vmatprep.subr.bf16.mxu0 %v7177
        %10137 = vmatpush2.bf16.msra.mxu0 %v7176
        %10138 = vmatprep.subr.bf16.mxu0 %v7173
        %10139 = vmatpush2.bf16.msra.mxu0 %v7172
        %10140 = vmatprep.subr.bf16.mxu0 %v7169
        %10141 = vmatpush2.bf16.msra.mxu0 %v7168
        %10142 = vmatprep.subr.bf16.mxu0 %v7165
        %10143 = vmatpush2.bf16.msra.mxu0 %v7164
        %10144 = vmatprep.subr.bf16.mxu0 %v7161
        %10145 = vmatpush2.bf16.msra.mxu0 %v7160
        %10146 = vmatprep.subr.bf16.mxu0 %v7157
        %10147 = vmatpush2.bf16.msra.mxu0 %v7156
        %10148 = vmatprep.subr.bf16.mxu0 %v7153
        %10149 = vmatpush2.bf16.msra.mxu0 %v7152
        %10150 = vmatprep.mubr.bf16.mxu0 %v1947
        %10151 = vmatmul.mubr.bf16.gmra.mxu0 %v1946
        %v10152 = vpop.f32.mrf.mxu0
        %v10153 = vadd.f32 %v10112, %v10152
        %v10154 = vpop.f32.mrf.mxu0
        %v10155 = vadd.f32 %v10114, %v10154
        %v10156 = vpop.f32.mrf.mxu0
        %v10157 = vpop.f32.mrf.mxu0
        %10158 = vdwg.mxu0
        %10159 = vmatprep.subr.bf16.mxu0 %v7213
        %10160 = vmatpush1.bf16.msra.mxu0 %v7212
        %10161 = vmatprep.subr.bf16.mxu0 %v7209
        %10162 = vmatpush1.bf16.msra.mxu0 %v7208
        %10163 = vmatprep.subr.bf16.mxu0 %v7205
        %10164 = vmatpush1.bf16.msra.mxu0 %v7204
        %10165 = vmatprep.subr.bf16.mxu0 %v7201
        %10166 = vmatpush1.bf16.msra.mxu0 %v7200
        %10167 = vmatprep.subr.bf16.mxu0 %v7197
        %10168 = vmatpush1.bf16.msra.mxu0 %v7196
        %10169 = vmatprep.subr.bf16.mxu0 %v7193
        %10170 = vmatpush1.bf16.msra.mxu0 %v7192
        %10171 = vmatprep.subr.bf16.mxu0 %v7189
        %10172 = vmatpush1.bf16.msra.mxu0 %v7188
        %10173 = vmatprep.subr.bf16.mxu0 %v7185
        %10174 = vmatpush1.bf16.msra.mxu0 %v7184
        %10175 = vmatprep.subr.bf16.mxu0 %v7245
        %10176 = vmatpush2.bf16.msra.mxu0 %v7244
        %10177 = vmatprep.subr.bf16.mxu0 %v7241
        %10178 = vmatpush2.bf16.msra.mxu0 %v7240
        %10179 = vmatprep.subr.bf16.mxu0 %v7237
        %10180 = vmatpush2.bf16.msra.mxu0 %v7236
        %10181 = vmatprep.subr.bf16.mxu0 %v7233
        %10182 = vmatpush2.bf16.msra.mxu0 %v7232
        %10183 = vmatprep.subr.bf16.mxu0 %v7229
        %10184 = vmatpush2.bf16.msra.mxu0 %v7228
        %10185 = vmatprep.subr.bf16.mxu0 %v7225
        %10186 = vmatpush2.bf16.msra.mxu0 %v7224
        %10187 = vmatprep.subr.bf16.mxu0 %v7221
        %10188 = vmatpush2.bf16.msra.mxu0 %v7220
        %10189 = vmatprep.subr.bf16.mxu0 %v7217
        %10190 = vmatpush2.bf16.msra.mxu0 %v7216
        %10191 = vmatprep.mubr.bf16.mxu0 %v1949
        %10192 = vmatmul.mubr.bf16.gmra.mxu0 %v1948
        %v10193 = vpop.f32.mrf.mxu0
        %v10194 = vadd.f32 %v10153, %v10193
        %v10195 = vpop.f32.mrf.mxu0
        %v10196 = vadd.f32 %v10155, %v10195
        %v10197 = vpop.f32.mrf.mxu0
        %v10198 = vpop.f32.mrf.mxu0
        %10199 = vdwg.mxu0
        %10200 = vmatprep.subr.bf16.mxu0 %v7277
        %10201 = vmatpush1.bf16.msra.mxu0 %v7276
        %10202 = vmatprep.subr.bf16.mxu0 %v7273
        %10203 = vmatpush1.bf16.msra.mxu0 %v7272
        %10204 = vmatprep.subr.bf16.mxu0 %v7269
        %10205 = vmatpush1.bf16.msra.mxu0 %v7268
        %10206 = vmatprep.subr.bf16.mxu0 %v7265
        %10207 = vmatpush1.bf16.msra.mxu0 %v7264
        %10208 = vmatprep.subr.bf16.mxu0 %v7261
        %10209 = vmatpush1.bf16.msra.mxu0 %v7260
        %10210 = vmatprep.subr.bf16.mxu0 %v7257
        %10211 = vmatpush1.bf16.msra.mxu0 %v7256
        %10212 = vmatprep.subr.bf16.mxu0 %v7253
        %10213 = vmatpush1.bf16.msra.mxu0 %v7252
        %10214 = vmatprep.subr.bf16.mxu0 %v7249
        %10215 = vmatpush1.bf16.msra.mxu0 %v7248
        %10216 = vmatprep.subr.bf16.mxu0 %v7309
        %10217 = vmatpush2.bf16.msra.mxu0 %v7308
        %10218 = vmatprep.subr.bf16.mxu0 %v7305
        %10219 = vmatpush2.bf16.msra.mxu0 %v7304
        %10220 = vmatprep.subr.bf16.mxu0 %v7301
        %10221 = vmatpush2.bf16.msra.mxu0 %v7300
        %10222 = vmatprep.subr.bf16.mxu0 %v7297
        %10223 = vmatpush2.bf16.msra.mxu0 %v7296
        %10224 = vmatprep.subr.bf16.mxu0 %v7293
        %10225 = vmatpush2.bf16.msra.mxu0 %v7292
        %10226 = vmatprep.subr.bf16.mxu0 %v7289
        %10227 = vmatpush2.bf16.msra.mxu0 %v7288
        %10228 = vmatprep.subr.bf16.mxu0 %v7285
        %10229 = vmatpush2.bf16.msra.mxu0 %v7284
        %10230 = vmatprep.subr.bf16.mxu0 %v7281
        %10231 = vmatpush2.bf16.msra.mxu0 %v7280
        %10232 = vmatprep.mubr.bf16.mxu0 %v1951
        %10233 = vmatmul.mubr.bf16.gmra.mxu0 %v1950
        %v10234 = vpop.f32.mrf.mxu0
        %v10235 = vadd.f32 %v10194, %v10234
        %v10236 = vpop.f32.mrf.mxu0
        %v10237 = vadd.f32 %v10196, %v10236
        %v10238 = vpop.f32.mrf.mxu0
        %v10239 = vpop.f32.mrf.mxu0
        %10240 = vdwg.mxu0
        %10241 = vmatprep.subr.bf16.mxu0 %v7341
        %10242 = vmatpush1.bf16.msra.mxu0 %v7340
        %10243 = vmatprep.subr.bf16.mxu0 %v7337
        %10244 = vmatpush1.bf16.msra.mxu0 %v7336
        %10245 = vmatprep.subr.bf16.mxu0 %v7333
        %10246 = vmatpush1.bf16.msra.mxu0 %v7332
        %10247 = vmatprep.subr.bf16.mxu0 %v7329
        %10248 = vmatpush1.bf16.msra.mxu0 %v7328
        %10249 = vmatprep.subr.bf16.mxu0 %v7325
        %10250 = vmatpush1.bf16.msra.mxu0 %v7324
        %10251 = vmatprep.subr.bf16.mxu0 %v7321
        %10252 = vmatpush1.bf16.msra.mxu0 %v7320
        %10253 = vmatprep.subr.bf16.mxu0 %v7317
        %10254 = vmatpush1.bf16.msra.mxu0 %v7316
        %10255 = vmatprep.subr.bf16.mxu0 %v7313
        %10256 = vmatpush1.bf16.msra.mxu0 %v7312
        %10257 = vmatprep.subr.bf16.mxu0 %v7373
        %10258 = vmatpush2.bf16.msra.mxu0 %v7372
        %10259 = vmatprep.subr.bf16.mxu0 %v7369
        %10260 = vmatpush2.bf16.msra.mxu0 %v7368
        %10261 = vmatprep.subr.bf16.mxu0 %v7365
        %10262 = vmatpush2.bf16.msra.mxu0 %v7364
        %10263 = vmatprep.subr.bf16.mxu0 %v7361
        %10264 = vmatpush2.bf16.msra.mxu0 %v7360
        %10265 = vmatprep.subr.bf16.mxu0 %v7357
        %10266 = vmatpush2.bf16.msra.mxu0 %v7356
        %10267 = vmatprep.subr.bf16.mxu0 %v7353
        %10268 = vmatpush2.bf16.msra.mxu0 %v7352
        %10269 = vmatprep.subr.bf16.mxu0 %v7349
        %10270 = vmatpush2.bf16.msra.mxu0 %v7348
        %10271 = vmatprep.subr.bf16.mxu0 %v7345
        %10272 = vmatpush2.bf16.msra.mxu0 %v7344
        %10273 = vmatprep.mubr.bf16.mxu0 %v1953
        %10274 = vmatmul.mubr.bf16.gmra.mxu0 %v1952
        %v10275 = vpop.f32.mrf.mxu0
        %v10276 = vadd.f32 %v10235, %v10275
        %v10277 = vpop.f32.mrf.mxu0
        %v10278 = vadd.f32 %v10237, %v10277
        %v10279 = vpop.f32.mrf.mxu0
        %v10280 = vpop.f32.mrf.mxu0
        %10281 = vdwg.mxu0
        %10282 = vmatprep.subr.bf16.mxu0 %v7405
        %10283 = vmatpush1.bf16.msra.mxu0 %v7404
        %10284 = vmatprep.subr.bf16.mxu0 %v7401
        %10285 = vmatpush1.bf16.msra.mxu0 %v7400
        %10286 = vmatprep.subr.bf16.mxu0 %v7397
        %10287 = vmatpush1.bf16.msra.mxu0 %v7396
        %10288 = vmatprep.subr.bf16.mxu0 %v7393
        %10289 = vmatpush1.bf16.msra.mxu0 %v7392
        %10290 = vmatprep.subr.bf16.mxu0 %v7389
        %10291 = vmatpush1.bf16.msra.mxu0 %v7388
        %10292 = vmatprep.subr.bf16.mxu0 %v7385
        %10293 = vmatpush1.bf16.msra.mxu0 %v7384
        %10294 = vmatprep.subr.bf16.mxu0 %v7381
        %10295 = vmatpush1.bf16.msra.mxu0 %v7380
        %10296 = vmatprep.subr.bf16.mxu0 %v7377
        %10297 = vmatpush1.bf16.msra.mxu0 %v7376
        %10298 = vmatprep.subr.bf16.mxu0 %v7437
        %10299 = vmatpush2.bf16.msra.mxu0 %v7436
        %10300 = vmatprep.subr.bf16.mxu0 %v7433
        %10301 = vmatpush2.bf16.msra.mxu0 %v7432
        %10302 = vmatprep.subr.bf16.mxu0 %v7429
        %10303 = vmatpush2.bf16.msra.mxu0 %v7428
        %10304 = vmatprep.subr.bf16.mxu0 %v7425
        %10305 = vmatpush2.bf16.msra.mxu0 %v7424
        %10306 = vmatprep.subr.bf16.mxu0 %v7421
        %10307 = vmatpush2.bf16.msra.mxu0 %v7420
        %10308 = vmatprep.subr.bf16.mxu0 %v7417
        %10309 = vmatpush2.bf16.msra.mxu0 %v7416
        %10310 = vmatprep.subr.bf16.mxu0 %v7413
        %10311 = vmatpush2.bf16.msra.mxu0 %v7412
        %10312 = vmatprep.subr.bf16.mxu0 %v7409
        %10313 = vmatpush2.bf16.msra.mxu0 %v7408
        %10314 = vmatprep.mubr.bf16.mxu0 %v1955
        %10315 = vmatmul.mubr.bf16.gmra.mxu0 %v1954
        %v10316 = vpop.f32.mrf.mxu0
        %v10317 = vadd.f32 %v10276, %v10316
        %v10318 = vpop.f32.mrf.mxu0
        %v10319 = vadd.f32 %v10278, %v10318
        %v10320 = vpop.f32.mrf.mxu0
        %v10321 = vpop.f32.mrf.mxu0
        %10322 = vdwg.mxu0
        %10323 = vmatprep.subr.bf16.mxu0 %v7469
        %10324 = vmatpush1.bf16.msra.mxu0 %v7468
        %10325 = vmatprep.subr.bf16.mxu0 %v7465
        %10326 = vmatpush1.bf16.msra.mxu0 %v7464
        %10327 = vmatprep.subr.bf16.mxu0 %v7461
        %10328 = vmatpush1.bf16.msra.mxu0 %v7460
        %10329 = vmatprep.subr.bf16.mxu0 %v7457
        %10330 = vmatpush1.bf16.msra.mxu0 %v7456
        %10331 = vmatprep.subr.bf16.mxu0 %v7453
        %10332 = vmatpush1.bf16.msra.mxu0 %v7452
        %10333 = vmatprep.subr.bf16.mxu0 %v7449
        %10334 = vmatpush1.bf16.msra.mxu0 %v7448
        %10335 = vmatprep.subr.bf16.mxu0 %v7445
        %10336 = vmatpush1.bf16.msra.mxu0 %v7444
        %10337 = vmatprep.subr.bf16.mxu0 %v7441
        %10338 = vmatpush1.bf16.msra.mxu0 %v7440
        %10339 = vmatprep.subr.bf16.mxu0 %v7501
        %10340 = vmatpush2.bf16.msra.mxu0 %v7500
        %10341 = vmatprep.subr.bf16.mxu0 %v7497
        %10342 = vmatpush2.bf16.msra.mxu0 %v7496
        %10343 = vmatprep.subr.bf16.mxu0 %v7493
        %10344 = vmatpush2.bf16.msra.mxu0 %v7492
        %10345 = vmatprep.subr.bf16.mxu0 %v7489
        %10346 = vmatpush2.bf16.msra.mxu0 %v7488
        %10347 = vmatprep.subr.bf16.mxu0 %v7485
        %10348 = vmatpush2.bf16.msra.mxu0 %v7484
        %10349 = vmatprep.subr.bf16.mxu0 %v7481
        %10350 = vmatpush2.bf16.msra.mxu0 %v7480
        %10351 = vmatprep.subr.bf16.mxu0 %v7477
        %10352 = vmatpush2.bf16.msra.mxu0 %v7476
        %10353 = vmatprep.subr.bf16.mxu0 %v7473
        %10354 = vmatpush2.bf16.msra.mxu0 %v7472
        %10355 = vmatprep.mubr.bf16.mxu0 %v1957
        %10356 = vmatmul.mubr.bf16.gmra.mxu0 %v1956
        %v10357 = vpop.f32.mrf.mxu0
        %v10358 = vadd.f32 %v10317, %v10357
        %v10359 = vpop.f32.mrf.mxu0
        %v10360 = vadd.f32 %v10319, %v10359
        %v10361 = vpop.f32.mrf.mxu0
        %v10362 = vpop.f32.mrf.mxu0
        %10363 = vdwg.mxu0
        %10364 = vmatprep.subr.bf16.mxu0 %v7533
        %10365 = vmatpush1.bf16.msra.mxu0 %v7532
        %10366 = vmatprep.subr.bf16.mxu0 %v7529
        %10367 = vmatpush1.bf16.msra.mxu0 %v7528
        %10368 = vmatprep.subr.bf16.mxu0 %v7525
        %10369 = vmatpush1.bf16.msra.mxu0 %v7524
        %10370 = vmatprep.subr.bf16.mxu0 %v7521
        %10371 = vmatpush1.bf16.msra.mxu0 %v7520
        %10372 = vmatprep.subr.bf16.mxu0 %v7517
        %10373 = vmatpush1.bf16.msra.mxu0 %v7516
        %10374 = vmatprep.subr.bf16.mxu0 %v7513
        %10375 = vmatpush1.bf16.msra.mxu0 %v7512
        %10376 = vmatprep.subr.bf16.mxu0 %v7509
        %10377 = vmatpush1.bf16.msra.mxu0 %v7508
        %10378 = vmatprep.subr.bf16.mxu0 %v7505
        %10379 = vmatpush1.bf16.msra.mxu0 %v7504
        %10380 = vmatprep.subr.bf16.mxu0 %v7565
        %10381 = vmatpush2.bf16.msra.mxu0 %v7564
        %10382 = vmatprep.subr.bf16.mxu0 %v7561
        %10383 = vmatpush2.bf16.msra.mxu0 %v7560
        %10384 = vmatprep.subr.bf16.mxu0 %v7557
        %10385 = vmatpush2.bf16.msra.mxu0 %v7556
        %10386 = vmatprep.subr.bf16.mxu0 %v7553
        %10387 = vmatpush2.bf16.msra.mxu0 %v7552
        %10388 = vmatprep.subr.bf16.mxu0 %v7549
        %10389 = vmatpush2.bf16.msra.mxu0 %v7548
        %10390 = vmatprep.subr.bf16.mxu0 %v7545
        %10391 = vmatpush2.bf16.msra.mxu0 %v7544
        %10392 = vmatprep.subr.bf16.mxu0 %v7541
        %10393 = vmatpush2.bf16.msra.mxu0 %v7540
        %10394 = vmatprep.subr.bf16.mxu0 %v7537
        %10395 = vmatpush2.bf16.msra.mxu0 %v7536
        %10396 = vmatprep.mubr.bf16.mxu0 %v1959
        %10397 = vmatmul.mubr.bf16.gmra.mxu0 %v1958
        %v10398 = vpop.f32.mrf.mxu0
        %v10399 = vadd.f32 %v10358, %v10398
        %v10400 = vpop.f32.mrf.mxu0
        %v10401 = vadd.f32 %v10360, %v10400
        %v10402 = vpop.f32.mrf.mxu0
        %v10403 = vpop.f32.mrf.mxu0
        %10404 = vdwg.mxu0
        %10405 = vmatprep.subr.bf16.mxu0 %v7597
        %10406 = vmatpush1.bf16.msra.mxu0 %v7596
        %10407 = vmatprep.subr.bf16.mxu0 %v7593
        %10408 = vmatpush1.bf16.msra.mxu0 %v7592
        %10409 = vmatprep.subr.bf16.mxu0 %v7589
        %10410 = vmatpush1.bf16.msra.mxu0 %v7588
        %10411 = vmatprep.subr.bf16.mxu0 %v7585
        %10412 = vmatpush1.bf16.msra.mxu0 %v7584
        %10413 = vmatprep.subr.bf16.mxu0 %v7581
        %10414 = vmatpush1.bf16.msra.mxu0 %v7580
        %10415 = vmatprep.subr.bf16.mxu0 %v7577
        %10416 = vmatpush1.bf16.msra.mxu0 %v7576
        %10417 = vmatprep.subr.bf16.mxu0 %v7573
        %10418 = vmatpush1.bf16.msra.mxu0 %v7572
        %10419 = vmatprep.subr.bf16.mxu0 %v7569
        %10420 = vmatpush1.bf16.msra.mxu0 %v7568
        %10421 = vmatprep.subr.bf16.mxu0 %v7629
        %10422 = vmatpush2.bf16.msra.mxu0 %v7628
        %10423 = vmatprep.subr.bf16.mxu0 %v7625
        %10424 = vmatpush2.bf16.msra.mxu0 %v7624
        %10425 = vmatprep.subr.bf16.mxu0 %v7621
        %10426 = vmatpush2.bf16.msra.mxu0 %v7620
        %10427 = vmatprep.subr.bf16.mxu0 %v7617
        %10428 = vmatpush2.bf16.msra.mxu0 %v7616
        %10429 = vmatprep.subr.bf16.mxu0 %v7613
        %10430 = vmatpush2.bf16.msra.mxu0 %v7612
        %10431 = vmatprep.subr.bf16.mxu0 %v7609
        %10432 = vmatpush2.bf16.msra.mxu0 %v7608
        %10433 = vmatprep.subr.bf16.mxu0 %v7605
        %10434 = vmatpush2.bf16.msra.mxu0 %v7604
        %10435 = vmatprep.subr.bf16.mxu0 %v7601
        %10436 = vmatpush2.bf16.msra.mxu0 %v7600
        %10437 = vmatprep.mubr.bf16.mxu0 %v1961
        %10438 = vmatmul.mubr.bf16.gmra.mxu0 %v1960
        %v10439 = vpop.f32.mrf.mxu0
        %v10440 = vadd.f32 %v10399, %v10439
        %v10441 = vpop.f32.mrf.mxu0
        %v10442 = vadd.f32 %v10401, %v10441
        %v10443 = vpop.f32.mrf.mxu0
        %v10444 = vpop.f32.mrf.mxu0
        %10445 = vdwg.mxu0
        %10446 = vmatprep.subr.bf16.mxu0 %v7661
        %10447 = vmatpush1.bf16.msra.mxu0 %v7660
        %10448 = vmatprep.subr.bf16.mxu0 %v7657
        %10449 = vmatpush1.bf16.msra.mxu0 %v7656
        %10450 = vmatprep.subr.bf16.mxu0 %v7653
        %10451 = vmatpush1.bf16.msra.mxu0 %v7652
        %10452 = vmatprep.subr.bf16.mxu0 %v7649
        %10453 = vmatpush1.bf16.msra.mxu0 %v7648
        %10454 = vmatprep.subr.bf16.mxu0 %v7645
        %10455 = vmatpush1.bf16.msra.mxu0 %v7644
        %10456 = vmatprep.subr.bf16.mxu0 %v7641
        %10457 = vmatpush1.bf16.msra.mxu0 %v7640
        %10458 = vmatprep.subr.bf16.mxu0 %v7637
        %10459 = vmatpush1.bf16.msra.mxu0 %v7636
        %10460 = vmatprep.subr.bf16.mxu0 %v7633
        %10461 = vmatpush1.bf16.msra.mxu0 %v7632
        %10462 = vmatprep.subr.bf16.mxu0 %v7693
        %10463 = vmatpush2.bf16.msra.mxu0 %v7692
        %10464 = vmatprep.subr.bf16.mxu0 %v7689
        %10465 = vmatpush2.bf16.msra.mxu0 %v7688
        %10466 = vmatprep.subr.bf16.mxu0 %v7685
        %10467 = vmatpush2.bf16.msra.mxu0 %v7684
        %10468 = vmatprep.subr.bf16.mxu0 %v7681
        %10469 = vmatpush2.bf16.msra.mxu0 %v7680
        %10470 = vmatprep.subr.bf16.mxu0 %v7677
        %10471 = vmatpush2.bf16.msra.mxu0 %v7676
        %10472 = vmatprep.subr.bf16.mxu0 %v7673
        %10473 = vmatpush2.bf16.msra.mxu0 %v7672
        %10474 = vmatprep.subr.bf16.mxu0 %v7669
        %10475 = vmatpush2.bf16.msra.mxu0 %v7668
        %10476 = vmatprep.subr.bf16.mxu0 %v7665
        %10477 = vmatpush2.bf16.msra.mxu0 %v7664
        %10478 = vmatprep.mubr.bf16.mxu0 %v1963
        %10479 = vmatmul.mubr.bf16.gmra.mxu0 %v1962
        %v10480 = vpop.f32.mrf.mxu0
        %v10481 = vadd.f32 %v10440, %v10480
        %v10482 = vpop.f32.mrf.mxu0
        %v10483 = vadd.f32 %v10442, %v10482
        %v10484 = vpop.f32.mrf.mxu0
        %v10485 = vpop.f32.mrf.mxu0
        %10486 = vdwg.mxu0
        %10487 = vmatprep.subr.bf16.mxu0 %v7725
        %10488 = vmatpush1.bf16.msra.mxu0 %v7724
        %10489 = vmatprep.subr.bf16.mxu0 %v7721
        %10490 = vmatpush1.bf16.msra.mxu0 %v7720
        %10491 = vmatprep.subr.bf16.mxu0 %v7717
        %10492 = vmatpush1.bf16.msra.mxu0 %v7716
        %10493 = vmatprep.subr.bf16.mxu0 %v7713
        %10494 = vmatpush1.bf16.msra.mxu0 %v7712
        %10495 = vmatprep.subr.bf16.mxu0 %v7709
        %10496 = vmatpush1.bf16.msra.mxu0 %v7708
        %10497 = vmatprep.subr.bf16.mxu0 %v7705
        %10498 = vmatpush1.bf16.msra.mxu0 %v7704
        %10499 = vmatprep.subr.bf16.mxu0 %v7701
        %10500 = vmatpush1.bf16.msra.mxu0 %v7700
        %10501 = vmatprep.subr.bf16.mxu0 %v7697
        %10502 = vmatpush1.bf16.msra.mxu0 %v7696
        %10503 = vmatprep.subr.bf16.mxu0 %v7757
        %10504 = vmatpush2.bf16.msra.mxu0 %v7756
        %10505 = vmatprep.subr.bf16.mxu0 %v7753
        %10506 = vmatpush2.bf16.msra.mxu0 %v7752
        %10507 = vmatprep.subr.bf16.mxu0 %v7749
        %10508 = vmatpush2.bf16.msra.mxu0 %v7748
        %10509 = vmatprep.subr.bf16.mxu0 %v7745
        %10510 = vmatpush2.bf16.msra.mxu0 %v7744
        %10511 = vmatprep.subr.bf16.mxu0 %v7741
        %10512 = vmatpush2.bf16.msra.mxu0 %v7740
        %10513 = vmatprep.subr.bf16.mxu0 %v7737
        %10514 = vmatpush2.bf16.msra.mxu0 %v7736
        %10515 = vmatprep.subr.bf16.mxu0 %v7733
        %10516 = vmatpush2.bf16.msra.mxu0 %v7732
        %10517 = vmatprep.subr.bf16.mxu0 %v7729
        %10518 = vmatpush2.bf16.msra.mxu0 %v7728
        %10519 = vmatprep.mubr.bf16.mxu0 %v1965
        %10520 = vmatmul.mubr.bf16.gmra.mxu0 %v1964
        %v10521 = vpop.f32.mrf.mxu0
        %v10522 = vadd.f32 %v10481, %v10521
        %v10523 = vpop.f32.mrf.mxu0
        %v10524 = vadd.f32 %v10483, %v10523
        %v10525 = vpop.f32.mrf.mxu0
        %v10526 = vpop.f32.mrf.mxu0
        %10527 = vdwg.mxu0
        %10528 = vmatprep.subr.bf16.mxu0 %v7789
        %10529 = vmatpush1.bf16.msra.mxu0 %v7788
        %10530 = vmatprep.subr.bf16.mxu0 %v7785
        %10531 = vmatpush1.bf16.msra.mxu0 %v7784
        %10532 = vmatprep.subr.bf16.mxu0 %v7781
        %10533 = vmatpush1.bf16.msra.mxu0 %v7780
        %10534 = vmatprep.subr.bf16.mxu0 %v7777
        %10535 = vmatpush1.bf16.msra.mxu0 %v7776
        %10536 = vmatprep.subr.bf16.mxu0 %v7773
        %10537 = vmatpush1.bf16.msra.mxu0 %v7772
        %10538 = vmatprep.subr.bf16.mxu0 %v7769
        %10539 = vmatpush1.bf16.msra.mxu0 %v7768
        %10540 = vmatprep.subr.bf16.mxu0 %v7765
        %10541 = vmatpush1.bf16.msra.mxu0 %v7764
        %10542 = vmatprep.subr.bf16.mxu0 %v7761
        %10543 = vmatpush1.bf16.msra.mxu0 %v7760
        %10544 = vmatprep.subr.bf16.mxu0 %v7821
        %10545 = vmatpush2.bf16.msra.mxu0 %v7820
        %10546 = vmatprep.subr.bf16.mxu0 %v7817
        %10547 = vmatpush2.bf16.msra.mxu0 %v7816
        %10548 = vmatprep.subr.bf16.mxu0 %v7813
        %10549 = vmatpush2.bf16.msra.mxu0 %v7812
        %10550 = vmatprep.subr.bf16.mxu0 %v7809
        %10551 = vmatpush2.bf16.msra.mxu0 %v7808
        %10552 = vmatprep.subr.bf16.mxu0 %v7805
        %10553 = vmatpush2.bf16.msra.mxu0 %v7804
        %10554 = vmatprep.subr.bf16.mxu0 %v7801
        %10555 = vmatpush2.bf16.msra.mxu0 %v7800
        %10556 = vmatprep.subr.bf16.mxu0 %v7797
        %10557 = vmatpush2.bf16.msra.mxu0 %v7796
        %10558 = vmatprep.subr.bf16.mxu0 %v7793
        %10559 = vmatpush2.bf16.msra.mxu0 %v7792
        %10560 = vmatprep.mubr.bf16.mxu0 %v1967
        %10561 = vmatmul.mubr.bf16.gmra.mxu0 %v1966
        %v10562 = vpop.f32.mrf.mxu0
        %v10563 = vadd.f32 %v10522, %v10562
        %v10564 = vpop.f32.mrf.mxu0
        %v10565 = vadd.f32 %v10524, %v10564
        %v10566 = vpop.f32.mrf.mxu0
        %v10567 = vpop.f32.mrf.mxu0
        %10568 = vdwg.mxu0
        %10569 = vmatprep.subr.bf16.mxu0 %v7853
        %10570 = vmatpush1.bf16.msra.mxu0 %v7852
        %10571 = vmatprep.subr.bf16.mxu0 %v7849
        %10572 = vmatpush1.bf16.msra.mxu0 %v7848
        %10573 = vmatprep.subr.bf16.mxu0 %v7845
        %10574 = vmatpush1.bf16.msra.mxu0 %v7844
        %10575 = vmatprep.subr.bf16.mxu0 %v7841
        %10576 = vmatpush1.bf16.msra.mxu0 %v7840
        %10577 = vmatprep.subr.bf16.mxu0 %v7837
        %10578 = vmatpush1.bf16.msra.mxu0 %v7836
        %10579 = vmatprep.subr.bf16.mxu0 %v7833
        %10580 = vmatpush1.bf16.msra.mxu0 %v7832
        %10581 = vmatprep.subr.bf16.mxu0 %v7829
        %10582 = vmatpush1.bf16.msra.mxu0 %v7828
        %10583 = vmatprep.subr.bf16.mxu0 %v7825
        %10584 = vmatpush1.bf16.msra.mxu0 %v7824
        %10585 = vmatprep.subr.bf16.mxu0 %v7885
        %10586 = vmatpush2.bf16.msra.mxu0 %v7884
        %10587 = vmatprep.subr.bf16.mxu0 %v7881
        %10588 = vmatpush2.bf16.msra.mxu0 %v7880
        %10589 = vmatprep.subr.bf16.mxu0 %v7877
        %10590 = vmatpush2.bf16.msra.mxu0 %v7876
        %10591 = vmatprep.subr.bf16.mxu0 %v7873
        %10592 = vmatpush2.bf16.msra.mxu0 %v7872
        %10593 = vmatprep.subr.bf16.mxu0 %v7869
        %10594 = vmatpush2.bf16.msra.mxu0 %v7868
        %10595 = vmatprep.subr.bf16.mxu0 %v7865
        %10596 = vmatpush2.bf16.msra.mxu0 %v7864
        %10597 = vmatprep.subr.bf16.mxu0 %v7861
        %10598 = vmatpush2.bf16.msra.mxu0 %v7860
        %10599 = vmatprep.subr.bf16.mxu0 %v7857
        %10600 = vmatpush2.bf16.msra.mxu0 %v7856
        %10601 = vmatprep.mubr.bf16.mxu0 %v1969
        %10602 = vmatmul.mubr.bf16.gmra.mxu0 %v1968
        %v10603 = vpop.f32.mrf.mxu0
        %v10604 = vadd.f32 %v10563, %v10603
        %v10605 = vpop.f32.mrf.mxu0
        %v10606 = vadd.f32 %v10565, %v10605
        %v10607 = vpop.f32.mrf.mxu0
        %v10608 = vpop.f32.mrf.mxu0
        %10609 = vdwg.mxu0
        %10610 = vmatprep.subr.bf16.mxu0 %v7917
        %10611 = vmatpush1.bf16.msra.mxu0 %v7916
        %10612 = vmatprep.subr.bf16.mxu0 %v7913
        %10613 = vmatpush1.bf16.msra.mxu0 %v7912
        %10614 = vmatprep.subr.bf16.mxu0 %v7909
        %10615 = vmatpush1.bf16.msra.mxu0 %v7908
        %10616 = vmatprep.subr.bf16.mxu0 %v7905
        %10617 = vmatpush1.bf16.msra.mxu0 %v7904
        %10618 = vmatprep.subr.bf16.mxu0 %v7901
        %10619 = vmatpush1.bf16.msra.mxu0 %v7900
        %10620 = vmatprep.subr.bf16.mxu0 %v7897
        %10621 = vmatpush1.bf16.msra.mxu0 %v7896
        %10622 = vmatprep.subr.bf16.mxu0 %v7893
        %10623 = vmatpush1.bf16.msra.mxu0 %v7892
        %10624 = vmatprep.subr.bf16.mxu0 %v7889
        %10625 = vmatpush1.bf16.msra.mxu0 %v7888
        %10626 = vmatprep.subr.bf16.mxu0 %v7949
        %10627 = vmatpush2.bf16.msra.mxu0 %v7948
        %10628 = vmatprep.subr.bf16.mxu0 %v7945
        %10629 = vmatpush2.bf16.msra.mxu0 %v7944
        %10630 = vmatprep.subr.bf16.mxu0 %v7941
        %10631 = vmatpush2.bf16.msra.mxu0 %v7940
        %10632 = vmatprep.subr.bf16.mxu0 %v7937
        %10633 = vmatpush2.bf16.msra.mxu0 %v7936
        %10634 = vmatprep.subr.bf16.mxu0 %v7933
        %10635 = vmatpush2.bf16.msra.mxu0 %v7932
        %10636 = vmatprep.subr.bf16.mxu0 %v7929
        %10637 = vmatpush2.bf16.msra.mxu0 %v7928
        %10638 = vmatprep.subr.bf16.mxu0 %v7925
        %10639 = vmatpush2.bf16.msra.mxu0 %v7924
        %10640 = vmatprep.subr.bf16.mxu0 %v7921
        %10641 = vmatpush2.bf16.msra.mxu0 %v7920
        %10642 = vmatprep.mubr.bf16.mxu0 %v1971
        %10643 = vmatmul.mubr.bf16.gmra.mxu0 %v1970
        %v10644 = vpop.f32.mrf.mxu0
        %v10645 = vadd.f32 %v10604, %v10644
        %v10646 = vpop.f32.mrf.mxu0
        %v10647 = vadd.f32 %v10606, %v10646
        %v10648 = vpop.f32.mrf.mxu0
        %v10649 = vpop.f32.mrf.mxu0
        %10650 = vdwg.mxu0
        %10651 = vmatprep.subr.bf16.mxu0 %v7981
        %10652 = vmatpush1.bf16.msra.mxu0 %v7980
        %10653 = vmatprep.subr.bf16.mxu0 %v7977
        %10654 = vmatpush1.bf16.msra.mxu0 %v7976
        %10655 = vmatprep.subr.bf16.mxu0 %v7973
        %10656 = vmatpush1.bf16.msra.mxu0 %v7972
        %10657 = vmatprep.subr.bf16.mxu0 %v7969
        %10658 = vmatpush1.bf16.msra.mxu0 %v7968
        %10659 = vmatprep.subr.bf16.mxu0 %v7965
        %10660 = vmatpush1.bf16.msra.mxu0 %v7964
        %10661 = vmatprep.subr.bf16.mxu0 %v7961
        %10662 = vmatpush1.bf16.msra.mxu0 %v7960
        %10663 = vmatprep.subr.bf16.mxu0 %v7957
        %10664 = vmatpush1.bf16.msra.mxu0 %v7956
        %10665 = vmatprep.subr.bf16.mxu0 %v7953
        %10666 = vmatpush1.bf16.msra.mxu0 %v7952
        %10667 = vmatprep.subr.bf16.mxu0 %v8013
        %10668 = vmatpush2.bf16.msra.mxu0 %v8012
        %10669 = vmatprep.subr.bf16.mxu0 %v8009
        %10670 = vmatpush2.bf16.msra.mxu0 %v8008
        %10671 = vmatprep.subr.bf16.mxu0 %v8005
        %10672 = vmatpush2.bf16.msra.mxu0 %v8004
        %10673 = vmatprep.subr.bf16.mxu0 %v8001
        %10674 = vmatpush2.bf16.msra.mxu0 %v8000
        %10675 = vmatprep.subr.bf16.mxu0 %v7997
        %10676 = vmatpush2.bf16.msra.mxu0 %v7996
        %10677 = vmatprep.subr.bf16.mxu0 %v7993
        %10678 = vmatpush2.bf16.msra.mxu0 %v7992
        %10679 = vmatprep.subr.bf16.mxu0 %v7989
        %10680 = vmatpush2.bf16.msra.mxu0 %v7988
        %10681 = vmatprep.subr.bf16.mxu0 %v7985
        %10682 = vmatpush2.bf16.msra.mxu0 %v7984
        %10683 = vmatprep.mubr.bf16.mxu0 %v1973
        %10684 = vmatmul.mubr.bf16.gmra.mxu0 %v1972
        %v10685 = vpop.f32.mrf.mxu0
        %v10686 = vadd.f32 %v10645, %v10685
        %v10687 = vpop.f32.mrf.mxu0
        %v10688 = vadd.f32 %v10647, %v10687
        %v10689 = vpop.f32.mrf.mxu0
        %v10690 = vpop.f32.mrf.mxu0
        %10691 = vdwg.mxu0
        %10692 = vmatprep.subr.bf16.mxu0 %v8045
        %10693 = vmatpush1.bf16.msra.mxu0 %v8044
        %10694 = vmatprep.subr.bf16.mxu0 %v8041
        %10695 = vmatpush1.bf16.msra.mxu0 %v8040
        %10696 = vmatprep.subr.bf16.mxu0 %v8037
        %10697 = vmatpush1.bf16.msra.mxu0 %v8036
        %10698 = vmatprep.subr.bf16.mxu0 %v8033
        %10699 = vmatpush1.bf16.msra.mxu0 %v8032
        %10700 = vmatprep.subr.bf16.mxu0 %v8029
        %10701 = vmatpush1.bf16.msra.mxu0 %v8028
        %10702 = vmatprep.subr.bf16.mxu0 %v8025
        %10703 = vmatpush1.bf16.msra.mxu0 %v8024
        %10704 = vmatprep.subr.bf16.mxu0 %v8021
        %10705 = vmatpush1.bf16.msra.mxu0 %v8020
        %10706 = vmatprep.subr.bf16.mxu0 %v8017
        %10707 = vmatpush1.bf16.msra.mxu0 %v8016
        %10708 = vmatprep.subr.bf16.mxu0 %v8077
        %10709 = vmatpush2.bf16.msra.mxu0 %v8076
        %10710 = vmatprep.subr.bf16.mxu0 %v8073
        %10711 = vmatpush2.bf16.msra.mxu0 %v8072
        %10712 = vmatprep.subr.bf16.mxu0 %v8069
        %10713 = vmatpush2.bf16.msra.mxu0 %v8068
        %10714 = vmatprep.subr.bf16.mxu0 %v8065
        %10715 = vmatpush2.bf16.msra.mxu0 %v8064
        %10716 = vmatprep.subr.bf16.mxu0 %v8061
        %10717 = vmatpush2.bf16.msra.mxu0 %v8060
        %10718 = vmatprep.subr.bf16.mxu0 %v8057
        %10719 = vmatpush2.bf16.msra.mxu0 %v8056
        %10720 = vmatprep.subr.bf16.mxu0 %v8053
        %10721 = vmatpush2.bf16.msra.mxu0 %v8052
        %10722 = vmatprep.subr.bf16.mxu0 %v8049
        %10723 = vmatpush2.bf16.msra.mxu0 %v8048
        %10724 = vmatprep.mubr.bf16.mxu0 %v1975
        %10725 = vmatmul.mubr.bf16.gmra.mxu0 %v1974
        %v10726 = vpop.f32.mrf.mxu0
        %v10727 = vadd.f32 %v10686, %v10726
        %v10728 = vpop.f32.mrf.mxu0
        %v10729 = vadd.f32 %v10688, %v10728
        %v10730 = vpop.f32.mrf.mxu0
        %v10731 = vpop.f32.mrf.mxu0
        %10732 = vdwg.mxu0
        %10733 = vmatprep.subr.bf16.mxu0 %v8109
        %10734 = vmatpush1.bf16.msra.mxu0 %v8108
        %10735 = vmatprep.subr.bf16.mxu0 %v8105
        %10736 = vmatpush1.bf16.msra.mxu0 %v8104
        %10737 = vmatprep.subr.bf16.mxu0 %v8101
        %10738 = vmatpush1.bf16.msra.mxu0 %v8100
        %10739 = vmatprep.subr.bf16.mxu0 %v8097
        %10740 = vmatpush1.bf16.msra.mxu0 %v8096
        %10741 = vmatprep.subr.bf16.mxu0 %v8093
        %10742 = vmatpush1.bf16.msra.mxu0 %v8092
        %10743 = vmatprep.subr.bf16.mxu0 %v8089
        %10744 = vmatpush1.bf16.msra.mxu0 %v8088
        %10745 = vmatprep.subr.bf16.mxu0 %v8085
        %10746 = vmatpush1.bf16.msra.mxu0 %v8084
        %10747 = vmatprep.subr.bf16.mxu0 %v8081
        %10748 = vmatpush1.bf16.msra.mxu0 %v8080
        %10749 = vmatprep.subr.bf16.mxu0 %v8141
        %10750 = vmatpush2.bf16.msra.mxu0 %v8140
        %10751 = vmatprep.subr.bf16.mxu0 %v8137
        %10752 = vmatpush2.bf16.msra.mxu0 %v8136
        %10753 = vmatprep.subr.bf16.mxu0 %v8133
        %10754 = vmatpush2.bf16.msra.mxu0 %v8132
        %10755 = vmatprep.subr.bf16.mxu0 %v8129
        %10756 = vmatpush2.bf16.msra.mxu0 %v8128
        %10757 = vmatprep.subr.bf16.mxu0 %v8125
        %10758 = vmatpush2.bf16.msra.mxu0 %v8124
        %10759 = vmatprep.subr.bf16.mxu0 %v8121
        %10760 = vmatpush2.bf16.msra.mxu0 %v8120
        %10761 = vmatprep.subr.bf16.mxu0 %v8117
        %10762 = vmatpush2.bf16.msra.mxu0 %v8116
        %10763 = vmatprep.subr.bf16.mxu0 %v8113
        %10764 = vmatpush2.bf16.msra.mxu0 %v8112
        %10765 = vmatprep.mubr.bf16.mxu0 %v1977
        %10766 = vmatmul.mubr.bf16.gmra.mxu0 %v1976
        %v10767 = vpop.f32.mrf.mxu0
        %v10768 = vadd.f32 %v10727, %v10767
        %v10769 = vpop.f32.mrf.mxu0
        %v10770 = vadd.f32 %v10729, %v10769
        %v10771 = vpop.f32.mrf.mxu0
        %v10772 = vpop.f32.mrf.mxu0
        %10773 = vdwg.mxu0
        %10774 = vmatprep.subr.bf16.mxu0 %v8173
        %10775 = vmatpush1.bf16.msra.mxu0 %v8172
        %10776 = vmatprep.subr.bf16.mxu0 %v8169
        %10777 = vmatpush1.bf16.msra.mxu0 %v8168
        %10778 = vmatprep.subr.bf16.mxu0 %v8165
        %10779 = vmatpush1.bf16.msra.mxu0 %v8164
        %10780 = vmatprep.subr.bf16.mxu0 %v8161
        %10781 = vmatpush1.bf16.msra.mxu0 %v8160
        %10782 = vmatprep.subr.bf16.mxu0 %v8157
        %10783 = vmatpush1.bf16.msra.mxu0 %v8156
        %10784 = vmatprep.subr.bf16.mxu0 %v8153
        %10785 = vmatpush1.bf16.msra.mxu0 %v8152
        %10786 = vmatprep.subr.bf16.mxu0 %v8149
        %10787 = vmatpush1.bf16.msra.mxu0 %v8148
        %10788 = vmatprep.subr.bf16.mxu0 %v8145
        %10789 = vmatpush1.bf16.msra.mxu0 %v8144
        %10790 = vmatprep.subr.bf16.mxu0 %v8205
        %10791 = vmatpush2.bf16.msra.mxu0 %v8204
        %10792 = vmatprep.subr.bf16.mxu0 %v8201
        %10793 = vmatpush2.bf16.msra.mxu0 %v8200
        %10794 = vmatprep.subr.bf16.mxu0 %v8197
        %10795 = vmatpush2.bf16.msra.mxu0 %v8196
        %10796 = vmatprep.subr.bf16.mxu0 %v8193
        %10797 = vmatpush2.bf16.msra.mxu0 %v8192
        %10798 = vmatprep.subr.bf16.mxu0 %v8189
        %10799 = vmatpush2.bf16.msra.mxu0 %v8188
        %10800 = vmatprep.subr.bf16.mxu0 %v8185
        %10801 = vmatpush2.bf16.msra.mxu0 %v8184
        %10802 = vmatprep.subr.bf16.mxu0 %v8181
        %10803 = vmatpush2.bf16.msra.mxu0 %v8180
        %10804 = vmatprep.subr.bf16.mxu0 %v8177
        %10805 = vmatpush2.bf16.msra.mxu0 %v8176
        %10806 = vmatprep.mubr.bf16.mxu0 %v1979
        %10807 = vmatmul.mubr.bf16.gmra.mxu0 %v1978
        %v10808 = vpop.f32.mrf.mxu0
        %v10809 = vadd.f32 %v10768, %v10808
        %v10810 = vpop.f32.mrf.mxu0
        %v10811 = vadd.f32 %v10770, %v10810
        %v10812 = vpop.f32.mrf.mxu0
        %v10813 = vpop.f32.mrf.mxu0
        %10814 = vdwg.mxu0
        %10815 = vmatprep.subr.bf16.mxu0 %v8237
        %10816 = vmatpush1.bf16.msra.mxu0 %v8236
        %10817 = vmatprep.subr.bf16.mxu0 %v8233
        %10818 = vmatpush1.bf16.msra.mxu0 %v8232
        %10819 = vmatprep.subr.bf16.mxu0 %v8229
        %10820 = vmatpush1.bf16.msra.mxu0 %v8228
        %10821 = vmatprep.subr.bf16.mxu0 %v8225
        %10822 = vmatpush1.bf16.msra.mxu0 %v8224
        %10823 = vmatprep.subr.bf16.mxu0 %v8221
        %10824 = vmatpush1.bf16.msra.mxu0 %v8220
        %10825 = vmatprep.subr.bf16.mxu0 %v8217
        %10826 = vmatpush1.bf16.msra.mxu0 %v8216
        %10827 = vmatprep.subr.bf16.mxu0 %v8213
        %10828 = vmatpush1.bf16.msra.mxu0 %v8212
        %10829 = vmatprep.subr.bf16.mxu0 %v8209
        %10830 = vmatpush1.bf16.msra.mxu0 %v8208
        %10831 = vmatprep.subr.bf16.mxu0 %v8269
        %10832 = vmatpush2.bf16.msra.mxu0 %v8268
        %10833 = vmatprep.subr.bf16.mxu0 %v8265
        %10834 = vmatpush2.bf16.msra.mxu0 %v8264
        %10835 = vmatprep.subr.bf16.mxu0 %v8261
        %10836 = vmatpush2.bf16.msra.mxu0 %v8260
        %10837 = vmatprep.subr.bf16.mxu0 %v8257
        %10838 = vmatpush2.bf16.msra.mxu0 %v8256
        %10839 = vmatprep.subr.bf16.mxu0 %v8253
        %10840 = vmatpush2.bf16.msra.mxu0 %v8252
        %10841 = vmatprep.subr.bf16.mxu0 %v8249
        %10842 = vmatpush2.bf16.msra.mxu0 %v8248
        %10843 = vmatprep.subr.bf16.mxu0 %v8245
        %10844 = vmatpush2.bf16.msra.mxu0 %v8244
        %10845 = vmatprep.subr.bf16.mxu0 %v8241
        %10846 = vmatpush2.bf16.msra.mxu0 %v8240
        %10847 = vmatprep.mubr.bf16.mxu0 %v1981
        %10848 = vmatmul.mubr.bf16.gmra.mxu0 %v1980
        %v10849 = vpop.f32.mrf.mxu0
        %v10850 = vadd.f32 %v10809, %v10849
        %v10851 = vpop.f32.mrf.mxu0
        %v10852 = vadd.f32 %v10811, %v10851
        %v10853 = vpop.f32.mrf.mxu0
        %v10854 = vpop.f32.mrf.mxu0
        %10855 = vdwg.mxu0
        %10856 = vmatprep.subr.bf16.mxu0 %v8301
        %10857 = vmatpush1.bf16.msra.mxu0 %v8300
        %10858 = vmatprep.subr.bf16.mxu0 %v8297
        %10859 = vmatpush1.bf16.msra.mxu0 %v8296
        %10860 = vmatprep.subr.bf16.mxu0 %v8293
        %10861 = vmatpush1.bf16.msra.mxu0 %v8292
        %10862 = vmatprep.subr.bf16.mxu0 %v8289
        %10863 = vmatpush1.bf16.msra.mxu0 %v8288
        %10864 = vmatprep.subr.bf16.mxu0 %v8285
        %10865 = vmatpush1.bf16.msra.mxu0 %v8284
        %10866 = vmatprep.subr.bf16.mxu0 %v8281
        %10867 = vmatpush1.bf16.msra.mxu0 %v8280
        %10868 = vmatprep.subr.bf16.mxu0 %v8277
        %10869 = vmatpush1.bf16.msra.mxu0 %v8276
        %10870 = vmatprep.subr.bf16.mxu0 %v8273
        %10871 = vmatpush1.bf16.msra.mxu0 %v8272
        %10872 = vmatprep.subr.bf16.mxu0 0
        %10873 = vmatpush2.bf16.msra.mxu0 0
        %10874 = vmatprep.subr.bf16.mxu0 0
        %10875 = vmatpush2.bf16.msra.mxu0 0
        %10876 = vmatprep.subr.bf16.mxu0 0
        %10877 = vmatpush2.bf16.msra.mxu0 0
        %10878 = vmatprep.subr.bf16.mxu0 0
        %10879 = vmatpush2.bf16.msra.mxu0 0
        %10880 = vmatprep.subr.bf16.mxu0 0
        %10881 = vmatpush2.bf16.msra.mxu0 0
        %10882 = vmatprep.subr.bf16.mxu0 0
        %10883 = vmatpush2.bf16.msra.mxu0 0
        %10884 = vmatprep.subr.bf16.mxu0 0
        %10885 = vmatpush2.bf16.msra.mxu0 0
        %10886 = vmatprep.subr.bf16.mxu0 0
        %10887 = vmatpush2.bf16.msra.mxu0 0
        %10888 = vmatprep.mubr.bf16.mxu0 0
        %10889 = vmatmul.mubr.bf16.gmra.mxu0 %v1982
        %v10890 = vpop.f32.mrf.mxu0
        %v10891 = vadd.f32 %v10850, %v10890
        %v10892 = vpop.f32.mrf.mxu0
        %v10893 = vadd.f32 %v10852, %v10892
        %v10894 = vpop.f32.mrf.mxu0
        %v10895 = vpop.f32.mrf.mxu0
        %10896 = vdwg.mxu0
        %10897 = vmatprep.subr.bf16.mxu0 %v6767
        %10898 = vmatpush1.bf16.msra.mxu0 %v6766
        %10899 = vmatprep.subr.bf16.mxu0 %v6763
        %10900 = vmatpush1.bf16.msra.mxu0 %v6762
        %10901 = vmatprep.subr.bf16.mxu0 %v6759
        %10902 = vmatpush1.bf16.msra.mxu0 %v6758
        %10903 = vmatprep.subr.bf16.mxu0 %v6755
        %10904 = vmatpush1.bf16.msra.mxu0 %v6754
        %10905 = vmatprep.subr.bf16.mxu0 %v6751
        %10906 = vmatpush1.bf16.msra.mxu0 %v6750
        %10907 = vmatprep.subr.bf16.mxu0 %v6747
        %10908 = vmatpush1.bf16.msra.mxu0 %v6746
        %10909 = vmatprep.subr.bf16.mxu0 %v6743
        %10910 = vmatpush1.bf16.msra.mxu0 %v6742
        %10911 = vmatprep.subr.bf16.mxu0 %v6739
        %10912 = vmatpush1.bf16.msra.mxu0 %v6738
        %10913 = vmatprep.subr.bf16.mxu0 %v6799
        %10914 = vmatpush2.bf16.msra.mxu0 %v6798
        %10915 = vmatprep.subr.bf16.mxu0 %v6795
        %10916 = vmatpush2.bf16.msra.mxu0 %v6794
        %10917 = vmatprep.subr.bf16.mxu0 %v6791
        %10918 = vmatpush2.bf16.msra.mxu0 %v6790
        %10919 = vmatprep.subr.bf16.mxu0 %v6787
        %10920 = vmatpush2.bf16.msra.mxu0 %v6786
        %10921 = vmatprep.subr.bf16.mxu0 %v6783
        %10922 = vmatpush2.bf16.msra.mxu0 %v6782
        %10923 = vmatprep.subr.bf16.mxu0 %v6779
        %10924 = vmatpush2.bf16.msra.mxu0 %v6778
        %10925 = vmatprep.subr.bf16.mxu0 %v6775
        %10926 = vmatpush2.bf16.msra.mxu0 %v6774
        %10927 = vmatprep.subr.bf16.mxu0 %v6771
        %10928 = vmatpush2.bf16.msra.mxu0 %v6770
        %10929 = vmatprep.mubr.bf16.mxu0 %v1935
        %10930 = vmatmul.mubr.bf16.gmra.mxu0 %v1934
        %v10931 = vpop.f32.mrf.mxu0
        %v10932 = vadd.f32 0.0, %v10931
        %v10933 = vpop.f32.mrf.mxu0
        %v10934 = vadd.f32 0.0, %v10933
        %v10935 = vpop.f32.mrf.mxu0
        %v10936 = vpop.f32.mrf.mxu0
        %10937 = vdwg.mxu0
        %10938 = vmatprep.subr.bf16.mxu0 %v6831
        %10939 = vmatpush1.bf16.msra.mxu0 %v6830
        %10940 = vmatprep.subr.bf16.mxu0 %v6827
        %10941 = vmatpush1.bf16.msra.mxu0 %v6826
        %10942 = vmatprep.subr.bf16.mxu0 %v6823
        %10943 = vmatpush1.bf16.msra.mxu0 %v6822
        %10944 = vmatprep.subr.bf16.mxu0 %v6819
        %10945 = vmatpush1.bf16.msra.mxu0 %v6818
        %10946 = vmatprep.subr.bf16.mxu0 %v6815
        %10947 = vmatpush1.bf16.msra.mxu0 %v6814
        %10948 = vmatprep.subr.bf16.mxu0 %v6811
        %10949 = vmatpush1.bf16.msra.mxu0 %v6810
        %10950 = vmatprep.subr.bf16.mxu0 %v6807
        %10951 = vmatpush1.bf16.msra.mxu0 %v6806
        %10952 = vmatprep.subr.bf16.mxu0 %v6803
        %10953 = vmatpush1.bf16.msra.mxu0 %v6802
        %10954 = vmatprep.subr.bf16.mxu0 %v6863
        %10955 = vmatpush2.bf16.msra.mxu0 %v6862
        %10956 = vmatprep.subr.bf16.mxu0 %v6859
        %10957 = vmatpush2.bf16.msra.mxu0 %v6858
        %10958 = vmatprep.subr.bf16.mxu0 %v6855
        %10959 = vmatpush2.bf16.msra.mxu0 %v6854
        %10960 = vmatprep.subr.bf16.mxu0 %v6851
        %10961 = vmatpush2.bf16.msra.mxu0 %v6850
        %10962 = vmatprep.subr.bf16.mxu0 %v6847
        %10963 = vmatpush2.bf16.msra.mxu0 %v6846
        %10964 = vmatprep.subr.bf16.mxu0 %v6843
        %10965 = vmatpush2.bf16.msra.mxu0 %v6842
        %10966 = vmatprep.subr.bf16.mxu0 %v6839
        %10967 = vmatpush2.bf16.msra.mxu0 %v6838
        %10968 = vmatprep.subr.bf16.mxu0 %v6835
        %10969 = vmatpush2.bf16.msra.mxu0 %v6834
        %10970 = vmatprep.mubr.bf16.mxu0 %v1937
        %10971 = vmatmul.mubr.bf16.gmra.mxu0 %v1936
        %v10972 = vpop.f32.mrf.mxu0
        %v10973 = vadd.f32 %v10932, %v10972
        %v10974 = vpop.f32.mrf.mxu0
        %v10975 = vadd.f32 %v10934, %v10974
        %v10976 = vpop.f32.mrf.mxu0
        %v10977 = vpop.f32.mrf.mxu0
        %10978 = vdwg.mxu0
        %10979 = vmatprep.subr.bf16.mxu0 %v6895
        %10980 = vmatpush1.bf16.msra.mxu0 %v6894
        %10981 = vmatprep.subr.bf16.mxu0 %v6891
        %10982 = vmatpush1.bf16.msra.mxu0 %v6890
        %10983 = vmatprep.subr.bf16.mxu0 %v6887
        %10984 = vmatpush1.bf16.msra.mxu0 %v6886
        %10985 = vmatprep.subr.bf16.mxu0 %v6883
        %10986 = vmatpush1.bf16.msra.mxu0 %v6882
        %10987 = vmatprep.subr.bf16.mxu0 %v6879
        %10988 = vmatpush1.bf16.msra.mxu0 %v6878
        %10989 = vmatprep.subr.bf16.mxu0 %v6875
        %10990 = vmatpush1.bf16.msra.mxu0 %v6874
        %10991 = vmatprep.subr.bf16.mxu0 %v6871
        %10992 = vmatpush1.bf16.msra.mxu0 %v6870
        %10993 = vmatprep.subr.bf16.mxu0 %v6867
        %10994 = vmatpush1.bf16.msra.mxu0 %v6866
        %10995 = vmatprep.subr.bf16.mxu0 %v6927
        %10996 = vmatpush2.bf16.msra.mxu0 %v6926
        %10997 = vmatprep.subr.bf16.mxu0 %v6923
        %10998 = vmatpush2.bf16.msra.mxu0 %v6922
        %10999 = vmatprep.subr.bf16.mxu0 %v6919
        %11000 = vmatpush2.bf16.msra.mxu0 %v6918
        %11001 = vmatprep.subr.bf16.mxu0 %v6915
        %11002 = vmatpush2.bf16.msra.mxu0 %v6914
        %11003 = vmatprep.subr.bf16.mxu0 %v6911
        %11004 = vmatpush2.bf16.msra.mxu0 %v6910
        %11005 = vmatprep.subr.bf16.mxu0 %v6907
        %11006 = vmatpush2.bf16.msra.mxu0 %v6906
        %11007 = vmatprep.subr.bf16.mxu0 %v6903
        %11008 = vmatpush2.bf16.msra.mxu0 %v6902
        %11009 = vmatprep.subr.bf16.mxu0 %v6899
        %11010 = vmatpush2.bf16.msra.mxu0 %v6898
        %11011 = vmatprep.mubr.bf16.mxu0 %v1939
        %11012 = vmatmul.mubr.bf16.gmra.mxu0 %v1938
        %v11013 = vpop.f32.mrf.mxu0
        %v11014 = vadd.f32 %v10973, %v11013
        %v11015 = vpop.f32.mrf.mxu0
        %v11016 = vadd.f32 %v10975, %v11015
        %v11017 = vpop.f32.mrf.mxu0
        %v11018 = vpop.f32.mrf.mxu0
        %11019 = vdwg.mxu0
        %11020 = vmatprep.subr.bf16.mxu0 %v6959
        %11021 = vmatpush1.bf16.msra.mxu0 %v6958
        %11022 = vmatprep.subr.bf16.mxu0 %v6955
        %11023 = vmatpush1.bf16.msra.mxu0 %v6954
        %11024 = vmatprep.subr.bf16.mxu0 %v6951
        %11025 = vmatpush1.bf16.msra.mxu0 %v6950
        %11026 = vmatprep.subr.bf16.mxu0 %v6947
        %11027 = vmatpush1.bf16.msra.mxu0 %v6946
        %11028 = vmatprep.subr.bf16.mxu0 %v6943
        %11029 = vmatpush1.bf16.msra.mxu0 %v6942
        %11030 = vmatprep.subr.bf16.mxu0 %v6939
        %11031 = vmatpush1.bf16.msra.mxu0 %v6938
        %11032 = vmatprep.subr.bf16.mxu0 %v6935
        %11033 = vmatpush1.bf16.msra.mxu0 %v6934
        %11034 = vmatprep.subr.bf16.mxu0 %v6931
        %11035 = vmatpush1.bf16.msra.mxu0 %v6930
        %11036 = vmatprep.subr.bf16.mxu0 %v6991
        %11037 = vmatpush2.bf16.msra.mxu0 %v6990
        %11038 = vmatprep.subr.bf16.mxu0 %v6987
        %11039 = vmatpush2.bf16.msra.mxu0 %v6986
        %11040 = vmatprep.subr.bf16.mxu0 %v6983
        %11041 = vmatpush2.bf16.msra.mxu0 %v6982
        %11042 = vmatprep.subr.bf16.mxu0 %v6979
        %11043 = vmatpush2.bf16.msra.mxu0 %v6978
        %11044 = vmatprep.subr.bf16.mxu0 %v6975
        %11045 = vmatpush2.bf16.msra.mxu0 %v6974
        %11046 = vmatprep.subr.bf16.mxu0 %v6971
        %11047 = vmatpush2.bf16.msra.mxu0 %v6970
        %11048 = vmatprep.subr.bf16.mxu0 %v6967
        %11049 = vmatpush2.bf16.msra.mxu0 %v6966
        %11050 = vmatprep.subr.bf16.mxu0 %v6963
        %11051 = vmatpush2.bf16.msra.mxu0 %v6962
        %11052 = vmatprep.mubr.bf16.mxu0 %v1941
        %11053 = vmatmul.mubr.bf16.gmra.mxu0 %v1940
        %v11054 = vpop.f32.mrf.mxu0
        %v11055 = vadd.f32 %v11014, %v11054
        %v11056 = vpop.f32.mrf.mxu0
        %v11057 = vadd.f32 %v11016, %v11056
        %v11058 = vpop.f32.mrf.mxu0
        %v11059 = vpop.f32.mrf.mxu0
        %11060 = vdwg.mxu0
        %11061 = vmatprep.subr.bf16.mxu0 %v7023
        %11062 = vmatpush1.bf16.msra.mxu0 %v7022
        %11063 = vmatprep.subr.bf16.mxu0 %v7019
        %11064 = vmatpush1.bf16.msra.mxu0 %v7018
        %11065 = vmatprep.subr.bf16.mxu0 %v7015
        %11066 = vmatpush1.bf16.msra.mxu0 %v7014
        %11067 = vmatprep.subr.bf16.mxu0 %v7011
        %11068 = vmatpush1.bf16.msra.mxu0 %v7010
        %11069 = vmatprep.subr.bf16.mxu0 %v7007
        %11070 = vmatpush1.bf16.msra.mxu0 %v7006
        %11071 = vmatprep.subr.bf16.mxu0 %v7003
        %11072 = vmatpush1.bf16.msra.mxu0 %v7002
        %11073 = vmatprep.subr.bf16.mxu0 %v6999
        %11074 = vmatpush1.bf16.msra.mxu0 %v6998
        %11075 = vmatprep.subr.bf16.mxu0 %v6995
        %11076 = vmatpush1.bf16.msra.mxu0 %v6994
        %11077 = vmatprep.subr.bf16.mxu0 %v7055
        %11078 = vmatpush2.bf16.msra.mxu0 %v7054
        %11079 = vmatprep.subr.bf16.mxu0 %v7051
        %11080 = vmatpush2.bf16.msra.mxu0 %v7050
        %11081 = vmatprep.subr.bf16.mxu0 %v7047
        %11082 = vmatpush2.bf16.msra.mxu0 %v7046
        %11083 = vmatprep.subr.bf16.mxu0 %v7043
        %11084 = vmatpush2.bf16.msra.mxu0 %v7042
        %11085 = vmatprep.subr.bf16.mxu0 %v7039
        %11086 = vmatpush2.bf16.msra.mxu0 %v7038
        %11087 = vmatprep.subr.bf16.mxu0 %v7035
        %11088 = vmatpush2.bf16.msra.mxu0 %v7034
        %11089 = vmatprep.subr.bf16.mxu0 %v7031
        %11090 = vmatpush2.bf16.msra.mxu0 %v7030
        %11091 = vmatprep.subr.bf16.mxu0 %v7027
        %11092 = vmatpush2.bf16.msra.mxu0 %v7026
        %11093 = vmatprep.mubr.bf16.mxu0 %v1943
        %11094 = vmatmul.mubr.bf16.gmra.mxu0 %v1942
        %v11095 = vpop.f32.mrf.mxu0
        %v11096 = vadd.f32 %v11055, %v11095
        %v11097 = vpop.f32.mrf.mxu0
        %v11098 = vadd.f32 %v11057, %v11097
        %v11099 = vpop.f32.mrf.mxu0
        %v11100 = vpop.f32.mrf.mxu0
        %11101 = vdwg.mxu0
        %11102 = vmatprep.subr.bf16.mxu0 %v7087
        %11103 = vmatpush1.bf16.msra.mxu0 %v7086
        %11104 = vmatprep.subr.bf16.mxu0 %v7083
        %11105 = vmatpush1.bf16.msra.mxu0 %v7082
        %11106 = vmatprep.subr.bf16.mxu0 %v7079
        %11107 = vmatpush1.bf16.msra.mxu0 %v7078
        %11108 = vmatprep.subr.bf16.mxu0 %v7075
        %11109 = vmatpush1.bf16.msra.mxu0 %v7074
        %11110 = vmatprep.subr.bf16.mxu0 %v7071
        %11111 = vmatpush1.bf16.msra.mxu0 %v7070
        %11112 = vmatprep.subr.bf16.mxu0 %v7067
        %11113 = vmatpush1.bf16.msra.mxu0 %v7066
        %11114 = vmatprep.subr.bf16.mxu0 %v7063
        %11115 = vmatpush1.bf16.msra.mxu0 %v7062
        %11116 = vmatprep.subr.bf16.mxu0 %v7059
        %11117 = vmatpush1.bf16.msra.mxu0 %v7058
        %11118 = vmatprep.subr.bf16.mxu0 %v7119
        %11119 = vmatpush2.bf16.msra.mxu0 %v7118
        %11120 = vmatprep.subr.bf16.mxu0 %v7115
        %11121 = vmatpush2.bf16.msra.mxu0 %v7114
        %11122 = vmatprep.subr.bf16.mxu0 %v7111
        %11123 = vmatpush2.bf16.msra.mxu0 %v7110
        %11124 = vmatprep.subr.bf16.mxu0 %v7107
        %11125 = vmatpush2.bf16.msra.mxu0 %v7106
        %11126 = vmatprep.subr.bf16.mxu0 %v7103
        %11127 = vmatpush2.bf16.msra.mxu0 %v7102
        %11128 = vmatprep.subr.bf16.mxu0 %v7099
        %11129 = vmatpush2.bf16.msra.mxu0 %v7098
        %11130 = vmatprep.subr.bf16.mxu0 %v7095
        %11131 = vmatpush2.bf16.msra.mxu0 %v7094
        %11132 = vmatprep.subr.bf16.mxu0 %v7091
        %11133 = vmatpush2.bf16.msra.mxu0 %v7090
        %11134 = vmatprep.mubr.bf16.mxu0 %v1945
        %11135 = vmatmul.mubr.bf16.gmra.mxu0 %v1944
        %v11136 = vpop.f32.mrf.mxu0
        %v11137 = vadd.f32 %v11096, %v11136
        %v11138 = vpop.f32.mrf.mxu0
        %v11139 = vadd.f32 %v11098, %v11138
        %v11140 = vpop.f32.mrf.mxu0
        %v11141 = vpop.f32.mrf.mxu0
        %11142 = vdwg.mxu0
        %11143 = vmatprep.subr.bf16.mxu0 %v7151
        %11144 = vmatpush1.bf16.msra.mxu0 %v7150
        %11145 = vmatprep.subr.bf16.mxu0 %v7147
        %11146 = vmatpush1.bf16.msra.mxu0 %v7146
        %11147 = vmatprep.subr.bf16.mxu0 %v7143
        %11148 = vmatpush1.bf16.msra.mxu0 %v7142
        %11149 = vmatprep.subr.bf16.mxu0 %v7139
        %11150 = vmatpush1.bf16.msra.mxu0 %v7138
        %11151 = vmatprep.subr.bf16.mxu0 %v7135
        %11152 = vmatpush1.bf16.msra.mxu0 %v7134
        %11153 = vmatprep.subr.bf16.mxu0 %v7131
        %11154 = vmatpush1.bf16.msra.mxu0 %v7130
        %11155 = vmatprep.subr.bf16.mxu0 %v7127
        %11156 = vmatpush1.bf16.msra.mxu0 %v7126
        %11157 = vmatprep.subr.bf16.mxu0 %v7123
        %11158 = vmatpush1.bf16.msra.mxu0 %v7122
        %11159 = vmatprep.subr.bf16.mxu0 %v7183
        %11160 = vmatpush2.bf16.msra.mxu0 %v7182
        %11161 = vmatprep.subr.bf16.mxu0 %v7179
        %11162 = vmatpush2.bf16.msra.mxu0 %v7178
        %11163 = vmatprep.subr.bf16.mxu0 %v7175
        %11164 = vmatpush2.bf16.msra.mxu0 %v7174
        %11165 = vmatprep.subr.bf16.mxu0 %v7171
        %11166 = vmatpush2.bf16.msra.mxu0 %v7170
        %11167 = vmatprep.subr.bf16.mxu0 %v7167
        %11168 = vmatpush2.bf16.msra.mxu0 %v7166
        %11169 = vmatprep.subr.bf16.mxu0 %v7163
        %11170 = vmatpush2.bf16.msra.mxu0 %v7162
        %11171 = vmatprep.subr.bf16.mxu0 %v7159
        %11172 = vmatpush2.bf16.msra.mxu0 %v7158
        %11173 = vmatprep.subr.bf16.mxu0 %v7155
        %11174 = vmatpush2.bf16.msra.mxu0 %v7154
        %11175 = vmatprep.mubr.bf16.mxu0 %v1947
        %11176 = vmatmul.mubr.bf16.gmra.mxu0 %v1946
        %v11177 = vpop.f32.mrf.mxu0
        %v11178 = vadd.f32 %v11137, %v11177
        %v11179 = vpop.f32.mrf.mxu0
        %v11180 = vadd.f32 %v11139, %v11179
        %v11181 = vpop.f32.mrf.mxu0
        %v11182 = vpop.f32.mrf.mxu0
        %11183 = vdwg.mxu0
        %11184 = vmatprep.subr.bf16.mxu0 %v7215
        %11185 = vmatpush1.bf16.msra.mxu0 %v7214
        %11186 = vmatprep.subr.bf16.mxu0 %v7211
        %11187 = vmatpush1.bf16.msra.mxu0 %v7210
        %11188 = vmatprep.subr.bf16.mxu0 %v7207
        %11189 = vmatpush1.bf16.msra.mxu0 %v7206
        %11190 = vmatprep.subr.bf16.mxu0 %v7203
        %11191 = vmatpush1.bf16.msra.mxu0 %v7202
        %11192 = vmatprep.subr.bf16.mxu0 %v7199
        %11193 = vmatpush1.bf16.msra.mxu0 %v7198
        %11194 = vmatprep.subr.bf16.mxu0 %v7195
        %11195 = vmatpush1.bf16.msra.mxu0 %v7194
        %11196 = vmatprep.subr.bf16.mxu0 %v7191
        %11197 = vmatpush1.bf16.msra.mxu0 %v7190
        %11198 = vmatprep.subr.bf16.mxu0 %v7187
        %11199 = vmatpush1.bf16.msra.mxu0 %v7186
        %11200 = vmatprep.subr.bf16.mxu0 %v7247
        %11201 = vmatpush2.bf16.msra.mxu0 %v7246
        %11202 = vmatprep.subr.bf16.mxu0 %v7243
        %11203 = vmatpush2.bf16.msra.mxu0 %v7242
        %11204 = vmatprep.subr.bf16.mxu0 %v7239
        %11205 = vmatpush2.bf16.msra.mxu0 %v7238
        %11206 = vmatprep.subr.bf16.mxu0 %v7235
        %11207 = vmatpush2.bf16.msra.mxu0 %v7234
        %11208 = vmatprep.subr.bf16.mxu0 %v7231
        %11209 = vmatpush2.bf16.msra.mxu0 %v7230
        %11210 = vmatprep.subr.bf16.mxu0 %v7227
        %11211 = vmatpush2.bf16.msra.mxu0 %v7226
        %11212 = vmatprep.subr.bf16.mxu0 %v7223
        %11213 = vmatpush2.bf16.msra.mxu0 %v7222
        %11214 = vmatprep.subr.bf16.mxu0 %v7219
        %11215 = vmatpush2.bf16.msra.mxu0 %v7218
        %11216 = vmatprep.mubr.bf16.mxu0 %v1949
        %11217 = vmatmul.mubr.bf16.gmra.mxu0 %v1948
        %v11218 = vpop.f32.mrf.mxu0
        %v11219 = vadd.f32 %v11178, %v11218
        %v11220 = vpop.f32.mrf.mxu0
        %v11221 = vadd.f32 %v11180, %v11220
        %v11222 = vpop.f32.mrf.mxu0
        %v11223 = vpop.f32.mrf.mxu0
        %11224 = vdwg.mxu0
        %11225 = vmatprep.subr.bf16.mxu0 %v7279
        %11226 = vmatpush1.bf16.msra.mxu0 %v7278
        %11227 = vmatprep.subr.bf16.mxu0 %v7275
        %11228 = vmatpush1.bf16.msra.mxu0 %v7274
        %11229 = vmatprep.subr.bf16.mxu0 %v7271
        %11230 = vmatpush1.bf16.msra.mxu0 %v7270
        %11231 = vmatprep.subr.bf16.mxu0 %v7267
        %11232 = vmatpush1.bf16.msra.mxu0 %v7266
        %11233 = vmatprep.subr.bf16.mxu0 %v7263
        %11234 = vmatpush1.bf16.msra.mxu0 %v7262
        %11235 = vmatprep.subr.bf16.mxu0 %v7259
        %11236 = vmatpush1.bf16.msra.mxu0 %v7258
        %11237 = vmatprep.subr.bf16.mxu0 %v7255
        %11238 = vmatpush1.bf16.msra.mxu0 %v7254
        %11239 = vmatprep.subr.bf16.mxu0 %v7251
        %11240 = vmatpush1.bf16.msra.mxu0 %v7250
        %11241 = vmatprep.subr.bf16.mxu0 %v7311
        %11242 = vmatpush2.bf16.msra.mxu0 %v7310
        %11243 = vmatprep.subr.bf16.mxu0 %v7307
        %11244 = vmatpush2.bf16.msra.mxu0 %v7306
        %11245 = vmatprep.subr.bf16.mxu0 %v7303
        %11246 = vmatpush2.bf16.msra.mxu0 %v7302
        %11247 = vmatprep.subr.bf16.mxu0 %v7299
        %11248 = vmatpush2.bf16.msra.mxu0 %v7298
        %11249 = vmatprep.subr.bf16.mxu0 %v7295
        %11250 = vmatpush2.bf16.msra.mxu0 %v7294
        %11251 = vmatprep.subr.bf16.mxu0 %v7291
        %11252 = vmatpush2.bf16.msra.mxu0 %v7290
        %11253 = vmatprep.subr.bf16.mxu0 %v7287
        %11254 = vmatpush2.bf16.msra.mxu0 %v7286
        %11255 = vmatprep.subr.bf16.mxu0 %v7283
        %11256 = vmatpush2.bf16.msra.mxu0 %v7282
        %11257 = vmatprep.mubr.bf16.mxu0 %v1951
        %11258 = vmatmul.mubr.bf16.gmra.mxu0 %v1950
        %v11259 = vpop.f32.mrf.mxu0
        %v11260 = vadd.f32 %v11219, %v11259
        %v11261 = vpop.f32.mrf.mxu0
        %v11262 = vadd.f32 %v11221, %v11261
        %v11263 = vpop.f32.mrf.mxu0
        %v11264 = vpop.f32.mrf.mxu0
        %11265 = vdwg.mxu0
        %11266 = vmatprep.subr.bf16.mxu0 %v7343
        %11267 = vmatpush1.bf16.msra.mxu0 %v7342
        %11268 = vmatprep.subr.bf16.mxu0 %v7339
        %11269 = vmatpush1.bf16.msra.mxu0 %v7338
        %11270 = vmatprep.subr.bf16.mxu0 %v7335
        %11271 = vmatpush1.bf16.msra.mxu0 %v7334
        %11272 = vmatprep.subr.bf16.mxu0 %v7331
        %11273 = vmatpush1.bf16.msra.mxu0 %v7330
        %11274 = vmatprep.subr.bf16.mxu0 %v7327
        %11275 = vmatpush1.bf16.msra.mxu0 %v7326
        %11276 = vmatprep.subr.bf16.mxu0 %v7323
        %11277 = vmatpush1.bf16.msra.mxu0 %v7322
        %11278 = vmatprep.subr.bf16.mxu0 %v7319
        %11279 = vmatpush1.bf16.msra.mxu0 %v7318
        %11280 = vmatprep.subr.bf16.mxu0 %v7315
        %11281 = vmatpush1.bf16.msra.mxu0 %v7314
        %11282 = vmatprep.subr.bf16.mxu0 %v7375
        %11283 = vmatpush2.bf16.msra.mxu0 %v7374
        %11284 = vmatprep.subr.bf16.mxu0 %v7371
        %11285 = vmatpush2.bf16.msra.mxu0 %v7370
        %11286 = vmatprep.subr.bf16.mxu0 %v7367
        %11287 = vmatpush2.bf16.msra.mxu0 %v7366
        %11288 = vmatprep.subr.bf16.mxu0 %v7363
        %11289 = vmatpush2.bf16.msra.mxu0 %v7362
        %11290 = vmatprep.subr.bf16.mxu0 %v7359
        %11291 = vmatpush2.bf16.msra.mxu0 %v7358
        %11292 = vmatprep.subr.bf16.mxu0 %v7355
        %11293 = vmatpush2.bf16.msra.mxu0 %v7354
        %11294 = vmatprep.subr.bf16.mxu0 %v7351
        %11295 = vmatpush2.bf16.msra.mxu0 %v7350
        %11296 = vmatprep.subr.bf16.mxu0 %v7347
        %11297 = vmatpush2.bf16.msra.mxu0 %v7346
        %11298 = vmatprep.mubr.bf16.mxu0 %v1953
        %11299 = vmatmul.mubr.bf16.gmra.mxu0 %v1952
        %v11300 = vpop.f32.mrf.mxu0
        %v11301 = vadd.f32 %v11260, %v11300
        %v11302 = vpop.f32.mrf.mxu0
        %v11303 = vadd.f32 %v11262, %v11302
        %v11304 = vpop.f32.mrf.mxu0
        %v11305 = vpop.f32.mrf.mxu0
        %11306 = vdwg.mxu0
        %11307 = vmatprep.subr.bf16.mxu0 %v7407
        %11308 = vmatpush1.bf16.msra.mxu0 %v7406
        %11309 = vmatprep.subr.bf16.mxu0 %v7403
        %11310 = vmatpush1.bf16.msra.mxu0 %v7402
        %11311 = vmatprep.subr.bf16.mxu0 %v7399
        %11312 = vmatpush1.bf16.msra.mxu0 %v7398
        %11313 = vmatprep.subr.bf16.mxu0 %v7395
        %11314 = vmatpush1.bf16.msra.mxu0 %v7394
        %11315 = vmatprep.subr.bf16.mxu0 %v7391
        %11316 = vmatpush1.bf16.msra.mxu0 %v7390
        %11317 = vmatprep.subr.bf16.mxu0 %v7387
        %11318 = vmatpush1.bf16.msra.mxu0 %v7386
        %11319 = vmatprep.subr.bf16.mxu0 %v7383
        %11320 = vmatpush1.bf16.msra.mxu0 %v7382
        %11321 = vmatprep.subr.bf16.mxu0 %v7379
        %11322 = vmatpush1.bf16.msra.mxu0 %v7378
        %11323 = vmatprep.subr.bf16.mxu0 %v7439
        %11324 = vmatpush2.bf16.msra.mxu0 %v7438
        %11325 = vmatprep.subr.bf16.mxu0 %v7435
        %11326 = vmatpush2.bf16.msra.mxu0 %v7434
        %11327 = vmatprep.subr.bf16.mxu0 %v7431
        %11328 = vmatpush2.bf16.msra.mxu0 %v7430
        %11329 = vmatprep.subr.bf16.mxu0 %v7427
        %11330 = vmatpush2.bf16.msra.mxu0 %v7426
        %11331 = vmatprep.subr.bf16.mxu0 %v7423
        %11332 = vmatpush2.bf16.msra.mxu0 %v7422
        %11333 = vmatprep.subr.bf16.mxu0 %v7419
        %11334 = vmatpush2.bf16.msra.mxu0 %v7418
        %11335 = vmatprep.subr.bf16.mxu0 %v7415
        %11336 = vmatpush2.bf16.msra.mxu0 %v7414
        %11337 = vmatprep.subr.bf16.mxu0 %v7411
        %11338 = vmatpush2.bf16.msra.mxu0 %v7410
        %11339 = vmatprep.mubr.bf16.mxu0 %v1955
        %11340 = vmatmul.mubr.bf16.gmra.mxu0 %v1954
        %v11341 = vpop.f32.mrf.mxu0
        %v11342 = vadd.f32 %v11301, %v11341
        %v11343 = vpop.f32.mrf.mxu0
        %v11344 = vadd.f32 %v11303, %v11343
        %v11345 = vpop.f32.mrf.mxu0
        %v11346 = vpop.f32.mrf.mxu0
        %11347 = vdwg.mxu0
        %11348 = vmatprep.subr.bf16.mxu0 %v7471
        %11349 = vmatpush1.bf16.msra.mxu0 %v7470
        %11350 = vmatprep.subr.bf16.mxu0 %v7467
        %11351 = vmatpush1.bf16.msra.mxu0 %v7466
        %11352 = vmatprep.subr.bf16.mxu0 %v7463
        %11353 = vmatpush1.bf16.msra.mxu0 %v7462
        %11354 = vmatprep.subr.bf16.mxu0 %v7459
        %11355 = vmatpush1.bf16.msra.mxu0 %v7458
        %11356 = vmatprep.subr.bf16.mxu0 %v7455
        %11357 = vmatpush1.bf16.msra.mxu0 %v7454
        %11358 = vmatprep.subr.bf16.mxu0 %v7451
        %11359 = vmatpush1.bf16.msra.mxu0 %v7450
        %11360 = vmatprep.subr.bf16.mxu0 %v7447
        %11361 = vmatpush1.bf16.msra.mxu0 %v7446
        %11362 = vmatprep.subr.bf16.mxu0 %v7443
        %11363 = vmatpush1.bf16.msra.mxu0 %v7442
        %11364 = vmatprep.subr.bf16.mxu0 %v7503
        %11365 = vmatpush2.bf16.msra.mxu0 %v7502
        %11366 = vmatprep.subr.bf16.mxu0 %v7499
        %11367 = vmatpush2.bf16.msra.mxu0 %v7498
        %11368 = vmatprep.subr.bf16.mxu0 %v7495
        %11369 = vmatpush2.bf16.msra.mxu0 %v7494
        %11370 = vmatprep.subr.bf16.mxu0 %v7491
        %11371 = vmatpush2.bf16.msra.mxu0 %v7490
        %11372 = vmatprep.subr.bf16.mxu0 %v7487
        %11373 = vmatpush2.bf16.msra.mxu0 %v7486
        %11374 = vmatprep.subr.bf16.mxu0 %v7483
        %11375 = vmatpush2.bf16.msra.mxu0 %v7482
        %11376 = vmatprep.subr.bf16.mxu0 %v7479
        %11377 = vmatpush2.bf16.msra.mxu0 %v7478
        %11378 = vmatprep.subr.bf16.mxu0 %v7475
        %11379 = vmatpush2.bf16.msra.mxu0 %v7474
        %11380 = vmatprep.mubr.bf16.mxu0 %v1957
        %11381 = vmatmul.mubr.bf16.gmra.mxu0 %v1956
        %v11382 = vpop.f32.mrf.mxu0
        %v11383 = vadd.f32 %v11342, %v11382
        %v11384 = vpop.f32.mrf.mxu0
        %v11385 = vadd.f32 %v11344, %v11384
        %v11386 = vpop.f32.mrf.mxu0
        %v11387 = vpop.f32.mrf.mxu0
        %11388 = vdwg.mxu0
        %11389 = vmatprep.subr.bf16.mxu0 %v7535
        %11390 = vmatpush1.bf16.msra.mxu0 %v7534
        %11391 = vmatprep.subr.bf16.mxu0 %v7531
        %11392 = vmatpush1.bf16.msra.mxu0 %v7530
        %11393 = vmatprep.subr.bf16.mxu0 %v7527
        %11394 = vmatpush1.bf16.msra.mxu0 %v7526
        %11395 = vmatprep.subr.bf16.mxu0 %v7523
        %11396 = vmatpush1.bf16.msra.mxu0 %v7522
        %11397 = vmatprep.subr.bf16.mxu0 %v7519
        %11398 = vmatpush1.bf16.msra.mxu0 %v7518
        %11399 = vmatprep.subr.bf16.mxu0 %v7515
        %11400 = vmatpush1.bf16.msra.mxu0 %v7514
        %11401 = vmatprep.subr.bf16.mxu0 %v7511
        %11402 = vmatpush1.bf16.msra.mxu0 %v7510
        %11403 = vmatprep.subr.bf16.mxu0 %v7507
        %11404 = vmatpush1.bf16.msra.mxu0 %v7506
        %11405 = vmatprep.subr.bf16.mxu0 %v7567
        %11406 = vmatpush2.bf16.msra.mxu0 %v7566
        %11407 = vmatprep.subr.bf16.mxu0 %v7563
        %11408 = vmatpush2.bf16.msra.mxu0 %v7562
        %11409 = vmatprep.subr.bf16.mxu0 %v7559
        %11410 = vmatpush2.bf16.msra.mxu0 %v7558
        %11411 = vmatprep.subr.bf16.mxu0 %v7555
        %11412 = vmatpush2.bf16.msra.mxu0 %v7554
        %11413 = vmatprep.subr.bf16.mxu0 %v7551
        %11414 = vmatpush2.bf16.msra.mxu0 %v7550
        %11415 = vmatprep.subr.bf16.mxu0 %v7547
        %11416 = vmatpush2.bf16.msra.mxu0 %v7546
        %11417 = vmatprep.subr.bf16.mxu0 %v7543
        %11418 = vmatpush2.bf16.msra.mxu0 %v7542
        %11419 = vmatprep.subr.bf16.mxu0 %v7539
        %11420 = vmatpush2.bf16.msra.mxu0 %v7538
        %11421 = vmatprep.mubr.bf16.mxu0 %v1959
        %11422 = vmatmul.mubr.bf16.gmra.mxu0 %v1958
        %v11423 = vpop.f32.mrf.mxu0
        %v11424 = vadd.f32 %v11383, %v11423
        %v11425 = vpop.f32.mrf.mxu0
        %v11426 = vadd.f32 %v11385, %v11425
        %v11427 = vpop.f32.mrf.mxu0
        %v11428 = vpop.f32.mrf.mxu0
        %11429 = vdwg.mxu0
        %11430 = vmatprep.subr.bf16.mxu0 %v7599
        %11431 = vmatpush1.bf16.msra.mxu0 %v7598
        %11432 = vmatprep.subr.bf16.mxu0 %v7595
        %11433 = vmatpush1.bf16.msra.mxu0 %v7594
        %11434 = vmatprep.subr.bf16.mxu0 %v7591
        %11435 = vmatpush1.bf16.msra.mxu0 %v7590
        %11436 = vmatprep.subr.bf16.mxu0 %v7587
        %11437 = vmatpush1.bf16.msra.mxu0 %v7586
        %11438 = vmatprep.subr.bf16.mxu0 %v7583
        %11439 = vmatpush1.bf16.msra.mxu0 %v7582
        %11440 = vmatprep.subr.bf16.mxu0 %v7579
        %11441 = vmatpush1.bf16.msra.mxu0 %v7578
        %11442 = vmatprep.subr.bf16.mxu0 %v7575
        %11443 = vmatpush1.bf16.msra.mxu0 %v7574
        %11444 = vmatprep.subr.bf16.mxu0 %v7571
        %11445 = vmatpush1.bf16.msra.mxu0 %v7570
        %11446 = vmatprep.subr.bf16.mxu0 %v7631
        %11447 = vmatpush2.bf16.msra.mxu0 %v7630
        %11448 = vmatprep.subr.bf16.mxu0 %v7627
        %11449 = vmatpush2.bf16.msra.mxu0 %v7626
        %11450 = vmatprep.subr.bf16.mxu0 %v7623
        %11451 = vmatpush2.bf16.msra.mxu0 %v7622
        %11452 = vmatprep.subr.bf16.mxu0 %v7619
        %11453 = vmatpush2.bf16.msra.mxu0 %v7618
        %11454 = vmatprep.subr.bf16.mxu0 %v7615
        %11455 = vmatpush2.bf16.msra.mxu0 %v7614
        %11456 = vmatprep.subr.bf16.mxu0 %v7611
        %11457 = vmatpush2.bf16.msra.mxu0 %v7610
        %11458 = vmatprep.subr.bf16.mxu0 %v7607
        %11459 = vmatpush2.bf16.msra.mxu0 %v7606
        %11460 = vmatprep.subr.bf16.mxu0 %v7603
        %11461 = vmatpush2.bf16.msra.mxu0 %v7602
        %11462 = vmatprep.mubr.bf16.mxu0 %v1961
        %11463 = vmatmul.mubr.bf16.gmra.mxu0 %v1960
        %v11464 = vpop.f32.mrf.mxu0
        %v11465 = vadd.f32 %v11424, %v11464
        %v11466 = vpop.f32.mrf.mxu0
        %v11467 = vadd.f32 %v11426, %v11466
        %v11468 = vpop.f32.mrf.mxu0
        %v11469 = vpop.f32.mrf.mxu0
        %11470 = vdwg.mxu0
        %11471 = vmatprep.subr.bf16.mxu0 %v7663
        %11472 = vmatpush1.bf16.msra.mxu0 %v7662
        %11473 = vmatprep.subr.bf16.mxu0 %v7659
        %11474 = vmatpush1.bf16.msra.mxu0 %v7658
        %11475 = vmatprep.subr.bf16.mxu0 %v7655
        %11476 = vmatpush1.bf16.msra.mxu0 %v7654
        %11477 = vmatprep.subr.bf16.mxu0 %v7651
        %11478 = vmatpush1.bf16.msra.mxu0 %v7650
        %11479 = vmatprep.subr.bf16.mxu0 %v7647
        %11480 = vmatpush1.bf16.msra.mxu0 %v7646
        %11481 = vmatprep.subr.bf16.mxu0 %v7643
        %11482 = vmatpush1.bf16.msra.mxu0 %v7642
        %11483 = vmatprep.subr.bf16.mxu0 %v7639
        %11484 = vmatpush1.bf16.msra.mxu0 %v7638
        %11485 = vmatprep.subr.bf16.mxu0 %v7635
        %11486 = vmatpush1.bf16.msra.mxu0 %v7634
        %11487 = vmatprep.subr.bf16.mxu0 %v7695
        %11488 = vmatpush2.bf16.msra.mxu0 %v7694
        %11489 = vmatprep.subr.bf16.mxu0 %v7691
        %11490 = vmatpush2.bf16.msra.mxu0 %v7690
        %11491 = vmatprep.subr.bf16.mxu0 %v7687
        %11492 = vmatpush2.bf16.msra.mxu0 %v7686
        %11493 = vmatprep.subr.bf16.mxu0 %v7683
        %11494 = vmatpush2.bf16.msra.mxu0 %v7682
        %11495 = vmatprep.subr.bf16.mxu0 %v7679
        %11496 = vmatpush2.bf16.msra.mxu0 %v7678
        %11497 = vmatprep.subr.bf16.mxu0 %v7675
        %11498 = vmatpush2.bf16.msra.mxu0 %v7674
        %11499 = vmatprep.subr.bf16.mxu0 %v7671
        %11500 = vmatpush2.bf16.msra.mxu0 %v7670
        %11501 = vmatprep.subr.bf16.mxu0 %v7667
        %11502 = vmatpush2.bf16.msra.mxu0 %v7666
        %11503 = vmatprep.mubr.bf16.mxu0 %v1963
        %11504 = vmatmul.mubr.bf16.gmra.mxu0 %v1962
        %v11505 = vpop.f32.mrf.mxu0
        %v11506 = vadd.f32 %v11465, %v11505
        %v11507 = vpop.f32.mrf.mxu0
        %v11508 = vadd.f32 %v11467, %v11507
        %v11509 = vpop.f32.mrf.mxu0
        %v11510 = vpop.f32.mrf.mxu0
        %11511 = vdwg.mxu0
        %11512 = vmatprep.subr.bf16.mxu0 %v7727
        %11513 = vmatpush1.bf16.msra.mxu0 %v7726
        %11514 = vmatprep.subr.bf16.mxu0 %v7723
        %11515 = vmatpush1.bf16.msra.mxu0 %v7722
        %11516 = vmatprep.subr.bf16.mxu0 %v7719
        %11517 = vmatpush1.bf16.msra.mxu0 %v7718
        %11518 = vmatprep.subr.bf16.mxu0 %v7715
        %11519 = vmatpush1.bf16.msra.mxu0 %v7714
        %11520 = vmatprep.subr.bf16.mxu0 %v7711
        %11521 = vmatpush1.bf16.msra.mxu0 %v7710
        %11522 = vmatprep.subr.bf16.mxu0 %v7707
        %11523 = vmatpush1.bf16.msra.mxu0 %v7706
        %11524 = vmatprep.subr.bf16.mxu0 %v7703
        %11525 = vmatpush1.bf16.msra.mxu0 %v7702
        %11526 = vmatprep.subr.bf16.mxu0 %v7699
        %11527 = vmatpush1.bf16.msra.mxu0 %v7698
        %11528 = vmatprep.subr.bf16.mxu0 %v7759
        %11529 = vmatpush2.bf16.msra.mxu0 %v7758
        %11530 = vmatprep.subr.bf16.mxu0 %v7755
        %11531 = vmatpush2.bf16.msra.mxu0 %v7754
        %11532 = vmatprep.subr.bf16.mxu0 %v7751
        %11533 = vmatpush2.bf16.msra.mxu0 %v7750
        %11534 = vmatprep.subr.bf16.mxu0 %v7747
        %11535 = vmatpush2.bf16.msra.mxu0 %v7746
        %11536 = vmatprep.subr.bf16.mxu0 %v7743
        %11537 = vmatpush2.bf16.msra.mxu0 %v7742
        %11538 = vmatprep.subr.bf16.mxu0 %v7739
        %11539 = vmatpush2.bf16.msra.mxu0 %v7738
        %11540 = vmatprep.subr.bf16.mxu0 %v7735
        %11541 = vmatpush2.bf16.msra.mxu0 %v7734
        %11542 = vmatprep.subr.bf16.mxu0 %v7731
        %11543 = vmatpush2.bf16.msra.mxu0 %v7730
        %11544 = vmatprep.mubr.bf16.mxu0 %v1965
        %11545 = vmatmul.mubr.bf16.gmra.mxu0 %v1964
        %v11546 = vpop.f32.mrf.mxu0
        %v11547 = vadd.f32 %v11506, %v11546
        %v11548 = vpop.f32.mrf.mxu0
        %v11549 = vadd.f32 %v11508, %v11548
        %v11550 = vpop.f32.mrf.mxu0
        %v11551 = vpop.f32.mrf.mxu0
        %11552 = vdwg.mxu0
        %11553 = vmatprep.subr.bf16.mxu0 %v7791
        %11554 = vmatpush1.bf16.msra.mxu0 %v7790
        %11555 = vmatprep.subr.bf16.mxu0 %v7787
        %11556 = vmatpush1.bf16.msra.mxu0 %v7786
        %11557 = vmatprep.subr.bf16.mxu0 %v7783
        %11558 = vmatpush1.bf16.msra.mxu0 %v7782
        %11559 = vmatprep.subr.bf16.mxu0 %v7779
        %11560 = vmatpush1.bf16.msra.mxu0 %v7778
        %11561 = vmatprep.subr.bf16.mxu0 %v7775
        %11562 = vmatpush1.bf16.msra.mxu0 %v7774
        %11563 = vmatprep.subr.bf16.mxu0 %v7771
        %11564 = vmatpush1.bf16.msra.mxu0 %v7770
        %11565 = vmatprep.subr.bf16.mxu0 %v7767
        %11566 = vmatpush1.bf16.msra.mxu0 %v7766
        %11567 = vmatprep.subr.bf16.mxu0 %v7763
        %11568 = vmatpush1.bf16.msra.mxu0 %v7762
        %11569 = vmatprep.subr.bf16.mxu0 %v7823
        %11570 = vmatpush2.bf16.msra.mxu0 %v7822
        %11571 = vmatprep.subr.bf16.mxu0 %v7819
        %11572 = vmatpush2.bf16.msra.mxu0 %v7818
        %11573 = vmatprep.subr.bf16.mxu0 %v7815
        %11574 = vmatpush2.bf16.msra.mxu0 %v7814
        %11575 = vmatprep.subr.bf16.mxu0 %v7811
        %11576 = vmatpush2.bf16.msra.mxu0 %v7810
        %11577 = vmatprep.subr.bf16.mxu0 %v7807
        %11578 = vmatpush2.bf16.msra.mxu0 %v7806
        %11579 = vmatprep.subr.bf16.mxu0 %v7803
        %11580 = vmatpush2.bf16.msra.mxu0 %v7802
        %11581 = vmatprep.subr.bf16.mxu0 %v7799
        %11582 = vmatpush2.bf16.msra.mxu0 %v7798
        %11583 = vmatprep.subr.bf16.mxu0 %v7795
        %11584 = vmatpush2.bf16.msra.mxu0 %v7794
        %11585 = vmatprep.mubr.bf16.mxu0 %v1967
        %11586 = vmatmul.mubr.bf16.gmra.mxu0 %v1966
        %v11587 = vpop.f32.mrf.mxu0
        %v11588 = vadd.f32 %v11547, %v11587
        %v11589 = vpop.f32.mrf.mxu0
        %v11590 = vadd.f32 %v11549, %v11589
        %v11591 = vpop.f32.mrf.mxu0
        %v11592 = vpop.f32.mrf.mxu0
        %11593 = vdwg.mxu0
        %11594 = vmatprep.subr.bf16.mxu0 %v7855
        %11595 = vmatpush1.bf16.msra.mxu0 %v7854
        %11596 = vmatprep.subr.bf16.mxu0 %v7851
        %11597 = vmatpush1.bf16.msra.mxu0 %v7850
        %11598 = vmatprep.subr.bf16.mxu0 %v7847
        %11599 = vmatpush1.bf16.msra.mxu0 %v7846
        %11600 = vmatprep.subr.bf16.mxu0 %v7843
        %11601 = vmatpush1.bf16.msra.mxu0 %v7842
        %11602 = vmatprep.subr.bf16.mxu0 %v7839
        %11603 = vmatpush1.bf16.msra.mxu0 %v7838
        %11604 = vmatprep.subr.bf16.mxu0 %v7835
        %11605 = vmatpush1.bf16.msra.mxu0 %v7834
        %11606 = vmatprep.subr.bf16.mxu0 %v7831
        %11607 = vmatpush1.bf16.msra.mxu0 %v7830
        %11608 = vmatprep.subr.bf16.mxu0 %v7827
        %11609 = vmatpush1.bf16.msra.mxu0 %v7826
        %11610 = vmatprep.subr.bf16.mxu0 %v7887
        %11611 = vmatpush2.bf16.msra.mxu0 %v7886
        %11612 = vmatprep.subr.bf16.mxu0 %v7883
        %11613 = vmatpush2.bf16.msra.mxu0 %v7882
        %11614 = vmatprep.subr.bf16.mxu0 %v7879
        %11615 = vmatpush2.bf16.msra.mxu0 %v7878
        %11616 = vmatprep.subr.bf16.mxu0 %v7875
        %11617 = vmatpush2.bf16.msra.mxu0 %v7874
        %11618 = vmatprep.subr.bf16.mxu0 %v7871
        %11619 = vmatpush2.bf16.msra.mxu0 %v7870
        %11620 = vmatprep.subr.bf16.mxu0 %v7867
        %11621 = vmatpush2.bf16.msra.mxu0 %v7866
        %11622 = vmatprep.subr.bf16.mxu0 %v7863
        %11623 = vmatpush2.bf16.msra.mxu0 %v7862
        %11624 = vmatprep.subr.bf16.mxu0 %v7859
        %11625 = vmatpush2.bf16.msra.mxu0 %v7858
        %11626 = vmatprep.mubr.bf16.mxu0 %v1969
        %11627 = vmatmul.mubr.bf16.gmra.mxu0 %v1968
        %v11628 = vpop.f32.mrf.mxu0
        %v11629 = vadd.f32 %v11588, %v11628
        %v11630 = vpop.f32.mrf.mxu0
        %v11631 = vadd.f32 %v11590, %v11630
        %v11632 = vpop.f32.mrf.mxu0
        %v11633 = vpop.f32.mrf.mxu0
        %11634 = vdwg.mxu0
        %11635 = vmatprep.subr.bf16.mxu0 %v7919
        %11636 = vmatpush1.bf16.msra.mxu0 %v7918
        %11637 = vmatprep.subr.bf16.mxu0 %v7915
        %11638 = vmatpush1.bf16.msra.mxu0 %v7914
        %11639 = vmatprep.subr.bf16.mxu0 %v7911
        %11640 = vmatpush1.bf16.msra.mxu0 %v7910
        %11641 = vmatprep.subr.bf16.mxu0 %v7907
        %11642 = vmatpush1.bf16.msra.mxu0 %v7906
        %11643 = vmatprep.subr.bf16.mxu0 %v7903
        %11644 = vmatpush1.bf16.msra.mxu0 %v7902
        %11645 = vmatprep.subr.bf16.mxu0 %v7899
        %11646 = vmatpush1.bf16.msra.mxu0 %v7898
        %11647 = vmatprep.subr.bf16.mxu0 %v7895
        %11648 = vmatpush1.bf16.msra.mxu0 %v7894
        %11649 = vmatprep.subr.bf16.mxu0 %v7891
        %11650 = vmatpush1.bf16.msra.mxu0 %v7890
        %11651 = vmatprep.subr.bf16.mxu0 %v7951
        %11652 = vmatpush2.bf16.msra.mxu0 %v7950
        %11653 = vmatprep.subr.bf16.mxu0 %v7947
        %11654 = vmatpush2.bf16.msra.mxu0 %v7946
        %11655 = vmatprep.subr.bf16.mxu0 %v7943
        %11656 = vmatpush2.bf16.msra.mxu0 %v7942
        %11657 = vmatprep.subr.bf16.mxu0 %v7939
        %11658 = vmatpush2.bf16.msra.mxu0 %v7938
        %11659 = vmatprep.subr.bf16.mxu0 %v7935
        %11660 = vmatpush2.bf16.msra.mxu0 %v7934
        %11661 = vmatprep.subr.bf16.mxu0 %v7931
        %11662 = vmatpush2.bf16.msra.mxu0 %v7930
        %11663 = vmatprep.subr.bf16.mxu0 %v7927
        %11664 = vmatpush2.bf16.msra.mxu0 %v7926
        %11665 = vmatprep.subr.bf16.mxu0 %v7923
        %11666 = vmatpush2.bf16.msra.mxu0 %v7922
        %11667 = vmatprep.mubr.bf16.mxu0 %v1971
        %11668 = vmatmul.mubr.bf16.gmra.mxu0 %v1970
        %v11669 = vpop.f32.mrf.mxu0
        %v11670 = vadd.f32 %v11629, %v11669
        %v11671 = vpop.f32.mrf.mxu0
        %v11672 = vadd.f32 %v11631, %v11671
        %v11673 = vpop.f32.mrf.mxu0
        %v11674 = vpop.f32.mrf.mxu0
        %11675 = vdwg.mxu0
        %11676 = vmatprep.subr.bf16.mxu0 %v7983
        %11677 = vmatpush1.bf16.msra.mxu0 %v7982
        %11678 = vmatprep.subr.bf16.mxu0 %v7979
        %11679 = vmatpush1.bf16.msra.mxu0 %v7978
        %11680 = vmatprep.subr.bf16.mxu0 %v7975
        %11681 = vmatpush1.bf16.msra.mxu0 %v7974
        %11682 = vmatprep.subr.bf16.mxu0 %v7971
        %11683 = vmatpush1.bf16.msra.mxu0 %v7970
        %11684 = vmatprep.subr.bf16.mxu0 %v7967
        %11685 = vmatpush1.bf16.msra.mxu0 %v7966
        %11686 = vmatprep.subr.bf16.mxu0 %v7963
        %11687 = vmatpush1.bf16.msra.mxu0 %v7962
        %11688 = vmatprep.subr.bf16.mxu0 %v7959
        %11689 = vmatpush1.bf16.msra.mxu0 %v7958
        %11690 = vmatprep.subr.bf16.mxu0 %v7955
        %11691 = vmatpush1.bf16.msra.mxu0 %v7954
        %11692 = vmatprep.subr.bf16.mxu0 %v8015
        %11693 = vmatpush2.bf16.msra.mxu0 %v8014
        %11694 = vmatprep.subr.bf16.mxu0 %v8011
        %11695 = vmatpush2.bf16.msra.mxu0 %v8010
        %11696 = vmatprep.subr.bf16.mxu0 %v8007
        %11697 = vmatpush2.bf16.msra.mxu0 %v8006
        %11698 = vmatprep.subr.bf16.mxu0 %v8003
        %11699 = vmatpush2.bf16.msra.mxu0 %v8002
        %11700 = vmatprep.subr.bf16.mxu0 %v7999
        %11701 = vmatpush2.bf16.msra.mxu0 %v7998
        %11702 = vmatprep.subr.bf16.mxu0 %v7995
        %11703 = vmatpush2.bf16.msra.mxu0 %v7994
        %11704 = vmatprep.subr.bf16.mxu0 %v7991
        %11705 = vmatpush2.bf16.msra.mxu0 %v7990
        %11706 = vmatprep.subr.bf16.mxu0 %v7987
        %11707 = vmatpush2.bf16.msra.mxu0 %v7986
        %11708 = vmatprep.mubr.bf16.mxu0 %v1973
        %11709 = vmatmul.mubr.bf16.gmra.mxu0 %v1972
        %v11710 = vpop.f32.mrf.mxu0
        %v11711 = vadd.f32 %v11670, %v11710
        %v11712 = vpop.f32.mrf.mxu0
        %v11713 = vadd.f32 %v11672, %v11712
        %v11714 = vpop.f32.mrf.mxu0
        %v11715 = vpop.f32.mrf.mxu0
        %11716 = vdwg.mxu0
        %11717 = vmatprep.subr.bf16.mxu0 %v8047
        %11718 = vmatpush1.bf16.msra.mxu0 %v8046
        %11719 = vmatprep.subr.bf16.mxu0 %v8043
        %11720 = vmatpush1.bf16.msra.mxu0 %v8042
        %11721 = vmatprep.subr.bf16.mxu0 %v8039
        %11722 = vmatpush1.bf16.msra.mxu0 %v8038
        %11723 = vmatprep.subr.bf16.mxu0 %v8035
        %11724 = vmatpush1.bf16.msra.mxu0 %v8034
        %11725 = vmatprep.subr.bf16.mxu0 %v8031
        %11726 = vmatpush1.bf16.msra.mxu0 %v8030
        %11727 = vmatprep.subr.bf16.mxu0 %v8027
        %11728 = vmatpush1.bf16.msra.mxu0 %v8026
        %11729 = vmatprep.subr.bf16.mxu0 %v8023
        %11730 = vmatpush1.bf16.msra.mxu0 %v8022
        %11731 = vmatprep.subr.bf16.mxu0 %v8019
        %11732 = vmatpush1.bf16.msra.mxu0 %v8018
        %11733 = vmatprep.subr.bf16.mxu0 %v8079
        %11734 = vmatpush2.bf16.msra.mxu0 %v8078
        %11735 = vmatprep.subr.bf16.mxu0 %v8075
        %11736 = vmatpush2.bf16.msra.mxu0 %v8074
        %11737 = vmatprep.subr.bf16.mxu0 %v8071
        %11738 = vmatpush2.bf16.msra.mxu0 %v8070
        %11739 = vmatprep.subr.bf16.mxu0 %v8067
        %11740 = vmatpush2.bf16.msra.mxu0 %v8066
        %11741 = vmatprep.subr.bf16.mxu0 %v8063
        %11742 = vmatpush2.bf16.msra.mxu0 %v8062
        %11743 = vmatprep.subr.bf16.mxu0 %v8059
        %11744 = vmatpush2.bf16.msra.mxu0 %v8058
        %11745 = vmatprep.subr.bf16.mxu0 %v8055
        %11746 = vmatpush2.bf16.msra.mxu0 %v8054
        %11747 = vmatprep.subr.bf16.mxu0 %v8051
        %11748 = vmatpush2.bf16.msra.mxu0 %v8050
        %11749 = vmatprep.mubr.bf16.mxu0 %v1975
        %11750 = vmatmul.mubr.bf16.gmra.mxu0 %v1974
        %v11751 = vpop.f32.mrf.mxu0
        %v11752 = vadd.f32 %v11711, %v11751
        %v11753 = vpop.f32.mrf.mxu0
        %v11754 = vadd.f32 %v11713, %v11753
        %v11755 = vpop.f32.mrf.mxu0
        %v11756 = vpop.f32.mrf.mxu0
        %11757 = vdwg.mxu0
        %11758 = vmatprep.subr.bf16.mxu0 %v8111
        %11759 = vmatpush1.bf16.msra.mxu0 %v8110
        %11760 = vmatprep.subr.bf16.mxu0 %v8107
        %11761 = vmatpush1.bf16.msra.mxu0 %v8106
        %11762 = vmatprep.subr.bf16.mxu0 %v8103
        %11763 = vmatpush1.bf16.msra.mxu0 %v8102
        %11764 = vmatprep.subr.bf16.mxu0 %v8099
        %11765 = vmatpush1.bf16.msra.mxu0 %v8098
        %11766 = vmatprep.subr.bf16.mxu0 %v8095
        %11767 = vmatpush1.bf16.msra.mxu0 %v8094
        %11768 = vmatprep.subr.bf16.mxu0 %v8091
        %11769 = vmatpush1.bf16.msra.mxu0 %v8090
        %11770 = vmatprep.subr.bf16.mxu0 %v8087
        %11771 = vmatpush1.bf16.msra.mxu0 %v8086
        %11772 = vmatprep.subr.bf16.mxu0 %v8083
        %11773 = vmatpush1.bf16.msra.mxu0 %v8082
        %11774 = vmatprep.subr.bf16.mxu0 %v8143
        %11775 = vmatpush2.bf16.msra.mxu0 %v8142
        %11776 = vmatprep.subr.bf16.mxu0 %v8139
        %11777 = vmatpush2.bf16.msra.mxu0 %v8138
        %11778 = vmatprep.subr.bf16.mxu0 %v8135
        %11779 = vmatpush2.bf16.msra.mxu0 %v8134
        %11780 = vmatprep.subr.bf16.mxu0 %v8131
        %11781 = vmatpush2.bf16.msra.mxu0 %v8130
        %11782 = vmatprep.subr.bf16.mxu0 %v8127
        %11783 = vmatpush2.bf16.msra.mxu0 %v8126
        %11784 = vmatprep.subr.bf16.mxu0 %v8123
        %11785 = vmatpush2.bf16.msra.mxu0 %v8122
        %11786 = vmatprep.subr.bf16.mxu0 %v8119
        %11787 = vmatpush2.bf16.msra.mxu0 %v8118
        %11788 = vmatprep.subr.bf16.mxu0 %v8115
        %11789 = vmatpush2.bf16.msra.mxu0 %v8114
        %11790 = vmatprep.mubr.bf16.mxu0 %v1977
        %11791 = vmatmul.mubr.bf16.gmra.mxu0 %v1976
        %v11792 = vpop.f32.mrf.mxu0
        %v11793 = vadd.f32 %v11752, %v11792
        %v11794 = vpop.f32.mrf.mxu0
        %v11795 = vadd.f32 %v11754, %v11794
        %v11796 = vpop.f32.mrf.mxu0
        %v11797 = vpop.f32.mrf.mxu0
        %11798 = vdwg.mxu0
        %11799 = vmatprep.subr.bf16.mxu0 %v8175
        %11800 = vmatpush1.bf16.msra.mxu0 %v8174
        %11801 = vmatprep.subr.bf16.mxu0 %v8171
        %11802 = vmatpush1.bf16.msra.mxu0 %v8170
        %11803 = vmatprep.subr.bf16.mxu0 %v8167
        %11804 = vmatpush1.bf16.msra.mxu0 %v8166
        %11805 = vmatprep.subr.bf16.mxu0 %v8163
        %11806 = vmatpush1.bf16.msra.mxu0 %v8162
        %11807 = vmatprep.subr.bf16.mxu0 %v8159
        %11808 = vmatpush1.bf16.msra.mxu0 %v8158
        %11809 = vmatprep.subr.bf16.mxu0 %v8155
        %11810 = vmatpush1.bf16.msra.mxu0 %v8154
        %11811 = vmatprep.subr.bf16.mxu0 %v8151
        %11812 = vmatpush1.bf16.msra.mxu0 %v8150
        %11813 = vmatprep.subr.bf16.mxu0 %v8147
        %11814 = vmatpush1.bf16.msra.mxu0 %v8146
        %11815 = vmatprep.subr.bf16.mxu0 %v8207
        %11816 = vmatpush2.bf16.msra.mxu0 %v8206
        %11817 = vmatprep.subr.bf16.mxu0 %v8203
        %11818 = vmatpush2.bf16.msra.mxu0 %v8202
        %11819 = vmatprep.subr.bf16.mxu0 %v8199
        %11820 = vmatpush2.bf16.msra.mxu0 %v8198
        %11821 = vmatprep.subr.bf16.mxu0 %v8195
        %11822 = vmatpush2.bf16.msra.mxu0 %v8194
        %11823 = vmatprep.subr.bf16.mxu0 %v8191
        %11824 = vmatpush2.bf16.msra.mxu0 %v8190
        %11825 = vmatprep.subr.bf16.mxu0 %v8187
        %11826 = vmatpush2.bf16.msra.mxu0 %v8186
        %11827 = vmatprep.subr.bf16.mxu0 %v8183
        %11828 = vmatpush2.bf16.msra.mxu0 %v8182
        %11829 = vmatprep.subr.bf16.mxu0 %v8179
        %11830 = vmatpush2.bf16.msra.mxu0 %v8178
        %11831 = vmatprep.mubr.bf16.mxu0 %v1979
        %11832 = vmatmul.mubr.bf16.gmra.mxu0 %v1978
        %v11833 = vpop.f32.mrf.mxu0
        %v11834 = vadd.f32 %v11793, %v11833
        %v11835 = vpop.f32.mrf.mxu0
        %v11836 = vadd.f32 %v11795, %v11835
        %v11837 = vpop.f32.mrf.mxu0
        %v11838 = vpop.f32.mrf.mxu0
        %11839 = vdwg.mxu0
        %11840 = vmatprep.subr.bf16.mxu0 %v8239
        %11841 = vmatpush1.bf16.msra.mxu0 %v8238
        %11842 = vmatprep.subr.bf16.mxu0 %v8235
        %11843 = vmatpush1.bf16.msra.mxu0 %v8234
        %11844 = vmatprep.subr.bf16.mxu0 %v8231
        %11845 = vmatpush1.bf16.msra.mxu0 %v8230
        %11846 = vmatprep.subr.bf16.mxu0 %v8227
        %11847 = vmatpush1.bf16.msra.mxu0 %v8226
        %11848 = vmatprep.subr.bf16.mxu0 %v8223
        %11849 = vmatpush1.bf16.msra.mxu0 %v8222
        %11850 = vmatprep.subr.bf16.mxu0 %v8219
        %11851 = vmatpush1.bf16.msra.mxu0 %v8218
        %11852 = vmatprep.subr.bf16.mxu0 %v8215
        %11853 = vmatpush1.bf16.msra.mxu0 %v8214
        %11854 = vmatprep.subr.bf16.mxu0 %v8211
        %11855 = vmatpush1.bf16.msra.mxu0 %v8210
        %11856 = vmatprep.subr.bf16.mxu0 %v8271
        %11857 = vmatpush2.bf16.msra.mxu0 %v8270
        %11858 = vmatprep.subr.bf16.mxu0 %v8267
        %11859 = vmatpush2.bf16.msra.mxu0 %v8266
        %11860 = vmatprep.subr.bf16.mxu0 %v8263
        %11861 = vmatpush2.bf16.msra.mxu0 %v8262
        %11862 = vmatprep.subr.bf16.mxu0 %v8259
        %11863 = vmatpush2.bf16.msra.mxu0 %v8258
        %11864 = vmatprep.subr.bf16.mxu0 %v8255
        %11865 = vmatpush2.bf16.msra.mxu0 %v8254
        %11866 = vmatprep.subr.bf16.mxu0 %v8251
        %11867 = vmatpush2.bf16.msra.mxu0 %v8250
        %11868 = vmatprep.subr.bf16.mxu0 %v8247
        %11869 = vmatpush2.bf16.msra.mxu0 %v8246
        %11870 = vmatprep.subr.bf16.mxu0 %v8243
        %11871 = vmatpush2.bf16.msra.mxu0 %v8242
        %11872 = vmatprep.mubr.bf16.mxu0 %v1981
        %11873 = vmatmul.mubr.bf16.gmra.mxu0 %v1980
        %v11874 = vpop.f32.mrf.mxu0
        %v11875 = vadd.f32 %v11834, %v11874
        %v11876 = vpop.f32.mrf.mxu0
        %v11877 = vadd.f32 %v11836, %v11876
        %v11878 = vpop.f32.mrf.mxu0
        %v11879 = vpop.f32.mrf.mxu0
        %11880 = vdwg.mxu0
        %11881 = vmatprep.subr.bf16.mxu0 %v8303
        %11882 = vmatpush1.bf16.msra.mxu0 %v8302
        %11883 = vmatprep.subr.bf16.mxu0 %v8299
        %11884 = vmatpush1.bf16.msra.mxu0 %v8298
        %11885 = vmatprep.subr.bf16.mxu0 %v8295
        %11886 = vmatpush1.bf16.msra.mxu0 %v8294
        %11887 = vmatprep.subr.bf16.mxu0 %v8291
        %11888 = vmatpush1.bf16.msra.mxu0 %v8290
        %11889 = vmatprep.subr.bf16.mxu0 %v8287
        %11890 = vmatpush1.bf16.msra.mxu0 %v8286
        %11891 = vmatprep.subr.bf16.mxu0 %v8283
        %11892 = vmatpush1.bf16.msra.mxu0 %v8282
        %11893 = vmatprep.subr.bf16.mxu0 %v8279
        %11894 = vmatpush1.bf16.msra.mxu0 %v8278
        %11895 = vmatprep.subr.bf16.mxu0 %v8275
        %11896 = vmatpush1.bf16.msra.mxu0 %v8274
        %11897 = vmatprep.subr.bf16.mxu0 0
        %11898 = vmatpush2.bf16.msra.mxu0 0
        %11899 = vmatprep.subr.bf16.mxu0 0
        %11900 = vmatpush2.bf16.msra.mxu0 0
        %11901 = vmatprep.subr.bf16.mxu0 0
        %11902 = vmatpush2.bf16.msra.mxu0 0
        %11903 = vmatprep.subr.bf16.mxu0 0
        %11904 = vmatpush2.bf16.msra.mxu0 0
        %11905 = vmatprep.subr.bf16.mxu0 0
        %11906 = vmatpush2.bf16.msra.mxu0 0
        %11907 = vmatprep.subr.bf16.mxu0 0
        %11908 = vmatpush2.bf16.msra.mxu0 0
        %11909 = vmatprep.subr.bf16.mxu0 0
        %11910 = vmatpush2.bf16.msra.mxu0 0
        %11911 = vmatprep.subr.bf16.mxu0 0
        %11912 = vmatpush2.bf16.msra.mxu0 0
        %11913 = vmatprep.mubr.bf16.mxu0 0
        %11914 = vmatmul.mubr.bf16.gmra.mxu0 %v1982
        %v11915 = vpop.f32.mrf.mxu0
        %v11916 = vadd.f32 %v11875, %v11915
        %v11917 = vpop.f32.mrf.mxu0
        %v11918 = vadd.f32 %v11877, %v11917
        %v11919 = vpop.f32.mrf.mxu0
        %v11920 = vpop.f32.mrf.mxu0
        %11921 = vdwg.mxu0
        %v11922 = vadd.f32 %v263, %v10891
        %v11923 = vadd.f32 %v264, %v10893
        %v11924 = vadd.f32 %v265, %v11916
        %v11925 = vadd.f32 %v266, %v11918
        %11926 = vst [vmem:[#allocation2] sm:$0xff] %v11922
        %11927 = vst [vmem:[#allocation2 + $0x8] sm:$0xff] %v11923
        %11928 = vst [vmem:[#allocation2 + $0x10] sm:$0xff] %v11924
        %11929 = vst [vmem:[#allocation2 + $0x18] sm:$0xff] %v11925
        %p11930 = scmp.eq.s32.totalorder %s23, 3
        // Predicated region
        $region45: #{locality_preserved_encoder.1} parent=31 // pred_check
          %p11931 = pneg %p11930
        $region46: #{locality_preserved_encoder.1} parent=31 // pred_check_branch
          %11933 = sbr.rel (%p11931) target = $region48
        $region47: #{locality_preserved_encoder.1} parent=31 // pred_region
          %v11934 = vld [vmem:[#allocation2] sm:$0xff]
          %v11935 = vld [vmem:[#allocation2 + $0x8] sm:$0xff]
          %v11936 = vld [vmem:[#allocation2 + $0x10] sm:$0xff]
          %v11937 = vld [vmem:[#allocation2 + $0x18] sm:$0xff]
          %v11938 = vld [vmem:[#allocation5] sm:$0xf]
          %v11940 = vlaneseq
          %v11941 = vshrl.u32 %v11940, 7
          %v11942 = vsub.s32 0, %v11941
          %v11943 = vrot.slane %v11938, %v11942
          %v11944 = vlaneseq
          %v11945 = vshrl.u32 %v11944, 7
          %v11946 = vsub.s32 1, %v11945
          %v11947 = vrot.slane %v11938, %v11946
          %v11948 = vlaneseq
          %v11949 = vshrl.u32 %v11948, 7
          %v11950 = vsub.s32 2, %v11949
          %v11951 = vrot.slane %v11938, %v11950
          %v11952 = vlaneseq
          %v11953 = vshrl.u32 %v11952, 7
          %v11954 = vsub.s32 3, %v11953
          %v11955 = vrot.slane %v11938, %v11954
          %v11960 = vadd.f32 %v11934, %v11943
          %v11961 = vadd.f32 %v11935, %v11947
          %v11962 = vadd.f32 %v11936, %v11951
          %v11963 = vadd.f32 %v11937, %v11955
          %v11964 = vmax.f32 %v11960, 0.0
          %v11965 = vmax.f32 %v11961, 0.0
          %v11966 = vmax.f32 %v11962, 0.0
          %v11967 = vmax.f32 %v11963, 0.0
          %11968 = vst [vmem:[%s253] sm:$0xff] %v11964
          %11969 = vst [vmem:[%s253 + $0x8] sm:$0xff] %v11965
          %11970 = vst [vmem:[%s253 + $0x10] sm:$0xff] %v11966
          %11971 = vst [vmem:[%s253 + $0x18] sm:$0xff] %v11967
        $region48: #{locality_preserved_encoder.1} parent=31 // pred_fallthru
          _
        %p11972 = scmp.lt.s32.totalorder %s22, 0
        %s11973 = scalar_select %p11972, %s22, 0
        %s11974 = smul.addr %s11973, 4
        %s11975 = smul.addr %s11974, 8
        %s11976 = scalar_lea.vmem %s3, %s11975
        // Predicated region
        $region49: #{locality_preserved_encoder.1} parent=31 // pred_check
          %p11977 = pneg %p123
        $region50: #{locality_preserved_encoder.1} parent=31 // pred_check_branch
          %11979 = sbr.rel (%p11977) target = $region52
        $region51: #{locality_preserved_encoder.1} parent=31 // pred_region
          _
        $region52: #{locality_preserved_encoder.1} parent=31 // pred_fallthru
          _
        // Predicated region
        $region53: #{locality_preserved_encoder.1} parent=31 // pred_check
          %p11980 = pneg %p123
        $region54: #{locality_preserved_encoder.1} parent=31 // pred_check_branch
          %11982 = sbr.rel (%p11980) target = $region56
        $region55: #{locality_preserved_encoder.1} parent=31 // pred_region
          %p11983 = scmp.lt.s32.totalorder %s22, 0
          %s11984 = scalar_select %p11983, %s22, 0
          %s11985 = smul.addr %s11984, 4
          %s11986 = smul.addr %s11985, 8
          %s11987 = scalar_lea.vmem %s3, %s11986
        $region56: #{locality_preserved_encoder.1} parent=31 // pred_fallthru
          _
      $region32: #{locality_preserved_encoder.1} parent=5 // pred_fallthru
        _
      %p11988 = scmp.le.s32.totalorder 2, %s13
      // Predicated region
      $region57: #{locality_preserved_encoder.1} parent=5 // pred_check
        %p11989 = pneg %p11988
      $region58: #{locality_preserved_encoder.1} parent=5 // pred_check_branch
        %11991 = sbr.rel (%p11989) target = $region60
      $region59: #{locality_preserved_encoder.1} parent=5 // pred_region
        %s11992 = ssub.s32 %s13, 2
      $region60: #{locality_preserved_encoder.1} parent=5 // pred_fallthru
        _
    $region6: #{locality_preserved_encoder.1} parent=1 // loop_footer
      %s17 = sadd.s32 1, %s13
    $region7: #{locality_preserved_encoder.1} parent=1 // loop_footer_branch
      %12 = sbr.rel target = $region3
    $region8: #{locality_preserved_encoder.1} parent=1 // loop_exit
      _
    %11993 = vsyncpa [#allocation4], 1
    %s11994 = scalar_lea.sflag [#allocation4], 1
    %11995 = vsyncpa %s11994, 1
    %11996 = vsyncpa [#allocation6], 1

</llo_original>
